<compile_context>
chip_gen: v6e
topology: v6e:2x2x1
jax: 0.10.0
libtpu: 0.0.40
codegen_flags: <defaults>
</compile_context>

<pallas_src>
import functools
import math

import jax
import jax.numpy as jnp
from jax.experimental import pallas as pl
from jax.experimental.pallas import tpu as pltpu

NORM_EPS = 1e-6
COL_TILE_MAX = 512          # output-column / MLP-hidden tile for projections


# --------------------------------------------------------------------------- #
# generation-aware VMEM budget & tile sizes
# --------------------------------------------------------------------------- #
def _tpu_vmem_capacity_bytes():
    try:
        info = pltpu.get_tpu_info()
        cap = getattr(info, "vmem_capacity_bytes", None)
        if cap:
            return int(cap)
    except Exception:
        pass
    return 64 << 20          # conservative (v7x-sized) fallback


_VMEM_CAP = _tpu_vmem_capacity_bytes()
_VMEM_LIMIT = int(min(_VMEM_CAP * 3 // 4, 100 << 20))     # leave headroom below physical
SEQ_TILE_MAX = 512 if _VMEM_CAP >= (100 << 20) else 256   # v5e/v6e: 512, v7x/unknown: 256


def _compiler_params(sem):
    return pltpu.CompilerParams(dimension_semantics=sem, vmem_limit_bytes=_VMEM_LIMIT)


# --------------------------------------------------------------------------- #
# small static helpers
# --------------------------------------------------------------------------- #
def _round_up(x, m):
    return (x + m - 1) // m * m


def _seq_tile(lv, lt):
    """One shared tile for row tiling, attention q/kv tiling and padding alignment."""
    return min(SEQ_TILE_MAX, _round_up(max(lv, lt), 8))


def _col_tile(n, max_tile=COL_TILE_MAX):
    if n <= max_tile:
        return n
    for t in (max_tile, 256, 128):
        if n % t == 0:
            return t
    return n                 # fallback: untiled


def _qkv_col_tile(inner, head_dim, max_tile=COL_TILE_MAX):
    """Column tile over `inner`: divides inner, multiple of head_dim, lane-dense (mult of 128)."""
    if inner <= max_tile:
        return inner
    step = head_dim * 128 // math.gcd(head_dim, 128)      # lcm(head_dim, 128)
    cand = (max_tile // step) * step
    while cand >= step:
        if inner % cand == 0:
            return cand
        cand -= step
    return inner


def _pad_rows(x, lp):
    if x.shape[1] == lp:
        return x
    return jnp.pad(x, ((0, 0), (0, lp - x.shape[1]), (0, 0)))


# --------------------------------------------------------------------------- #
# Kernel 1: LayerNorm + adaLN-in + fused QKV projection (+ per-head qk RMSNorm)
#           grid = (B, rows, 3 sections, inner-column tiles); LN computed once per row tile.
#           Writes straight into the joint [B, 3, Ljp, inner] buffer (aliased for txt).
# --------------------------------------------------------------------------- #
def _ln_mod_qkv_kernel(*refs, eps, head_dim, heads_per_tile, has_donor):
    if has_donor:
        x_ref, shift_ref, scale_ref, w_ref, b_ref, nw_ref, _donor, o_ref, y_ref = refs
    else:
        x_ref, shift_ref, scale_ref, w_ref, b_ref, nw_ref, o_ref, y_ref = refs

    s_idx = pl.program_id(2)
    j_idx = pl.program_id(3)

    @pl.when(jnp.logical_and(s_idx == 0, j_idx == 0))
    def _():
        x = x_ref[0].astype(jnp.float32)                    # [tl, D]
        mu = jnp.mean(x, axis=-1, keepdims=True)
        xc = x - mu
        var = jnp.mean(xc * xc, axis=-1, keepdims=True)
        y = xc * jax.lax.rsqrt(var + eps)
        y = y * (1.0 + scale_ref[0].astype(jnp.float32)) + shift_ref[0].astype(jnp.float32)
        y_ref[...] = y.astype(y_ref.dtype)                  # bf16 scratch, reused for all tiles

    # MXU-native dot: bf16 x bf16 -> f32 accumulate
    proj = jnp.dot(y_ref[...], w_ref[0], preferred_element_type=jnp.float32)   # [tl, tn]
    proj = proj + b_ref[0].astype(jnp.float32)

    @pl.when(s_idx == 2)                                    # v section: plain lane-dense store
    def _():
        o_ref[0, 0] = proj.astype(o_ref.dtype)

    @pl.when(s_idx < 2)                                     # q / k: per-head RMSNorm, one store
    def _():
        nw = nw_ref[0].astype(jnp.float32)                  # [1, tn] (softmax scale folded in q)
        parts = []
        for h in range(heads_per_tile):
            sl = slice(h * head_dim, (h + 1) * head_dim)
            c = proj[:, sl]
            c = c * jax.lax.rsqrt(jnp.mean(c * c, axis=-1, keepdims=True) + eps)
            parts.append(c * nw[:, sl])
        full = parts[0] if heads_per_tile == 1 else jnp.concatenate(parts, axis=-1)
        o_ref[0, 0] = full.astype(o_ref.dtype)


def ln_mod_qkv(x, shift, scale, w3, b3, nw3, *, heads, head_dim, tl,
               joint_rows, row_block_offset, donor=None, eps=NORM_EPS):
    B, Lp, D = x.shape
    inner = heads * head_dim
    tn = _qkv_col_tile(inner, head_dim)
    grid = (B, Lp // tl, 3, inner // tn)

    in_specs = [
        pl.BlockSpec((1, tl, D), lambda b, i, s, j: (b, i, 0)),      # x (resident over s, j)
        pl.BlockSpec((1, 1, D), lambda b, i, s, j: (b, 0, 0)),       # shift [B,1,D]
        pl.BlockSpec((1, 1, D), lambda b, i, s, j: (b, 0, 0)),       # scale [B,1,D]
        pl.BlockSpec((1, D, tn), lambda b, i, s, j: (s, 0, j)),      # W [3,D,inner] col-tiled
        pl.BlockSpec((1, 1, tn), lambda b, i, s, j: (s, 0, j)),      # bias [3,1,inner]
        pl.BlockSpec((1, 1, tn), lambda b, i, s, j: (s, 0, j)),      # qk-norm w [3,1,inner]
    ]
    args = [x, shift, scale, w3, b3, nw3]
    io_aliases = {}
    if donor is not None:                                            # write into existing joint
        in_specs.append(pl.BlockSpec(memory_space=pl.ANY))
        args.append(donor)
        io_aliases = {len(args) - 1: 0}

    off = row_block_offset
    return pl.pallas_call(
        functools.partial(_ln_mod_qkv_kernel, eps=eps, head_dim=head_dim,
                          heads_per_tile=tn // head_dim, has_donor=donor is not None),
        out_shape=jax.ShapeDtypeStruct((B, 3, joint_rows, inner), x.dtype),
        grid=grid,
        in_specs=in_specs,
        out_specs=pl.BlockSpec((1, 1, tl, tn), lambda b, i, s, j: (b, s, i + off, j)),
        scratch_shapes=[pltpu.VMEM((tl, D), x.dtype)],               # modulated LN activations
        input_output_aliases=io_aliases,
        compiler_params=_compiler_params(("parallel", "parallel", "arbitrary", "arbitrary")),
    )(*args)


# --------------------------------------------------------------------------- #
# Kernel 2: flash attention over the joint (vid|txt) sequence, lane-dense heads
# --------------------------------------------------------------------------- #
def _flash_attn_kernel(q_ref, k_ref, v_ref, o_ref, m_ref, l_ref, acc_ref,
                       *, heads, head_dim, lv, lvp, lt, tk):
    kv_i = pl.program_id(2)

    @pl.when(kv_i == 0)
    def _():
        m_ref[...] = jnp.full(m_ref.shape, -1e30, jnp.float32)
        l_ref[...] = jnp.zeros(l_ref.shape, jnp.float32)
        acc_ref[...] = jnp.zeros(acc_ref.shape, jnp.float32)

    q = q_ref[0, 0]                                   # [tq, inner] bf16 (scale pre-folded in q)
    k = k_ref[0, 0]                                   # [tk, inner] bf16
    v = v_ref[0, 0]                                   # [tk, inner] bf16

    # validity of kv columns in the tile-aligned joint layout [vid | vid-pad | txt | txt-pad]
    col = kv_i * tk + jax.lax.broadcasted_iota(jnp.int32, (1, tk), 1)
    valid = jnp.logical_or(col < lv, jnp.logical_and(col >= lvp, col < lvp + lt))
    bias = jnp.where(valid, 0.0, -1e30).astype(jnp.float32)
    valid_f = valid.astype(jnp.float32)

    for h in range(heads):
        sl = slice(h * head_dim, (h + 1) * head_dim)
        s = jax.lax.dot_general(q[:, sl], k[:, sl], (((1,), (1,)), ((), ())),
                                preferred_element_type=jnp.float32)           # [tq, tk]
        s = s + bias
        m_prev = m_ref[:, sl]                                                  # [tq, hd] bcast
        m_new = jnp.maximum(m_prev, jnp.max(s, axis=-1, keepdims=True))
        alpha = jnp.exp(m_prev - m_new)
        p = jnp.exp(s - m_new[:, :1]) * valid_f                                # [tq, tk] f32
        l_ref[:, sl] = alpha * l_ref[:, sl] + jnp.sum(p, axis=-1, keepdims=True)
        acc_ref[:, sl] = alpha * acc_ref[:, sl] + jnp.dot(
            p.astype(v.dtype), v[:, sl], preferred_element_type=jnp.float32)
        m_ref[:, sl] = m_new

    @pl.when(kv_i == pl.num_programs(2) - 1)
    def _():
        o_ref[0] = (acc_ref[...] * pl.reciprocal(l_ref[...], approx=True)).astype(o_ref.dtype)


def flash_attention(qkv, *, heads, head_dim, lv, lvp, lt, ts):
    B, _, Ljp, inner = qkv.shape
    tq = tk = ts
    q_spec = pl.BlockSpec((1, 1, tq, inner), lambda b, i, j: (b, 0, i, 0))
    k_spec = pl.BlockSpec((1, 1, tk, inner), lambda b, i, j: (b, 1, j, 0))
    v_spec = pl.BlockSpec((1, 1, tk, inner), lambda b, i, j: (b, 2, j, 0))
    return pl.pallas_call(
        functools.partial(_flash_attn_kernel, heads=heads, head_dim=head_dim,
                          lv=lv, lvp=lvp, lt=lt, tk=tk),
        out_shape=jax.ShapeDtypeStruct((B, Ljp, inner), qkv.dtype),
        grid=(B, Ljp // tq, Ljp // tk),
        in_specs=[q_spec, k_spec, v_spec],
        out_specs=pl.BlockSpec((1, tq, inner), lambda b, i, j: (b, i, 0)),
        scratch_shapes=[
            pltpu.VMEM((tq, inner), jnp.float32),      # m (broadcast across each head's lanes)
            pltpu.VMEM((tq, inner), jnp.float32),      # l
            pltpu.VMEM((tq, inner), jnp.float32),      # acc
        ],
        compiler_params=_compiler_params(("parallel", "parallel", "arbitrary")),
    )(qkv, qkv, qkv)


# --------------------------------------------------------------------------- #
# Kernel 3: attention out-projection + adaLN-out gate + residual (reads the joint
#           attention output with a static row-block offset; no slicing copies)
# --------------------------------------------------------------------------- #
def _proj_gate_res_kernel(x_ref, w_ref, b_ref, g_ref, r_ref, o_ref):
    acc = jnp.dot(x_ref[0], w_ref[...], preferred_element_type=jnp.float32)   # [tl, tn]
    acc = acc + b_ref[0].astype(jnp.float32)
    o_ref[0] = (acc * g_ref[0].astype(jnp.float32)
                + r_ref[0].astype(jnp.float32)).astype(o_ref.dtype)


def proj_gate_residual(x_joint, w, b, gate, res, *, tl, row_block_offset):
    B, _, K = x_joint.shape
    _, Lp, D = res.shape
    tn = _col_tile(D)
    off = row_block_offset
    return pl.pallas_call(
        _proj_gate_res_kernel,
        out_shape=jax.ShapeDtypeStruct((B, Lp, D), res.dtype),
        grid=(B, Lp // tl, D // tn),
        in_specs=[
            pl.BlockSpec((1, tl, K), lambda b, i, j: (b, i + off, 0)),
            pl.BlockSpec((K, tn), lambda b, i, j: (0, j)),
            pl.BlockSpec((1, 1, tn), lambda b, i, j: (0, 0, j)),
            pl.BlockSpec((1, 1, tn), lambda b, i, j: (b, 0, j)),
            pl.BlockSpec((1, tl, tn), lambda b, i, j: (b, i, j)),
        ],
        out_specs=pl.BlockSpec((1, tl, tn), lambda b, i, j: (b, i, j)),
        compiler_params=_compiler_params(("parallel", "parallel", "parallel")),
    )(x_joint, w, b, gate, res)


# --------------------------------------------------------------------------- #
# Kernel 4: fused MLP = LN + adaLN-in + fc1 + GELU + fc2 + gate + residual
#           (hidden dim tiled with f32 accumulator; bf16 LN scratch)
# --------------------------------------------------------------------------- #
def _mlp_fused_kernel(x_ref, shift_ref, scale_ref, gate_ref,
                      w1_ref, b1_ref, w2_ref, b2_ref, o_ref,
                      y_ref, acc_ref, *, eps):
    j = pl.program_id(2)

    @pl.when(j == 0)
    def _():
        x = x_ref[0].astype(jnp.float32)
        mu = jnp.mean(x, axis=-1, keepdims=True)
        xc = x - mu
        var = jnp.mean(xc * xc, axis=-1, keepdims=True)
        y = xc * jax.lax.rsqrt(var + eps)
        y = y * (1.0 + scale_ref[0].astype(jnp.float32)) + shift_ref[0].astype(jnp.float32)
        y_ref[...] = y.astype(y_ref.dtype)                    # bf16 scratch (MXU-native operand)
        acc_ref[...] = jnp.zeros(acc_ref.shape, jnp.float32)

    h = jnp.dot(y_ref[...], w1_ref[...], preferred_element_type=jnp.float32)
    # TODO(synk): tanh-approx GELU; swap to exact erf GELU if the reference mlp_type uses it.
    h = jax.nn.gelu(h + b1_ref[0].astype(jnp.float32), approximate=True)
    acc_ref[...] += jnp.dot(h.astype(w2_ref.dtype), w2_ref[...],
                            preferred_element_type=jnp.float32)

    @pl.when(j == pl.num_programs(2) - 1)
    def _():
        out = acc_ref[...] + b2_ref[0].astype(jnp.float32)
        out = out * gate_ref[0].astype(jnp.float32) + x_ref[0].astype(jnp.float32)
        o_ref[0] = out.astype(o_ref.dtype)


def mlp_gate_residual(x, shift, scale, gate, w1, b1, w2, b2, *, tl, eps=NORM_EPS):
    B, Lp, D = x.shape
    Hd = w1.shape[1]
    th = _col_tile(Hd)
    return pl.pallas_call(
        functools.partial(_mlp_fused_kernel, eps=eps),
        out_shape=jax.ShapeDtypeStruct((B, Lp, D), x.dtype),
        grid=(B, Lp // tl, Hd // th),
        in_specs=[
            pl.BlockSpec((1, tl, D), lambda b, i, j: (b, i, 0)),   # x (residual)
            pl.BlockSpec((1, 1, D), lambda b, i, j: (b, 0, 0)),    # shift
            pl.BlockSpec((1, 1, D), lambda b, i, j: (b, 0, 0)),    # scale
            pl.BlockSpec((1, 1, D), lambda b, i, j: (b, 0, 0)),    # gate
            pl.BlockSpec((D, th), lambda b, i, j: (0, j)),         # fc1 w
            pl.BlockSpec((1, 1, th), lambda b, i, j: (0, 0, j)),   # fc1 b
            pl.BlockSpec((th, D), lambda b, i, j: (j, 0)),         # fc2 w
            pl.BlockSpec((1, 1, D), lambda b, i, j: (0, 0, 0)),    # fc2 b
        ],
        out_specs=pl.BlockSpec((1, tl, D), lambda b, i, j: (b, i, 0)),
        scratch_shapes=[
            pltpu.VMEM((tl, D), x.dtype),        # modulated LN activations (bf16)
            pltpu.VMEM((tl, D), jnp.float32),    # fc2 accumulator (f32)
        ],
        compiler_params=_compiler_params(("parallel", "parallel", "arbitrary")),
    )(x, shift, scale, gate, w1, b1, w2, b2)


# --------------------------------------------------------------------------- #
# Parameter construction (deterministic, synthetic)
# --------------------------------------------------------------------------- #
def make_params(key, *, vid_dim, txt_dim, emb_dim, heads, head_dim, expand_ratio,
                dtype=jnp.bfloat16):
    inner = heads * head_dim

    def normal(k, shape, std=0.02):
        return (std * jax.random.normal(k, shape, dtype=jnp.float32)).astype(dtype)

    def branch(k, dim):
        ks = jax.random.split(k, 6)
        return {
            "qkv_w": normal(ks[0], (3, dim, inner)),                 # [q|k|v] sections, bf16
            "qkv_b": jnp.zeros((3, 1, inner), jnp.float32),
            "q_norm_w": jnp.ones((head_dim,), jnp.float32),
            "k_norm_w": jnp.ones((head_dim,), jnp.float32),
            "out_w": normal(ks[1], (inner, dim)),
            "out_b": jnp.zeros((1, 1, dim), jnp.float32),
            "fc1_w": normal(ks[2], (dim, expand_ratio * dim)),
            "fc1_b": jnp.zeros((1, 1, expand_ratio * dim), jnp.float32),
            "fc2_w": normal(ks[3], (expand_ratio * dim, dim)),
            "fc2_b": jnp.zeros((1, 1, dim), jnp.float32),
            "ada": {
                layer: {"w": 0.02 * jax.random.normal(kk, (emb_dim, 3 * dim), jnp.float32),
                        "b": jnp.zeros((3 * dim,), jnp.float32)}
                for layer, kk in zip(("attn", "mlp"), (ks[4], ks[5]))
            },
        }

    kv_key, kt_key = jax.random.split(key)
    return {"vid": branch(kv_key, vid_dim), "txt": branch(kt_key, txt_dim)}


# --------------------------------------------------------------------------- #
# Block forward
# --------------------------------------------------------------------------- #
def nammsr_block_forward(params, vid, txt, vid_shape, txt_shape, emb,
                         *, heads, head_dim, norm_eps=NORM_EPS):
    assert vid.dtype == txt.dtype
    B, Lv, _ = vid.shape
    _, Lt, _ = txt.shape
    inner = heads * head_dim

    # one shared seq tile -> padding aligned with attention tiles (no fully-masked kv tiles)
    ts = _seq_tile(Lv, Lt)
    Lvp, Ltp = _round_up(Lv, ts), _round_up(Lt, ts)
    Ljp = Lvp + Ltp
    vid_p, txt_p = _pad_rows(vid, Lvp), _pad_rows(txt, Ltp)

    # adaLN projection: tiny [B, emb] GEMM stays in plain XLA; returns [B,1,dim] tensors.
    emb_act = jax.nn.silu(emb.astype(jnp.float32))

    def ada(branch, layer):
        p = params[branch]["ada"][layer]
        out = emb_act @ p["w"] + p["b"]
        # TODO(synk): confirm (shift, scale, gate) chunk order and the (1+scale) convention.
        shift, scale, gate = jnp.split(out, 3, axis=-1)
        return shift[:, None, :], scale[:, None, :], gate[:, None, :]

    def qk_norm_weights(branch):
        p = params[branch]
        q_w = jnp.tile(p["q_norm_w"] * (head_dim ** -0.5), heads)   # fold softmax scale into q
        k_w = jnp.tile(p["k_norm_w"], heads)
        return jnp.stack([q_w, k_w, jnp.ones((inner,), jnp.float32)])[:, None, :]

    # ---------------- attention path ----------------
    v_shift, v_scale, v_gate = ada("vid", "attn")
    t_shift, t_scale, t_gate = ada("txt", "attn")

    qkv = ln_mod_qkv(vid_p, v_shift, v_scale, params["vid"]["qkv_w"],
                     params["vid"]["qkv_b"], qk_norm_weights("vid"),
                     heads=heads, head_dim=head_dim, tl=ts, joint_rows=Ljp,
                     row_block_offset=0, donor=None, eps=norm_eps)
    qkv = ln_mod_qkv(txt_p, t_shift, t_scale, params["txt"]["qkv_w"],
                     params["txt"]["qkv_b"], qk_norm_weights("txt"),
                     heads=heads, head_dim=head_dim, tl=ts, joint_rows=Ljp,
                     row_block_offset=Lvp // ts, donor=qkv, eps=norm_eps)

    o_joint = flash_attention(qkv, heads=heads, head_dim=head_dim,
                              lv=Lv, lvp=Lvp, lt=Lt, ts=ts)

    vid_attn = proj_gate_residual(o_joint, params["vid"]["out_w"], params["vid"]["out_b"],
                                  v_gate, vid_p, tl=ts, row_block_offset=0)
    txt_attn = proj_gate_residual(o_joint, params["txt"]["out_w"], params["txt"]["out_b"],
                                  t_gate, txt_p, tl=ts, row_block_offset=Lvp // ts)

    # ---------------- mlp path (is_last_layer=False -> both branches) ----------------
    def mlp_branch(x_p, branch):
        p = params[branch]
        shift, scale, gate = ada(branch, "mlp")
        return mlp_gate_residual(x_p, shift, scale, gate,
                                 p["fc1_w"], p["fc1_b"], p["fc2_w"], p["fc2_b"],
                                 tl=ts, eps=norm_eps)

    vid_out = mlp_branch(vid_attn, "vid")
    txt_out = mlp_branch(txt_attn, "txt")

    return vid_out[:, :Lv], txt_out[:, :Lt], vid_shape, txt_shape


# --------------------------------------------------------------------------- #
# Main
# --------------------------------------------------------------------------- #
if __name__ == "__main__":
    B = 2
    VID_DIM, TXT_DIM, EMB_DIM = 32, 16, 32
    HEADS, HEAD_DIM, EXPAND = 2, 16, 4
    T, Hs, Ws = 2, 4, 2
    Lv = T * Hs * Ws          # 16 video tokens per sample
    Lt = 8                    # 8 text tokens per sample

    key = jax.random.PRNGKey(0)
    kp, kvid, ktxt, kemb = jax.random.split(key, 4)

    params = make_params(kp, vid_dim=VID_DIM, txt_dim=TXT_DIM, emb_dim=EMB_DIM,
                         heads=HEADS, head_dim=HEAD_DIM, expand_ratio=EXPAND)

    vid = jax.random.normal(kvid, (B, Lv, VID_DIM), dtype=jnp.float32).astype(jnp.bfloat16)
    txt = jax.random.normal(ktxt, (B, Lt, TXT_DIM), dtype=jnp.float32).astype(jnp.bfloat16)
    emb = jax.random.normal(kemb, (B, EMB_DIM), dtype=jnp.float32)
    vid_shape = jnp.array([[T, Hs, Ws]] * B, dtype=jnp.int32)
    txt_shape = jnp.array([[Lt]] * B, dtype=jnp.int32)

    fwd = jax.jit(functools.partial(nammsr_block_forward, heads=HEADS, head_dim=HEAD_DIM))
    vid_o, txt_o, vs_o, ts_o = fwd(params, vid, txt, vid_shape, txt_shape, emb)
    jax.block_until_ready((vid_o, txt_o, vs_o, ts_o))

    assert vid_o.shape == (B, Lv, VID_DIM) and txt_o.shape == (B, Lt, TXT_DIM)
    assert bool(jnp.all(jnp.isfinite(vid_o.astype(jnp.float32))))
    assert bool(jnp.all(jnp.isfinite(txt_o.astype(jnp.float32))))
    print("KERNEL_OK")
</pallas_src>

<mosaic_0001>
module attributes {stable_mosaic.version = 11 : i64} {
  func.func @_ln_mod_qkv_kernel(%arg0: i32, %arg1: i32, %arg2: i32, %arg3: i32, %arg4: memref<1x16x16xbf16, #tpu.memory_space<vmem>>, %arg5: memref<1x1x16xf32, #tpu.memory_space<vmem>>, %arg6: memref<1x1x16xf32, #tpu.memory_space<vmem>>, %arg7: memref<1x16x32xbf16, #tpu.memory_space<vmem>>, %arg8: memref<1x1x32xf32, #tpu.memory_space<vmem>>, %arg9: memref<1x1x32xf32, #tpu.memory_space<vmem>>, %arg10: memref<2x3x32x32xbf16, #tpu.memory_space<any>>, %arg11: memref<1x1x16x32xbf16, #tpu.memory_space<vmem>>, %arg12: memref<16x16xbf16, #tpu.memory_space<vmem>>) attributes {dimension_semantics = [#tpu.dimension_semantics<parallel>, #tpu.dimension_semantics<parallel>, #tpu.dimension_semantics<arbitrary>, #tpu.dimension_semantics<arbitrary>], iteration_bounds = array<i64: 2, 1, 3, 1>, scalar_prefetch = 0 : i64, scratch_operands = 1 : i64, tpu.core_type = #tpu.core_type<tc>, window_params = [{transform_indices = @transform_0, window_bounds = array<i64: 1, 16, 16>}, {transform_indices = @transform_1, window_bounds = array<i64: 1, 1, 16>}, {transform_indices = @transform_2, window_bounds = array<i64: 1, 1, 16>}, {transform_indices = @transform_3, window_bounds = array<i64: 1, 16, 32>}, {transform_indices = @transform_4, window_bounds = array<i64: 1, 1, 32>}, {transform_indices = @transform_5, window_bounds = array<i64: 1, 1, 32>}, {}, {transform_indices = @transform_7, window_bounds = array<i64: 1, 1, 16, 32>}]} {
    %c0_i32 = arith.constant 0 : i32
    %0 = arith.cmpi eq, %arg2, %c0_i32 : i32
    %c0_i32_0 = arith.constant 0 : i32
    %1 = arith.cmpi eq, %arg3, %c0_i32_0 : i32
    %2 = arith.andi %0, %1 : i1
    %3 = arith.extui %2 : i1 to i32
    %c0_i32_1 = arith.constant 0 : i32
    %4 = arith.cmpi ne, %3, %c0_i32_1 : i32
    scf.if %4 {
      %c0_12 = arith.constant 0 : index
      %c0_13 = arith.constant 0 : index
      %c0_14 = arith.constant 0 : index
      %19 = vector.load %arg4[%c0_12, %c0_13, %c0_14] : memref<1x16x16xbf16, #tpu.memory_space<vmem>>, vector<1x16x16xbf16>
      %20 = vector.shape_cast %19 : vector<1x16x16xbf16> to vector<16x16xbf16>
      %21 = arith.extf %20 : vector<16x16xbf16> to vector<16x16xf32>
      %cst_15 = arith.constant dense<0.000000e+00> : vector<16xf32>
      %22 = vector.multi_reduction <add>, %21, %cst_15 [1] : vector<16x16xf32> to vector<16xf32>
      %23 = vector.shape_cast %22 : vector<16xf32> to vector<16x1xf32>
      %cst_16 = arith.constant 1.600000e+01 : f32
      %24 = vector.broadcast %cst_16 : f32 to vector<16x1xf32>
      %25 = arith.divf %23, %24 : vector<16x1xf32>
      %26 = vector.broadcast %25 : vector<16x1xf32> to vector<16x16xf32>
      %27 = arith.subf %21, %26 : vector<16x16xf32>
      %28 = arith.mulf %27, %27 : vector<16x16xf32>
      %cst_17 = arith.constant dense<0.000000e+00> : vector<16xf32>
      %29 = vector.multi_reduction <add>, %28, %cst_17 [1] : vector<16x16xf32> to vector<16xf32>
      %30 = vector.shape_cast %29 : vector<16xf32> to vector<16x1xf32>
      %cst_18 = arith.constant 1.600000e+01 : f32
      %31 = vector.broadcast %cst_18 : f32 to vector<16x1xf32>
      %32 = arith.divf %30, %31 : vector<16x1xf32>
      %cst_19 = arith.constant 9.99999997E-7 : f32
      %33 = vector.broadcast %cst_19 : f32 to vector<16x1xf32>
      %34 = arith.addf %32, %33 : vector<16x1xf32>
      %35 = math.rsqrt %34 : vector<16x1xf32>
      %36 = vector.broadcast %35 : vector<16x1xf32> to vector<16x16xf32>
      %37 = arith.mulf %27, %36 : vector<16x16xf32>
      %c0_20 = arith.constant 0 : index
      %c0_21 = arith.constant 0 : index
      %c0_22 = arith.constant 0 : index
      %38 = vector.load %arg6[%c0_20, %c0_21, %c0_22] : memref<1x1x16xf32, #tpu.memory_space<vmem>>, vector<1x1x16xf32>
      %39 = vector.shape_cast %38 : vector<1x1x16xf32> to vector<1x16xf32>
      %cst_23 = arith.constant 1.000000e+00 : f32
      %40 = vector.broadcast %cst_23 : f32 to vector<1x16xf32>
      %41 = arith.addf %40, %39 : vector<1x16xf32>
      %42 = vector.broadcast %41 : vector<1x16xf32> to vector<16x16xf32>
      %43 = arith.mulf %37, %42 : vector<16x16xf32>
      %c0_24 = arith.constant 0 : index
      %c0_25 = arith.constant 0 : index
      %c0_26 = arith.constant 0 : index
      %44 = vector.load %arg5[%c0_24, %c0_25, %c0_26] : memref<1x1x16xf32, #tpu.memory_space<vmem>>, vector<1x1x16xf32>
      %45 = vector.shape_cast %44 : vector<1x1x16xf32> to vector<1x16xf32>
      %46 = vector.broadcast %45 : vector<1x16xf32> to vector<16x16xf32>
      %47 = arith.addf %43, %46 : vector<16x16xf32>
      %48 = arith.truncf %47 : vector<16x16xf32> to vector<16x16xbf16>
      %c0_27 = arith.constant 0 : index
      %c0_28 = arith.constant 0 : index
      %49 = vector.load %arg12[%c0_27, %c0_28] : memref<16x16xbf16, #tpu.memory_space<vmem>>, vector<16x16xbf16>
      tpu.vector_store %arg12[%c0_27, %c0_28], %48 {strides = array<i32>} : memref<16x16xbf16, #tpu.memory_space<vmem>>, vector<16x16xbf16>,
    } else {
    }
    %c0 = arith.constant 0 : index
    %c0_2 = arith.constant 0 : index
    %5 = vector.load %arg12[%c0, %c0_2] : memref<16x16xbf16, #tpu.memory_space<vmem>>, vector<16x16xbf16>
    %c0_3 = arith.constant 0 : index
    %c0_4 = arith.constant 0 : index
    %c0_5 = arith.constant 0 : index
    %6 = vector.load %arg7[%c0_3, %c0_4, %c0_5] : memref<1x16x32xbf16, #tpu.memory_space<vmem>>, vector<1x16x32xbf16>
    %7 = vector.shape_cast %6 : vector<1x16x32xbf16> to vector<16x32xbf16>
    %cst = arith.constant dense<0.000000e+00> : vector<16x32xf32>
    %8 = tpu.matmul %5, %7, %cst {dimension_numbers = #tpu.dot_dimension_numbers<[1], [0], [0], [1], [0, 0, 1, 1], [], []>} : vector<16x16xbf16>, vector<16x32xbf16>, vector<16x32xf32> -> vector<16x32xf32>
    %c0_6 = arith.constant 0 : index
    %c0_7 = arith.constant 0 : index
    %c0_8 = arith.constant 0 : index
    %9 = vector.load %arg8[%c0_6, %c0_7, %c0_8] : memref<1x1x32xf32, #tpu.memory_space<vmem>>, vector<1x1x32xf32>
    %10 = vector.shape_cast %9 : vector<1x1x32xf32> to vector<1x32xf32>
    %11 = vector.broadcast %10 : vector<1x32xf32> to vector<16x32xf32>
    %12 = arith.addf %8, %11 : vector<16x32xf32>
    %c2_i32 = arith.constant 2 : i32
    %13 = arith.cmpi eq, %arg2, %c2_i32 : i32
    %14 = arith.extui %13 : i1 to i32
    %c0_i32_9 = arith.constant 0 : i32
    %15 = arith.cmpi ne, %14, %c0_i32_9 : i32
    scf.if %15 {
      %19 = arith.truncf %12 : vector<16x32xf32> to vector<16x32xbf16>
      %c0_12 = arith.constant 0 : index
      %c0_13 = arith.constant 0 : index
      %c0_14 = arith.constant 0 : index
      %c0_15 = arith.constant 0 : index
      %20 = vector.load %arg11[%c0_12, %c0_13, %c0_14, %c0_15] : memref<1x1x16x32xbf16, #tpu.memory_space<vmem>>, vector<1x1x16x32xbf16>
      %21 = vector.shape_cast %20 : vector<1x1x16x32xbf16> to vector<16x32xbf16>
      %22 = vector.shape_cast %19 : vector<16x32xbf16> to vector<1x1x16x32xbf16>
      tpu.vector_store %arg11[%c0_12, %c0_13, %c0_14, %c0_15], %22 {strides = array<i32>} : memref<1x1x16x32xbf16, #tpu.memory_space<vmem>>, vector<1x1x16x32xbf16>,
    } else {
    }
    %c2_i32_10 = arith.constant 2 : i32
    %16 = arith.cmpi slt, %arg2, %c2_i32_10 : i32
    %17 = arith.extui %16 : i1 to i32
    %c0_i32_11 = arith.constant 0 : i32
    %18 = arith.cmpi ne, %17, %c0_i32_11 : i32
    scf.if %18 {
      %c0_12 = arith.constant 0 : index
      %c0_13 = arith.constant 0 : index
      %c0_14 = arith.constant 0 : index
      %19 = vector.load %arg9[%c0_12, %c0_13, %c0_14] : memref<1x1x32xf32, #tpu.memory_space<vmem>>, vector<1x1x32xf32>
      %20 = vector.shape_cast %19 : vector<1x1x32xf32> to vector<1x32xf32>
      %21 = vector.extract_strided_slice %12 {offsets = [0, 0], sizes = [16, 16], strides = [1, 1]} : vector<16x32xf32> to vector<16x16xf32>
      %22 = arith.mulf %21, %21 : vector<16x16xf32>
      %cst_15 = arith.constant dense<0.000000e+00> : vector<16xf32>
      %23 = vector.multi_reduction <add>, %22, %cst_15 [1] : vector<16x16xf32> to vector<16xf32>
      %24 = vector.shape_cast %23 : vector<16xf32> to vector<16x1xf32>
      %cst_16 = arith.constant 1.600000e+01 : f32
      %25 = vector.broadcast %cst_16 : f32 to vector<16x1xf32>
      %26 = arith.divf %24, %25 : vector<16x1xf32>
      %cst_17 = arith.constant 9.99999997E-7 : f32
      %27 = vector.broadcast %cst_17 : f32 to vector<16x1xf32>
      %28 = arith.addf %26, %27 : vector<16x1xf32>
      %29 = math.rsqrt %28 : vector<16x1xf32>
      %30 = vector.broadcast %29 : vector<16x1xf32> to vector<16x16xf32>
      %31 = arith.mulf %21, %30 : vector<16x16xf32>
      %32 = vector.extract_strided_slice %20 {offsets = [0, 0], sizes = [1, 16], strides = [1, 1]} : vector<1x32xf32> to vector<1x16xf32>
      %33 = vector.broadcast %32 : vector<1x16xf32> to vector<16x16xf32>
      %34 = arith.mulf %31, %33 : vector<16x16xf32>
      %35 = vector.extract_strided_slice %12 {offsets = [0, 16], sizes = [16, 16], strides = [1, 1]} : vector<16x32xf32> to vector<16x16xf32>
      %36 = arith.mulf %35, %35 : vector<16x16xf32>
      %cst_18 = arith.constant dense<0.000000e+00> : vector<16xf32>
      %37 = vector.multi_reduction <add>, %36, %cst_18 [1] : vector<16x16xf32> to vector<16xf32>
      %38 = vector.shape_cast %37 : vector<16xf32> to vector<16x1xf32>
      %cst_19 = arith.constant 1.600000e+01 : f32
      %39 = vector.broadcast %cst_19 : f32 to vector<16x1xf32>
      %40 = arith.divf %38, %39 : vector<16x1xf32>
      %cst_20 = arith.constant 9.99999997E-7 : f32
      %41 = vector.broadcast %cst_20 : f32 to vector<16x1xf32>
      %42 = arith.addf %40, %41 : vector<16x1xf32>
      %43 = math.rsqrt %42 : vector<16x1xf32>
      %44 = vector.broadcast %43 : vector<16x1xf32> to vector<16x16xf32>
      %45 = arith.mulf %35, %44 : vector<16x16xf32>
      %46 = vector.extract_strided_slice %20 {offsets = [0, 16], sizes = [1, 16], strides = [1, 1]} : vector<1x32xf32> to vector<1x16xf32>
      %47 = vector.broadcast %46 : vector<1x16xf32> to vector<16x16xf32>
      %48 = arith.mulf %45, %47 : vector<16x16xf32>
      %49 = tpu.concatenate %34, %48 in 1 : vector<16x16xf32>, vector<16x16xf32> -> vector<16x32xf32>
      %50 = arith.truncf %49 : vector<16x32xf32> to vector<16x32xbf16>
      %c0_21 = arith.constant 0 : index
      %c0_22 = arith.constant 0 : index
      %c0_23 = arith.constant 0 : index
      %c0_24 = arith.constant 0 : index
      %51 = vector.load %arg11[%c0_21, %c0_22, %c0_23, %c0_24] : memref<1x1x16x32xbf16, #tpu.memory_space<vmem>>, vector<1x1x16x32xbf16>
      %52 = vector.shape_cast %51 : vector<1x1x16x32xbf16> to vector<16x32xbf16>
      %53 = vector.shape_cast %50 : vector<16x32xbf16> to vector<1x1x16x32xbf16>
      tpu.vector_store %arg11[%c0_21, %c0_22, %c0_23, %c0_24], %53 {strides = array<i32>} : memref<1x1x16x32xbf16, #tpu.memory_space<vmem>>, vector<1x1x16x32xbf16>,
    } else {
    }
    return
  }
  func.func @transform_0(%arg0: i32, %arg1: i32, %arg2: i32, %arg3: i32) -> (i32, i32, i32) {
    %c0_i32 = arith.constant 0 : i32
    %c0_i32_0 = arith.constant 0 : i32
    return %arg0, %arg1, %c0_i32 : i32, i32, i32
  }
  func.func @transform_1(%arg0: i32, %arg1: i32, %arg2: i32, %arg3: i32) -> (i32, i32, i32) {
    %c0_i32 = arith.constant 0 : i32
    %c0_i32_0 = arith.constant 0 : i32
    %c0_i32_1 = arith.constant 0 : i32
    return %arg0, %c0_i32, %c0_i32_0 : i32, i32, i32
  }
  func.func @transform_2(%arg0: i32, %arg1: i32, %arg2: i32, %arg3: i32) -> (i32, i32, i32) {
    %c0_i32 = arith.constant 0 : i32
    %c0_i32_0 = arith.constant 0 : i32
    %c0_i32_1 = arith.constant 0 : i32
    return %arg0, %c0_i32, %c0_i32_0 : i32, i32, i32
  }
  func.func @transform_3(%arg0: i32, %arg1: i32, %arg2: i32, %arg3: i32) -> (i32, i32, i32) {
    %c0_i32 = arith.constant 0 : i32
    %c0_i32_0 = arith.constant 0 : i32
    return %arg2, %c0_i32, %arg3 : i32, i32, i32
  }
  func.func @transform_4(%arg0: i32, %arg1: i32, %arg2: i32, %arg3: i32) -> (i32, i32, i32) {
    %c0_i32 = arith.constant 0 : i32
    %c0_i32_0 = arith.constant 0 : i32
    return %arg2, %c0_i32, %arg3 : i32, i32, i32
  }
  func.func @transform_5(%arg0: i32, %arg1: i32, %arg2: i32, %arg3: i32) -> (i32, i32, i32) {
    %c0_i32 = arith.constant 0 : i32
    %c0_i32_0 = arith.constant 0 : i32
    return %arg2, %c0_i32, %arg3 : i32, i32, i32
  }
  func.func @transform_7(%arg0: i32, %arg1: i32, %arg2: i32, %arg3: i32) -> (i32, i32, i32, i32) {
    %c1_i32 = arith.constant 1 : i32
    %0 = arith.addi %arg1, %c1_i32 : i32
    %c0_i32 = arith.constant 0 : i32
    return %arg0, %arg2, %0, %arg3 : i32, i32, i32, i32
  }
}

module attributes {stable_mosaic.version = 11 : i64} {
  func.func @_ln_mod_qkv_kernel(%arg0: i32, %arg1: i32, %arg2: i32, %arg3: i32, %arg4: memref<1x16x32xbf16, #tpu.memory_space<vmem>>, %arg5: memref<1x1x32xf32, #tpu.memory_space<vmem>>, %arg6: memref<1x1x32xf32, #tpu.memory_space<vmem>>, %arg7: memref<1x32x32xbf16, #tpu.memory_space<vmem>>, %arg8: memref<1x1x32xf32, #tpu.memory_space<vmem>>, %arg9: memref<1x1x32xf32, #tpu.memory_space<vmem>>, %arg10: memref<1x1x16x32xbf16, #tpu.memory_space<vmem>>, %arg11: memref<16x32xbf16, #tpu.memory_space<vmem>>) attributes {dimension_semantics = [#tpu.dimension_semantics<parallel>, #tpu.dimension_semantics<parallel>, #tpu.dimension_semantics<arbitrary>, #tpu.dimension_semantics<arbitrary>], iteration_bounds = array<i64: 2, 1, 3, 1>, scalar_prefetch = 0 : i64, scratch_operands = 1 : i64, tpu.core_type = #tpu.core_type<tc>, window_params = [{transform_indices = @transform_0, window_bounds = array<i64: 1, 16, 32>}, {transform_indices = @transform_1, window_bounds = array<i64: 1, 1, 32>}, {transform_indices = @transform_2, window_bounds = array<i64: 1, 1, 32>}, {transform_indices = @transform_3, window_bounds = array<i64: 1, 32, 32>}, {transform_indices = @transform_4, window_bounds = array<i64: 1, 1, 32>}, {transform_indices = @transform_5, window_bounds = array<i64: 1, 1, 32>}, {transform_indices = @transform_6, window_bounds = array<i64: 1, 1, 16, 32>}]} {
    %c0_i32 = arith.constant 0 : i32
    %0 = arith.cmpi eq, %arg2, %c0_i32 : i32
    %c0_i32_0 = arith.constant 0 : i32
    %1 = arith.cmpi eq, %arg3, %c0_i32_0 : i32
    %2 = arith.andi %0, %1 : i1
    %3 = arith.extui %2 : i1 to i32
    %c0_i32_1 = arith.constant 0 : i32
    %4 = arith.cmpi ne, %3, %c0_i32_1 : i32
    scf.if %4 {
      %c0_12 = arith.constant 0 : index
      %c0_13 = arith.constant 0 : index
      %c0_14 = arith.constant 0 : index
      %19 = vector.load %arg4[%c0_12, %c0_13, %c0_14] : memref<1x16x32xbf16, #tpu.memory_space<vmem>>, vector<1x16x32xbf16>
      %20 = vector.shape_cast %19 : vector<1x16x32xbf16> to vector<16x32xbf16>
      %21 = arith.extf %20 : vector<16x32xbf16> to vector<16x32xf32>
      %cst_15 = arith.constant dense<0.000000e+00> : vector<16xf32>
      %22 = vector.multi_reduction <add>, %21, %cst_15 [1] : vector<16x32xf32> to vector<16xf32>
      %23 = vector.shape_cast %22 : vector<16xf32> to vector<16x1xf32>
      %cst_16 = arith.constant 3.200000e+01 : f32
      %24 = vector.broadcast %cst_16 : f32 to vector<16x1xf32>
      %25 = arith.divf %23, %24 : vector<16x1xf32>
      %26 = vector.broadcast %25 : vector<16x1xf32> to vector<16x32xf32>
      %27 = arith.subf %21, %26 : vector<16x32xf32>
      %28 = arith.mulf %27, %27 : vector<16x32xf32>
      %cst_17 = arith.constant dense<0.000000e+00> : vector<16xf32>
      %29 = vector.multi_reduction <add>, %28, %cst_17 [1] : vector<16x32xf32> to vector<16xf32>
      %30 = vector.shape_cast %29 : vector<16xf32> to vector<16x1xf32>
      %cst_18 = arith.constant 3.200000e+01 : f32
      %31 = vector.broadcast %cst_18 : f32 to vector<16x1xf32>
      %32 = arith.divf %30, %31 : vector<16x1xf32>
      %cst_19 = arith.constant 9.99999997E-7 : f32
      %33 = vector.broadcast %cst_19 : f32 to vector<16x1xf32>
      %34 = arith.addf %32, %33 : vector<16x1xf32>
      %35 = math.rsqrt %34 : vector<16x1xf32>
      %36 = vector.broadcast %35 : vector<16x1xf32> to vector<16x32xf32>
      %37 = arith.mulf %27, %36 : vector<16x32xf32>
      %c0_20 = arith.constant 0 : index
      %c0_21 = arith.constant 0 : index
      %c0_22 = arith.constant 0 : index
      %38 = vector.load %arg6[%c0_20, %c0_21, %c0_22] : memref<1x1x32xf32, #tpu.memory_space<vmem>>, vector<1x1x32xf32>
      %39 = vector.shape_cast %38 : vector<1x1x32xf32> to vector<1x32xf32>
      %cst_23 = arith.constant 1.000000e+00 : f32
      %40 = vector.broadcast %cst_23 : f32 to vector<1x32xf32>
      %41 = arith.addf %40, %39 : vector<1x32xf32>
      %42 = vector.broadcast %41 : vector<1x32xf32> to vector<16x32xf32>
      %43 = arith.mulf %37, %42 : vector<16x32xf32>
      %c0_24 = arith.constant 0 : index
      %c0_25 = arith.constant 0 : index
      %c0_26 = arith.constant 0 : index
      %44 = vector.load %arg5[%c0_24, %c0_25, %c0_26] : memref<1x1x32xf32, #tpu.memory_space<vmem>>, vector<1x1x32xf32>
      %45 = vector.shape_cast %44 : vector<1x1x32xf32> to vector<1x32xf32>
      %46 = vector.broadcast %45 : vector<1x32xf32> to vector<16x32xf32>
      %47 = arith.addf %43, %46 : vector<16x32xf32>
      %48 = arith.truncf %47 : vector<16x32xf32> to vector<16x32xbf16>
      %c0_27 = arith.constant 0 : index
      %c0_28 = arith.constant 0 : index
      %49 = vector.load %arg11[%c0_27, %c0_28] : memref<16x32xbf16, #tpu.memory_space<vmem>>, vector<16x32xbf16>
      tpu.vector_store %arg11[%c0_27, %c0_28], %48 {strides = array<i32>} : memref<16x32xbf16, #tpu.memory_space<vmem>>, vector<16x32xbf16>,
    } else {
    }
    %c0 = arith.constant 0 : index
    %c0_2 = arith.constant 0 : index
    %5 = vector.load %arg11[%c0, %c0_2] : memref<16x32xbf16, #tpu.memory_space<vmem>>, vector<16x32xbf16>
    %c0_3 = arith.constant 0 : index
    %c0_4 = arith.constant 0 : index
    %c0_5 = arith.constant 0 : index
    %6 = vector.load %arg7[%c0_3, %c0_4, %c0_5] : memref<1x32x32xbf16, #tpu.memory_space<vmem>>, vector<1x32x32xbf16>
    %7 = vector.shape_cast %6 : vector<1x32x32xbf16> to vector<32x32xbf16>
    %cst = arith.constant dense<0.000000e+00> : vector<16x32xf32>
    %8 = tpu.matmul %5, %7, %cst {dimension_numbers = #tpu.dot_dimension_numbers<[1], [0], [0], [1], [0, 0, 1, 1], [], []>} : vector<16x32xbf16>, vector<32x32xbf16>, vector<16x32xf32> -> vector<16x32xf32>
    %c0_6 = arith.constant 0 : index
    %c0_7 = arith.constant 0 : index
    %c0_8 = arith.constant 0 : index
    %9 = vector.load %arg8[%c0_6, %c0_7, %c0_8] : memref<1x1x32xf32, #tpu.memory_space<vmem>>, vector<1x1x32xf32>
    %10 = vector.shape_cast %9 : vector<1x1x32xf32> to vector<1x32xf32>
    %11 = vector.broadcast %10 : vector<1x32xf32> to vector<16x32xf32>
    %12 = arith.addf %8, %11 : vector<16x32xf32>
    %c2_i32 = arith.constant 2 : i32
    %13 = arith.cmpi eq, %arg2, %c2_i32 : i32
    %14 = arith.extui %13 : i1 to i32
    %c0_i32_9 = arith.constant 0 : i32
    %15 = arith.cmpi ne, %14, %c0_i32_9 : i32
    scf.if %15 {
      %19 = arith.truncf %12 : vector<16x32xf32> to vector<16x32xbf16>
      %c0_12 = arith.constant 0 : index
      %c0_13 = arith.constant 0 : index
      %c0_14 = arith.constant 0 : index
      %c0_15 = arith.constant 0 : index
      %20 = vector.load %arg10[%c0_12, %c0_13, %c0_14, %c0_15] : memref<1x1x16x32xbf16, #tpu.memory_space<vmem>>, vector<1x1x16x32xbf16>
      %21 = vector.shape_cast %20 : vector<1x1x16x32xbf16> to vector<16x32xbf16>
      %22 = vector.shape_cast %19 : vector<16x32xbf16> to vector<1x1x16x32xbf16>
      tpu.vector_store %arg10[%c0_12, %c0_13, %c0_14, %c0_15], %22 {strides = array<i32>} : memref<1x1x16x32xbf16, #tpu.memory_space<vmem>>, vector<1x1x16x32xbf16>,
    } else {
    }
    %c2_i32_10 = arith.constant 2 : i32
    %16 = arith.cmpi slt, %arg2, %c2_i32_10 : i32
    %17 = arith.extui %16 : i1 to i32
    %c0_i32_11 = arith.constant 0 : i32
    %18 = arith.cmpi ne, %17, %c0_i32_11 : i32
    scf.if %18 {
      %c0_12 = arith.constant 0 : index
      %c0_13 = arith.constant 0 : index
      %c0_14 = arith.constant 0 : index
      %19 = vector.load %arg9[%c0_12, %c0_13, %c0_14] : memref<1x1x32xf32, #tpu.memory_space<vmem>>, vector<1x1x32xf32>
      %20 = vector.shape_cast %19 : vector<1x1x32xf32> to vector<1x32xf32>
      %21 = vector.extract_strided_slice %12 {offsets = [0, 0], sizes = [16, 16], strides = [1, 1]} : vector<16x32xf32> to vector<16x16xf32>
      %22 = arith.mulf %21, %21 : vector<16x16xf32>
      %cst_15 = arith.constant dense<0.000000e+00> : vector<16xf32>
      %23 = vector.multi_reduction <add>, %22, %cst_15 [1] : vector<16x16xf32> to vector<16xf32>
      %24 = vector.shape_cast %23 : vector<16xf32> to vector<16x1xf32>
      %cst_16 = arith.constant 1.600000e+01 : f32
      %25 = vector.broadcast %cst_16 : f32 to vector<16x1xf32>
      %26 = arith.divf %24, %25 : vector<16x1xf32>
      %cst_17 = arith.constant 9.99999997E-7 : f32
      %27 = vector.broadcast %cst_17 : f32 to vector<16x1xf32>
      %28 = arith.addf %26, %27 : vector<16x1xf32>
      %29 = math.rsqrt %28 : vector<16x1xf32>
      %30 = vector.broadcast %29 : vector<16x1xf32> to vector<16x16xf32>
      %31 = arith.mulf %21, %30 : vector<16x16xf32>
      %32 = vector.extract_strided_slice %20 {offsets = [0, 0], sizes = [1, 16], strides = [1, 1]} : vector<1x32xf32> to vector<1x16xf32>
      %33 = vector.broadcast %32 : vector<1x16xf32> to vector<16x16xf32>
      %34 = arith.mulf %31, %33 : vector<16x16xf32>
      %35 = vector.extract_strided_slice %12 {offsets = [0, 16], sizes = [16, 16], strides = [1, 1]} : vector<16x32xf32> to vector<16x16xf32>
      %36 = arith.mulf %35, %35 : vector<16x16xf32>
      %cst_18 = arith.constant dense<0.000000e+00> : vector<16xf32>
      %37 = vector.multi_reduction <add>, %36, %cst_18 [1] : vector<16x16xf32> to vector<16xf32>
      %38 = vector.shape_cast %37 : vector<16xf32> to vector<16x1xf32>
      %cst_19 = arith.constant 1.600000e+01 : f32
      %39 = vector.broadcast %cst_19 : f32 to vector<16x1xf32>
      %40 = arith.divf %38, %39 : vector<16x1xf32>
      %cst_20 = arith.constant 9.99999997E-7 : f32
      %41 = vector.broadcast %cst_20 : f32 to vector<16x1xf32>
      %42 = arith.addf %40, %41 : vector<16x1xf32>
      %43 = math.rsqrt %42 : vector<16x1xf32>
      %44 = vector.broadcast %43 : vector<16x1xf32> to vector<16x16xf32>
      %45 = arith.mulf %35, %44 : vector<16x16xf32>
      %46 = vector.extract_strided_slice %20 {offsets = [0, 16], sizes = [1, 16], strides = [1, 1]} : vector<1x32xf32> to vector<1x16xf32>
      %47 = vector.broadcast %46 : vector<1x16xf32> to vector<16x16xf32>
      %48 = arith.mulf %45, %47 : vector<16x16xf32>
      %49 = tpu.concatenate %34, %48 in 1 : vector<16x16xf32>, vector<16x16xf32> -> vector<16x32xf32>
      %50 = arith.truncf %49 : vector<16x32xf32> to vector<16x32xbf16>
      %c0_21 = arith.constant 0 : index
      %c0_22 = arith.constant 0 : index
      %c0_23 = arith.constant 0 : index
      %c0_24 = arith.constant 0 : index
      %51 = vector.load %arg10[%c0_21, %c0_22, %c0_23, %c0_24] : memref<1x1x16x32xbf16, #tpu.memory_space<vmem>>, vector<1x1x16x32xbf16>
      %52 = vector.shape_cast %51 : vector<1x1x16x32xbf16> to vector<16x32xbf16>
      %53 = vector.shape_cast %50 : vector<16x32xbf16> to vector<1x1x16x32xbf16>
      tpu.vector_store %arg10[%c0_21, %c0_22, %c0_23, %c0_24], %53 {strides = array<i32>} : memref<1x1x16x32xbf16, #tpu.memory_space<vmem>>, vector<1x1x16x32xbf16>,
    } else {
    }
    return
  }
  func.func @transform_0(%arg0: i32, %arg1: i32, %arg2: i32, %arg3: i32) -> (i32, i32, i32) {
    %c0_i32 = arith.constant 0 : i32
    %c0_i32_0 = arith.constant 0 : i32
    return %arg0, %arg1, %c0_i32 : i32, i32, i32
  }
  func.func @transform_1(%arg0: i32, %arg1: i32, %arg2: i32, %arg3: i32) -> (i32, i32, i32) {
    %c0_i32 = arith.constant 0 : i32
    %c0_i32_0 = arith.constant 0 : i32
    %c0_i32_1 = arith.constant 0 : i32
    return %arg0, %c0_i32, %c0_i32_0 : i32, i32, i32
  }
  func.func @transform_2(%arg0: i32, %arg1: i32, %arg2: i32, %arg3: i32) -> (i32, i32, i32) {
    %c0_i32 = arith.constant 0 : i32
    %c0_i32_0 = arith.constant 0 : i32
    %c0_i32_1 = arith.constant 0 : i32
    return %arg0, %c0_i32, %c0_i32_0 : i32, i32, i32
  }
  func.func @transform_3(%arg0: i32, %arg1: i32, %arg2: i32, %arg3: i32) -> (i32, i32, i32) {
    %c0_i32 = arith.constant 0 : i32
    %c0_i32_0 = arith.constant 0 : i32
    return %arg2, %c0_i32, %arg3 : i32, i32, i32
  }
  func.func @transform_4(%arg0: i32, %arg1: i32, %arg2: i32, %arg3: i32) -> (i32, i32, i32) {
    %c0_i32 = arith.constant 0 : i32
    %c0_i32_0 = arith.constant 0 : i32
    return %arg2, %c0_i32, %arg3 : i32, i32, i32
  }
  func.func @transform_5(%arg0: i32, %arg1: i32, %arg2: i32, %arg3: i32) -> (i32, i32, i32) {
    %c0_i32 = arith.constant 0 : i32
    %c0_i32_0 = arith.constant 0 : i32
    return %arg2, %c0_i32, %arg3 : i32, i32, i32
  }
  func.func @transform_6(%arg0: i32, %arg1: i32, %arg2: i32, %arg3: i32) -> (i32, i32, i32, i32) {
    %c0_i32 = arith.constant 0 : i32
    %0 = arith.addi %arg1, %c0_i32 : i32
    %c0_i32_0 = arith.constant 0 : i32
    return %arg0, %arg2, %0, %arg3 : i32, i32, i32, i32
  }
}

module attributes {stable_mosaic.version = 11 : i64} {
  func.func @_flash_attn_kernel(%arg0: i32, %arg1: i32, %arg2: i32, %arg3: memref<1x1x16x32xbf16, #tpu.memory_space<vmem>>, %arg4: memref<1x1x16x32xbf16, #tpu.memory_space<vmem>>, %arg5: memref<1x1x16x32xbf16, #tpu.memory_space<vmem>>, %arg6: memref<1x16x32xbf16, #tpu.memory_space<vmem>>, %arg7: memref<16x32xf32, #tpu.memory_space<vmem>>, %arg8: memref<16x32xf32, #tpu.memory_space<vmem>>, %arg9: memref<16x32xf32, #tpu.memory_space<vmem>>) attributes {dimension_semantics = [#tpu.dimension_semantics<parallel>, #tpu.dimension_semantics<parallel>, #tpu.dimension_semantics<arbitrary>], iteration_bounds = array<i64: 2, 2, 2>, scalar_prefetch = 0 : i64, scratch_operands = 3 : i64, tpu.core_type = #tpu.core_type<tc>, window_params = [{transform_indices = @transform_0, window_bounds = array<i64: 1, 1, 16, 32>}, {transform_indices = @transform_1, window_bounds = array<i64: 1, 1, 16, 32>}, {transform_indices = @transform_2, window_bounds = array<i64: 1, 1, 16, 32>}, {transform_indices = @transform_3, window_bounds = array<i64: 1, 16, 32>}]} {
    %c0_i32 = arith.constant 0 : i32
    %0 = arith.cmpi eq, %arg2, %c0_i32 : i32
    %1 = arith.extui %0 : i1 to i32
    %c0_i32_0 = arith.constant 0 : i32
    %2 = arith.cmpi ne, %1, %c0_i32_0 : i32
    scf.if %2 {
      %cst_47 = arith.constant -1.000000e+30 : f32
      %95 = vector.broadcast %cst_47 : f32 to vector<16x32xf32>
      %c0_48 = arith.constant 0 : index
      %c0_49 = arith.constant 0 : index
      %96 = vector.load %arg7[%c0_48, %c0_49] : memref<16x32xf32, #tpu.memory_space<vmem>>, vector<16x32xf32>
      tpu.vector_store %arg7[%c0_48, %c0_49], %95 {strides = array<i32>} : memref<16x32xf32, #tpu.memory_space<vmem>>, vector<16x32xf32>,
      %cst_50 = arith.constant 0.000000e+00 : f32
      %97 = vector.broadcast %cst_50 : f32 to vector<16x32xf32>
      %c0_51 = arith.constant 0 : index
      %c0_52 = arith.constant 0 : index
      %98 = vector.load %arg8[%c0_51, %c0_52] : memref<16x32xf32, #tpu.memory_space<vmem>>, vector<16x32xf32>
      tpu.vector_store %arg8[%c0_51, %c0_52], %97 {strides = array<i32>} : memref<16x32xf32, #tpu.memory_space<vmem>>, vector<16x32xf32>,
      %cst_53 = arith.constant 0.000000e+00 : f32
      %99 = vector.broadcast %cst_53 : f32 to vector<16x32xf32>
      %c0_54 = arith.constant 0 : index
      %c0_55 = arith.constant 0 : index
      %100 = vector.load %arg9[%c0_54, %c0_55] : memref<16x32xf32, #tpu.memory_space<vmem>>, vector<16x32xf32>
      tpu.vector_store %arg9[%c0_54, %c0_55], %99 {strides = array<i32>} : memref<16x32xf32, #tpu.memory_space<vmem>>, vector<16x32xf32>,
    } else {
    }
    %c0 = arith.constant 0 : index
    %c0_1 = arith.constant 0 : index
    %c0_2 = arith.constant 0 : index
    %c0_3 = arith.constant 0 : index
    %3 = vector.load %arg3[%c0, %c0_1, %c0_2, %c0_3] : memref<1x1x16x32xbf16, #tpu.memory_space<vmem>>, vector<1x1x16x32xbf16>
    %4 = vector.shape_cast %3 : vector<1x1x16x32xbf16> to vector<16x32xbf16>
    %c0_4 = arith.constant 0 : index
    %c0_5 = arith.constant 0 : index
    %c0_6 = arith.constant 0 : index
    %c0_7 = arith.constant 0 : index
    %5 = vector.load %arg4[%c0_4, %c0_5, %c0_6, %c0_7] : memref<1x1x16x32xbf16, #tpu.memory_space<vmem>>, vector<1x1x16x32xbf16>
    %6 = vector.shape_cast %5 : vector<1x1x16x32xbf16> to vector<16x32xbf16>
    %c0_8 = arith.constant 0 : index
    %c0_9 = arith.constant 0 : index
    %c0_10 = arith.constant 0 : index
    %c0_11 = arith.constant 0 : index
    %7 = vector.load %arg5[%c0_8, %c0_9, %c0_10, %c0_11] : memref<1x1x16x32xbf16, #tpu.memory_space<vmem>>, vector<1x1x16x32xbf16>
    %8 = vector.shape_cast %7 : vector<1x1x16x32xbf16> to vector<16x32xbf16>
    %c16_i32 = arith.constant 16 : i32
    %9 = arith.muli %arg2, %c16_i32 : i32
    %10 = tpu.iota {dimensions = array<i32: 1>} : vector<1x16xi32>
    %11 = vector.broadcast %9 : i32 to vector<1x16xi32>
    %12 = arith.addi %11, %10 : vector<1x16xi32>
    %c16_i32_12 = arith.constant 16 : i32
    %13 = vector.broadcast %c16_i32_12 : i32 to vector<1x16xi32>
    %14 = arith.cmpi slt, %12, %13 : vector<1x16xi32>
    %c16_i32_13 = arith.constant 16 : i32
    %15 = vector.broadcast %c16_i32_13 : i32 to vector<1x16xi32>
    %16 = arith.cmpi sge, %12, %15 : vector<1x16xi32>
    %c24_i32 = arith.constant 24 : i32
    %17 = vector.broadcast %c24_i32 : i32 to vector<1x16xi32>
    %18 = arith.cmpi slt, %12, %17 : vector<1x16xi32>
    %19 = arith.andi %16, %18 : vector<1x16xi1>
    %20 = arith.ori %14, %19 : vector<1x16xi1>
    %cst = arith.constant 0.000000e+00 : f32
    %cst_14 = arith.constant -1.000000e+30 : f32
    %21 = vector.broadcast %cst : f32 to vector<1x16xf32>
    %22 = vector.broadcast %cst_14 : f32 to vector<1x16xf32>
    %23 = arith.select %20, %21, %22 : vector<1x16xi1>, vector<1x16xf32>
    %24 = arith.extui %20 : vector<1x16xi1> to vector<1x16xi32>
    %25 = arith.sitofp %24 : vector<1x16xi32> to vector<1x16xf32>
    %26 = vector.extract_strided_slice %4 {offsets = [0, 0], sizes = [16, 16], strides = [1, 1]} : vector<16x32xbf16> to vector<16x16xbf16>
    %27 = vector.extract_strided_slice %6 {offsets = [0, 0], sizes = [16, 16], strides = [1, 1]} : vector<16x32xbf16> to vector<16x16xbf16>
    %cst_15 = arith.constant dense<0.000000e+00> : vector<16x16xf32>
    %28 = tpu.matmul %26, %27, %cst_15 {dimension_numbers = #tpu.dot_dimension_numbers<[1], [1], [0], [0], [0, 0, 1, 0], [], []>} : vector<16x16xbf16>, vector<16x16xbf16>, vector<16x16xf32> -> vector<16x16xf32>
    %29 = vector.broadcast %23 : vector<1x16xf32> to vector<16x16xf32>
    %30 = arith.addf %28, %29 : vector<16x16xf32>
    %c0_16 = arith.constant 0 : index
    %c0_17 = arith.constant 0 : index
    %31 = vector.load %arg7[%c0_16, %c0_17] : memref<16x32xf32, #tpu.memory_space<vmem>>, vector<16x16xf32>
    %cst_18 = arith.constant dense<0xFF800000> : vector<16xf32>
    %32 = vector.multi_reduction <maximumf>, %30, %cst_18 [1] : vector<16x16xf32> to vector<16xf32>
    %33 = vector.shape_cast %32 : vector<16xf32> to vector<16x1xf32>
    %34 = vector.broadcast %33 : vector<16x1xf32> to vector<16x16xf32>
    %35 = arith.maximumf %31, %34 : vector<16x16xf32>
    %36 = arith.subf %31, %35 : vector<16x16xf32>
    %37 = math.exp %36 : vector<16x16xf32>
    %38 = vector.extract_strided_slice %35 {offsets = [0, 0], sizes = [16, 1], strides = [1, 1]} : vector<16x16xf32> to vector<16x1xf32>
    %39 = vector.broadcast %38 : vector<16x1xf32> to vector<16x16xf32>
    %40 = arith.subf %30, %39 : vector<16x16xf32>
    %41 = math.exp %40 : vector<16x16xf32>
    %42 = vector.broadcast %25 : vector<1x16xf32> to vector<16x16xf32>
    %43 = arith.mulf %41, %42 : vector<16x16xf32>
    %c0_19 = arith.constant 0 : index
    %c0_20 = arith.constant 0 : index
    %44 = vector.load %arg8[%c0_19, %c0_20] : memref<16x32xf32, #tpu.memory_space<vmem>>, vector<16x16xf32>
    %45 = arith.mulf %37, %44 : vector<16x16xf32>
    %cst_21 = arith.constant dense<0.000000e+00> : vector<16xf32>
    %46 = vector.multi_reduction <add>, %43, %cst_21 [1] : vector<16x16xf32> to vector<16xf32>
    %47 = vector.shape_cast %46 : vector<16xf32> to vector<16x1xf32>
    %48 = vector.broadcast %47 : vector<16x1xf32> to vector<16x16xf32>
    %49 = arith.addf %45, %48 : vector<16x16xf32>
    %c0_22 = arith.constant 0 : index
    %c0_23 = arith.constant 0 : index
    %50 = vector.load %arg8[%c0_22, %c0_23] : memref<16x32xf32, #tpu.memory_space<vmem>>, vector<16x16xf32>
    tpu.vector_store %arg8[%c0_22, %c0_23], %49 {strides = array<i32>} : memref<16x32xf32, #tpu.memory_space<vmem>>, vector<16x16xf32>,
    %c0_24 = arith.constant 0 : index
    %c0_25 = arith.constant 0 : index
    %51 = vector.load %arg9[%c0_24, %c0_25] : memref<16x32xf32, #tpu.memory_space<vmem>>, vector<16x16xf32>
    %52 = arith.mulf %37, %51 : vector<16x16xf32>
    %53 = arith.truncf %43 : vector<16x16xf32> to vector<16x16xbf16>
    %54 = vector.extract_strided_slice %8 {offsets = [0, 0], sizes = [16, 16], strides = [1, 1]} : vector<16x32xbf16> to vector<16x16xbf16>
    %cst_26 = arith.constant dense<0.000000e+00> : vector<16x16xf32>
    %55 = tpu.matmul %53, %54, %cst_26 {dimension_numbers = #tpu.dot_dimension_numbers<[1], [0], [0], [1], [0, 0, 1, 1], [], []>} : vector<16x16xbf16>, vector<16x16xbf16>, vector<16x16xf32> -> vector<16x16xf32>
    %56 = arith.addf %52, %55 : vector<16x16xf32>
    %c0_27 = arith.constant 0 : index
    %c0_28 = arith.constant 0 : index
    %57 = vector.load %arg9[%c0_27, %c0_28] : memref<16x32xf32, #tpu.memory_space<vmem>>, vector<16x16xf32>
    tpu.vector_store %arg9[%c0_27, %c0_28], %56 {strides = array<i32>} : memref<16x32xf32, #tpu.memory_space<vmem>>, vector<16x16xf32>,
    %c0_29 = arith.constant 0 : index
    %c0_30 = arith.constant 0 : index
    %58 = vector.load %arg7[%c0_29, %c0_30] : memref<16x32xf32, #tpu.memory_space<vmem>>, vector<16x16xf32>
    tpu.vector_store %arg7[%c0_29, %c0_30], %35 {strides = array<i32>} : memref<16x32xf32, #tpu.memory_space<vmem>>, vector<16x16xf32>,
    %59 = vector.extract_strided_slice %4 {offsets = [0, 16], sizes = [16, 16], strides = [1, 1]} : vector<16x32xbf16> to vector<16x16xbf16>
    %60 = vector.extract_strided_slice %6 {offsets = [0, 16], sizes = [16, 16], strides = [1, 1]} : vector<16x32xbf16> to vector<16x16xbf16>
    %cst_31 = arith.constant dense<0.000000e+00> : vector<16x16xf32>
    %61 = tpu.matmul %59, %60, %cst_31 {dimension_numbers = #tpu.dot_dimension_numbers<[1], [1], [0], [0], [0, 0, 1, 0], [], []>} : vector<16x16xbf16>, vector<16x16xbf16>, vector<16x16xf32> -> vector<16x16xf32>
    %62 = vector.broadcast %23 : vector<1x16xf32> to vector<16x16xf32>
    %63 = arith.addf %61, %62 : vector<16x16xf32>
    %c0_32 = arith.constant 0 : index
    %c16 = arith.constant 16 : index
    %64 = vector.load %arg7[%c0_32, %c16] : memref<16x32xf32, #tpu.memory_space<vmem>>, vector<16x16xf32>
    %cst_33 = arith.constant dense<0xFF800000> : vector<16xf32>
    %65 = vector.multi_reduction <maximumf>, %63, %cst_33 [1] : vector<16x16xf32> to vector<16xf32>
    %66 = vector.shape_cast %65 : vector<16xf32> to vector<16x1xf32>
    %67 = vector.broadcast %66 : vector<16x1xf32> to vector<16x16xf32>
    %68 = arith.maximumf %64, %67 : vector<16x16xf32>
    %69 = arith.subf %64, %68 : vector<16x16xf32>
    %70 = math.exp %69 : vector<16x16xf32>
    %71 = vector.extract_strided_slice %68 {offsets = [0, 0], sizes = [16, 1], strides = [1, 1]} : vector<16x16xf32> to vector<16x1xf32>
    %72 = vector.broadcast %71 : vector<16x1xf32> to vector<16x16xf32>
    %73 = arith.subf %63, %72 : vector<16x16xf32>
    %74 = math.exp %73 : vector<16x16xf32>
    %75 = vector.broadcast %25 : vector<1x16xf32> to vector<16x16xf32>
    %76 = arith.mulf %74, %75 : vector<16x16xf32>
    %c0_34 = arith.constant 0 : index
    %c16_35 = arith.constant 16 : index
    %77 = vector.load %arg8[%c0_34, %c16_35] : memref<16x32xf32, #tpu.memory_space<vmem>>, vector<16x16xf32>
    %78 = arith.mulf %70, %77 : vector<16x16xf32>
    %cst_36 = arith.constant dense<0.000000e+00> : vector<16xf32>
    %79 = vector.multi_reduction <add>, %76, %cst_36 [1] : vector<16x16xf32> to vector<16xf32>
    %80 = vector.shape_cast %79 : vector<16xf32> to vector<16x1xf32>
    %81 = vector.broadcast %80 : vector<16x1xf32> to vector<16x16xf32>
    %82 = arith.addf %78, %81 : vector<16x16xf32>
    %c0_37 = arith.constant 0 : index
    %c16_38 = arith.constant 16 : index
    %83 = vector.load %arg8[%c0_37, %c16_38] : memref<16x32xf32, #tpu.memory_space<vmem>>, vector<16x16xf32>
    tpu.vector_store %arg8[%c0_37, %c16_38], %82 {strides = array<i32>} : memref<16x32xf32, #tpu.memory_space<vmem>>, vector<16x16xf32>,
    %c0_39 = arith.constant 0 : index
    %c16_40 = arith.constant 16 : index
    %84 = vector.load %arg9[%c0_39, %c16_40] : memref<16x32xf32, #tpu.memory_space<vmem>>, vector<16x16xf32>
    %85 = arith.mulf %70, %84 : vector<16x16xf32>
    %86 = arith.truncf %76 : vector<16x16xf32> to vector<16x16xbf16>
    %87 = vector.extract_strided_slice %8 {offsets = [0, 16], sizes = [16, 16], strides = [1, 1]} : vector<16x32xbf16> to vector<16x16xbf16>
    %cst_41 = arith.constant dense<0.000000e+00> : vector<16x16xf32>
    %88 = tpu.matmul %86, %87, %cst_41 {dimension_numbers = #tpu.dot_dimension_numbers<[1], [0], [0], [1], [0, 0, 1, 1], [], []>} : vector<16x16xbf16>, vector<16x16xbf16>, vector<16x16xf32> -> vector<16x16xf32>
    %89 = arith.addf %85, %88 : vector<16x16xf32>
    %c0_42 = arith.constant 0 : index
    %c16_43 = arith.constant 16 : index
    %90 = vector.load %arg9[%c0_42, %c16_43] : memref<16x32xf32, #tpu.memory_space<vmem>>, vector<16x16xf32>
    tpu.vector_store %arg9[%c0_42, %c16_43], %89 {strides = array<i32>} : memref<16x32xf32, #tpu.memory_space<vmem>>, vector<16x16xf32>,
    %c0_44 = arith.constant 0 : index
    %c16_45 = arith.constant 16 : index
    %91 = vector.load %arg7[%c0_44, %c16_45] : memref<16x32xf32, #tpu.memory_space<vmem>>, vector<16x16xf32>
    tpu.vector_store %arg7[%c0_44, %c16_45], %68 {strides = array<i32>} : memref<16x32xf32, #tpu.memory_space<vmem>>, vector<16x16xf32>,
    %c1_i32 = arith.constant 1 : i32
    %92 = arith.cmpi eq, %arg2, %c1_i32 : i32
    %93 = arith.extui %92 : i1 to i32
    %c0_i32_46 = arith.constant 0 : i32
    %94 = arith.cmpi ne, %93, %c0_i32_46 : i32
    scf.if %94 {
      %c0_47 = arith.constant 0 : index
      %c0_48 = arith.constant 0 : index
      %95 = vector.load %arg9[%c0_47, %c0_48] : memref<16x32xf32, #tpu.memory_space<vmem>>, vector<16x32xf32>
      %c0_49 = arith.constant 0 : index
      %c0_50 = arith.constant 0 : index
      %96 = vector.load %arg8[%c0_49, %c0_50] : memref<16x32xf32, #tpu.memory_space<vmem>>, vector<16x32xf32>
      %97 = tpu.reciprocal %96 {approx = true} : vector<16x32xf32> -> vector<16x32xf32>
      %98 = arith.mulf %95, %97 : vector<16x32xf32>
      %99 = arith.truncf %98 : vector<16x32xf32> to vector<16x32xbf16>
      %c0_51 = arith.constant 0 : index
      %c0_52 = arith.constant 0 : index
      %c0_53 = arith.constant 0 : index
      %100 = vector.load %arg6[%c0_51, %c0_52, %c0_53] : memref<1x16x32xbf16, #tpu.memory_space<vmem>>, vector<1x16x32xbf16>
      %101 = vector.shape_cast %100 : vector<1x16x32xbf16> to vector<16x32xbf16>
      %102 = vector.shape_cast %99 : vector<16x32xbf16> to vector<1x16x32xbf16>
      tpu.vector_store %arg6[%c0_51, %c0_52, %c0_53], %102 {strides = array<i32>} : memref<1x16x32xbf16, #tpu.memory_space<vmem>>, vector<1x16x32xbf16>,
    } else {
    }
    return
  }
  func.func @transform_0(%arg0: i32, %arg1: i32, %arg2: i32) -> (i32, i32, i32, i32) {
    %c0_i32 = arith.constant 0 : i32
    %c0_i32_0 = arith.constant 0 : i32
    %c0_i32_1 = arith.constant 0 : i32
    return %arg0, %c0_i32, %arg1, %c0_i32_0 : i32, i32, i32, i32
  }
  func.func @transform_1(%arg0: i32, %arg1: i32, %arg2: i32) -> (i32, i32, i32, i32) {
    %c1_i32 = arith.constant 1 : i32
    %c0_i32 = arith.constant 0 : i32
    %c0_i32_0 = arith.constant 0 : i32
    return %arg0, %c1_i32, %arg2, %c0_i32 : i32, i32, i32, i32
  }
  func.func @transform_2(%arg0: i32, %arg1: i32, %arg2: i32) -> (i32, i32, i32, i32) {
    %c2_i32 = arith.constant 2 : i32
    %c0_i32 = arith.constant 0 : i32
    %c0_i32_0 = arith.constant 0 : i32
    return %arg0, %c2_i32, %arg2, %c0_i32 : i32, i32, i32, i32
  }
  func.func @transform_3(%arg0: i32, %arg1: i32, %arg2: i32) -> (i32, i32, i32) {
    %c0_i32 = arith.constant 0 : i32
    %c0_i32_0 = arith.constant 0 : i32
    return %arg0, %arg1, %c0_i32 : i32, i32, i32
  }
}

module attributes {stable_mosaic.version = 11 : i64} {
  func.func @_proj_gate_res_kernel(%arg0: i32, %arg1: i32, %arg2: i32, %arg3: memref<1x16x32xbf16, #tpu.memory_space<vmem>>, %arg4: memref<32x16xbf16, #tpu.memory_space<vmem>>, %arg5: memref<1x1x16xf32, #tpu.memory_space<vmem>>, %arg6: memref<1x1x16xf32, #tpu.memory_space<vmem>>, %arg7: memref<1x16x16xbf16, #tpu.memory_space<vmem>>, %arg8: memref<1x16x16xbf16, #tpu.memory_space<vmem>>) attributes {dimension_semantics = [#tpu.dimension_semantics<parallel>, #tpu.dimension_semantics<parallel>, #tpu.dimension_semantics<parallel>], iteration_bounds = array<i64: 2, 1, 1>, scalar_prefetch = 0 : i64, scratch_operands = 0 : i64, tpu.core_type = #tpu.core_type<tc>, window_params = [{transform_indices = @transform_0, window_bounds = array<i64: 1, 16, 32>}, {transform_indices = @transform_1, window_bounds = array<i64: 32, 16>}, {transform_indices = @transform_2, window_bounds = array<i64: 1, 1, 16>}, {transform_indices = @transform_3, window_bounds = array<i64: 1, 1, 16>}, {transform_indices = @transform_4, window_bounds = array<i64: 1, 16, 16>}, {transform_indices = @transform_5, window_bounds = array<i64: 1, 16, 16>}]} {
    %c0 = arith.constant 0 : index
    %c0_0 = arith.constant 0 : index
    %c0_1 = arith.constant 0 : index
    %0 = vector.load %arg3[%c0, %c0_0, %c0_1] : memref<1x16x32xbf16, #tpu.memory_space<vmem>>, vector<1x16x32xbf16>
    %1 = vector.shape_cast %0 : vector<1x16x32xbf16> to vector<16x32xbf16>
    %c0_2 = arith.constant 0 : index
    %c0_3 = arith.constant 0 : index
    %2 = vector.load %arg4[%c0_2, %c0_3] : memref<32x16xbf16, #tpu.memory_space<vmem>>, vector<32x16xbf16>
    %cst = arith.constant dense<0.000000e+00> : vector<16x16xf32>
    %3 = tpu.matmul %1, %2, %cst {dimension_numbers = #tpu.dot_dimension_numbers<[1], [0], [0], [1], [0, 0, 1, 1], [], []>} : vector<16x32xbf16>, vector<32x16xbf16>, vector<16x16xf32> -> vector<16x16xf32>
    %c0_4 = arith.constant 0 : index
    %c0_5 = arith.constant 0 : index
    %c0_6 = arith.constant 0 : index
    %4 = vector.load %arg5[%c0_4, %c0_5, %c0_6] : memref<1x1x16xf32, #tpu.memory_space<vmem>>, vector<1x1x16xf32>
    %5 = vector.shape_cast %4 : vector<1x1x16xf32> to vector<1x16xf32>
    %6 = vector.broadcast %5 : vector<1x16xf32> to vector<16x16xf32>
    %7 = arith.addf %3, %6 : vector<16x16xf32>
    %c0_7 = arith.constant 0 : index
    %c0_8 = arith.constant 0 : index
    %c0_9 = arith.constant 0 : index
    %8 = vector.load %arg6[%c0_7, %c0_8, %c0_9] : memref<1x1x16xf32, #tpu.memory_space<vmem>>, vector<1x1x16xf32>
    %9 = vector.shape_cast %8 : vector<1x1x16xf32> to vector<1x16xf32>
    %10 = vector.broadcast %9 : vector<1x16xf32> to vector<16x16xf32>
    %11 = arith.mulf %7, %10 : vector<16x16xf32>
    %c0_10 = arith.constant 0 : index
    %c0_11 = arith.constant 0 : index
    %c0_12 = arith.constant 0 : index
    %12 = vector.load %arg7[%c0_10, %c0_11, %c0_12] : memref<1x16x16xbf16, #tpu.memory_space<vmem>>, vector<1x16x16xbf16>
    %13 = vector.shape_cast %12 : vector<1x16x16xbf16> to vector<16x16xbf16>
    %14 = arith.extf %13 : vector<16x16xbf16> to vector<16x16xf32>
    %15 = arith.addf %11, %14 : vector<16x16xf32>
    %16 = arith.truncf %15 : vector<16x16xf32> to vector<16x16xbf16>
    %c0_13 = arith.constant 0 : index
    %c0_14 = arith.constant 0 : index
    %c0_15 = arith.constant 0 : index
    %17 = vector.load %arg8[%c0_13, %c0_14, %c0_15] : memref<1x16x16xbf16, #tpu.memory_space<vmem>>, vector<1x16x16xbf16>
    %18 = vector.shape_cast %17 : vector<1x16x16xbf16> to vector<16x16xbf16>
    %19 = vector.shape_cast %16 : vector<16x16xbf16> to vector<1x16x16xbf16>
    tpu.vector_store %arg8[%c0_13, %c0_14, %c0_15], %19 {strides = array<i32>} : memref<1x16x16xbf16, #tpu.memory_space<vmem>>, vector<1x16x16xbf16>,
    return
  }
  func.func @transform_0(%arg0: i32, %arg1: i32, %arg2: i32) -> (i32, i32, i32) {
    %c1_i32 = arith.constant 1 : i32
    %0 = arith.addi %arg1, %c1_i32 : i32
    %c0_i32 = arith.constant 0 : i32
    %c0_i32_0 = arith.constant 0 : i32
    return %arg0, %0, %c0_i32 : i32, i32, i32
  }
  func.func @transform_1(%arg0: i32, %arg1: i32, %arg2: i32) -> (i32, i32) {
    %c0_i32 = arith.constant 0 : i32
    %c0_i32_0 = arith.constant 0 : i32
    return %c0_i32, %arg2 : i32, i32
  }
  func.func @transform_2(%arg0: i32, %arg1: i32, %arg2: i32) -> (i32, i32, i32) {
    %c0_i32 = arith.constant 0 : i32
    %c0_i32_0 = arith.constant 0 : i32
    %c0_i32_1 = arith.constant 0 : i32
    return %c0_i32, %c0_i32_0, %arg2 : i32, i32, i32
  }
  func.func @transform_3(%arg0: i32, %arg1: i32, %arg2: i32) -> (i32, i32, i32) {
    %c0_i32 = arith.constant 0 : i32
    %c0_i32_0 = arith.constant 0 : i32
    return %arg0, %c0_i32, %arg2 : i32, i32, i32
  }
  func.func @transform_4(%arg0: i32, %arg1: i32, %arg2: i32) -> (i32, i32, i32) {
    %c0_i32 = arith.constant 0 : i32
    return %arg0, %arg1, %arg2 : i32, i32, i32
  }
  func.func @transform_5(%arg0: i32, %arg1: i32, %arg2: i32) -> (i32, i32, i32) {
    %c0_i32 = arith.constant 0 : i32
    return %arg0, %arg1, %arg2 : i32, i32, i32
  }
}

module attributes {stable_mosaic.version = 11 : i64} {
  func.func @_proj_gate_res_kernel(%arg0: i32, %arg1: i32, %arg2: i32, %arg3: memref<1x16x32xbf16, #tpu.memory_space<vmem>>, %arg4: memref<32x32xbf16, #tpu.memory_space<vmem>>, %arg5: memref<1x1x32xf32, #tpu.memory_space<vmem>>, %arg6: memref<1x1x32xf32, #tpu.memory_space<vmem>>, %arg7: memref<1x16x32xbf16, #tpu.memory_space<vmem>>, %arg8: memref<1x16x32xbf16, #tpu.memory_space<vmem>>) attributes {dimension_semantics = [#tpu.dimension_semantics<parallel>, #tpu.dimension_semantics<parallel>, #tpu.dimension_semantics<parallel>], iteration_bounds = array<i64: 2, 1, 1>, scalar_prefetch = 0 : i64, scratch_operands = 0 : i64, tpu.core_type = #tpu.core_type<tc>, window_params = [{transform_indices = @transform_0, window_bounds = array<i64: 1, 16, 32>}, {transform_indices = @transform_1, window_bounds = array<i64: 32, 32>}, {transform_indices = @transform_2, window_bounds = array<i64: 1, 1, 32>}, {transform_indices = @transform_3, window_bounds = array<i64: 1, 1, 32>}, {transform_indices = @transform_4, window_bounds = array<i64: 1, 16, 32>}, {transform_indices = @transform_5, window_bounds = array<i64: 1, 16, 32>}]} {
    %c0 = arith.constant 0 : index
    %c0_0 = arith.constant 0 : index
    %c0_1 = arith.constant 0 : index
    %0 = vector.load %arg3[%c0, %c0_0, %c0_1] : memref<1x16x32xbf16, #tpu.memory_space<vmem>>, vector<1x16x32xbf16>
    %1 = vector.shape_cast %0 : vector<1x16x32xbf16> to vector<16x32xbf16>
    %c0_2 = arith.constant 0 : index
    %c0_3 = arith.constant 0 : index
    %2 = vector.load %arg4[%c0_2, %c0_3] : memref<32x32xbf16, #tpu.memory_space<vmem>>, vector<32x32xbf16>
    %cst = arith.constant dense<0.000000e+00> : vector<16x32xf32>
    %3 = tpu.matmul %1, %2, %cst {dimension_numbers = #tpu.dot_dimension_numbers<[1], [0], [0], [1], [0, 0, 1, 1], [], []>} : vector<16x32xbf16>, vector<32x32xbf16>, vector<16x32xf32> -> vector<16x32xf32>
    %c0_4 = arith.constant 0 : index
    %c0_5 = arith.constant 0 : index
    %c0_6 = arith.constant 0 : index
    %4 = vector.load %arg5[%c0_4, %c0_5, %c0_6] : memref<1x1x32xf32, #tpu.memory_space<vmem>>, vector<1x1x32xf32>
    %5 = vector.shape_cast %4 : vector<1x1x32xf32> to vector<1x32xf32>
    %6 = vector.broadcast %5 : vector<1x32xf32> to vector<16x32xf32>
    %7 = arith.addf %3, %6 : vector<16x32xf32>
    %c0_7 = arith.constant 0 : index
    %c0_8 = arith.constant 0 : index
    %c0_9 = arith.constant 0 : index
    %8 = vector.load %arg6[%c0_7, %c0_8, %c0_9] : memref<1x1x32xf32, #tpu.memory_space<vmem>>, vector<1x1x32xf32>
    %9 = vector.shape_cast %8 : vector<1x1x32xf32> to vector<1x32xf32>
    %10 = vector.broadcast %9 : vector<1x32xf32> to vector<16x32xf32>
    %11 = arith.mulf %7, %10 : vector<16x32xf32>
    %c0_10 = arith.constant 0 : index
    %c0_11 = arith.constant 0 : index
    %c0_12 = arith.constant 0 : index
    %12 = vector.load %arg7[%c0_10, %c0_11, %c0_12] : memref<1x16x32xbf16, #tpu.memory_space<vmem>>, vector<1x16x32xbf16>
    %13 = vector.shape_cast %12 : vector<1x16x32xbf16> to vector<16x32xbf16>
    %14 = arith.extf %13 : vector<16x32xbf16> to vector<16x32xf32>
    %15 = arith.addf %11, %14 : vector<16x32xf32>
    %16 = arith.truncf %15 : vector<16x32xf32> to vector<16x32xbf16>
    %c0_13 = arith.constant 0 : index
    %c0_14 = arith.constant 0 : index
    %c0_15 = arith.constant 0 : index
    %17 = vector.load %arg8[%c0_13, %c0_14, %c0_15] : memref<1x16x32xbf16, #tpu.memory_space<vmem>>, vector<1x16x32xbf16>
    %18 = vector.shape_cast %17 : vector<1x16x32xbf16> to vector<16x32xbf16>
    %19 = vector.shape_cast %16 : vector<16x32xbf16> to vector<1x16x32xbf16>
    tpu.vector_store %arg8[%c0_13, %c0_14, %c0_15], %19 {strides = array<i32>} : memref<1x16x32xbf16, #tpu.memory_space<vmem>>, vector<1x16x32xbf16>,
    return
  }
  func.func @transform_0(%arg0: i32, %arg1: i32, %arg2: i32) -> (i32, i32, i32) {
    %c0_i32 = arith.constant 0 : i32
    %0 = arith.addi %arg1, %c0_i32 : i32
    %c0_i32_0 = arith.constant 0 : i32
    %c0_i32_1 = arith.constant 0 : i32
    return %arg0, %0, %c0_i32_0 : i32, i32, i32
  }
  func.func @transform_1(%arg0: i32, %arg1: i32, %arg2: i32) -> (i32, i32) {
    %c0_i32 = arith.constant 0 : i32
    %c0_i32_0 = arith.constant 0 : i32
    return %c0_i32, %arg2 : i32, i32
  }
  func.func @transform_2(%arg0: i32, %arg1: i32, %arg2: i32) -> (i32, i32, i32) {
    %c0_i32 = arith.constant 0 : i32
    %c0_i32_0 = arith.constant 0 : i32
    %c0_i32_1 = arith.constant 0 : i32
    return %c0_i32, %c0_i32_0, %arg2 : i32, i32, i32
  }
  func.func @transform_3(%arg0: i32, %arg1: i32, %arg2: i32) -> (i32, i32, i32) {
    %c0_i32 = arith.constant 0 : i32
    %c0_i32_0 = arith.constant 0 : i32
    return %arg0, %c0_i32, %arg2 : i32, i32, i32
  }
  func.func @transform_4(%arg0: i32, %arg1: i32, %arg2: i32) -> (i32, i32, i32) {
    %c0_i32 = arith.constant 0 : i32
    return %arg0, %arg1, %arg2 : i32, i32, i32
  }
  func.func @transform_5(%arg0: i32, %arg1: i32, %arg2: i32) -> (i32, i32, i32) {
    %c0_i32 = arith.constant 0 : i32
    return %arg0, %arg1, %arg2 : i32, i32, i32
  }
}

module attributes {stable_mosaic.version = 11 : i64} {
  func.func @_mlp_fused_kernel(%arg0: i32, %arg1: i32, %arg2: i32, %arg3: memref<1x16x32xbf16, #tpu.memory_space<vmem>>, %arg4: memref<1x1x32xf32, #tpu.memory_space<vmem>>, %arg5: memref<1x1x32xf32, #tpu.memory_space<vmem>>, %arg6: memref<1x1x32xf32, #tpu.memory_space<vmem>>, %arg7: memref<32x128xbf16, #tpu.memory_space<vmem>>, %arg8: memref<1x1x128xf32, #tpu.memory_space<vmem>>, %arg9: memref<128x32xbf16, #tpu.memory_space<vmem>>, %arg10: memref<1x1x32xf32, #tpu.memory_space<vmem>>, %arg11: memref<1x16x32xbf16, #tpu.memory_space<vmem>>, %arg12: memref<16x32xbf16, #tpu.memory_space<vmem>>, %arg13: memref<16x32xf32, #tpu.memory_space<vmem>>) attributes {dimension_semantics = [#tpu.dimension_semantics<parallel>, #tpu.dimension_semantics<parallel>, #tpu.dimension_semantics<arbitrary>], iteration_bounds = array<i64: 2, 1, 1>, scalar_prefetch = 0 : i64, scratch_operands = 2 : i64, tpu.core_type = #tpu.core_type<tc>, window_params = [{transform_indices = @transform_0, window_bounds = array<i64: 1, 16, 32>}, {transform_indices = @transform_1, window_bounds = array<i64: 1, 1, 32>}, {transform_indices = @transform_2, window_bounds = array<i64: 1, 1, 32>}, {transform_indices = @transform_3, window_bounds = array<i64: 1, 1, 32>}, {transform_indices = @transform_4, window_bounds = array<i64: 32, 128>}, {transform_indices = @transform_5, window_bounds = array<i64: 1, 1, 128>}, {transform_indices = @transform_6, window_bounds = array<i64: 128, 32>}, {pipeline_mode = #tpu.pipeline_mode<synchronous>, transform_indices = @transform_7, window_bounds = array<i64: 1, 1, 32>}, {transform_indices = @transform_8, window_bounds = array<i64: 1, 16, 32>}]} {
    %c0_i32 = arith.constant 0 : i32
    %0 = arith.cmpi eq, %arg2, %c0_i32 : i32
    %1 = arith.extui %0 : i1 to i32
    %c0_i32_0 = arith.constant 0 : i32
    %2 = arith.cmpi ne, %1, %c0_i32_0 : i32
    scf.if %2 {
      %c0_20 = arith.constant 0 : index
      %c0_21 = arith.constant 0 : index
      %c0_22 = arith.constant 0 : index
      %32 = vector.load %arg3[%c0_20, %c0_21, %c0_22] : memref<1x16x32xbf16, #tpu.memory_space<vmem>>, vector<1x16x32xbf16>
      %33 = vector.shape_cast %32 : vector<1x16x32xbf16> to vector<16x32xbf16>
      %34 = arith.extf %33 : vector<16x32xbf16> to vector<16x32xf32>
      %cst_23 = arith.constant dense<0.000000e+00> : vector<16xf32>
      %35 = vector.multi_reduction <add>, %34, %cst_23 [1] : vector<16x32xf32> to vector<16xf32>
      %36 = vector.shape_cast %35 : vector<16xf32> to vector<16x1xf32>
      %cst_24 = arith.constant 3.200000e+01 : f32
      %37 = vector.broadcast %cst_24 : f32 to vector<16x1xf32>
      %38 = arith.divf %36, %37 : vector<16x1xf32>
      %39 = vector.broadcast %38 : vector<16x1xf32> to vector<16x32xf32>
      %40 = arith.subf %34, %39 : vector<16x32xf32>
      %41 = arith.mulf %40, %40 : vector<16x32xf32>
      %cst_25 = arith.constant dense<0.000000e+00> : vector<16xf32>
      %42 = vector.multi_reduction <add>, %41, %cst_25 [1] : vector<16x32xf32> to vector<16xf32>
      %43 = vector.shape_cast %42 : vector<16xf32> to vector<16x1xf32>
      %cst_26 = arith.constant 3.200000e+01 : f32
      %44 = vector.broadcast %cst_26 : f32 to vector<16x1xf32>
      %45 = arith.divf %43, %44 : vector<16x1xf32>
      %cst_27 = arith.constant 9.99999997E-7 : f32
      %46 = vector.broadcast %cst_27 : f32 to vector<16x1xf32>
      %47 = arith.addf %45, %46 : vector<16x1xf32>
      %48 = math.rsqrt %47 : vector<16x1xf32>
      %49 = vector.broadcast %48 : vector<16x1xf32> to vector<16x32xf32>
      %50 = arith.mulf %40, %49 : vector<16x32xf32>
      %c0_28 = arith.constant 0 : index
      %c0_29 = arith.constant 0 : index
      %c0_30 = arith.constant 0 : index
      %51 = vector.load %arg5[%c0_28, %c0_29, %c0_30] : memref<1x1x32xf32, #tpu.memory_space<vmem>>, vector<1x1x32xf32>
      %52 = vector.shape_cast %51 : vector<1x1x32xf32> to vector<1x32xf32>
      %cst_31 = arith.constant 1.000000e+00 : f32
      %53 = vector.broadcast %cst_31 : f32 to vector<1x32xf32>
      %54 = arith.addf %53, %52 : vector<1x32xf32>
      %55 = vector.broadcast %54 : vector<1x32xf32> to vector<16x32xf32>
      %56 = arith.mulf %50, %55 : vector<16x32xf32>
      %c0_32 = arith.constant 0 : index
      %c0_33 = arith.constant 0 : index
      %c0_34 = arith.constant 0 : index
      %57 = vector.load %arg4[%c0_32, %c0_33, %c0_34] : memref<1x1x32xf32, #tpu.memory_space<vmem>>, vector<1x1x32xf32>
      %58 = vector.shape_cast %57 : vector<1x1x32xf32> to vector<1x32xf32>
      %59 = vector.broadcast %58 : vector<1x32xf32> to vector<16x32xf32>
      %60 = arith.addf %56, %59 : vector<16x32xf32>
      %61 = arith.truncf %60 : vector<16x32xf32> to vector<16x32xbf16>
      %c0_35 = arith.constant 0 : index
      %c0_36 = arith.constant 0 : index
      %62 = vector.load %arg12[%c0_35, %c0_36] : memref<16x32xbf16, #tpu.memory_space<vmem>>, vector<16x32xbf16>
      tpu.vector_store %arg12[%c0_35, %c0_36], %61 {strides = array<i32>} : memref<16x32xbf16, #tpu.memory_space<vmem>>, vector<16x32xbf16>,
      %cst_37 = arith.constant 0.000000e+00 : f32
      %63 = vector.broadcast %cst_37 : f32 to vector<16x32xf32>
      %c0_38 = arith.constant 0 : index
      %c0_39 = arith.constant 0 : index
      %64 = vector.load %arg13[%c0_38, %c0_39] : memref<16x32xf32, #tpu.memory_space<vmem>>, vector<16x32xf32>
      tpu.vector_store %arg13[%c0_38, %c0_39], %63 {strides = array<i32>} : memref<16x32xf32, #tpu.memory_space<vmem>>, vector<16x32xf32>,
    } else {
    }
    %c0 = arith.constant 0 : index
    %c0_1 = arith.constant 0 : index
    %3 = vector.load %arg12[%c0, %c0_1] : memref<16x32xbf16, #tpu.memory_space<vmem>>, vector<16x32xbf16>
    %c0_2 = arith.constant 0 : index
    %c0_3 = arith.constant 0 : index
    %4 = vector.load %arg7[%c0_2, %c0_3] : memref<32x128xbf16, #tpu.memory_space<vmem>>, vector<32x128xbf16>
    %cst = arith.constant dense<0.000000e+00> : vector<16x128xf32>
    %5 = tpu.matmul %3, %4, %cst {dimension_numbers = #tpu.dot_dimension_numbers<[1], [0], [0], [1], [0, 0, 1, 1], [], []>} : vector<16x32xbf16>, vector<32x128xbf16>, vector<16x128xf32> -> vector<16x128xf32>
    %c0_4 = arith.constant 0 : index
    %c0_5 = arith.constant 0 : index
    %c0_6 = arith.constant 0 : index
    %6 = vector.load %arg8[%c0_4, %c0_5, %c0_6] : memref<1x1x128xf32, #tpu.memory_space<vmem>>, vector<1x1x128xf32>
    %7 = vector.shape_cast %6 : vector<1x1x128xf32> to vector<1x128xf32>
    %8 = vector.broadcast %7 : vector<1x128xf32> to vector<16x128xf32>
    %9 = arith.addf %5, %8 : vector<16x128xf32>
    %10 = arith.mulf %9, %9 : vector<16x128xf32>
    %11 = arith.mulf %9, %10 : vector<16x128xf32>
    %cst_7 = arith.constant 4.471500e-02 : f32
    %12 = vector.broadcast %cst_7 : f32 to vector<16x128xf32>
    %13 = arith.mulf %12, %11 : vector<16x128xf32>
    %14 = arith.addf %9, %13 : vector<16x128xf32>
    %cst_8 = arith.constant 0.797884583 : f32
    %15 = vector.broadcast %cst_8 : f32 to vector<16x128xf32>
    %16 = arith.mulf %15, %14 : vector<16x128xf32>
    %17 = math.tanh %16 : vector<16x128xf32>
    %cst_9 = arith.constant 1.000000e+00 : f32
    %18 = vector.broadcast %cst_9 : f32 to vector<16x128xf32>
    %19 = arith.addf %18, %17 : vector<16x128xf32>
    %cst_10 = arith.constant 5.000000e-01 : f32
    %20 = vector.broadcast %cst_10 : f32 to vector<16x128xf32>
    %21 = arith.mulf %20, %19 : vector<16x128xf32>
    %22 = arith.mulf %9, %21 : vector<16x128xf32>
    %c0_11 = arith.constant 0 : index
    %c0_12 = arith.constant 0 : index
    %23 = vector.load %arg13[%c0_11, %c0_12] : memref<16x32xf32, #tpu.memory_space<vmem>>, vector<16x32xf32>
    %24 = arith.truncf %22 : vector<16x128xf32> to vector<16x128xbf16>
    %c0_13 = arith.constant 0 : index
    %c0_14 = arith.constant 0 : index
    %25 = vector.load %arg9[%c0_13, %c0_14] : memref<128x32xbf16, #tpu.memory_space<vmem>>, vector<128x32xbf16>
    %cst_15 = arith.constant dense<0.000000e+00> : vector<16x32xf32>
    %26 = tpu.matmul %24, %25, %cst_15 {dimension_numbers = #tpu.dot_dimension_numbers<[1], [0], [0], [1], [0, 0, 1, 1], [], []>} : vector<16x128xbf16>, vector<128x32xbf16>, vector<16x32xf32> -> vector<16x32xf32>
    %27 = arith.addf %23, %26 : vector<16x32xf32>
    %c0_16 = arith.constant 0 : index
    %c0_17 = arith.constant 0 : index
    %28 = vector.load %arg13[%c0_16, %c0_17] : memref<16x32xf32, #tpu.memory_space<vmem>>, vector<16x32xf32>
    tpu.vector_store %arg13[%c0_16, %c0_17], %27 {strides = array<i32>} : memref<16x32xf32, #tpu.memory_space<vmem>>, vector<16x32xf32>,
    %c0_i32_18 = arith.constant 0 : i32
    %29 = arith.cmpi eq, %arg2, %c0_i32_18 : i32
    %30 = arith.extui %29 : i1 to i32
    %c0_i32_19 = arith.constant 0 : i32
    %31 = arith.cmpi ne, %30, %c0_i32_19 : i32
    scf.if %31 {
      %c0_20 = arith.constant 0 : index
      %c0_21 = arith.constant 0 : index
      %32 = vector.load %arg13[%c0_20, %c0_21] : memref<16x32xf32, #tpu.memory_space<vmem>>, vector<16x32xf32>
      %c0_22 = arith.constant 0 : index
      %c0_23 = arith.constant 0 : index
      %c0_24 = arith.constant 0 : index
      %33 = vector.load %arg10[%c0_22, %c0_23, %c0_24] : memref<1x1x32xf32, #tpu.memory_space<vmem>>, vector<1x1x32xf32>
      %34 = vector.shape_cast %33 : vector<1x1x32xf32> to vector<1x32xf32>
      %35 = vector.broadcast %34 : vector<1x32xf32> to vector<16x32xf32>
      %36 = arith.addf %32, %35 : vector<16x32xf32>
      %c0_25 = arith.constant 0 : index
      %c0_26 = arith.constant 0 : index
      %c0_27 = arith.constant 0 : index
      %37 = vector.load %arg6[%c0_25, %c0_26, %c0_27] : memref<1x1x32xf32, #tpu.memory_space<vmem>>, vector<1x1x32xf32>
      %38 = vector.shape_cast %37 : vector<1x1x32xf32> to vector<1x32xf32>
      %39 = vector.broadcast %38 : vector<1x32xf32> to vector<16x32xf32>
      %40 = arith.mulf %36, %39 : vector<16x32xf32>
      %c0_28 = arith.constant 0 : index
      %c0_29 = arith.constant 0 : index
      %c0_30 = arith.constant 0 : index
      %41 = vector.load %arg3[%c0_28, %c0_29, %c0_30] : memref<1x16x32xbf16, #tpu.memory_space<vmem>>, vector<1x16x32xbf16>
      %42 = vector.shape_cast %41 : vector<1x16x32xbf16> to vector<16x32xbf16>
      %43 = arith.extf %42 : vector<16x32xbf16> to vector<16x32xf32>
      %44 = arith.addf %40, %43 : vector<16x32xf32>
      %45 = arith.truncf %44 : vector<16x32xf32> to vector<16x32xbf16>
      %c0_31 = arith.constant 0 : index
      %c0_32 = arith.constant 0 : index
      %c0_33 = arith.constant 0 : index
      %46 = vector.load %arg11[%c0_31, %c0_32, %c0_33] : memref<1x16x32xbf16, #tpu.memory_space<vmem>>, vector<1x16x32xbf16>
      %47 = vector.shape_cast %46 : vector<1x16x32xbf16> to vector<16x32xbf16>
      %48 = vector.shape_cast %45 : vector<16x32xbf16> to vector<1x16x32xbf16>
      tpu.vector_store %arg11[%c0_31, %c0_32, %c0_33], %48 {strides = array<i32>} : memref<1x16x32xbf16, #tpu.memory_space<vmem>>, vector<1x16x32xbf16>,
    } else {
    }
    return
  }
  func.func @transform_0(%arg0: i32, %arg1: i32, %arg2: i32) -> (i32, i32, i32) {
    %c0_i32 = arith.constant 0 : i32
    %c0_i32_0 = arith.constant 0 : i32
    return %arg0, %arg1, %c0_i32 : i32, i32, i32
  }
  func.func @transform_1(%arg0: i32, %arg1: i32, %arg2: i32) -> (i32, i32, i32) {
    %c0_i32 = arith.constant 0 : i32
    %c0_i32_0 = arith.constant 0 : i32
    %c0_i32_1 = arith.constant 0 : i32
    return %arg0, %c0_i32, %c0_i32_0 : i32, i32, i32
  }
  func.func @transform_2(%arg0: i32, %arg1: i32, %arg2: i32) -> (i32, i32, i32) {
    %c0_i32 = arith.constant 0 : i32
    %c0_i32_0 = arith.constant 0 : i32
    %c0_i32_1 = arith.constant 0 : i32
    return %arg0, %c0_i32, %c0_i32_0 : i32, i32, i32
  }
  func.func @transform_3(%arg0: i32, %arg1: i32, %arg2: i32) -> (i32, i32, i32) {
    %c0_i32 = arith.constant 0 : i32
    %c0_i32_0 = arith.constant 0 : i32
    %c0_i32_1 = arith.constant 0 : i32
    return %arg0, %c0_i32, %c0_i32_0 : i32, i32, i32
  }
  func.func @transform_4(%arg0: i32, %arg1: i32, %arg2: i32) -> (i32, i32) {
    %c0_i32 = arith.constant 0 : i32
    %c0_i32_0 = arith.constant 0 : i32
    return %c0_i32, %arg2 : i32, i32
  }
  func.func @transform_5(%arg0: i32, %arg1: i32, %arg2: i32) -> (i32, i32, i32) {
    %c0_i32 = arith.constant 0 : i32
    %c0_i32_0 = arith.constant 0 : i32
    %c0_i32_1 = arith.constant 0 : i32
    return %c0_i32, %c0_i32_0, %arg2 : i32, i32, i32
  }
  func.func @transform_6(%arg0: i32, %arg1: i32, %arg2: i32) -> (i32, i32) {
    %c0_i32 = arith.constant 0 : i32
    %c0_i32_0 = arith.constant 0 : i32
    return %arg2, %c0_i32 : i32, i32
  }
  func.func @transform_7(%arg0: i32, %arg1: i32, %arg2: i32) -> (i32, i32, i32) {
    %c0_i32 = arith.constant 0 : i32
    %c0_i32_0 = arith.constant 0 : i32
    %c0_i32_1 = arith.constant 0 : i32
    %c0_i32_2 = arith.constant 0 : i32
    return %c0_i32, %c0_i32_0, %c0_i32_1 : i32, i32, i32
  }
  func.func @transform_8(%arg0: i32, %arg1: i32, %arg2: i32) -> (i32, i32, i32) {
    %c0_i32 = arith.constant 0 : i32
    %c0_i32_0 = arith.constant 0 : i32
    return %arg0, %arg1, %c0_i32 : i32, i32, i32
  }
}

module attributes {stable_mosaic.version = 11 : i64} {
  func.func @_mlp_fused_kernel(%arg0: i32, %arg1: i32, %arg2: i32, %arg3: memref<1x16x16xbf16, #tpu.memory_space<vmem>>, %arg4: memref<1x1x16xf32, #tpu.memory_space<vmem>>, %arg5: memref<1x1x16xf32, #tpu.memory_space<vmem>>, %arg6: memref<1x1x16xf32, #tpu.memory_space<vmem>>, %arg7: memref<16x64xbf16, #tpu.memory_space<vmem>>, %arg8: memref<1x1x64xf32, #tpu.memory_space<vmem>>, %arg9: memref<64x16xbf16, #tpu.memory_space<vmem>>, %arg10: memref<1x1x16xf32, #tpu.memory_space<vmem>>, %arg11: memref<1x16x16xbf16, #tpu.memory_space<vmem>>, %arg12: memref<16x16xbf16, #tpu.memory_space<vmem>>, %arg13: memref<16x16xf32, #tpu.memory_space<vmem>>) attributes {dimension_semantics = [#tpu.dimension_semantics<parallel>, #tpu.dimension_semantics<parallel>, #tpu.dimension_semantics<arbitrary>], iteration_bounds = array<i64: 2, 1, 1>, scalar_prefetch = 0 : i64, scratch_operands = 2 : i64, tpu.core_type = #tpu.core_type<tc>, window_params = [{transform_indices = @transform_0, window_bounds = array<i64: 1, 16, 16>}, {transform_indices = @transform_1, window_bounds = array<i64: 1, 1, 16>}, {transform_indices = @transform_2, window_bounds = array<i64: 1, 1, 16>}, {transform_indices = @transform_3, window_bounds = array<i64: 1, 1, 16>}, {transform_indices = @transform_4, window_bounds = array<i64: 16, 64>}, {transform_indices = @transform_5, window_bounds = array<i64: 1, 1, 64>}, {transform_indices = @transform_6, window_bounds = array<i64: 64, 16>}, {pipeline_mode = #tpu.pipeline_mode<synchronous>, transform_indices = @transform_7, window_bounds = array<i64: 1, 1, 16>}, {transform_indices = @transform_8, window_bounds = array<i64: 1, 16, 16>}]} {
    %c0_i32 = arith.constant 0 : i32
    %0 = arith.cmpi eq, %arg2, %c0_i32 : i32
    %1 = arith.extui %0 : i1 to i32
    %c0_i32_0 = arith.constant 0 : i32
    %2 = arith.cmpi ne, %1, %c0_i32_0 : i32
    scf.if %2 {
      %c0_20 = arith.constant 0 : index
      %c0_21 = arith.constant 0 : index
      %c0_22 = arith.constant 0 : index
      %32 = vector.load %arg3[%c0_20, %c0_21, %c0_22] : memref<1x16x16xbf16, #tpu.memory_space<vmem>>, vector<1x16x16xbf16>
      %33 = vector.shape_cast %32 : vector<1x16x16xbf16> to vector<16x16xbf16>
      %34 = arith.extf %33 : vector<16x16xbf16> to vector<16x16xf32>
      %cst_23 = arith.constant dense<0.000000e+00> : vector<16xf32>
      %35 = vector.multi_reduction <add>, %34, %cst_23 [1] : vector<16x16xf32> to vector<16xf32>
      %36 = vector.shape_cast %35 : vector<16xf32> to vector<16x1xf32>
      %cst_24 = arith.constant 1.600000e+01 : f32
      %37 = vector.broadcast %cst_24 : f32 to vector<16x1xf32>
      %38 = arith.divf %36, %37 : vector<16x1xf32>
      %39 = vector.broadcast %38 : vector<16x1xf32> to vector<16x16xf32>
      %40 = arith.subf %34, %39 : vector<16x16xf32>
      %41 = arith.mulf %40, %40 : vector<16x16xf32>
      %cst_25 = arith.constant dense<0.000000e+00> : vector<16xf32>
      %42 = vector.multi_reduction <add>, %41, %cst_25 [1] : vector<16x16xf32> to vector<16xf32>
      %43 = vector.shape_cast %42 : vector<16xf32> to vector<16x1xf32>
      %cst_26 = arith.constant 1.600000e+01 : f32
      %44 = vector.broadcast %cst_26 : f32 to vector<16x1xf32>
      %45 = arith.divf %43, %44 : vector<16x1xf32>
      %cst_27 = arith.constant 9.99999997E-7 : f32
      %46 = vector.broadcast %cst_27 : f32 to vector<16x1xf32>
      %47 = arith.addf %45, %46 : vector<16x1xf32>
      %48 = math.rsqrt %47 : vector<16x1xf32>
      %49 = vector.broadcast %48 : vector<16x1xf32> to vector<16x16xf32>
      %50 = arith.mulf %40, %49 : vector<16x16xf32>
      %c0_28 = arith.constant 0 : index
      %c0_29 = arith.constant 0 : index
      %c0_30 = arith.constant 0 : index
      %51 = vector.load %arg5[%c0_28, %c0_29, %c0_30] : memref<1x1x16xf32, #tpu.memory_space<vmem>>, vector<1x1x16xf32>
      %52 = vector.shape_cast %51 : vector<1x1x16xf32> to vector<1x16xf32>
      %cst_31 = arith.constant 1.000000e+00 : f32
      %53 = vector.broadcast %cst_31 : f32 to vector<1x16xf32>
      %54 = arith.addf %53, %52 : vector<1x16xf32>
      %55 = vector.broadcast %54 : vector<1x16xf32> to vector<16x16xf32>
      %56 = arith.mulf %50, %55 : vector<16x16xf32>
      %c0_32 = arith.constant 0 : index
      %c0_33 = arith.constant 0 : index
      %c0_34 = arith.constant 0 : index
      %57 = vector.load %arg4[%c0_32, %c0_33, %c0_34] : memref<1x1x16xf32, #tpu.memory_space<vmem>>, vector<1x1x16xf32>
      %58 = vector.shape_cast %57 : vector<1x1x16xf32> to vector<1x16xf32>
      %59 = vector.broadcast %58 : vector<1x16xf32> to vector<16x16xf32>
      %60 = arith.addf %56, %59 : vector<16x16xf32>
      %61 = arith.truncf %60 : vector<16x16xf32> to vector<16x16xbf16>
      %c0_35 = arith.constant 0 : index
      %c0_36 = arith.constant 0 : index
      %62 = vector.load %arg12[%c0_35, %c0_36] : memref<16x16xbf16, #tpu.memory_space<vmem>>, vector<16x16xbf16>
      tpu.vector_store %arg12[%c0_35, %c0_36], %61 {strides = array<i32>} : memref<16x16xbf16, #tpu.memory_space<vmem>>, vector<16x16xbf16>,
      %cst_37 = arith.constant 0.000000e+00 : f32
      %63 = vector.broadcast %cst_37 : f32 to vector<16x16xf32>
      %c0_38 = arith.constant 0 : index
      %c0_39 = arith.constant 0 : index
      %64 = vector.load %arg13[%c0_38, %c0_39] : memref<16x16xf32, #tpu.memory_space<vmem>>, vector<16x16xf32>
      tpu.vector_store %arg13[%c0_38, %c0_39], %63 {strides = array<i32>} : memref<16x16xf32, #tpu.memory_space<vmem>>, vector<16x16xf32>,
    } else {
    }
    %c0 = arith.constant 0 : index
    %c0_1 = arith.constant 0 : index
    %3 = vector.load %arg12[%c0, %c0_1] : memref<16x16xbf16, #tpu.memory_space<vmem>>, vector<16x16xbf16>
    %c0_2 = arith.constant 0 : index
    %c0_3 = arith.constant 0 : index
    %4 = vector.load %arg7[%c0_2, %c0_3] : memref<16x64xbf16, #tpu.memory_space<vmem>>, vector<16x64xbf16>
    %cst = arith.constant dense<0.000000e+00> : vector<16x64xf32>
    %5 = tpu.matmul %3, %4, %cst {dimension_numbers = #tpu.dot_dimension_numbers<[1], [0], [0], [1], [0, 0, 1, 1], [], []>} : vector<16x16xbf16>, vector<16x64xbf16>, vector<16x64xf32> -> vector<16x64xf32>
    %c0_4 = arith.constant 0 : index
    %c0_5 = arith.constant 0 : index
    %c0_6 = arith.constant 0 : index
    %6 = vector.load %arg8[%c0_4, %c0_5, %c0_6] : memref<1x1x64xf32, #tpu.memory_space<vmem>>, vector<1x1x64xf32>
    %7 = vector.shape_cast %6 : vector<1x1x64xf32> to vector<1x64xf32>
    %8 = vector.broadcast %7 : vector<1x64xf32> to vector<16x64xf32>
    %9 = arith.addf %5, %8 : vector<16x64xf32>
    %10 = arith.mulf %9, %9 : vector<16x64xf32>
    %11 = arith.mulf %9, %10 : vector<16x64xf32>
    %cst_7 = arith.constant 4.471500e-02 : f32
    %12 = vector.broadcast %cst_7 : f32 to vector<16x64xf32>
    %13 = arith.mulf %12, %11 : vector<16x64xf32>
    %14 = arith.addf %9, %13 : vector<16x64xf32>
    %cst_8 = arith.constant 0.797884583 : f32
    %15 = vector.broadcast %cst_8 : f32 to vector<16x64xf32>
    %16 = arith.mulf %15, %14 : vector<16x64xf32>
    %17 = math.tanh %16 : vector<16x64xf32>
    %cst_9 = arith.constant 1.000000e+00 : f32
    %18 = vector.broadcast %cst_9 : f32 to vector<16x64xf32>
    %19 = arith.addf %18, %17 : vector<16x64xf32>
    %cst_10 = arith.constant 5.000000e-01 : f32
    %20 = vector.broadcast %cst_10 : f32 to vector<16x64xf32>
    %21 = arith.mulf %20, %19 : vector<16x64xf32>
    %22 = arith.mulf %9, %21 : vector<16x64xf32>
    %c0_11 = arith.constant 0 : index
    %c0_12 = arith.constant 0 : index
    %23 = vector.load %arg13[%c0_11, %c0_12] : memref<16x16xf32, #tpu.memory_space<vmem>>, vector<16x16xf32>
    %24 = arith.truncf %22 : vector<16x64xf32> to vector<16x64xbf16>
    %c0_13 = arith.constant 0 : index
    %c0_14 = arith.constant 0 : index
    %25 = vector.load %arg9[%c0_13, %c0_14] : memref<64x16xbf16, #tpu.memory_space<vmem>>, vector<64x16xbf16>
    %cst_15 = arith.constant dense<0.000000e+00> : vector<16x16xf32>
    %26 = tpu.matmul %24, %25, %cst_15 {dimension_numbers = #tpu.dot_dimension_numbers<[1], [0], [0], [1], [0, 0, 1, 1], [], []>} : vector<16x64xbf16>, vector<64x16xbf16>, vector<16x16xf32> -> vector<16x16xf32>
    %27 = arith.addf %23, %26 : vector<16x16xf32>
    %c0_16 = arith.constant 0 : index
    %c0_17 = arith.constant 0 : index
    %28 = vector.load %arg13[%c0_16, %c0_17] : memref<16x16xf32, #tpu.memory_space<vmem>>, vector<16x16xf32>
    tpu.vector_store %arg13[%c0_16, %c0_17], %27 {strides = array<i32>} : memref<16x16xf32, #tpu.memory_space<vmem>>, vector<16x16xf32>,
    %c0_i32_18 = arith.constant 0 : i32
    %29 = arith.cmpi eq, %arg2, %c0_i32_18 : i32
    %30 = arith.extui %29 : i1 to i32
    %c0_i32_19 = arith.constant 0 : i32
    %31 = arith.cmpi ne, %30, %c0_i32_19 : i32
    scf.if %31 {
      %c0_20 = arith.constant 0 : index
      %c0_21 = arith.constant 0 : index
      %32 = vector.load %arg13[%c0_20, %c0_21] : memref<16x16xf32, #tpu.memory_space<vmem>>, vector<16x16xf32>
      %c0_22 = arith.constant 0 : index
      %c0_23 = arith.constant 0 : index
      %c0_24 = arith.constant 0 : index
      %33 = vector.load %arg10[%c0_22, %c0_23, %c0_24] : memref<1x1x16xf32, #tpu.memory_space<vmem>>, vector<1x1x16xf32>
      %34 = vector.shape_cast %33 : vector<1x1x16xf32> to vector<1x16xf32>
      %35 = vector.broadcast %34 : vector<1x16xf32> to vector<16x16xf32>
      %36 = arith.addf %32, %35 : vector<16x16xf32>
      %c0_25 = arith.constant 0 : index
      %c0_26 = arith.constant 0 : index
      %c0_27 = arith.constant 0 : index
      %37 = vector.load %arg6[%c0_25, %c0_26, %c0_27] : memref<1x1x16xf32, #tpu.memory_space<vmem>>, vector<1x1x16xf32>
      %38 = vector.shape_cast %37 : vector<1x1x16xf32> to vector<1x16xf32>
      %39 = vector.broadcast %38 : vector<1x16xf32> to vector<16x16xf32>
      %40 = arith.mulf %36, %39 : vector<16x16xf32>
      %c0_28 = arith.constant 0 : index
      %c0_29 = arith.constant 0 : index
      %c0_30 = arith.constant 0 : index
      %41 = vector.load %arg3[%c0_28, %c0_29, %c0_30] : memref<1x16x16xbf16, #tpu.memory_space<vmem>>, vector<1x16x16xbf16>
      %42 = vector.shape_cast %41 : vector<1x16x16xbf16> to vector<16x16xbf16>
      %43 = arith.extf %42 : vector<16x16xbf16> to vector<16x16xf32>
      %44 = arith.addf %40, %43 : vector<16x16xf32>
      %45 = arith.truncf %44 : vector<16x16xf32> to vector<16x16xbf16>
      %c0_31 = arith.constant 0 : index
      %c0_32 = arith.constant 0 : index
      %c0_33 = arith.constant 0 : index
      %46 = vector.load %arg11[%c0_31, %c0_32, %c0_33] : memref<1x16x16xbf16, #tpu.memory_space<vmem>>, vector<1x16x16xbf16>
      %47 = vector.shape_cast %46 : vector<1x16x16xbf16> to vector<16x16xbf16>
      %48 = vector.shape_cast %45 : vector<16x16xbf16> to vector<1x16x16xbf16>
      tpu.vector_store %arg11[%c0_31, %c0_32, %c0_33], %48 {strides = array<i32>} : memref<1x16x16xbf16, #tpu.memory_space<vmem>>, vector<1x16x16xbf16>,
    } else {
    }
    return
  }
  func.func @transform_0(%arg0: i32, %arg1: i32, %arg2: i32) -> (i32, i32, i32) {
    %c0_i32 = arith.constant 0 : i32
    %c0_i32_0 = arith.constant 0 : i32
    return %arg0, %arg1, %c0_i32 : i32, i32, i32
  }
  func.func @transform_1(%arg0: i32, %arg1: i32, %arg2: i32) -> (i32, i32, i32) {
    %c0_i32 = arith.constant 0 : i32
    %c0_i32_0 = arith.constant 0 : i32
    %c0_i32_1 = arith.constant 0 : i32
    return %arg0, %c0_i32, %c0_i32_0 : i32, i32, i32
  }
  func.func @transform_2(%arg0: i32, %arg1: i32, %arg2: i32) -> (i32, i32, i32) {
    %c0_i32 = arith.constant 0 : i32
    %c0_i32_0 = arith.constant 0 : i32
    %c0_i32_1 = arith.constant 0 : i32
    return %arg0, %c0_i32, %c0_i32_0 : i32, i32, i32
  }
  func.func @transform_3(%arg0: i32, %arg1: i32, %arg2: i32) -> (i32, i32, i32) {
    %c0_i32 = arith.constant 0 : i32
    %c0_i32_0 = arith.constant 0 : i32
    %c0_i32_1 = arith.constant 0 : i32
    return %arg0, %c0_i32, %c0_i32_0 : i32, i32, i32
  }
  func.func @transform_4(%arg0: i32, %arg1: i32, %arg2: i32) -> (i32, i32) {
    %c0_i32 = arith.constant 0 : i32
    %c0_i32_0 = arith.constant 0 : i32
    return %c0_i32, %arg2 : i32, i32
  }
  func.func @transform_5(%arg0: i32, %arg1: i32, %arg2: i32) -> (i32, i32, i32) {
    %c0_i32 = arith.constant 0 : i32
    %c0_i32_0 = arith.constant 0 : i32
    %c0_i32_1 = arith.constant 0 : i32
    return %c0_i32, %c0_i32_0, %arg2 : i32, i32, i32
  }
  func.func @transform_6(%arg0: i32, %arg1: i32, %arg2: i32) -> (i32, i32) {
    %c0_i32 = arith.constant 0 : i32
    %c0_i32_0 = arith.constant 0 : i32
    return %arg2, %c0_i32 : i32, i32
  }
  func.func @transform_7(%arg0: i32, %arg1: i32, %arg2: i32) -> (i32, i32, i32) {
    %c0_i32 = arith.constant 0 : i32
    %c0_i32_0 = arith.constant 0 : i32
    %c0_i32_1 = arith.constant 0 : i32
    %c0_i32_2 = arith.constant 0 : i32
    return %c0_i32, %c0_i32_0, %c0_i32_1 : i32, i32, i32
  }
  func.func @transform_8(%arg0: i32, %arg1: i32, %arg2: i32) -> (i32, i32, i32) {
    %c0_i32 = arith.constant 0 : i32
    %c0_i32_0 = arith.constant 0 : i32
    return %arg0, %arg1, %c0_i32 : i32, i32, i32
  }
}

</mosaic_0001>

<llo_original>
// kernel: tile.23
$region0: #{tile.23}
  #allocation0 [shape = 's32[1]{0}', space=sflag, size = 0x4, scoped, tag = 'scoped memory for tile.23']
  %s0 = inlined_call_operand.vmem [shape: f32[16], index: 0, kind: input, shape index: {}]
  %s1 = inlined_call_operand.vmem [shape: f32[2,16], index: 1, kind: output, shape index: {}]
  // Predicated region
  $region2: #{tile.23} parent=0 // pred_check
    _
  $region3: #{tile.23} parent=0 // pred_check_branch
    %3 = sbr.rel (0) target = $region5
  $region4: #{tile.23} parent=0 // pred_region
    _
  $region5: #{tile.23} parent=0 // pred_fallthru
    _
  %v4 = vld [vmem:[%s0] ss:$0 sm:$0xff]
  %5 = vst [vmem:[%s1] sm:$0x3] %v4

// kernel: tile.28
$region0: #{tile.28}
  %s0 = inlined_call_operand.vmem [shape: f32[2,16], index: 0, kind: input, shape index: {}]
  %s1 = inlined_call_operand.vmem [shape: f32[1,32], index: 1, kind: output, shape index: {}]
  $region1: #{tile.28} parent=0
    #allocation0 [shape = 'u8[4096]{0}', space=vmem, size = 0x1000, scoped, tag = 'scoped mem for output reshape']
    #allocation1 [shape = 'u8[4096]{0}', space=vmem, size = 0x1000, scoped, tag = 'scoped mem for input reshape']
    %s3 = sshll.u32 1, 2
    %s4 = ssub.s32 %s3, 1
    %v5 = vld [vmem:[%s0] sm:%s4]
    %6 = vst [vmem:[#allocation1] sm:%s4] %v5
    %v7 = vld [vmem:[#allocation1] sm:$0x1]
    %vm8 = vcmask 130048
    %9 = vst.msk [vmem:[#allocation0] sm:$0x1] %vm8, %v7
    %s10 = scalar_lea.vmem [#allocation1], 1
    %v11 = vld [vmem:[%s10] sm:$0x1]
    %12 = vrot.lane.b32.xlu0 %v11, 16
    %v13 = vpop.permute.xlu0 %12
    %vm14 = vcmask 261248
    %15 = vst.msk [vmem:[#allocation0] sm:$0x1] %vm14, %v13
    %s17 = sshll.u32 1, 1
    %s18 = ssub.s32 %s17, 1
    %v20 = vld [vmem:[#allocation0] sm:%s18]
    %s21 = sshll.u32 1, 1
    %s22 = ssub.s32 %s21, 1
    %23 = vst [vmem:[%s1] sm:%s22] %v20

// kernel: nammsr_block_forward.11
$region0: #{nammsr_block_forward.11}
  #allocation0 [shape = 'u32[]', space=smem, size = 0x4, offset = 0x4, fixed_abs, tag = 'smem constant byte address 0x4 - core index']
  #allocation1 [shape = 'u32[144,128]{1,0:T(1,128)}', space=vmem, size = 0x12000, scoped, tag = 'internal scratch']
  %s0 = inlined_call_operand.vmem [shape: bf16[2,32,32], index: 0, kind: input, shape index: {}]
  %s1 = inlined_call_operand.vmem [shape: bf16[32,16], index: 1, kind: input, shape index: {}]
  %s2 = inlined_call_operand.vmem [shape: f32[1,1,16], index: 2, kind: input, shape index: {}]
  %s3 = inlined_call_operand.vmem [shape: f32[2,1,16], index: 3, kind: input, shape index: {}]
  %s4 = inlined_call_operand.vmem [shape: bf16[2,16,16], index: 4, kind: input, shape index: {}]
  %s5 = inlined_call_operand.vmem [shape: bf16[2,16,16], index: 5, kind: output, shape index: {}]
  %s6 = sld [smem:[#allocation0]]
  $region53: #{nammsr_block_forward.11} parent=0
    _
  %s8 = ssub.s32 1, %s6
  %s9 = scalar_select 0, %s8, %s6
  loop: start=0, step=1, limit=4
  $region2: #{nammsr_block_forward.11} parent=0 // loop_pre_header
    _
  $region3: #{nammsr_block_forward.11} parent=0 // loop_header
    %s11 = sphi 0, %s15
    %p12 = scmp.ge.s32.totalorder %s11, 4
    %s18 = sphi 0, %s37
    %s19 = sphi 0, %s33
    %s20 = sphi 0, %s29
    %s21 = sphi 0, %s18
    %s22 = sphi 0, %s19
    %s23 = sphi 0, %s20
    %s24 = sphi 0, %s21
    %s25 = sphi 0, %s22
    %s26 = sphi 0, %s23
    %s44 = sphi 0, %s46
    %s47 = sphi 0, %s44
    %s48 = sphi 0, %s47
    %s64 = sphi 0, %s48
    %s70 = sphi 0, %s72
    %s73 = sphi 0, %s70
    %s74 = sphi 0, %s73
    %s90 = sphi 0, %s74
    %s96 = sphi 0, %s98
    %s99 = sphi 0, %s96
    %s100 = sphi 0, %s99
    %s116 = sphi 0, %s100
    %s124 = sphi 0, %s126
    %s127 = sphi 0, %s124
    %s128 = sphi 0, %s127
    %s144 = sphi 0, %s128
    %s154 = sphi 0, %s156
    %s157 = sphi 0, %s154
    %s158 = sphi 0, %s157
    %s174 = sphi 0, %s158
    %s184 = sphi 0, %s186
    %s187 = sphi 0, %s184
    %s188 = sphi 0, %s187
    %s204 = sphi 0, %s188
  $region4: #{nammsr_block_forward.11} parent=0 // loop_header_branch
    %14 = sbr.rel (%p12) target = $region8
  $region5: #{nammsr_block_forward.11} parent=0 // loop_body
    %s16 = ssub.s32 %s11, 1
    %s17 = ssub.s32 %s11, 2
    %s27 = sadd.s32 1, %s20
    %p28 = scmp.ge.s32.totalorder %s27, 1
    %s29 = scalar_select %p28, 0, %s27
    %s30 = sadd.s32 1, %s19
    %s31 = scalar_select %p28, %s30, %s19
    %p32 = scmp.ge.s32.totalorder %s31, 1
    %s33 = scalar_select %p32, 0, %s31
    %s34 = sadd.s32 1, %s18
    %s35 = scalar_select %p32, %s34, %s18
    %p36 = scmp.ge.s32.totalorder %s35, 2
    %s37 = scalar_select %p36, 0, %s35
    %s38 = sadd.s32 %s19, 1
    %s39 = sadd.s32 %s33, 1
    %s40 = ssub.s32 %s18, %s37
    %s41 = ssub.s32 %s38, %s39
    %s42 = sor.u32 %s40, %s41
    %p43 = scmp.eq.s32.totalorder %s42, 0
    %s45 = sadd.s32 %s44, 1
    %s46 = scalar_select %p43, %s44, %s45
    %p49 = pneg %p43
    %p50 = scmp.eq.s32.totalorder %s11, 1
    %p51 = por %p49, %p50
    %p52 = scmp.ne.s32.totalorder %s44, %s47
    %p53 = scmp.eq.s32.totalorder %s11, 0
    %p54 = por %p52, %p53
    %p55 = scmp.ne.s32.totalorder %s44, %s47
    %p56 = scmp.eq.s32.totalorder %s16, 1
    %p57 = por %p55, %p56
    %p58 = scmp.ne.s32.totalorder %s47, %s48
    %p59 = scmp.eq.s32.totalorder %s16, 0
    %p60 = por %p58, %p59
    %p61 = scmp.ne.s32.totalorder %s47, %s48
    %p62 = scmp.eq.s32.totalorder %s17, 1
    %p63 = por %p61, %p62
    %p65 = scmp.ne.s32.totalorder %s48, %s64
    %p66 = scmp.eq.s32.totalorder %s17, 0
    %p67 = por %p65, %p66
    %s68 = ssub.s32 %s20, %s29
    %p69 = scmp.eq.s32.totalorder %s68, 0
    %s71 = sadd.s32 %s70, 1
    %s72 = scalar_select %p69, %s70, %s71
    %p75 = pneg %p69
    %p76 = scmp.eq.s32.totalorder %s11, 1
    %p77 = por %p75, %p76
    %p78 = scmp.ne.s32.totalorder %s70, %s73
    %p79 = scmp.eq.s32.totalorder %s11, 0
    %p80 = por %p78, %p79
    %p81 = scmp.ne.s32.totalorder %s70, %s73
    %p82 = scmp.eq.s32.totalorder %s16, 1
    %p83 = por %p81, %p82
    %p84 = scmp.ne.s32.totalorder %s73, %s74
    %p85 = scmp.eq.s32.totalorder %s16, 0
    %p86 = por %p84, %p85
    %p87 = scmp.ne.s32.totalorder %s73, %s74
    %p88 = scmp.eq.s32.totalorder %s17, 1
    %p89 = por %p87, %p88
    %p91 = scmp.ne.s32.totalorder %s74, %s90
    %p92 = scmp.eq.s32.totalorder %s17, 0
    %p93 = por %p91, %p92
    %s94 = ssub.s32 %s20, %s29
    %p95 = scmp.eq.s32.totalorder %s94, 0
    %s97 = sadd.s32 %s96, 1
    %s98 = scalar_select %p95, %s96, %s97
    %p101 = pneg %p95
    %p102 = scmp.eq.s32.totalorder %s11, 1
    %p103 = por %p101, %p102
    %p104 = scmp.ne.s32.totalorder %s96, %s99
    %p105 = scmp.eq.s32.totalorder %s11, 0
    %p106 = por %p104, %p105
    %p107 = scmp.ne.s32.totalorder %s96, %s99
    %p108 = scmp.eq.s32.totalorder %s16, 1
    %p109 = por %p107, %p108
    %p110 = scmp.ne.s32.totalorder %s99, %s100
    %p111 = scmp.eq.s32.totalorder %s16, 0
    %p112 = por %p110, %p111
    %p113 = scmp.ne.s32.totalorder %s99, %s100
    %p114 = scmp.eq.s32.totalorder %s17, 1
    %p115 = por %p113, %p114
    %p117 = scmp.ne.s32.totalorder %s100, %s116
    %p118 = scmp.eq.s32.totalorder %s17, 0
    %p119 = por %p117, %p118
    %s120 = ssub.s32 %s18, %s37
    %s121 = ssub.s32 %s20, %s29
    %s122 = sor.u32 %s120, %s121
    %p123 = scmp.eq.s32.totalorder %s122, 0
    %s125 = sadd.s32 %s124, 1
    %s126 = scalar_select %p123, %s124, %s125
    %p129 = pneg %p123
    %p130 = scmp.eq.s32.totalorder %s11, 1
    %p131 = por %p129, %p130
    %p132 = scmp.ne.s32.totalorder %s124, %s127
    %p133 = scmp.eq.s32.totalorder %s11, 0
    %p134 = por %p132, %p133
    %p135 = scmp.ne.s32.totalorder %s124, %s127
    %p136 = scmp.eq.s32.totalorder %s16, 1
    %p137 = por %p135, %p136
    %p138 = scmp.ne.s32.totalorder %s127, %s128
    %p139 = scmp.eq.s32.totalorder %s16, 0
    %p140 = por %p138, %p139
    %p141 = scmp.ne.s32.totalorder %s127, %s128
    %p142 = scmp.eq.s32.totalorder %s17, 1
    %p143 = por %p141, %p142
    %p145 = scmp.ne.s32.totalorder %s128, %s144
    %p146 = scmp.eq.s32.totalorder %s17, 0
    %p147 = por %p145, %p146
    %s148 = ssub.s32 %s18, %s37
    %s149 = ssub.s32 %s19, %s33
    %s150 = sor.u32 %s148, %s149
    %s151 = ssub.s32 %s20, %s29
    %s152 = sor.u32 %s150, %s151
    %p153 = scmp.eq.s32.totalorder %s152, 0
    %s155 = sadd.s32 %s154, 1
    %s156 = scalar_select %p153, %s154, %s155
    %p159 = pneg %p153
    %p160 = scmp.eq.s32.totalorder %s11, 1
    %p161 = por %p159, %p160
    %p162 = scmp.ne.s32.totalorder %s154, %s157
    %p163 = scmp.eq.s32.totalorder %s11, 0
    %p164 = por %p162, %p163
    %p165 = scmp.ne.s32.totalorder %s154, %s157
    %p166 = scmp.eq.s32.totalorder %s16, 1
    %p167 = por %p165, %p166
    %p168 = scmp.ne.s32.totalorder %s157, %s158
    %p169 = scmp.eq.s32.totalorder %s16, 0
    %p170 = por %p168, %p169
    %p171 = scmp.ne.s32.totalorder %s157, %s158
    %p172 = scmp.eq.s32.totalorder %s17, 1
    %p173 = por %p171, %p172
    %p175 = scmp.ne.s32.totalorder %s158, %s174
    %p176 = scmp.eq.s32.totalorder %s17, 0
    %p177 = por %p175, %p176
    %s178 = ssub.s32 %s18, %s37
    %s179 = ssub.s32 %s19, %s33
    %s180 = sor.u32 %s178, %s179
    %s181 = ssub.s32 %s20, %s29
    %s182 = sor.u32 %s180, %s181
    %p183 = scmp.eq.s32.totalorder %s182, 0
    %s185 = sadd.s32 %s184, 1
    %s186 = scalar_select %p183, %s184, %s185
    %p189 = pneg %p183
    %p190 = scmp.eq.s32.totalorder %s11, 1
    %p191 = por %p189, %p190
    %p192 = scmp.ne.s32.totalorder %s184, %s187
    %p193 = scmp.eq.s32.totalorder %s11, 0
    %p194 = por %p192, %p193
    %p195 = scmp.ne.s32.totalorder %s184, %s187
    %p196 = scmp.eq.s32.totalorder %s16, 1
    %p197 = por %p195, %p196
    %p198 = scmp.ne.s32.totalorder %s187, %s188
    %p199 = scmp.eq.s32.totalorder %s16, 0
    %p200 = por %p198, %p199
    %p201 = scmp.ne.s32.totalorder %s187, %s188
    %p202 = scmp.eq.s32.totalorder %s17, 1
    %p203 = por %p201, %p202
    %p205 = scmp.ne.s32.totalorder %s188, %s204
    %p206 = scmp.eq.s32.totalorder %s17, 0
    %p207 = por %p205, %p206
    %p208 = scmp.le.s32.totalorder 1, %s11
    %p209 = scmp.lt.s32.totalorder %s11, 3
    %p210 = pnand %p208, %p209
    %p211 = pneg %p210
    // Predicated region
    $region9: #{nammsr_block_forward.11} parent=5 // pred_check
      _
    $region10: #{nammsr_block_forward.11} parent=5 // pred_check_branch
      %213 = sbr.rel (%p210) target = $region12
    $region11: #{nammsr_block_forward.11} parent=5 // pred_region
      %s214 = ssub.s32 %s11, 1
      // Predicated region
      $region13: #{nammsr_block_forward.11} parent=11 // pred_check
        %p215 = pneg %p86
      $region14: #{nammsr_block_forward.11} parent=11 // pred_check_branch
        %217 = sbr.rel (%p215) target = $region16
      $region15: #{nammsr_block_forward.11} parent=11 // pred_region
        %p218 = scmp.lt.s32.totalorder %s23, 0
        %s219 = scalar_select %p218, %s23, 0
        %s220 = smul.addr %s219, 4
        %s221 = scalar_lea.vmem %s1, %s220
      $region16: #{nammsr_block_forward.11} parent=11 // pred_fallthru
        _
      // Predicated region
      $region17: #{nammsr_block_forward.11} parent=11 // pred_check
        %p222 = pneg %p112
      $region18: #{nammsr_block_forward.11} parent=11 // pred_check_branch
        %224 = sbr.rel (%p222) target = $region20
      $region19: #{nammsr_block_forward.11} parent=11 // pred_region
        %p225 = scmp.lt.s32.totalorder %s23, 0
        %s226 = scalar_select %p225, %s23, 0
        %s227 = scalar_lea.vmem %s2, %s226
      $region20: #{nammsr_block_forward.11} parent=11 // pred_fallthru
        _
    $region12: #{nammsr_block_forward.11} parent=5 // pred_fallthru
      _
    %p228 = scmp.lt.s32.totalorder %s11, 2
    // Predicated region
    $region21: #{nammsr_block_forward.11} parent=5 // pred_check
      %p229 = pneg %p228
    $region22: #{nammsr_block_forward.11} parent=5 // pred_check_branch
      %231 = sbr.rel (%p229) target = $region24
    $region23: #{nammsr_block_forward.11} parent=5 // pred_region
      // Predicated region
      $region25: #{nammsr_block_forward.11} parent=23 // pred_check
        %p232 = pneg %p54
      $region26: #{nammsr_block_forward.11} parent=23 // pred_check_branch
        %234 = sbr.rel (%p232) target = $region28
      $region27: #{nammsr_block_forward.11} parent=23 // pred_region
        %s235 = sadd.s32 %s19, 1
        %s236 = smul.u32 2, %s235
        %p237 = scmp.lt.s32.totalorder %s18, 1
        %s238 = scalar_select %p237, %s18, 1
        %p239 = scmp.lt.s32.totalorder %s236, 3
        %s240 = scalar_select %p239, %s236, 3
        %s241 = smul.addr %s238, 4
        %s242 = sadd.s32 %s240, %s241
        %s243 = smul.addr %s242, 4
        %s244 = scalar_lea.vmem %s0, %s243
        %s245 = sadd.s32 %s19, 1
        %s246 = smul.u32 2, %s245
      $region28: #{nammsr_block_forward.11} parent=23 // pred_fallthru
        _
      // Predicated region
      $region29: #{nammsr_block_forward.11} parent=23 // pred_check
        %p247 = pneg %p134
      $region30: #{nammsr_block_forward.11} parent=23 // pred_check_branch
        %249 = sbr.rel (%p247) target = $region32
      $region31: #{nammsr_block_forward.11} parent=23 // pred_region
        %p250 = scmp.lt.s32.totalorder %s18, 1
        %s251 = scalar_select %p250, %s18, 1
        %p252 = scmp.lt.s32.totalorder %s20, 0
        %s253 = scalar_select %p252, %s20, 0
        %s254 = sadd.s32 %s253, %s251
        %s255 = scalar_lea.vmem %s3, %s254
      $region32: #{nammsr_block_forward.11} parent=23 // pred_fallthru
        _
      // Predicated region
      $region33: #{nammsr_block_forward.11} parent=23 // pred_check
        %p256 = pneg %p164
      $region34: #{nammsr_block_forward.11} parent=23 // pred_check_branch
        %258 = sbr.rel (%p256) target = $region36
      $region35: #{nammsr_block_forward.11} parent=23 // pred_region
        %s259 = smul.u32 2, %s19
        %p260 = scmp.lt.s32.totalorder %s18, 1
        %s261 = scalar_select %p260, %s18, 1
        %p262 = scmp.lt.s32.totalorder %s259, 1
        %s263 = scalar_select %p262, %s259, 1
        %p264 = scmp.lt.s32.totalorder %s20, 0
        %s265 = scalar_select %p264, %s20, 0
        %s266 = sadd.s32 %s265, %s263
        %s267 = smul.addr %s261, 2
        %s268 = sadd.s32 %s266, %s267
        %s269 = smul.addr %s268, 4
        %s270 = scalar_lea.vmem %s4, %s269
        %s271 = smul.u32 2, %s19
      $region36: #{nammsr_block_forward.11} parent=23 // pred_fallthru
        _
    $region24: #{nammsr_block_forward.11} parent=5 // pred_fallthru
      _
    %p272 = scmp.le.s32.totalorder 1, %s11
    %p273 = scmp.lt.s32.totalorder %s11, 3
    %p274 = pnand %p272, %p273
    %p275 = pneg %p274
    // Predicated region
    $region37: #{nammsr_block_forward.11} parent=5 // pred_check
      _
    $region38: #{nammsr_block_forward.11} parent=5 // pred_check_branch
      %277 = sbr.rel (%p274) target = $region40
    $region39: #{nammsr_block_forward.11} parent=5 // pred_region
      %s278 = ssub.s32 %s11, 1
      %s279 = sadd.s32 %s22, 1
      %s280 = smul.u32 2, %s279
      %p281 = scmp.lt.s32.totalorder %s21, 1
      %s282 = scalar_select %p281, %s21, 1
      %p283 = scmp.lt.s32.totalorder %s280, 3
      %s284 = scalar_select %p283, %s280, 3
      %s285 = smul.addr %s282, 4
      %s286 = sadd.s32 %s284, %s285
      %s287 = smul.addr %s286, 4
      %s288 = scalar_lea.vmem %s0, %s287
      %p289 = pneg %p60
      %p290 = pneg %p57
      %p291 = scmp.lt.s32.totalorder %s23, 0
      %s292 = scalar_select %p291, %s23, 0
      %s293 = smul.addr %s292, 4
      %s294 = scalar_lea.vmem %s1, %s293
      %p295 = pneg %p86
      %p296 = pneg %p83
      %p297 = scmp.lt.s32.totalorder %s23, 0
      %s298 = scalar_select %p297, %s23, 0
      %s299 = scalar_lea.vmem %s2, %s298
      %p300 = pneg %p112
      %p301 = pneg %p109
      %p302 = scmp.lt.s32.totalorder %s21, 1
      %s303 = scalar_select %p302, %s21, 1
      %p304 = scmp.lt.s32.totalorder %s23, 0
      %s305 = scalar_select %p304, %s23, 0
      %s306 = sadd.s32 %s305, %s303
      %s307 = scalar_lea.vmem %s3, %s306
      %p308 = pneg %p140
      %p309 = pneg %p137
      %s310 = smul.u32 2, %s22
      %p311 = scmp.lt.s32.totalorder %s21, 1
      %s312 = scalar_select %p311, %s21, 1
      %p313 = scmp.lt.s32.totalorder %s310, 1
      %s314 = scalar_select %p313, %s310, 1
      %p315 = scmp.lt.s32.totalorder %s23, 0
      %s316 = scalar_select %p315, %s23, 0
      %s317 = sadd.s32 %s316, %s314
      %s318 = smul.addr %s312, 2
      %s319 = sadd.s32 %s317, %s318
      %s320 = smul.addr %s319, 4
      %s321 = scalar_lea.vmem %s4, %s320
      %p322 = pneg %p170
      %p323 = pneg %p167
      %p324 = pneg %p200
      %p325 = pneg %p197
      %s326 = smul.u32 2, %s22
      %p327 = scmp.lt.s32.totalorder %s21, 1
      %s328 = scalar_select %p327, %s21, 1
      %p329 = scmp.lt.s32.totalorder %s326, 1
      %s330 = scalar_select %p329, %s326, 1
      %p331 = scmp.lt.s32.totalorder %s23, 0
      %s332 = scalar_select %p331, %s23, 0
      %s333 = sadd.s32 %s332, %s330
      %s334 = smul.addr %s328, 2
      %s335 = sadd.s32 %s333, %s334
      %s336 = smul.addr %s335, 4
      %s337 = scalar_lea.vmem %s5, %s336
      %s338 = sadd.s32 %s22, 1
      %s339 = smul.u32 2, %s338
      %p340 = scmp.lt.s32.totalorder %s21, 1
      %s341 = scalar_select %p340, %s21, 1
      %p342 = scmp.lt.s32.totalorder %s339, 3
      %s343 = scalar_select %p342, %s339, 3
      %s344 = smul.addr %s341, 4
      %s345 = sadd.s32 %s343, %s344
      %s346 = smul.addr %s345, 4
      %s347 = scalar_lea.vmem %s0, %s346
      %s348 = sadd.s32 %s22, 1
      %s349 = smul.u32 2, %s348
      %p350 = scmp.lt.s32.totalorder %s23, 0
      %s351 = scalar_select %p350, %s23, 0
      %s352 = smul.addr %s351, 4
      %s353 = scalar_lea.vmem %s1, %s352
      %p354 = scmp.lt.s32.totalorder %s23, 0
      %s355 = scalar_select %p354, %s23, 0
      %s356 = scalar_lea.vmem %s2, %s355
      %p357 = scmp.lt.s32.totalorder %s21, 1
      %s358 = scalar_select %p357, %s21, 1
      %p359 = scmp.lt.s32.totalorder %s23, 0
      %s360 = scalar_select %p359, %s23, 0
      %s361 = sadd.s32 %s360, %s358
      %s362 = scalar_lea.vmem %s3, %s361
      %s363 = smul.u32 2, %s22
      %p364 = scmp.lt.s32.totalorder %s21, 1
      %s365 = scalar_select %p364, %s21, 1
      %p366 = scmp.lt.s32.totalorder %s363, 1
      %s367 = scalar_select %p366, %s363, 1
      %p368 = scmp.lt.s32.totalorder %s23, 0
      %s369 = scalar_select %p368, %s23, 0
      %s370 = sadd.s32 %s369, %s367
      %s371 = smul.addr %s365, 2
      %s372 = sadd.s32 %s370, %s371
      %s373 = smul.addr %s372, 4
      %s374 = scalar_lea.vmem %s4, %s373
      %s375 = smul.u32 2, %s22
      %s376 = smul.u32 2, %s22
      %p377 = scmp.lt.s32.totalorder %s21, 1
      %s378 = scalar_select %p377, %s21, 1
      %p379 = scmp.lt.s32.totalorder %s376, 1
      %s380 = scalar_select %p379, %s376, 1
      %p381 = scmp.lt.s32.totalorder %s23, 0
      %s382 = scalar_select %p381, %s23, 0
      %s383 = sadd.s32 %s382, %s380
      %s384 = smul.addr %s378, 2
      %s385 = sadd.s32 %s383, %s384
      %s386 = smul.addr %s385, 4
      %s387 = scalar_lea.vmem %s5, %s386
      %s388 = smul.u32 2, %s22
      %v390 = vld [vmem:[%s347] sm:$0xf]
      %v391 = vld [vmem:[%s347 + $0x4] sm:$0xf]
      %v392 = vld [vmem:[%s353] sm:$0xf]
      %v393 = vld [vmem:[%s353 + $0x4] sm:$0xf]
      %v394 = vld [vmem:[%s353 + $0x8] sm:$0xf]
      %v395 = vld [vmem:[%s353 + $0xc] sm:$0xf]
      %v396 = vld [vmem:[%s356] sm:$0x1]
      %v398 = vlaneseq
      %v399 = vshrl.u32 %v398, 7
      %v400 = vsub.s32 0, %v399
      %v401 = vrot.slane %v396, %v400
      %v405 = vunpack.c.l.b16 %v390
      %v406 = vunpack.c.l.b16 %v391
      %v407 = vpack.c.b16 %v406, %v405
      %v412 = vunpack.c.l.b16 %v392
      %v413 = vunpack.c.l.b16 %v393
      %v414 = vunpack.c.l.b16 %v394
      %v415 = vunpack.c.l.b16 %v395
      %v416 = vpack.c.b16 %v413, %v412
      %v417 = vpack.c.b16 %v415, %v414
      %vm420 = vcmask 261120
      %v422 = vsel %vm420, %v407, 0
      %424 = vmatprep.subr.bf16.mxu0 0
      %425 = vmatpush1.bf16.msra.mxu0 0
      %426 = vmatprep.subr.bf16.mxu0 0
      %427 = vmatpush1.bf16.msra.mxu0 0
      %428 = vmatprep.subr.bf16.mxu0 0
      %429 = vmatpush1.bf16.msra.mxu0 0
      %430 = vmatprep.subr.bf16.mxu0 0
      %431 = vmatpush1.bf16.msra.mxu0 0
      %432 = vmatprep.subr.bf16.mxu0 0
      %433 = vmatpush1.bf16.msra.mxu0 0
      %434 = vmatprep.subr.bf16.mxu0 0
      %435 = vmatpush1.bf16.msra.mxu0 0
      %436 = vmatprep.subr.bf16.mxu0 0
      %437 = vmatpush1.bf16.msra.mxu0 %v417
      %438 = vmatprep.subr.bf16.mxu0 0
      %439 = vmatpush1.bf16.msra.mxu0 %v416
      %440 = vmatprep.subr.bf16.mxu0 0
      %441 = vmatpush2.bf16.msra.mxu0 0
      %442 = vmatprep.subr.bf16.mxu0 0
      %443 = vmatpush2.bf16.msra.mxu0 0
      %444 = vmatprep.subr.bf16.mxu0 0
      %445 = vmatpush2.bf16.msra.mxu0 0
      %446 = vmatprep.subr.bf16.mxu0 0
      %447 = vmatpush2.bf16.msra.mxu0 0
      %448 = vmatprep.subr.bf16.mxu0 0
      %449 = vmatpush2.bf16.msra.mxu0 0
      %450 = vmatprep.subr.bf16.mxu0 0
      %451 = vmatpush2.bf16.msra.mxu0 0
      %452 = vmatprep.subr.bf16.mxu0 0
      %453 = vmatpush2.bf16.msra.mxu0 0
      %454 = vmatprep.subr.bf16.mxu0 0
      %455 = vmatpush2.bf16.msra.mxu0 0
      %456 = vmatprep.mubr.bf16.mxu0 0
      %457 = vmatmul.mubr.bf16.gmra.mxu0 %v422
      %v458 = vpop.f32.mrf.mxu0
      %v459 = vadd.f32 %v401, %v458
      %v460 = vpop.f32.mrf.mxu0
      %v461 = vpop.f32.mrf.mxu0
      %v462 = vadd.f32 %v401, %v461
      %v463 = vpop.f32.mrf.mxu0
      %464 = vdwg.mxu0
      %v465 = vld [vmem:[%s362] sm:$0x1]
      %v467 = vlaneseq
      %v468 = vshrl.u32 %v467, 7
      %v469 = vsub.s32 0, %v468
      %v470 = vrot.slane %v465, %v469
      %v472 = vmul.f32 %v459, %v470
      %v473 = vmul.f32 %v462, %v470
      %v474 = vld [vmem:[%s374] sm:$0xf]
      %v475 = vld [vmem:[%s374 + $0x4] sm:$0xf]
      %v476 = vunpack.c.l.bf16 %v474
      %v477 = vunpack.c.l.bf16 %v475
      %v478 = vadd.f32 %v472, %v476
      %v479 = vadd.f32 %v473, %v477
      %v480 = vpack.c.bf16 %v479, %v478
      %v482 = vunpack.c.l.b16 %v480
      %v483 = vunpack.c.h.b16 %v480
      %v484 = vpack.c.b16 %v482, %v482
      %v485 = vpack.c.b16 %v483, %v483
      %vm488 = vcmask 125952
      %489 = vst.msk [vmem:[%s387] sm:$0xf] %vm488, %v484
      %490 = vst.msk [vmem:[%s387 + $0x4] sm:$0xf] %vm488, %v485
      %s491 = smul.u32 2, %s22
      %p492 = scmp.lt.s32.totalorder %s21, 1
      %s493 = scalar_select %p492, %s21, 1
      %p494 = scmp.lt.s32.totalorder %s491, 1
      %s495 = scalar_select %p494, %s491, 1
      %p496 = scmp.lt.s32.totalorder %s23, 0
      %s497 = scalar_select %p496, %s23, 0
      %s498 = sadd.s32 %s497, %s495
      %s499 = smul.addr %s493, 2
      %s500 = sadd.s32 %s498, %s499
      %s501 = smul.addr %s500, 4
      %s502 = scalar_lea.vmem %s5, %s501
      // Predicated region
      $region41: #{nammsr_block_forward.11} parent=39 // pred_check
        %p503 = pneg %p197
      $region42: #{nammsr_block_forward.11} parent=39 // pred_check_branch
        %505 = sbr.rel (%p503) target = $region44
      $region43: #{nammsr_block_forward.11} parent=39 // pred_region
        %s506 = smul.u32 2, %s22
      $region44: #{nammsr_block_forward.11} parent=39 // pred_fallthru
        _
    $region40: #{nammsr_block_forward.11} parent=5 // pred_fallthru
      _
    %p507 = scmp.le.s32.totalorder 2, %s11
    // Predicated region
    $region45: #{nammsr_block_forward.11} parent=5 // pred_check
      %p508 = pneg %p507
    $region46: #{nammsr_block_forward.11} parent=5 // pred_check_branch
      %510 = sbr.rel (%p508) target = $region48
    $region47: #{nammsr_block_forward.11} parent=5 // pred_region
      %s511 = ssub.s32 %s11, 2
      // Predicated region
      $region49: #{nammsr_block_forward.11} parent=47 // pred_check
        %p512 = pneg %p203
      $region50: #{nammsr_block_forward.11} parent=47 // pred_check_branch
        %514 = sbr.rel (%p512) target = $region52
      $region51: #{nammsr_block_forward.11} parent=47 // pred_region
        %s515 = smul.u32 2, %s25
        %p516 = scmp.lt.s32.totalorder %s24, 1
        %s517 = scalar_select %p516, %s24, 1
        %p518 = scmp.lt.s32.totalorder %s515, 1
        %s519 = scalar_select %p518, %s515, 1
        %p520 = scmp.lt.s32.totalorder %s26, 0
        %s521 = scalar_select %p520, %s26, 0
        %s522 = sadd.s32 %s521, %s519
        %s523 = smul.addr %s517, 2
        %s524 = sadd.s32 %s522, %s523
        %s525 = smul.addr %s524, 4
        %s526 = scalar_lea.vmem %s5, %s525
      $region52: #{nammsr_block_forward.11} parent=47 // pred_fallthru
        _
    $region48: #{nammsr_block_forward.11} parent=5 // pred_fallthru
      _
  $region6: #{nammsr_block_forward.11} parent=0 // loop_footer
    %s15 = sadd.s32 1, %s11
  $region7: #{nammsr_block_forward.11} parent=0 // loop_footer_branch
    %10 = sbr.rel target = $region3
  $region8: #{nammsr_block_forward.11} parent=0 // loop_exit
    _

// kernel: nammsr_block_forward.7
$region0: #{nammsr_block_forward.7}
  #allocation0 [shape = 'u32[]', space=smem, size = 0x4, offset = 0x4, fixed_abs, tag = 'smem constant byte address 0x4 - core index']
  #allocation1 [shape = 'u32[144,128]{1,0:T(1,128)}', space=vmem, size = 0x12000, scoped, tag = 'internal scratch']
  #allocation2 [shape = 'bf16[16,32]{1,0:T(8,128)(2,1)}', space=vmem, size = 0x1000, scoped, tag = 'scratch operand']
  %s0 = inlined_call_operand.vmem [shape: bf16[2,16,32], index: 0, kind: input, shape index: {}]
  %s1 = inlined_call_operand.vmem [shape: f32[2,1,32], index: 1, kind: input, shape index: {}]
  %s2 = inlined_call_operand.vmem [shape: f32[2,1,32], index: 2, kind: input, shape index: {}]
  %s3 = inlined_call_operand.vmem [shape: bf16[3,32,32], index: 3, kind: input, shape index: {}]
  %s4 = inlined_call_operand.vmem [shape: f32[3,1,32], index: 4, kind: input, shape index: {}]
  %s5 = inlined_call_operand.vmem [shape: f32[3,1,32], index: 5, kind: input, shape index: {}]
  %s6 = inlined_call_operand.vmem [shape: bf16[2,3,32,32], index: 6, kind: output, shape index: {}]
  %s7 = sld [smem:[#allocation0]]
  $region69: #{nammsr_block_forward.7} parent=0
    _
  %s9 = ssub.s32 1, %s7
  %s10 = scalar_select 0, %s9, %s7
  loop: start=0, step=1, limit=8
  $region2: #{nammsr_block_forward.7} parent=0 // loop_pre_header
    _
  $region3: #{nammsr_block_forward.7} parent=0 // loop_header
    %s12 = sphi 0, %s16
    %p13 = scmp.ge.s32.totalorder %s12, 8
    %s19 = sphi 0, %s45
    %s20 = sphi 0, %s41
    %s21 = sphi 0, %s37
    %s22 = sphi 0, %s33
    %s23 = sphi 0, %s19
    %s24 = sphi 0, %s20
    %s25 = sphi 0, %s21
    %s26 = sphi 0, %s22
    %s27 = sphi 0, %s23
    %s28 = sphi 0, %s24
    %s29 = sphi 0, %s25
    %s30 = sphi 0, %s26
    %s50 = sphi 0, %s52
    %s53 = sphi 0, %s50
    %s54 = sphi 0, %s53
    %s70 = sphi 0, %s54
    %s76 = sphi 0, %s78
    %s79 = sphi 0, %s76
    %s80 = sphi 0, %s79
    %s96 = sphi 0, %s80
    %s102 = sphi 0, %s104
    %s105 = sphi 0, %s102
    %s106 = sphi 0, %s105
    %s122 = sphi 0, %s106
    %s130 = sphi 0, %s132
    %s133 = sphi 0, %s130
    %s134 = sphi 0, %s133
    %s150 = sphi 0, %s134
    %s158 = sphi 0, %s160
    %s161 = sphi 0, %s158
    %s162 = sphi 0, %s161
    %s178 = sphi 0, %s162
    %s186 = sphi 0, %s188
    %s189 = sphi 0, %s186
    %s190 = sphi 0, %s189
    %s206 = sphi 0, %s190
    %s218 = sphi 0, %s220
    %s221 = sphi 0, %s218
    %s222 = sphi 0, %s221
    %s238 = sphi 0, %s222
  $region4: #{nammsr_block_forward.7} parent=0 // loop_header_branch
    %15 = sbr.rel (%p13) target = $region8
  $region5: #{nammsr_block_forward.7} parent=0 // loop_body
    %s17 = ssub.s32 %s12, 1
    %s18 = ssub.s32 %s12, 2
    %s31 = sadd.s32 1, %s22
    %p32 = scmp.ge.s32.totalorder %s31, 1
    %s33 = scalar_select %p32, 0, %s31
    %s34 = sadd.s32 1, %s21
    %s35 = scalar_select %p32, %s34, %s21
    %p36 = scmp.ge.s32.totalorder %s35, 3
    %s37 = scalar_select %p36, 0, %s35
    %s38 = sadd.s32 1, %s20
    %s39 = scalar_select %p36, %s38, %s20
    %p40 = scmp.ge.s32.totalorder %s39, 1
    %s41 = scalar_select %p40, 0, %s39
    %s42 = sadd.s32 1, %s19
    %s43 = scalar_select %p40, %s42, %s19
    %p44 = scmp.ge.s32.totalorder %s43, 2
    %s45 = scalar_select %p44, 0, %s43
    %s46 = ssub.s32 %s19, %s45
    %s47 = ssub.s32 %s20, %s41
    %s48 = sor.u32 %s46, %s47
    %p49 = scmp.eq.s32.totalorder %s48, 0
    %s51 = sadd.s32 %s50, 1
    %s52 = scalar_select %p49, %s50, %s51
    %p55 = pneg %p49
    %p56 = scmp.eq.s32.totalorder %s12, 5
    %p57 = por %p55, %p56
    %p58 = scmp.ne.s32.totalorder %s50, %s53
    %p59 = scmp.eq.s32.totalorder %s12, 0
    %p60 = por %p58, %p59
    %p61 = scmp.ne.s32.totalorder %s50, %s53
    %p62 = scmp.eq.s32.totalorder %s17, 5
    %p63 = por %p61, %p62
    %p64 = scmp.ne.s32.totalorder %s53, %s54
    %p65 = scmp.eq.s32.totalorder %s17, 0
    %p66 = por %p64, %p65
    %p67 = scmp.ne.s32.totalorder %s53, %s54
    %p68 = scmp.eq.s32.totalorder %s18, 5
    %p69 = por %p67, %p68
    %p71 = scmp.ne.s32.totalorder %s54, %s70
    %p72 = scmp.eq.s32.totalorder %s18, 0
    %p73 = por %p71, %p72
    %s74 = ssub.s32 %s19, %s45
    %p75 = scmp.eq.s32.totalorder %s74, 0
    %s77 = sadd.s32 %s76, 1
    %s78 = scalar_select %p75, %s76, %s77
    %p81 = pneg %p75
    %p82 = scmp.eq.s32.totalorder %s12, 5
    %p83 = por %p81, %p82
    %p84 = scmp.ne.s32.totalorder %s76, %s79
    %p85 = scmp.eq.s32.totalorder %s12, 0
    %p86 = por %p84, %p85
    %p87 = scmp.ne.s32.totalorder %s76, %s79
    %p88 = scmp.eq.s32.totalorder %s17, 5
    %p89 = por %p87, %p88
    %p90 = scmp.ne.s32.totalorder %s79, %s80
    %p91 = scmp.eq.s32.totalorder %s17, 0
    %p92 = por %p90, %p91
    %p93 = scmp.ne.s32.totalorder %s79, %s80
    %p94 = scmp.eq.s32.totalorder %s18, 5
    %p95 = por %p93, %p94
    %p97 = scmp.ne.s32.totalorder %s80, %s96
    %p98 = scmp.eq.s32.totalorder %s18, 0
    %p99 = por %p97, %p98
    %s100 = ssub.s32 %s19, %s45
    %p101 = scmp.eq.s32.totalorder %s100, 0
    %s103 = sadd.s32 %s102, 1
    %s104 = scalar_select %p101, %s102, %s103
    %p107 = pneg %p101
    %p108 = scmp.eq.s32.totalorder %s12, 5
    %p109 = por %p107, %p108
    %p110 = scmp.ne.s32.totalorder %s102, %s105
    %p111 = scmp.eq.s32.totalorder %s12, 0
    %p112 = por %p110, %p111
    %p113 = scmp.ne.s32.totalorder %s102, %s105
    %p114 = scmp.eq.s32.totalorder %s17, 5
    %p115 = por %p113, %p114
    %p116 = scmp.ne.s32.totalorder %s105, %s106
    %p117 = scmp.eq.s32.totalorder %s17, 0
    %p118 = por %p116, %p117
    %p119 = scmp.ne.s32.totalorder %s105, %s106
    %p120 = scmp.eq.s32.totalorder %s18, 5
    %p121 = por %p119, %p120
    %p123 = scmp.ne.s32.totalorder %s106, %s122
    %p124 = scmp.eq.s32.totalorder %s18, 0
    %p125 = por %p123, %p124
    %s126 = ssub.s32 %s21, %s37
    %s127 = ssub.s32 %s22, %s33
    %s128 = sor.u32 %s126, %s127
    %p129 = scmp.eq.s32.totalorder %s128, 0
    %s131 = sadd.s32 %s130, 1
    %s132 = scalar_select %p129, %s130, %s131
    %p135 = pneg %p129
    %p136 = scmp.eq.s32.totalorder %s12, 5
    %p137 = por %p135, %p136
    %p138 = scmp.ne.s32.totalorder %s130, %s133
    %p139 = scmp.eq.s32.totalorder %s12, 0
    %p140 = por %p138, %p139
    %p141 = scmp.ne.s32.totalorder %s130, %s133
    %p142 = scmp.eq.s32.totalorder %s17, 5
    %p143 = por %p141, %p142
    %p144 = scmp.ne.s32.totalorder %s133, %s134
    %p145 = scmp.eq.s32.totalorder %s17, 0
    %p146 = por %p144, %p145
    %p147 = scmp.ne.s32.totalorder %s133, %s134
    %p148 = scmp.eq.s32.totalorder %s18, 5
    %p149 = por %p147, %p148
    %p151 = scmp.ne.s32.totalorder %s134, %s150
    %p152 = scmp.eq.s32.totalorder %s18, 0
    %p153 = por %p151, %p152
    %s154 = ssub.s32 %s21, %s37
    %s155 = ssub.s32 %s22, %s33
    %s156 = sor.u32 %s154, %s155
    %p157 = scmp.eq.s32.totalorder %s156, 0
    %s159 = sadd.s32 %s158, 1
    %s160 = scalar_select %p157, %s158, %s159
    %p163 = pneg %p157
    %p164 = scmp.eq.s32.totalorder %s12, 5
    %p165 = por %p163, %p164
    %p166 = scmp.ne.s32.totalorder %s158, %s161
    %p167 = scmp.eq.s32.totalorder %s12, 0
    %p168 = por %p166, %p167
    %p169 = scmp.ne.s32.totalorder %s158, %s161
    %p170 = scmp.eq.s32.totalorder %s17, 5
    %p171 = por %p169, %p170
    %p172 = scmp.ne.s32.totalorder %s161, %s162
    %p173 = scmp.eq.s32.totalorder %s17, 0
    %p174 = por %p172, %p173
    %p175 = scmp.ne.s32.totalorder %s161, %s162
    %p176 = scmp.eq.s32.totalorder %s18, 5
    %p177 = por %p175, %p176
    %p179 = scmp.ne.s32.totalorder %s162, %s178
    %p180 = scmp.eq.s32.totalorder %s18, 0
    %p181 = por %p179, %p180
    %s182 = ssub.s32 %s21, %s37
    %s183 = ssub.s32 %s22, %s33
    %s184 = sor.u32 %s182, %s183
    %p185 = scmp.eq.s32.totalorder %s184, 0
    %s187 = sadd.s32 %s186, 1
    %s188 = scalar_select %p185, %s186, %s187
    %p191 = pneg %p185
    %p192 = scmp.eq.s32.totalorder %s12, 5
    %p193 = por %p191, %p192
    %p194 = scmp.ne.s32.totalorder %s186, %s189
    %p195 = scmp.eq.s32.totalorder %s12, 0
    %p196 = por %p194, %p195
    %p197 = scmp.ne.s32.totalorder %s186, %s189
    %p198 = scmp.eq.s32.totalorder %s17, 5
    %p199 = por %p197, %p198
    %p200 = scmp.ne.s32.totalorder %s189, %s190
    %p201 = scmp.eq.s32.totalorder %s17, 0
    %p202 = por %p200, %p201
    %p203 = scmp.ne.s32.totalorder %s189, %s190
    %p204 = scmp.eq.s32.totalorder %s18, 5
    %p205 = por %p203, %p204
    %p207 = scmp.ne.s32.totalorder %s190, %s206
    %p208 = scmp.eq.s32.totalorder %s18, 0
    %p209 = por %p207, %p208
    %s210 = ssub.s32 %s19, %s45
    %s211 = ssub.s32 %s21, %s37
    %s212 = sor.u32 %s210, %s211
    %s213 = ssub.s32 %s20, %s41
    %s214 = sor.u32 %s212, %s213
    %s215 = ssub.s32 %s22, %s33
    %s216 = sor.u32 %s214, %s215
    %p217 = scmp.eq.s32.totalorder %s216, 0
    %s219 = sadd.s32 %s218, 1
    %s220 = scalar_select %p217, %s218, %s219
    %p223 = pneg %p217
    %p224 = scmp.eq.s32.totalorder %s12, 5
    %p225 = por %p223, %p224
    %p226 = scmp.ne.s32.totalorder %s218, %s221
    %p227 = scmp.eq.s32.totalorder %s12, 0
    %p228 = por %p226, %p227
    %p229 = scmp.ne.s32.totalorder %s218, %s221
    %p230 = scmp.eq.s32.totalorder %s17, 5
    %p231 = por %p229, %p230
    %p232 = scmp.ne.s32.totalorder %s221, %s222
    %p233 = scmp.eq.s32.totalorder %s17, 0
    %p234 = por %p232, %p233
    %p235 = scmp.ne.s32.totalorder %s221, %s222
    %p236 = scmp.eq.s32.totalorder %s18, 5
    %p237 = por %p235, %p236
    %p239 = scmp.ne.s32.totalorder %s222, %s238
    %p240 = scmp.eq.s32.totalorder %s18, 0
    %p241 = por %p239, %p240
    %p242 = scmp.le.s32.totalorder 1, %s12
    %p243 = scmp.lt.s32.totalorder %s12, 7
    %p244 = pnand %p242, %p243
    %p245 = pneg %p244
    // Predicated region
    $region9: #{nammsr_block_forward.7} parent=5 // pred_check
      _
    $region10: #{nammsr_block_forward.7} parent=5 // pred_check_branch
      %247 = sbr.rel (%p244) target = $region12
    $region11: #{nammsr_block_forward.7} parent=5 // pred_region
      %s248 = ssub.s32 %s12, 1
    $region12: #{nammsr_block_forward.7} parent=5 // pred_fallthru
      _
    %p249 = scmp.lt.s32.totalorder %s12, 6
    // Predicated region
    $region13: #{nammsr_block_forward.7} parent=5 // pred_check
      %p250 = pneg %p249
    $region14: #{nammsr_block_forward.7} parent=5 // pred_check_branch
      %252 = sbr.rel (%p250) target = $region16
    $region15: #{nammsr_block_forward.7} parent=5 // pred_region
      // Predicated region
      $region17: #{nammsr_block_forward.7} parent=15 // pred_check
        %p253 = pneg %p60
      $region18: #{nammsr_block_forward.7} parent=15 // pred_check_branch
        %255 = sbr.rel (%p253) target = $region20
      $region19: #{nammsr_block_forward.7} parent=15 // pred_region
        %s256 = smul.u32 2, %s20
        %p257 = scmp.lt.s32.totalorder %s19, 1
        %s258 = scalar_select %p257, %s19, 1
        %p259 = scmp.lt.s32.totalorder %s256, 1
        %s260 = scalar_select %p259, %s256, 1
        %s261 = smul.addr %s258, 2
        %s262 = sadd.s32 %s260, %s261
        %s263 = smul.addr %s262, 4
        %s264 = scalar_lea.vmem %s0, %s263
        %s265 = smul.u32 2, %s20
      $region20: #{nammsr_block_forward.7} parent=15 // pred_fallthru
        _
      // Predicated region
      $region21: #{nammsr_block_forward.7} parent=15 // pred_check
        %p266 = pneg %p86
      $region22: #{nammsr_block_forward.7} parent=15 // pred_check_branch
        %268 = sbr.rel (%p266) target = $region24
      $region23: #{nammsr_block_forward.7} parent=15 // pred_region
        %p269 = scmp.lt.s32.totalorder %s19, 1
        %s270 = scalar_select %p269, %s19, 1
        %s271 = scalar_lea.vmem %s1, %s270
      $region24: #{nammsr_block_forward.7} parent=15 // pred_fallthru
        _
      // Predicated region
      $region25: #{nammsr_block_forward.7} parent=15 // pred_check
        %p272 = pneg %p112
      $region26: #{nammsr_block_forward.7} parent=15 // pred_check_branch
        %274 = sbr.rel (%p272) target = $region28
      $region27: #{nammsr_block_forward.7} parent=15 // pred_region
        %p275 = scmp.lt.s32.totalorder %s19, 1
        %s276 = scalar_select %p275, %s19, 1
        %s277 = scalar_lea.vmem %s2, %s276
      $region28: #{nammsr_block_forward.7} parent=15 // pred_fallthru
        _
      // Predicated region
      $region29: #{nammsr_block_forward.7} parent=15 // pred_check
        %p278 = pneg %p140
      $region30: #{nammsr_block_forward.7} parent=15 // pred_check_branch
        %280 = sbr.rel (%p278) target = $region32
      $region31: #{nammsr_block_forward.7} parent=15 // pred_region
        %p281 = scmp.lt.s32.totalorder %s21, 2
        %s282 = scalar_select %p281, %s21, 2
        %p283 = scmp.lt.s32.totalorder %s22, 0
        %s284 = scalar_select %p283, %s22, 0
        %s285 = smul.addr %s282, 4
        %s286 = sadd.s32 %s284, %s285
        %s287 = smul.addr %s286, 4
        %s288 = scalar_lea.vmem %s3, %s287
      $region32: #{nammsr_block_forward.7} parent=15 // pred_fallthru
        _
      // Predicated region
      $region33: #{nammsr_block_forward.7} parent=15 // pred_check
        %p289 = pneg %p168
      $region34: #{nammsr_block_forward.7} parent=15 // pred_check_branch
        %291 = sbr.rel (%p289) target = $region36
      $region35: #{nammsr_block_forward.7} parent=15 // pred_region
        %p292 = scmp.lt.s32.totalorder %s21, 2
        %s293 = scalar_select %p292, %s21, 2
        %p294 = scmp.lt.s32.totalorder %s22, 0
        %s295 = scalar_select %p294, %s22, 0
        %s296 = sadd.s32 %s295, %s293
        %s297 = scalar_lea.vmem %s4, %s296
      $region36: #{nammsr_block_forward.7} parent=15 // pred_fallthru
        _
      // Predicated region
      $region37: #{nammsr_block_forward.7} parent=15 // pred_check
        %p298 = pneg %p196
      $region38: #{nammsr_block_forward.7} parent=15 // pred_check_branch
        %300 = sbr.rel (%p298) target = $region40
      $region39: #{nammsr_block_forward.7} parent=15 // pred_region
        %p301 = scmp.lt.s32.totalorder %s21, 2
        %s302 = scalar_select %p301, %s21, 2
        %p303 = scmp.lt.s32.totalorder %s22, 0
        %s304 = scalar_select %p303, %s22, 0
        %s305 = sadd.s32 %s304, %s302
        %s306 = scalar_lea.vmem %s5, %s305
      $region40: #{nammsr_block_forward.7} parent=15 // pred_fallthru
        _
    $region16: #{nammsr_block_forward.7} parent=5 // pred_fallthru
      _
    %p307 = scmp.le.s32.totalorder 1, %s12
    %p308 = scmp.lt.s32.totalorder %s12, 7
    %p309 = pnand %p307, %p308
    %p310 = pneg %p309
    // Predicated region
    $region41: #{nammsr_block_forward.7} parent=5 // pred_check
      _
    $region42: #{nammsr_block_forward.7} parent=5 // pred_check_branch
      %312 = sbr.rel (%p309) target = $region44
    $region43: #{nammsr_block_forward.7} parent=5 // pred_region
      %s313 = ssub.s32 %s12, 1
      %s314 = smul.u32 2, %s24
      %p315 = scmp.lt.s32.totalorder %s23, 1
      %s316 = scalar_select %p315, %s23, 1
      %p317 = scmp.lt.s32.totalorder %s314, 1
      %s318 = scalar_select %p317, %s314, 1
      %s319 = smul.addr %s316, 2
      %s320 = sadd.s32 %s318, %s319
      %s321 = smul.addr %s320, 4
      %s322 = scalar_lea.vmem %s0, %s321
      %p323 = pneg %p66
      %p324 = pneg %p63
      %p325 = scmp.lt.s32.totalorder %s23, 1
      %s326 = scalar_select %p325, %s23, 1
      %s327 = scalar_lea.vmem %s1, %s326
      %p328 = pneg %p92
      %p329 = pneg %p89
      %p330 = scmp.lt.s32.totalorder %s23, 1
      %s331 = scalar_select %p330, %s23, 1
      %s332 = scalar_lea.vmem %s2, %s331
      %p333 = pneg %p118
      %p334 = pneg %p115
      %p335 = scmp.lt.s32.totalorder %s25, 2
      %s336 = scalar_select %p335, %s25, 2
      %p337 = scmp.lt.s32.totalorder %s26, 0
      %s338 = scalar_select %p337, %s26, 0
      %s339 = smul.addr %s336, 4
      %s340 = sadd.s32 %s338, %s339
      %s341 = smul.addr %s340, 4
      %s342 = scalar_lea.vmem %s3, %s341
      %p343 = pneg %p146
      %p344 = pneg %p143
      %p345 = scmp.lt.s32.totalorder %s25, 2
      %s346 = scalar_select %p345, %s25, 2
      %p347 = scmp.lt.s32.totalorder %s26, 0
      %s348 = scalar_select %p347, %s26, 0
      %s349 = sadd.s32 %s348, %s346
      %s350 = scalar_lea.vmem %s4, %s349
      %p351 = pneg %p174
      %p352 = pneg %p171
      %p353 = scmp.lt.s32.totalorder %s25, 2
      %s354 = scalar_select %p353, %s25, 2
      %p355 = scmp.lt.s32.totalorder %s26, 0
      %s356 = scalar_select %p355, %s26, 0
      %s357 = sadd.s32 %s356, %s354
      %s358 = scalar_lea.vmem %s5, %s357
      %p359 = pneg %p202
      %p360 = pneg %p199
      %p361 = pneg %p234
      %p362 = pneg %p231
      %s363 = smul.u32 2, %s24
      %p364 = scmp.lt.s32.totalorder %s23, 1
      %s365 = scalar_select %p364, %s23, 1
      %p366 = scmp.lt.s32.totalorder %s25, 2
      %s367 = scalar_select %p366, %s25, 2
      %p368 = scmp.lt.s32.totalorder %s363, 3
      %s369 = scalar_select %p368, %s363, 3
      %p370 = scmp.lt.s32.totalorder %s26, 0
      %s371 = scalar_select %p370, %s26, 0
      %s372 = sadd.s32 %s371, %s369
      %s373 = smul.addr %s367, 4
      %s374 = sadd.s32 %s372, %s373
      %s375 = smul.addr %s365, 12
      %s376 = sadd.s32 %s374, %s375
      %s377 = smul.addr %s376, 4
      %s378 = scalar_lea.vmem %s6, %s377
      %s379 = smul.u32 2, %s24
      %p380 = scmp.lt.s32.totalorder %s23, 1
      %s381 = scalar_select %p380, %s23, 1
      %p382 = scmp.lt.s32.totalorder %s379, 1
      %s383 = scalar_select %p382, %s379, 1
      %s384 = smul.addr %s381, 2
      %s385 = sadd.s32 %s383, %s384
      %s386 = smul.addr %s385, 4
      %s387 = scalar_lea.vmem %s0, %s386
      %s388 = smul.u32 2, %s24
      %p389 = scmp.lt.s32.totalorder %s23, 1
      %s390 = scalar_select %p389, %s23, 1
      %s391 = scalar_lea.vmem %s1, %s390
      %p392 = scmp.lt.s32.totalorder %s23, 1
      %s393 = scalar_select %p392, %s23, 1
      %s394 = scalar_lea.vmem %s2, %s393
      %p395 = scmp.lt.s32.totalorder %s25, 2
      %s396 = scalar_select %p395, %s25, 2
      %p397 = scmp.lt.s32.totalorder %s26, 0
      %s398 = scalar_select %p397, %s26, 0
      %s399 = smul.addr %s396, 4
      %s400 = sadd.s32 %s398, %s399
      %s401 = smul.addr %s400, 4
      %s402 = scalar_lea.vmem %s3, %s401
      %p403 = scmp.lt.s32.totalorder %s25, 2
      %s404 = scalar_select %p403, %s25, 2
      %p405 = scmp.lt.s32.totalorder %s26, 0
      %s406 = scalar_select %p405, %s26, 0
      %s407 = sadd.s32 %s406, %s404
      %s408 = scalar_lea.vmem %s4, %s407
      %p409 = scmp.lt.s32.totalorder %s25, 2
      %s410 = scalar_select %p409, %s25, 2
      %p411 = scmp.lt.s32.totalorder %s26, 0
      %s412 = scalar_select %p411, %s26, 0
      %s413 = sadd.s32 %s412, %s410
      %s414 = scalar_lea.vmem %s5, %s413
      %s415 = smul.u32 2, %s24
      %p416 = scmp.lt.s32.totalorder %s23, 1
      %s417 = scalar_select %p416, %s23, 1
      %p418 = scmp.lt.s32.totalorder %s25, 2
      %s419 = scalar_select %p418, %s25, 2
      %p420 = scmp.lt.s32.totalorder %s415, 3
      %s421 = scalar_select %p420, %s415, 3
      %p422 = scmp.lt.s32.totalorder %s26, 0
      %s423 = scalar_select %p422, %s26, 0
      %s424 = sadd.s32 %s423, %s421
      %s425 = smul.addr %s419, 4
      %s426 = sadd.s32 %s424, %s425
      %s427 = smul.addr %s417, 12
      %s428 = sadd.s32 %s426, %s427
      %s429 = smul.addr %s428, 4
      %s430 = scalar_lea.vmem %s6, %s429
      %s431 = smul.u32 2, %s24
      %p433 = scmp.eq.s32.totalorder %s25, 0
      %p434 = scmp.eq.s32.totalorder %s26, 0
      %p435 = pnand %p433, %p434
      %p436 = pneg %p435
      // Predicated region
      $region45: #{nammsr_block_forward.7} parent=43 // pred_check
        _
      $region46: #{nammsr_block_forward.7} parent=43 // pred_check_branch
        %438 = sbr.rel (%p435) target = $region48
      $region47: #{nammsr_block_forward.7} parent=43 // pred_region
        %v439 = vld [vmem:[%s387] sm:$0xf]
        %v440 = vld [vmem:[%s387 + $0x4] sm:$0xf]
        %v441 = vunpack.c.l.bf16 %v439
        %v442 = vunpack.c.l.bf16 %v440
        %vm443 = vcmask 261120
        %v444 = vsel %vm443, %v441, 0.0
        %445 = vadd.xlane.f32.xlu0 %v444
        %v446 = vpop.xlane.xlu0 %445
        %v447 = vsel %vm443, %v442, 0.0
        %448 = vadd.xlane.f32.xlu0 %v447
        %v449 = vpop.xlane.xlu0 %448
        %v450 = vrcp.pop 32.0
        %v451 = vmul.f32 %v446, %v450
        %v452 = vmul.f32 %v449, %v450
        %v453 = vsub.f32 %v441, %v451
        %v454 = vsub.f32 %v442, %v452
        %v455 = vmul.f32 %v453, %v453
        %v456 = vmul.f32 %v454, %v454
        %v457 = vsel %vm443, %v455, 0.0
        %458 = vadd.xlane.f32.xlu0 %v457
        %v459 = vpop.xlane.xlu0 %458
        %v460 = vsel %vm443, %v456, 0.0
        %461 = vadd.xlane.f32.xlu0 %v460
        %v462 = vpop.xlane.xlu0 %461
        %v463 = vmul.f32 %v459, %v450
        %v464 = vmul.f32 %v462, %v450
        %v465 = vadd.f32 %v463, 1e-06
        %v466 = vadd.f32 %v464, 1e-06
        %v467 = vrsqrt.pop %v465
        %v468 = vrsqrt.pop %v466
        %v469 = vmul.f32 %v453, %v467
        %v470 = vmul.f32 %v454, %v468
        %v471 = vld [vmem:[%s394] sm:$0x1]
        %v472 = vadd.f32 %v471, 1.0
        %v474 = vlaneseq
        %v475 = vshrl.u32 %v474, 7
        %v476 = vsub.s32 0, %v475
        %v477 = vrot.slane %v472, %v476
        %v479 = vmul.f32 %v469, %v477
        %v480 = vmul.f32 %v470, %v477
        %v481 = vld [vmem:[%s391] sm:$0x1]
        %v483 = vlaneseq
        %v484 = vshrl.u32 %v483, 7
        %v485 = vsub.s32 0, %v484
        %v486 = vrot.slane %v481, %v485
        %v488 = vadd.f32 %v479, %v486
        %v489 = vadd.f32 %v480, %v486
        %v490 = vpack.c.bf16 %v489, %v488
        %v492 = vunpack.c.l.b16 %v490
        %v493 = vunpack.c.h.b16 %v490
        %v494 = vpack.c.b16 %v492, %v492
        %v495 = vpack.c.b16 %v493, %v493
        %vm498 = vcmask 257024
        %499 = vst.msk [vmem:[#allocation2] sm:$0xf] %vm498, %v494
        %500 = vst.msk [vmem:[#allocation2 + $0x4] sm:$0xf] %vm498, %v495
      $region48: #{nammsr_block_forward.7} parent=43 // pred_fallthru
        _
      %v501 = vld [vmem:[#allocation2] sm:$0xf]
      %v502 = vld [vmem:[#allocation2 + $0x4] sm:$0xf]
      %v503 = vld [vmem:[%s402] sm:$0xf]
      %v504 = vld [vmem:[%s402 + $0x4] sm:$0xf]
      %v505 = vld [vmem:[%s402 + $0x8] sm:$0xf]
      %v506 = vld [vmem:[%s402 + $0xc] sm:$0xf]
      %v507 = vld [vmem:[%s408] sm:$0x1]
      %v509 = vlaneseq
      %v510 = vshrl.u32 %v509, 7
      %v511 = vsub.s32 0, %v510
      %v512 = vrot.slane %v507, %v511
      %v516 = vunpack.c.l.b16 %v501
      %v517 = vunpack.c.l.b16 %v502
      %v518 = vpack.c.b16 %v517, %v516
      %v523 = vunpack.c.l.b16 %v503
      %v524 = vunpack.c.l.b16 %v504
      %v525 = vunpack.c.l.b16 %v505
      %v526 = vunpack.c.l.b16 %v506
      %v527 = vpack.c.b16 %v524, %v523
      %v528 = vpack.c.b16 %v526, %v525
      %vm531 = vcmask 261120
      %v533 = vsel %vm531, %v518, 0
      %535 = vmatprep.subr.bf16.mxu0 0
      %536 = vmatpush1.bf16.msra.mxu0 0
      %537 = vmatprep.subr.bf16.mxu0 0
      %538 = vmatpush1.bf16.msra.mxu0 0
      %539 = vmatprep.subr.bf16.mxu0 0
      %540 = vmatpush1.bf16.msra.mxu0 0
      %541 = vmatprep.subr.bf16.mxu0 0
      %542 = vmatpush1.bf16.msra.mxu0 0
      %543 = vmatprep.subr.bf16.mxu0 0
      %544 = vmatpush1.bf16.msra.mxu0 0
      %545 = vmatprep.subr.bf16.mxu0 0
      %546 = vmatpush1.bf16.msra.mxu0 0
      %547 = vmatprep.subr.bf16.mxu0 0
      %548 = vmatpush1.bf16.msra.mxu0 %v528
      %549 = vmatprep.subr.bf16.mxu0 0
      %550 = vmatpush1.bf16.msra.mxu0 %v527
      %551 = vmatprep.subr.bf16.mxu0 0
      %552 = vmatpush2.bf16.msra.mxu0 0
      %553 = vmatprep.subr.bf16.mxu0 0
      %554 = vmatpush2.bf16.msra.mxu0 0
      %555 = vmatprep.subr.bf16.mxu0 0
      %556 = vmatpush2.bf16.msra.mxu0 0
      %557 = vmatprep.subr.bf16.mxu0 0
      %558 = vmatpush2.bf16.msra.mxu0 0
      %559 = vmatprep.subr.bf16.mxu0 0
      %560 = vmatpush2.bf16.msra.mxu0 0
      %561 = vmatprep.subr.bf16.mxu0 0
      %562 = vmatpush2.bf16.msra.mxu0 0
      %563 = vmatprep.subr.bf16.mxu0 0
      %564 = vmatpush2.bf16.msra.mxu0 0
      %565 = vmatprep.subr.bf16.mxu0 0
      %566 = vmatpush2.bf16.msra.mxu0 0
      %567 = vmatprep.mubr.bf16.mxu0 0
      %568 = vmatmul.mubr.bf16.gmra.mxu0 %v533
      %v569 = vpop.f32.mrf.mxu0
      %v570 = vadd.f32 %v512, %v569
      %v571 = vpop.f32.mrf.mxu0
      %v572 = vpop.f32.mrf.mxu0
      %v573 = vadd.f32 %v512, %v572
      %v574 = vpop.f32.mrf.mxu0
      %575 = vdwg.mxu0
      %p576 = scmp.eq.s32.totalorder %s25, 2
      // Predicated region
      $region49: #{nammsr_block_forward.7} parent=43 // pred_check
        %p577 = pneg %p576
      $region50: #{nammsr_block_forward.7} parent=43 // pred_check_branch
        %579 = sbr.rel (%p577) target = $region52
      $region51: #{nammsr_block_forward.7} parent=43 // pred_region
        %v580 = vpack.c.bf16 %v573, %v570
        %v582 = vunpack.c.l.b16 %v580
        %v583 = vunpack.c.h.b16 %v580
        %v584 = vpack.c.b16 %v582, %v582
        %v585 = vpack.c.b16 %v583, %v583
        %vm588 = vcmask 257024
        %589 = vst.msk [vmem:[%s430] sm:$0xf] %vm588, %v584
        %590 = vst.msk [vmem:[%s430 + $0x4] sm:$0xf] %vm588, %v585
      $region52: #{nammsr_block_forward.7} parent=43 // pred_fallthru
        _
      %p591 = scmp.lt.s32.totalorder %s25, 2
      // Predicated region
      $region53: #{nammsr_block_forward.7} parent=43 // pred_check
        %p592 = pneg %p591
      $region54: #{nammsr_block_forward.7} parent=43 // pred_check_branch
        %594 = sbr.rel (%p592) target = $region56
      $region55: #{nammsr_block_forward.7} parent=43 // pred_region
        %v595 = vld [vmem:[%s414] sm:$0x1]
        %v596 = vmul.f32 %v570, %v570
        %v597 = vmul.f32 %v573, %v573
        %vm598 = vcmask 130048
        %v599 = vsel %vm598, %v596, 0.0
        %600 = vadd.xlane.f32.xlu0 %v599
        %v601 = vpop.xlane.xlu0 %600
        %v602 = vsel %vm598, %v597, 0.0
        %603 = vadd.xlane.f32.xlu0 %v602
        %v604 = vpop.xlane.xlu0 %603
        %v605 = vrcp.pop 16.0
        %v606 = vmul.f32 %v601, %v605
        %v607 = vmul.f32 %v604, %v605
        %v608 = vadd.f32 %v606, 1e-06
        %v609 = vadd.f32 %v607, 1e-06
        %v610 = vrsqrt.pop %v608
        %v611 = vrsqrt.pop %v609
        %v612 = vmul.f32 %v570, %v610
        %v613 = vmul.f32 %v573, %v611
        %v615 = vlaneseq
        %v616 = vshrl.u32 %v615, 7
        %v617 = vsub.s32 0, %v616
        %v618 = vrot.slane %v595, %v617
        %v620 = vmul.f32 %v612, %v618
        %v621 = vmul.f32 %v613, %v618
        %624 = vrot.lane.b32.xlu0 %v596, 112
        %v625 = vpop.permute.xlu0 %624
        %626 = vrot.lane.b32.xlu0 %v597, 112
        %v627 = vpop.permute.xlu0 %626
        %v630 = vsel %vm598, %v625, 0.0
        %631 = vadd.xlane.f32.xlu0 %v630
        %v632 = vpop.xlane.xlu0 %631
        %v633 = vsel %vm598, %v627, 0.0
        %634 = vadd.xlane.f32.xlu0 %v633
        %v635 = vpop.xlane.xlu0 %634
        %v636 = vmul.f32 %v632, %v605
        %v637 = vmul.f32 %v635, %v605
        %v638 = vadd.f32 %v636, 1e-06
        %v639 = vadd.f32 %v637, 1e-06
        %v640 = vrsqrt.pop %v638
        %v641 = vrsqrt.pop %v639
        %v642 = vmul.f32 %v570, %v640
        %v643 = vmul.f32 %v573, %v641
        %v644 = vmul.f32 %v642, %v618
        %v645 = vmul.f32 %v643, %v618
        %v646 = vsel %vm598, %v620, %v644
        %v647 = vsel %vm598, %v621, %v645
        %v648 = vpack.c.bf16 %v647, %v646
        %v650 = vunpack.c.l.b16 %v648
        %v651 = vunpack.c.h.b16 %v648
        %v652 = vpack.c.b16 %v650, %v650
        %v653 = vpack.c.b16 %v651, %v651
        %vm656 = vcmask 257024
        %657 = vst.msk [vmem:[%s430] sm:$0xf] %vm656, %v652
        %658 = vst.msk [vmem:[%s430 + $0x4] sm:$0xf] %vm656, %v653
      $region56: #{nammsr_block_forward.7} parent=43 // pred_fallthru
        _
      %s659 = smul.u32 2, %s24
      %p660 = scmp.lt.s32.totalorder %s23, 1
      %s661 = scalar_select %p660, %s23, 1
      %p662 = scmp.lt.s32.totalorder %s25, 2
      %s663 = scalar_select %p662, %s25, 2
      %p664 = scmp.lt.s32.totalorder %s659, 3
      %s665 = scalar_select %p664, %s659, 3
      %p666 = scmp.lt.s32.totalorder %s26, 0
      %s667 = scalar_select %p666, %s26, 0
      %s668 = sadd.s32 %s667, %s665
      %s669 = smul.addr %s663, 4
      %s670 = sadd.s32 %s668, %s669
      %s671 = smul.addr %s661, 12
      %s672 = sadd.s32 %s670, %s671
      %s673 = smul.addr %s672, 4
      %s674 = scalar_lea.vmem %s6, %s673
      // Predicated region
      $region57: #{nammsr_block_forward.7} parent=43 // pred_check
        %p675 = pneg %p231
      $region58: #{nammsr_block_forward.7} parent=43 // pred_check_branch
        %677 = sbr.rel (%p675) target = $region60
      $region59: #{nammsr_block_forward.7} parent=43 // pred_region
        %s678 = smul.u32 2, %s24
      $region60: #{nammsr_block_forward.7} parent=43 // pred_fallthru
        _
    $region44: #{nammsr_block_forward.7} parent=5 // pred_fallthru
      _
    %p679 = scmp.le.s32.totalorder 2, %s12
    // Predicated region
    $region61: #{nammsr_block_forward.7} parent=5 // pred_check
      %p680 = pneg %p679
    $region62: #{nammsr_block_forward.7} parent=5 // pred_check_branch
      %682 = sbr.rel (%p680) target = $region64
    $region63: #{nammsr_block_forward.7} parent=5 // pred_region
      %s683 = ssub.s32 %s12, 2
      // Predicated region
      $region65: #{nammsr_block_forward.7} parent=63 // pred_check
        %p684 = pneg %p237
      $region66: #{nammsr_block_forward.7} parent=63 // pred_check_branch
        %686 = sbr.rel (%p684) target = $region68
      $region67: #{nammsr_block_forward.7} parent=63 // pred_region
        %s687 = smul.u32 2, %s28
        %p688 = scmp.lt.s32.totalorder %s27, 1
        %s689 = scalar_select %p688, %s27, 1
        %p690 = scmp.lt.s32.totalorder %s29, 2
        %s691 = scalar_select %p690, %s29, 2
        %p692 = scmp.lt.s32.totalorder %s687, 3
        %s693 = scalar_select %p692, %s687, 3
        %p694 = scmp.lt.s32.totalorder %s30, 0
        %s695 = scalar_select %p694, %s30, 0
        %s696 = sadd.s32 %s695, %s693
        %s697 = smul.addr %s691, 4
        %s698 = sadd.s32 %s696, %s697
        %s699 = smul.addr %s689, 12
        %s700 = sadd.s32 %s698, %s699
        %s701 = smul.addr %s700, 4
        %s702 = scalar_lea.vmem %s6, %s701
      $region68: #{nammsr_block_forward.7} parent=63 // pred_fallthru
        _
    $region64: #{nammsr_block_forward.7} parent=5 // pred_fallthru
      _
  $region6: #{nammsr_block_forward.7} parent=0 // loop_footer
    %s16 = sadd.s32 1, %s12
  $region7: #{nammsr_block_forward.7} parent=0 // loop_footer_branch
    %11 = sbr.rel target = $region3
  $region8: #{nammsr_block_forward.7} parent=0 // loop_exit
    _

// kernel: nammsr_block_forward.8
$region0: #{nammsr_block_forward.8}
  #allocation0 [shape = 'u32[]', space=smem, size = 0x4, offset = 0x4, fixed_abs, tag = 'smem constant byte address 0x4 - core index']
  #allocation1 [shape = 'u32[144,128]{1,0:T(1,128)}', space=vmem, size = 0x12000, scoped, tag = 'internal scratch']
  #allocation2 [shape = 'bf16[16,16]{1,0:T(8,128)(2,1)}', space=vmem, size = 0x1000, scoped, tag = 'scratch operand']
  %s0 = inlined_call_operand.vmem [shape: bf16[2,16,16], index: 0, kind: input, shape index: {}]
  %s1 = inlined_call_operand.vmem [shape: f32[2,1,16], index: 1, kind: input, shape index: {}]
  %s2 = inlined_call_operand.vmem [shape: f32[2,1,16], index: 2, kind: input, shape index: {}]
  %s3 = inlined_call_operand.vmem [shape: bf16[3,16,32], index: 3, kind: input, shape index: {}]
  %s4 = inlined_call_operand.vmem [shape: f32[3,1,32], index: 4, kind: input, shape index: {}]
  %s5 = inlined_call_operand.vmem [shape: f32[3,1,32], index: 5, kind: input, shape index: {}]
  %s6 = inlined_call_operand.vmem [shape: bf16[2,3,32,32], index: 6, kind: input, shape index: {}, may-alias: {6,7}]
  %s7 = inlined_call_operand.vmem [shape: bf16[2,3,32,32], index: 7, kind: output, shape index: {}, may-alias: {6,7}]
  %s8 = sld [smem:[#allocation0]]
  $region69: #{nammsr_block_forward.8} parent=0
    _
  %s10 = ssub.s32 1, %s8
  %s11 = scalar_select 0, %s10, %s8
  loop: start=0, step=1, limit=8
  $region2: #{nammsr_block_forward.8} parent=0 // loop_pre_header
    _
  $region3: #{nammsr_block_forward.8} parent=0 // loop_header
    %s13 = sphi 0, %s17
    %p14 = scmp.ge.s32.totalorder %s13, 8
    %s20 = sphi 0, %s46
    %s21 = sphi 0, %s42
    %s22 = sphi 0, %s38
    %s23 = sphi 0, %s34
    %s24 = sphi 0, %s20
    %s25 = sphi 0, %s21
    %s26 = sphi 0, %s22
    %s27 = sphi 0, %s23
    %s28 = sphi 0, %s24
    %s29 = sphi 0, %s25
    %s30 = sphi 0, %s26
    %s31 = sphi 0, %s27
    %s51 = sphi 0, %s53
    %s54 = sphi 0, %s51
    %s55 = sphi 0, %s54
    %s71 = sphi 0, %s55
    %s77 = sphi 0, %s79
    %s80 = sphi 0, %s77
    %s81 = sphi 0, %s80
    %s97 = sphi 0, %s81
    %s103 = sphi 0, %s105
    %s106 = sphi 0, %s103
    %s107 = sphi 0, %s106
    %s123 = sphi 0, %s107
    %s131 = sphi 0, %s133
    %s134 = sphi 0, %s131
    %s135 = sphi 0, %s134
    %s151 = sphi 0, %s135
    %s159 = sphi 0, %s161
    %s162 = sphi 0, %s159
    %s163 = sphi 0, %s162
    %s179 = sphi 0, %s163
    %s187 = sphi 0, %s189
    %s190 = sphi 0, %s187
    %s191 = sphi 0, %s190
    %s207 = sphi 0, %s191
    %s221 = sphi 0, %s223
    %s224 = sphi 0, %s221
    %s225 = sphi 0, %s224
    %s241 = sphi 0, %s225
  $region4: #{nammsr_block_forward.8} parent=0 // loop_header_branch
    %16 = sbr.rel (%p14) target = $region8
  $region5: #{nammsr_block_forward.8} parent=0 // loop_body
    %s18 = ssub.s32 %s13, 1
    %s19 = ssub.s32 %s13, 2
    %s32 = sadd.s32 1, %s23
    %p33 = scmp.ge.s32.totalorder %s32, 1
    %s34 = scalar_select %p33, 0, %s32
    %s35 = sadd.s32 1, %s22
    %s36 = scalar_select %p33, %s35, %s22
    %p37 = scmp.ge.s32.totalorder %s36, 3
    %s38 = scalar_select %p37, 0, %s36
    %s39 = sadd.s32 1, %s21
    %s40 = scalar_select %p37, %s39, %s21
    %p41 = scmp.ge.s32.totalorder %s40, 1
    %s42 = scalar_select %p41, 0, %s40
    %s43 = sadd.s32 1, %s20
    %s44 = scalar_select %p41, %s43, %s20
    %p45 = scmp.ge.s32.totalorder %s44, 2
    %s46 = scalar_select %p45, 0, %s44
    %s47 = ssub.s32 %s20, %s46
    %s48 = ssub.s32 %s21, %s42
    %s49 = sor.u32 %s47, %s48
    %p50 = scmp.eq.s32.totalorder %s49, 0
    %s52 = sadd.s32 %s51, 1
    %s53 = scalar_select %p50, %s51, %s52
    %p56 = pneg %p50
    %p57 = scmp.eq.s32.totalorder %s13, 5
    %p58 = por %p56, %p57
    %p59 = scmp.ne.s32.totalorder %s51, %s54
    %p60 = scmp.eq.s32.totalorder %s13, 0
    %p61 = por %p59, %p60
    %p62 = scmp.ne.s32.totalorder %s51, %s54
    %p63 = scmp.eq.s32.totalorder %s18, 5
    %p64 = por %p62, %p63
    %p65 = scmp.ne.s32.totalorder %s54, %s55
    %p66 = scmp.eq.s32.totalorder %s18, 0
    %p67 = por %p65, %p66
    %p68 = scmp.ne.s32.totalorder %s54, %s55
    %p69 = scmp.eq.s32.totalorder %s19, 5
    %p70 = por %p68, %p69
    %p72 = scmp.ne.s32.totalorder %s55, %s71
    %p73 = scmp.eq.s32.totalorder %s19, 0
    %p74 = por %p72, %p73
    %s75 = ssub.s32 %s20, %s46
    %p76 = scmp.eq.s32.totalorder %s75, 0
    %s78 = sadd.s32 %s77, 1
    %s79 = scalar_select %p76, %s77, %s78
    %p82 = pneg %p76
    %p83 = scmp.eq.s32.totalorder %s13, 5
    %p84 = por %p82, %p83
    %p85 = scmp.ne.s32.totalorder %s77, %s80
    %p86 = scmp.eq.s32.totalorder %s13, 0
    %p87 = por %p85, %p86
    %p88 = scmp.ne.s32.totalorder %s77, %s80
    %p89 = scmp.eq.s32.totalorder %s18, 5
    %p90 = por %p88, %p89
    %p91 = scmp.ne.s32.totalorder %s80, %s81
    %p92 = scmp.eq.s32.totalorder %s18, 0
    %p93 = por %p91, %p92
    %p94 = scmp.ne.s32.totalorder %s80, %s81
    %p95 = scmp.eq.s32.totalorder %s19, 5
    %p96 = por %p94, %p95
    %p98 = scmp.ne.s32.totalorder %s81, %s97
    %p99 = scmp.eq.s32.totalorder %s19, 0
    %p100 = por %p98, %p99
    %s101 = ssub.s32 %s20, %s46
    %p102 = scmp.eq.s32.totalorder %s101, 0
    %s104 = sadd.s32 %s103, 1
    %s105 = scalar_select %p102, %s103, %s104
    %p108 = pneg %p102
    %p109 = scmp.eq.s32.totalorder %s13, 5
    %p110 = por %p108, %p109
    %p111 = scmp.ne.s32.totalorder %s103, %s106
    %p112 = scmp.eq.s32.totalorder %s13, 0
    %p113 = por %p111, %p112
    %p114 = scmp.ne.s32.totalorder %s103, %s106
    %p115 = scmp.eq.s32.totalorder %s18, 5
    %p116 = por %p114, %p115
    %p117 = scmp.ne.s32.totalorder %s106, %s107
    %p118 = scmp.eq.s32.totalorder %s18, 0
    %p119 = por %p117, %p118
    %p120 = scmp.ne.s32.totalorder %s106, %s107
    %p121 = scmp.eq.s32.totalorder %s19, 5
    %p122 = por %p120, %p121
    %p124 = scmp.ne.s32.totalorder %s107, %s123
    %p125 = scmp.eq.s32.totalorder %s19, 0
    %p126 = por %p124, %p125
    %s127 = ssub.s32 %s22, %s38
    %s128 = ssub.s32 %s23, %s34
    %s129 = sor.u32 %s127, %s128
    %p130 = scmp.eq.s32.totalorder %s129, 0
    %s132 = sadd.s32 %s131, 1
    %s133 = scalar_select %p130, %s131, %s132
    %p136 = pneg %p130
    %p137 = scmp.eq.s32.totalorder %s13, 5
    %p138 = por %p136, %p137
    %p139 = scmp.ne.s32.totalorder %s131, %s134
    %p140 = scmp.eq.s32.totalorder %s13, 0
    %p141 = por %p139, %p140
    %p142 = scmp.ne.s32.totalorder %s131, %s134
    %p143 = scmp.eq.s32.totalorder %s18, 5
    %p144 = por %p142, %p143
    %p145 = scmp.ne.s32.totalorder %s134, %s135
    %p146 = scmp.eq.s32.totalorder %s18, 0
    %p147 = por %p145, %p146
    %p148 = scmp.ne.s32.totalorder %s134, %s135
    %p149 = scmp.eq.s32.totalorder %s19, 5
    %p150 = por %p148, %p149
    %p152 = scmp.ne.s32.totalorder %s135, %s151
    %p153 = scmp.eq.s32.totalorder %s19, 0
    %p154 = por %p152, %p153
    %s155 = ssub.s32 %s22, %s38
    %s156 = ssub.s32 %s23, %s34
    %s157 = sor.u32 %s155, %s156
    %p158 = scmp.eq.s32.totalorder %s157, 0
    %s160 = sadd.s32 %s159, 1
    %s161 = scalar_select %p158, %s159, %s160
    %p164 = pneg %p158
    %p165 = scmp.eq.s32.totalorder %s13, 5
    %p166 = por %p164, %p165
    %p167 = scmp.ne.s32.totalorder %s159, %s162
    %p168 = scmp.eq.s32.totalorder %s13, 0
    %p169 = por %p167, %p168
    %p170 = scmp.ne.s32.totalorder %s159, %s162
    %p171 = scmp.eq.s32.totalorder %s18, 5
    %p172 = por %p170, %p171
    %p173 = scmp.ne.s32.totalorder %s162, %s163
    %p174 = scmp.eq.s32.totalorder %s18, 0
    %p175 = por %p173, %p174
    %p176 = scmp.ne.s32.totalorder %s162, %s163
    %p177 = scmp.eq.s32.totalorder %s19, 5
    %p178 = por %p176, %p177
    %p180 = scmp.ne.s32.totalorder %s163, %s179
    %p181 = scmp.eq.s32.totalorder %s19, 0
    %p182 = por %p180, %p181
    %s183 = ssub.s32 %s22, %s38
    %s184 = ssub.s32 %s23, %s34
    %s185 = sor.u32 %s183, %s184
    %p186 = scmp.eq.s32.totalorder %s185, 0
    %s188 = sadd.s32 %s187, 1
    %s189 = scalar_select %p186, %s187, %s188
    %p192 = pneg %p186
    %p193 = scmp.eq.s32.totalorder %s13, 5
    %p194 = por %p192, %p193
    %p195 = scmp.ne.s32.totalorder %s187, %s190
    %p196 = scmp.eq.s32.totalorder %s13, 0
    %p197 = por %p195, %p196
    %p198 = scmp.ne.s32.totalorder %s187, %s190
    %p199 = scmp.eq.s32.totalorder %s18, 5
    %p200 = por %p198, %p199
    %p201 = scmp.ne.s32.totalorder %s190, %s191
    %p202 = scmp.eq.s32.totalorder %s18, 0
    %p203 = por %p201, %p202
    %p204 = scmp.ne.s32.totalorder %s190, %s191
    %p205 = scmp.eq.s32.totalorder %s19, 5
    %p206 = por %p204, %p205
    %p208 = scmp.ne.s32.totalorder %s191, %s207
    %p209 = scmp.eq.s32.totalorder %s19, 0
    %p210 = por %p208, %p209
    %s211 = sadd.s32 %s21, 1
    %s212 = sadd.s32 %s42, 1
    %s213 = ssub.s32 %s20, %s46
    %s214 = ssub.s32 %s22, %s38
    %s215 = sor.u32 %s213, %s214
    %s216 = ssub.s32 %s211, %s212
    %s217 = sor.u32 %s215, %s216
    %s218 = ssub.s32 %s23, %s34
    %s219 = sor.u32 %s217, %s218
    %p220 = scmp.eq.s32.totalorder %s219, 0
    %s222 = sadd.s32 %s221, 1
    %s223 = scalar_select %p220, %s221, %s222
    %p226 = pneg %p220
    %p227 = scmp.eq.s32.totalorder %s13, 5
    %p228 = por %p226, %p227
    %p229 = scmp.ne.s32.totalorder %s221, %s224
    %p230 = scmp.eq.s32.totalorder %s13, 0
    %p231 = por %p229, %p230
    %p232 = scmp.ne.s32.totalorder %s221, %s224
    %p233 = scmp.eq.s32.totalorder %s18, 5
    %p234 = por %p232, %p233
    %p235 = scmp.ne.s32.totalorder %s224, %s225
    %p236 = scmp.eq.s32.totalorder %s18, 0
    %p237 = por %p235, %p236
    %p238 = scmp.ne.s32.totalorder %s224, %s225
    %p239 = scmp.eq.s32.totalorder %s19, 5
    %p240 = por %p238, %p239
    %p242 = scmp.ne.s32.totalorder %s225, %s241
    %p243 = scmp.eq.s32.totalorder %s19, 0
    %p244 = por %p242, %p243
    %p245 = scmp.le.s32.totalorder 1, %s13
    %p246 = scmp.lt.s32.totalorder %s13, 7
    %p247 = pnand %p245, %p246
    %p248 = pneg %p247
    // Predicated region
    $region9: #{nammsr_block_forward.8} parent=5 // pred_check
      _
    $region10: #{nammsr_block_forward.8} parent=5 // pred_check_branch
      %250 = sbr.rel (%p247) target = $region12
    $region11: #{nammsr_block_forward.8} parent=5 // pred_region
      %s251 = ssub.s32 %s13, 1
    $region12: #{nammsr_block_forward.8} parent=5 // pred_fallthru
      _
    %p252 = scmp.lt.s32.totalorder %s13, 6
    // Predicated region
    $region13: #{nammsr_block_forward.8} parent=5 // pred_check
      %p253 = pneg %p252
    $region14: #{nammsr_block_forward.8} parent=5 // pred_check_branch
      %255 = sbr.rel (%p253) target = $region16
    $region15: #{nammsr_block_forward.8} parent=5 // pred_region
      // Predicated region
      $region17: #{nammsr_block_forward.8} parent=15 // pred_check
        %p256 = pneg %p61
      $region18: #{nammsr_block_forward.8} parent=15 // pred_check_branch
        %258 = sbr.rel (%p256) target = $region20
      $region19: #{nammsr_block_forward.8} parent=15 // pred_region
        %s259 = smul.u32 2, %s21
        %p260 = scmp.lt.s32.totalorder %s20, 1
        %s261 = scalar_select %p260, %s20, 1
        %p262 = scmp.lt.s32.totalorder %s259, 1
        %s263 = scalar_select %p262, %s259, 1
        %s264 = smul.addr %s261, 2
        %s265 = sadd.s32 %s263, %s264
        %s266 = smul.addr %s265, 4
        %s267 = scalar_lea.vmem %s0, %s266
        %s268 = smul.u32 2, %s21
      $region20: #{nammsr_block_forward.8} parent=15 // pred_fallthru
        _
      // Predicated region
      $region21: #{nammsr_block_forward.8} parent=15 // pred_check
        %p269 = pneg %p87
      $region22: #{nammsr_block_forward.8} parent=15 // pred_check_branch
        %271 = sbr.rel (%p269) target = $region24
      $region23: #{nammsr_block_forward.8} parent=15 // pred_region
        %p272 = scmp.lt.s32.totalorder %s20, 1
        %s273 = scalar_select %p272, %s20, 1
        %s274 = scalar_lea.vmem %s1, %s273
      $region24: #{nammsr_block_forward.8} parent=15 // pred_fallthru
        _
      // Predicated region
      $region25: #{nammsr_block_forward.8} parent=15 // pred_check
        %p275 = pneg %p113
      $region26: #{nammsr_block_forward.8} parent=15 // pred_check_branch
        %277 = sbr.rel (%p275) target = $region28
      $region27: #{nammsr_block_forward.8} parent=15 // pred_region
        %p278 = scmp.lt.s32.totalorder %s20, 1
        %s279 = scalar_select %p278, %s20, 1
        %s280 = scalar_lea.vmem %s2, %s279
      $region28: #{nammsr_block_forward.8} parent=15 // pred_fallthru
        _
      // Predicated region
      $region29: #{nammsr_block_forward.8} parent=15 // pred_check
        %p281 = pneg %p141
      $region30: #{nammsr_block_forward.8} parent=15 // pred_check_branch
        %283 = sbr.rel (%p281) target = $region32
      $region31: #{nammsr_block_forward.8} parent=15 // pred_region
        %p284 = scmp.lt.s32.totalorder %s22, 2
        %s285 = scalar_select %p284, %s22, 2
        %p286 = scmp.lt.s32.totalorder %s23, 0
        %s287 = scalar_select %p286, %s23, 0
        %s288 = smul.addr %s285, 2
        %s289 = sadd.s32 %s287, %s288
        %s290 = smul.addr %s289, 4
        %s291 = scalar_lea.vmem %s3, %s290
      $region32: #{nammsr_block_forward.8} parent=15 // pred_fallthru
        _
      // Predicated region
      $region33: #{nammsr_block_forward.8} parent=15 // pred_check
        %p292 = pneg %p169
      $region34: #{nammsr_block_forward.8} parent=15 // pred_check_branch
        %294 = sbr.rel (%p292) target = $region36
      $region35: #{nammsr_block_forward.8} parent=15 // pred_region
        %p295 = scmp.lt.s32.totalorder %s22, 2
        %s296 = scalar_select %p295, %s22, 2
        %p297 = scmp.lt.s32.totalorder %s23, 0
        %s298 = scalar_select %p297, %s23, 0
        %s299 = sadd.s32 %s298, %s296
        %s300 = scalar_lea.vmem %s4, %s299
      $region36: #{nammsr_block_forward.8} parent=15 // pred_fallthru
        _
      // Predicated region
      $region37: #{nammsr_block_forward.8} parent=15 // pred_check
        %p301 = pneg %p197
      $region38: #{nammsr_block_forward.8} parent=15 // pred_check_branch
        %303 = sbr.rel (%p301) target = $region40
      $region39: #{nammsr_block_forward.8} parent=15 // pred_region
        %p304 = scmp.lt.s32.totalorder %s22, 2
        %s305 = scalar_select %p304, %s22, 2
        %p306 = scmp.lt.s32.totalorder %s23, 0
        %s307 = scalar_select %p306, %s23, 0
        %s308 = sadd.s32 %s307, %s305
        %s309 = scalar_lea.vmem %s5, %s308
      $region40: #{nammsr_block_forward.8} parent=15 // pred_fallthru
        _
    $region16: #{nammsr_block_forward.8} parent=5 // pred_fallthru
      _
    %p310 = scmp.le.s32.totalorder 1, %s13
    %p311 = scmp.lt.s32.totalorder %s13, 7
    %p312 = pnand %p310, %p311
    %p313 = pneg %p312
    // Predicated region
    $region41: #{nammsr_block_forward.8} parent=5 // pred_check
      _
    $region42: #{nammsr_block_forward.8} parent=5 // pred_check_branch
      %315 = sbr.rel (%p312) target = $region44
    $region43: #{nammsr_block_forward.8} parent=5 // pred_region
      %s316 = ssub.s32 %s13, 1
      %s317 = smul.u32 2, %s25
      %p318 = scmp.lt.s32.totalorder %s24, 1
      %s319 = scalar_select %p318, %s24, 1
      %p320 = scmp.lt.s32.totalorder %s317, 1
      %s321 = scalar_select %p320, %s317, 1
      %s322 = smul.addr %s319, 2
      %s323 = sadd.s32 %s321, %s322
      %s324 = smul.addr %s323, 4
      %s325 = scalar_lea.vmem %s0, %s324
      %p326 = pneg %p67
      %p327 = pneg %p64
      %p328 = scmp.lt.s32.totalorder %s24, 1
      %s329 = scalar_select %p328, %s24, 1
      %s330 = scalar_lea.vmem %s1, %s329
      %p331 = pneg %p93
      %p332 = pneg %p90
      %p333 = scmp.lt.s32.totalorder %s24, 1
      %s334 = scalar_select %p333, %s24, 1
      %s335 = scalar_lea.vmem %s2, %s334
      %p336 = pneg %p119
      %p337 = pneg %p116
      %p338 = scmp.lt.s32.totalorder %s26, 2
      %s339 = scalar_select %p338, %s26, 2
      %p340 = scmp.lt.s32.totalorder %s27, 0
      %s341 = scalar_select %p340, %s27, 0
      %s342 = smul.addr %s339, 2
      %s343 = sadd.s32 %s341, %s342
      %s344 = smul.addr %s343, 4
      %s345 = scalar_lea.vmem %s3, %s344
      %p346 = pneg %p147
      %p347 = pneg %p144
      %p348 = scmp.lt.s32.totalorder %s26, 2
      %s349 = scalar_select %p348, %s26, 2
      %p350 = scmp.lt.s32.totalorder %s27, 0
      %s351 = scalar_select %p350, %s27, 0
      %s352 = sadd.s32 %s351, %s349
      %s353 = scalar_lea.vmem %s4, %s352
      %p354 = pneg %p175
      %p355 = pneg %p172
      %p356 = scmp.lt.s32.totalorder %s26, 2
      %s357 = scalar_select %p356, %s26, 2
      %p358 = scmp.lt.s32.totalorder %s27, 0
      %s359 = scalar_select %p358, %s27, 0
      %s360 = sadd.s32 %s359, %s357
      %s361 = scalar_lea.vmem %s5, %s360
      %p362 = pneg %p203
      %p363 = pneg %p200
      %p364 = pneg %p237
      %p365 = pneg %p234
      %s366 = sadd.s32 %s25, 1
      %s367 = smul.u32 2, %s366
      %p368 = scmp.lt.s32.totalorder %s24, 1
      %s369 = scalar_select %p368, %s24, 1
      %p370 = scmp.lt.s32.totalorder %s26, 2
      %s371 = scalar_select %p370, %s26, 2
      %p372 = scmp.lt.s32.totalorder %s367, 3
      %s373 = scalar_select %p372, %s367, 3
      %p374 = scmp.lt.s32.totalorder %s27, 0
      %s375 = scalar_select %p374, %s27, 0
      %s376 = sadd.s32 %s375, %s373
      %s377 = smul.addr %s371, 4
      %s378 = sadd.s32 %s376, %s377
      %s379 = smul.addr %s369, 12
      %s380 = sadd.s32 %s378, %s379
      %s381 = smul.addr %s380, 4
      %s382 = scalar_lea.vmem %s7, %s381
      %s383 = smul.u32 2, %s25
      %p384 = scmp.lt.s32.totalorder %s24, 1
      %s385 = scalar_select %p384, %s24, 1
      %p386 = scmp.lt.s32.totalorder %s383, 1
      %s387 = scalar_select %p386, %s383, 1
      %s388 = smul.addr %s385, 2
      %s389 = sadd.s32 %s387, %s388
      %s390 = smul.addr %s389, 4
      %s391 = scalar_lea.vmem %s0, %s390
      %s392 = smul.u32 2, %s25
      %p393 = scmp.lt.s32.totalorder %s24, 1
      %s394 = scalar_select %p393, %s24, 1
      %s395 = scalar_lea.vmem %s1, %s394
      %p396 = scmp.lt.s32.totalorder %s24, 1
      %s397 = scalar_select %p396, %s24, 1
      %s398 = scalar_lea.vmem %s2, %s397
      %p399 = scmp.lt.s32.totalorder %s26, 2
      %s400 = scalar_select %p399, %s26, 2
      %p401 = scmp.lt.s32.totalorder %s27, 0
      %s402 = scalar_select %p401, %s27, 0
      %s403 = smul.addr %s400, 2
      %s404 = sadd.s32 %s402, %s403
      %s405 = smul.addr %s404, 4
      %s406 = scalar_lea.vmem %s3, %s405
      %p407 = scmp.lt.s32.totalorder %s26, 2
      %s408 = scalar_select %p407, %s26, 2
      %p409 = scmp.lt.s32.totalorder %s27, 0
      %s410 = scalar_select %p409, %s27, 0
      %s411 = sadd.s32 %s410, %s408
      %s412 = scalar_lea.vmem %s4, %s411
      %p413 = scmp.lt.s32.totalorder %s26, 2
      %s414 = scalar_select %p413, %s26, 2
      %p415 = scmp.lt.s32.totalorder %s27, 0
      %s416 = scalar_select %p415, %s27, 0
      %s417 = sadd.s32 %s416, %s414
      %s418 = scalar_lea.vmem %s5, %s417
      %s419 = sadd.s32 %s25, 1
      %s420 = smul.u32 2, %s419
      %p421 = scmp.lt.s32.totalorder %s24, 1
      %s422 = scalar_select %p421, %s24, 1
      %p423 = scmp.lt.s32.totalorder %s26, 2
      %s424 = scalar_select %p423, %s26, 2
      %p425 = scmp.lt.s32.totalorder %s420, 3
      %s426 = scalar_select %p425, %s420, 3
      %p427 = scmp.lt.s32.totalorder %s27, 0
      %s428 = scalar_select %p427, %s27, 0
      %s429 = sadd.s32 %s428, %s426
      %s430 = smul.addr %s424, 4
      %s431 = sadd.s32 %s429, %s430
      %s432 = smul.addr %s422, 12
      %s433 = sadd.s32 %s431, %s432
      %s434 = smul.addr %s433, 4
      %s435 = scalar_lea.vmem %s7, %s434
      %s436 = sadd.s32 %s25, 1
      %s437 = smul.u32 2, %s436
      %p439 = scmp.eq.s32.totalorder %s26, 0
      %p440 = scmp.eq.s32.totalorder %s27, 0
      %p441 = pnand %p439, %p440
      %p442 = pneg %p441
      // Predicated region
      $region45: #{nammsr_block_forward.8} parent=43 // pred_check
        _
      $region46: #{nammsr_block_forward.8} parent=43 // pred_check_branch
        %444 = sbr.rel (%p441) target = $region48
      $region47: #{nammsr_block_forward.8} parent=43 // pred_region
        %v445 = vld [vmem:[%s391] sm:$0xf]
        %v446 = vld [vmem:[%s391 + $0x4] sm:$0xf]
        %v447 = vunpack.c.l.bf16 %v445
        %v448 = vunpack.c.l.bf16 %v446
        %vm449 = vcmask 130048
        %v450 = vsel %vm449, %v447, 0.0
        %451 = vadd.xlane.f32.xlu0 %v450
        %v452 = vpop.xlane.xlu0 %451
        %v453 = vsel %vm449, %v448, 0.0
        %454 = vadd.xlane.f32.xlu0 %v453
        %v455 = vpop.xlane.xlu0 %454
        %v456 = vrcp.pop 16.0
        %v457 = vmul.f32 %v452, %v456
        %v458 = vmul.f32 %v455, %v456
        %v459 = vsub.f32 %v447, %v457
        %v460 = vsub.f32 %v448, %v458
        %v461 = vmul.f32 %v459, %v459
        %v462 = vmul.f32 %v460, %v460
        %v463 = vsel %vm449, %v461, 0.0
        %464 = vadd.xlane.f32.xlu0 %v463
        %v465 = vpop.xlane.xlu0 %464
        %v466 = vsel %vm449, %v462, 0.0
        %467 = vadd.xlane.f32.xlu0 %v466
        %v468 = vpop.xlane.xlu0 %467
        %v469 = vmul.f32 %v465, %v456
        %v470 = vmul.f32 %v468, %v456
        %v471 = vadd.f32 %v469, 1e-06
        %v472 = vadd.f32 %v470, 1e-06
        %v473 = vrsqrt.pop %v471
        %v474 = vrsqrt.pop %v472
        %v475 = vmul.f32 %v459, %v473
        %v476 = vmul.f32 %v460, %v474
        %v477 = vld [vmem:[%s398] sm:$0x1]
        %v478 = vadd.f32 %v477, 1.0
        %v480 = vlaneseq
        %v481 = vshrl.u32 %v480, 7
        %v482 = vsub.s32 0, %v481
        %v483 = vrot.slane %v478, %v482
        %v485 = vmul.f32 %v475, %v483
        %v486 = vmul.f32 %v476, %v483
        %v487 = vld [vmem:[%s395] sm:$0x1]
        %v489 = vlaneseq
        %v490 = vshrl.u32 %v489, 7
        %v491 = vsub.s32 0, %v490
        %v492 = vrot.slane %v487, %v491
        %v494 = vadd.f32 %v485, %v492
        %v495 = vadd.f32 %v486, %v492
        %v496 = vpack.c.bf16 %v495, %v494
        %v498 = vunpack.c.l.b16 %v496
        %v499 = vunpack.c.h.b16 %v496
        %v500 = vpack.c.b16 %v498, %v498
        %v501 = vpack.c.b16 %v499, %v499
        %vm504 = vcmask 125952
        %505 = vst.msk [vmem:[#allocation2] sm:$0xf] %vm504, %v500
        %506 = vst.msk [vmem:[#allocation2 + $0x4] sm:$0xf] %vm504, %v501
      $region48: #{nammsr_block_forward.8} parent=43 // pred_fallthru
        _
      %v507 = vld [vmem:[#allocation2] sm:$0xf]
      %v508 = vld [vmem:[#allocation2 + $0x4] sm:$0xf]
      %v509 = vld [vmem:[%s406] sm:$0xf]
      %v510 = vld [vmem:[%s406 + $0x4] sm:$0xf]
      %v511 = vld [vmem:[%s412] sm:$0x1]
      %v513 = vlaneseq
      %v514 = vshrl.u32 %v513, 7
      %v515 = vsub.s32 0, %v514
      %v516 = vrot.slane %v511, %v515
      %v520 = vunpack.c.l.b16 %v507
      %v521 = vunpack.c.l.b16 %v508
      %v522 = vpack.c.b16 %v521, %v520
      %v525 = vunpack.c.l.b16 %v509
      %v526 = vunpack.c.l.b16 %v510
      %v527 = vpack.c.b16 %v526, %v525
      %vm529 = vcmask 130048
      %v531 = vsel %vm529, %v522, 0
      %533 = vmatprep.subr.bf16.mxu0 0
      %534 = vmatpush1.bf16.msra.mxu0 0
      %535 = vmatprep.subr.bf16.mxu0 0
      %536 = vmatpush1.bf16.msra.mxu0 0
      %537 = vmatprep.subr.bf16.mxu0 0
      %538 = vmatpush1.bf16.msra.mxu0 0
      %539 = vmatprep.subr.bf16.mxu0 0
      %540 = vmatpush1.bf16.msra.mxu0 0
      %541 = vmatprep.subr.bf16.mxu0 0
      %542 = vmatpush1.bf16.msra.mxu0 0
      %543 = vmatprep.subr.bf16.mxu0 0
      %544 = vmatpush1.bf16.msra.mxu0 0
      %545 = vmatprep.subr.bf16.mxu0 0
      %546 = vmatpush1.bf16.msra.mxu0 0
      %547 = vmatprep.subr.bf16.mxu0 0
      %548 = vmatpush1.bf16.msra.mxu0 %v527
      %549 = vmatprep.subr.bf16.mxu0 0
      %550 = vmatpush2.bf16.msra.mxu0 0
      %551 = vmatprep.subr.bf16.mxu0 0
      %552 = vmatpush2.bf16.msra.mxu0 0
      %553 = vmatprep.subr.bf16.mxu0 0
      %554 = vmatpush2.bf16.msra.mxu0 0
      %555 = vmatprep.subr.bf16.mxu0 0
      %556 = vmatpush2.bf16.msra.mxu0 0
      %557 = vmatprep.subr.bf16.mxu0 0
      %558 = vmatpush2.bf16.msra.mxu0 0
      %559 = vmatprep.subr.bf16.mxu0 0
      %560 = vmatpush2.bf16.msra.mxu0 0
      %561 = vmatprep.subr.bf16.mxu0 0
      %562 = vmatpush2.bf16.msra.mxu0 0
      %563 = vmatprep.subr.bf16.mxu0 0
      %564 = vmatpush2.bf16.msra.mxu0 0
      %565 = vmatprep.mubr.bf16.mxu0 0
      %566 = vmatmul.mubr.bf16.gmra.mxu0 %v531
      %v567 = vpop.f32.mrf.mxu0
      %v568 = vadd.f32 %v516, %v567
      %v569 = vpop.f32.mrf.mxu0
      %v570 = vpop.f32.mrf.mxu0
      %v571 = vadd.f32 %v516, %v570
      %v572 = vpop.f32.mrf.mxu0
      %573 = vdwg.mxu0
      %p574 = scmp.eq.s32.totalorder %s26, 2
      // Predicated region
      $region49: #{nammsr_block_forward.8} parent=43 // pred_check
        %p575 = pneg %p574
      $region50: #{nammsr_block_forward.8} parent=43 // pred_check_branch
        %577 = sbr.rel (%p575) target = $region52
      $region51: #{nammsr_block_forward.8} parent=43 // pred_region
        %v578 = vpack.c.bf16 %v571, %v568
        %v580 = vunpack.c.l.b16 %v578
        %v581 = vunpack.c.h.b16 %v578
        %v582 = vpack.c.b16 %v580, %v580
        %v583 = vpack.c.b16 %v581, %v581
        %vm586 = vcmask 257024
        %587 = vst.msk [vmem:[%s435] sm:$0xf] %vm586, %v582
        %588 = vst.msk [vmem:[%s435 + $0x4] sm:$0xf] %vm586, %v583
      $region52: #{nammsr_block_forward.8} parent=43 // pred_fallthru
        _
      %p589 = scmp.lt.s32.totalorder %s26, 2
      // Predicated region
      $region53: #{nammsr_block_forward.8} parent=43 // pred_check
        %p590 = pneg %p589
      $region54: #{nammsr_block_forward.8} parent=43 // pred_check_branch
        %592 = sbr.rel (%p590) target = $region56
      $region55: #{nammsr_block_forward.8} parent=43 // pred_region
        %v593 = vld [vmem:[%s418] sm:$0x1]
        %v594 = vmul.f32 %v568, %v568
        %v595 = vmul.f32 %v571, %v571
        %v596 = vsel %vm529, %v594, 0.0
        %597 = vadd.xlane.f32.xlu0 %v596
        %v598 = vpop.xlane.xlu0 %597
        %v599 = vsel %vm529, %v595, 0.0
        %600 = vadd.xlane.f32.xlu0 %v599
        %v601 = vpop.xlane.xlu0 %600
        %v602 = vrcp.pop 16.0
        %v603 = vmul.f32 %v598, %v602
        %v604 = vmul.f32 %v601, %v602
        %v605 = vadd.f32 %v603, 1e-06
        %v606 = vadd.f32 %v604, 1e-06
        %v607 = vrsqrt.pop %v605
        %v608 = vrsqrt.pop %v606
        %v609 = vmul.f32 %v568, %v607
        %v610 = vmul.f32 %v571, %v608
        %v612 = vlaneseq
        %v613 = vshrl.u32 %v612, 7
        %v614 = vsub.s32 0, %v613
        %v615 = vrot.slane %v593, %v614
        %v617 = vmul.f32 %v609, %v615
        %v618 = vmul.f32 %v610, %v615
        %621 = vrot.lane.b32.xlu0 %v594, 112
        %v622 = vpop.permute.xlu0 %621
        %623 = vrot.lane.b32.xlu0 %v595, 112
        %v624 = vpop.permute.xlu0 %623
        %v627 = vsel %vm529, %v622, 0.0
        %628 = vadd.xlane.f32.xlu0 %v627
        %v629 = vpop.xlane.xlu0 %628
        %v630 = vsel %vm529, %v624, 0.0
        %631 = vadd.xlane.f32.xlu0 %v630
        %v632 = vpop.xlane.xlu0 %631
        %v633 = vmul.f32 %v629, %v602
        %v634 = vmul.f32 %v632, %v602
        %v635 = vadd.f32 %v633, 1e-06
        %v636 = vadd.f32 %v634, 1e-06
        %v637 = vrsqrt.pop %v635
        %v638 = vrsqrt.pop %v636
        %v639 = vmul.f32 %v568, %v637
        %v640 = vmul.f32 %v571, %v638
        %v641 = vmul.f32 %v639, %v615
        %v642 = vmul.f32 %v640, %v615
        %v643 = vsel %vm529, %v617, %v641
        %v644 = vsel %vm529, %v618, %v642
        %v645 = vpack.c.bf16 %v644, %v643
        %v647 = vunpack.c.l.b16 %v645
        %v648 = vunpack.c.h.b16 %v645
        %v649 = vpack.c.b16 %v647, %v647
        %v650 = vpack.c.b16 %v648, %v648
        %vm653 = vcmask 257024
        %654 = vst.msk [vmem:[%s435] sm:$0xf] %vm653, %v649
        %655 = vst.msk [vmem:[%s435 + $0x4] sm:$0xf] %vm653, %v650
      $region56: #{nammsr_block_forward.8} parent=43 // pred_fallthru
        _
      %s656 = sadd.s32 %s25, 1
      %s657 = smul.u32 2, %s656
      %p658 = scmp.lt.s32.totalorder %s24, 1
      %s659 = scalar_select %p658, %s24, 1
      %p660 = scmp.lt.s32.totalorder %s26, 2
      %s661 = scalar_select %p660, %s26, 2
      %p662 = scmp.lt.s32.totalorder %s657, 3
      %s663 = scalar_select %p662, %s657, 3
      %p664 = scmp.lt.s32.totalorder %s27, 0
      %s665 = scalar_select %p664, %s27, 0
      %s666 = sadd.s32 %s665, %s663
      %s667 = smul.addr %s661, 4
      %s668 = sadd.s32 %s666, %s667
      %s669 = smul.addr %s659, 12
      %s670 = sadd.s32 %s668, %s669
      %s671 = smul.addr %s670, 4
      %s672 = scalar_lea.vmem %s7, %s671
      // Predicated region
      $region57: #{nammsr_block_forward.8} parent=43 // pred_check
        %p673 = pneg %p234
      $region58: #{nammsr_block_forward.8} parent=43 // pred_check_branch
        %675 = sbr.rel (%p673) target = $region60
      $region59: #{nammsr_block_forward.8} parent=43 // pred_region
        %s676 = sadd.s32 %s25, 1
        %s677 = smul.u32 2, %s676
      $region60: #{nammsr_block_forward.8} parent=43 // pred_fallthru
        _
    $region44: #{nammsr_block_forward.8} parent=5 // pred_fallthru
      _
    %p678 = scmp.le.s32.totalorder 2, %s13
    // Predicated region
    $region61: #{nammsr_block_forward.8} parent=5 // pred_check
      %p679 = pneg %p678
    $region62: #{nammsr_block_forward.8} parent=5 // pred_check_branch
      %681 = sbr.rel (%p679) target = $region64
    $region63: #{nammsr_block_forward.8} parent=5 // pred_region
      %s682 = ssub.s32 %s13, 2
      // Predicated region
      $region65: #{nammsr_block_forward.8} parent=63 // pred_check
        %p683 = pneg %p240
      $region66: #{nammsr_block_forward.8} parent=63 // pred_check_branch
        %685 = sbr.rel (%p683) target = $region68
      $region67: #{nammsr_block_forward.8} parent=63 // pred_region
        %s686 = sadd.s32 %s29, 1
        %s687 = smul.u32 2, %s686
        %p688 = scmp.lt.s32.totalorder %s28, 1
        %s689 = scalar_select %p688, %s28, 1
        %p690 = scmp.lt.s32.totalorder %s30, 2
        %s691 = scalar_select %p690, %s30, 2
        %p692 = scmp.lt.s32.totalorder %s687, 3
        %s693 = scalar_select %p692, %s687, 3
        %p694 = scmp.lt.s32.totalorder %s31, 0
        %s695 = scalar_select %p694, %s31, 0
        %s696 = sadd.s32 %s695, %s693
        %s697 = smul.addr %s691, 4
        %s698 = sadd.s32 %s696, %s697
        %s699 = smul.addr %s689, 12
        %s700 = sadd.s32 %s698, %s699
        %s701 = smul.addr %s700, 4
        %s702 = scalar_lea.vmem %s7, %s701
      $region68: #{nammsr_block_forward.8} parent=63 // pred_fallthru
        _
    $region64: #{nammsr_block_forward.8} parent=5 // pred_fallthru
      _
  $region6: #{nammsr_block_forward.8} parent=0 // loop_footer
    %s17 = sadd.s32 1, %s13
  $region7: #{nammsr_block_forward.8} parent=0 // loop_footer_branch
    %12 = sbr.rel target = $region3
  $region8: #{nammsr_block_forward.8} parent=0 // loop_exit
    _

// kernel: nammsr_block_forward.9
$region0: #{nammsr_block_forward.9}
  #allocation0 [shape = 'u32[]', space=smem, size = 0x4, offset = 0x4, fixed_abs, tag = 'smem constant byte address 0x4 - core index']
  #allocation1 [shape = 'u32[144,128]{1,0:T(1,128)}', space=vmem, size = 0x12000, scoped, tag = 'internal scratch']
  #allocation2 [shape = 'f32[16,32]{1,0:T(8,128)}', space=vmem, size = 0x2000, scoped, tag = 'scratch operand']
  #allocation3 [shape = 'f32[16,32]{1,0:T(8,128)}', space=vmem, size = 0x2000, scoped, tag = 'scratch operand']
  #allocation4 [shape = 'f32[16,32]{1,0:T(8,128)}', space=vmem, size = 0x2000, scoped, tag = 'scratch operand']
  %s0 = inlined_call_operand.vmem [shape: bf16[2,3,32,32], index: 0, kind: input, shape index: {}, may-alias: {0,1,2}]
  %s1 = inlined_call_operand.vmem [shape: bf16[2,3,32,32], index: 1, kind: input, shape index: {}, may-alias: {0,1,2}]
  %s2 = inlined_call_operand.vmem [shape: bf16[2,3,32,32], index: 2, kind: input, shape index: {}, may-alias: {0,1,2}]
  %s3 = inlined_call_operand.vmem [shape: bf16[2,32,32], index: 3, kind: output, shape index: {}]
  %s4 = sld [smem:[#allocation0]]
  $region53: #{nammsr_block_forward.9} parent=0
    _
  %s6 = ssub.s32 1, %s4
  %s7 = scalar_select 0, %s6, %s4
  loop: start=0, step=1, limit=10
  $region2: #{nammsr_block_forward.9} parent=0 // loop_pre_header
    _
  $region3: #{nammsr_block_forward.9} parent=0 // loop_header
    %s9 = sphi 0, %s13
    %p10 = scmp.ge.s32.totalorder %s9, 10
    %s16 = sphi 0, %s35
    %s17 = sphi 0, %s31
    %s18 = sphi 0, %s27
    %s19 = sphi 0, %s16
    %s20 = sphi 0, %s17
    %s21 = sphi 0, %s18
    %s22 = sphi 0, %s19
    %s23 = sphi 0, %s20
    %s24 = sphi 0, %s21
    %s40 = sphi 0, %s42
    %s43 = sphi 0, %s40
    %s44 = sphi 0, %s43
    %s60 = sphi 0, %s44
    %s68 = sphi 0, %s70
    %s71 = sphi 0, %s68
    %s72 = sphi 0, %s71
    %s88 = sphi 0, %s72
    %s96 = sphi 0, %s98
    %s99 = sphi 0, %s96
    %s100 = sphi 0, %s99
    %s116 = sphi 0, %s100
    %s124 = sphi 0, %s126
    %s127 = sphi 0, %s124
    %s128 = sphi 0, %s127
    %s144 = sphi 0, %s128
  $region4: #{nammsr_block_forward.9} parent=0 // loop_header_branch
    %12 = sbr.rel (%p10) target = $region8
  $region5: #{nammsr_block_forward.9} parent=0 // loop_body
    %s14 = ssub.s32 %s9, 1
    %s15 = ssub.s32 %s9, 2
    %s25 = sadd.s32 1, %s18
    %p26 = scmp.ge.s32.totalorder %s25, 2
    %s27 = scalar_select %p26, 0, %s25
    %s28 = sadd.s32 1, %s17
    %s29 = scalar_select %p26, %s28, %s17
    %p30 = scmp.ge.s32.totalorder %s29, 2
    %s31 = scalar_select %p30, 0, %s29
    %s32 = sadd.s32 1, %s16
    %s33 = scalar_select %p30, %s32, %s16
    %p34 = scmp.ge.s32.totalorder %s33, 2
    %s35 = scalar_select %p34, 0, %s33
    %s36 = ssub.s32 %s16, %s35
    %s37 = ssub.s32 %s17, %s31
    %s38 = sor.u32 %s36, %s37
    %p39 = scmp.eq.s32.totalorder %s38, 0
    %s41 = sadd.s32 %s40, 1
    %s42 = scalar_select %p39, %s40, %s41
    %p45 = pneg %p39
    %p46 = scmp.eq.s32.totalorder %s9, 7
    %p47 = por %p45, %p46
    %p48 = scmp.ne.s32.totalorder %s40, %s43
    %p49 = scmp.eq.s32.totalorder %s9, 0
    %p50 = por %p48, %p49
    %p51 = scmp.ne.s32.totalorder %s40, %s43
    %p52 = scmp.eq.s32.totalorder %s14, 7
    %p53 = por %p51, %p52
    %p54 = scmp.ne.s32.totalorder %s43, %s44
    %p55 = scmp.eq.s32.totalorder %s14, 0
    %p56 = por %p54, %p55
    %p57 = scmp.ne.s32.totalorder %s43, %s44
    %p58 = scmp.eq.s32.totalorder %s15, 7
    %p59 = por %p57, %p58
    %p61 = scmp.ne.s32.totalorder %s44, %s60
    %p62 = scmp.eq.s32.totalorder %s15, 0
    %p63 = por %p61, %p62
    %s64 = ssub.s32 %s16, %s35
    %s65 = ssub.s32 %s18, %s27
    %s66 = sor.u32 %s64, %s65
    %p67 = scmp.eq.s32.totalorder %s66, 0
    %s69 = sadd.s32 %s68, 1
    %s70 = scalar_select %p67, %s68, %s69
    %p73 = pneg %p67
    %p74 = scmp.eq.s32.totalorder %s9, 7
    %p75 = por %p73, %p74
    %p76 = scmp.ne.s32.totalorder %s68, %s71
    %p77 = scmp.eq.s32.totalorder %s9, 0
    %p78 = por %p76, %p77
    %p79 = scmp.ne.s32.totalorder %s68, %s71
    %p80 = scmp.eq.s32.totalorder %s14, 7
    %p81 = por %p79, %p80
    %p82 = scmp.ne.s32.totalorder %s71, %s72
    %p83 = scmp.eq.s32.totalorder %s14, 0
    %p84 = por %p82, %p83
    %p85 = scmp.ne.s32.totalorder %s71, %s72
    %p86 = scmp.eq.s32.totalorder %s15, 7
    %p87 = por %p85, %p86
    %p89 = scmp.ne.s32.totalorder %s72, %s88
    %p90 = scmp.eq.s32.totalorder %s15, 0
    %p91 = por %p89, %p90
    %s92 = ssub.s32 %s16, %s35
    %s93 = ssub.s32 %s18, %s27
    %s94 = sor.u32 %s92, %s93
    %p95 = scmp.eq.s32.totalorder %s94, 0
    %s97 = sadd.s32 %s96, 1
    %s98 = scalar_select %p95, %s96, %s97
    %p101 = pneg %p95
    %p102 = scmp.eq.s32.totalorder %s9, 7
    %p103 = por %p101, %p102
    %p104 = scmp.ne.s32.totalorder %s96, %s99
    %p105 = scmp.eq.s32.totalorder %s9, 0
    %p106 = por %p104, %p105
    %p107 = scmp.ne.s32.totalorder %s96, %s99
    %p108 = scmp.eq.s32.totalorder %s14, 7
    %p109 = por %p107, %p108
    %p110 = scmp.ne.s32.totalorder %s99, %s100
    %p111 = scmp.eq.s32.totalorder %s14, 0
    %p112 = por %p110, %p111
    %p113 = scmp.ne.s32.totalorder %s99, %s100
    %p114 = scmp.eq.s32.totalorder %s15, 7
    %p115 = por %p113, %p114
    %p117 = scmp.ne.s32.totalorder %s100, %s116
    %p118 = scmp.eq.s32.totalorder %s15, 0
    %p119 = por %p117, %p118
    %s120 = ssub.s32 %s16, %s35
    %s121 = ssub.s32 %s17, %s31
    %s122 = sor.u32 %s120, %s121
    %p123 = scmp.eq.s32.totalorder %s122, 0
    %s125 = sadd.s32 %s124, 1
    %s126 = scalar_select %p123, %s124, %s125
    %p129 = pneg %p123
    %p130 = scmp.eq.s32.totalorder %s9, 7
    %p131 = por %p129, %p130
    %p132 = scmp.ne.s32.totalorder %s124, %s127
    %p133 = scmp.eq.s32.totalorder %s9, 0
    %p134 = por %p132, %p133
    %p135 = scmp.ne.s32.totalorder %s124, %s127
    %p136 = scmp.eq.s32.totalorder %s14, 7
    %p137 = por %p135, %p136
    %p138 = scmp.ne.s32.totalorder %s127, %s128
    %p139 = scmp.eq.s32.totalorder %s14, 0
    %p140 = por %p138, %p139
    %p141 = scmp.ne.s32.totalorder %s127, %s128
    %p142 = scmp.eq.s32.totalorder %s15, 7
    %p143 = por %p141, %p142
    %p145 = scmp.ne.s32.totalorder %s128, %s144
    %p146 = scmp.eq.s32.totalorder %s15, 0
    %p147 = por %p145, %p146
    %p148 = scmp.le.s32.totalorder 1, %s9
    %p149 = scmp.lt.s32.totalorder %s9, 9
    %p150 = pnand %p148, %p149
    %p151 = pneg %p150
    // Predicated region
    $region9: #{nammsr_block_forward.9} parent=5 // pred_check
      _
    $region10: #{nammsr_block_forward.9} parent=5 // pred_check_branch
      %153 = sbr.rel (%p150) target = $region12
    $region11: #{nammsr_block_forward.9} parent=5 // pred_region
      %s154 = ssub.s32 %s9, 1
    $region12: #{nammsr_block_forward.9} parent=5 // pred_fallthru
      _
    %p155 = scmp.lt.s32.totalorder %s9, 8
    // Predicated region
    $region13: #{nammsr_block_forward.9} parent=5 // pred_check
      %p156 = pneg %p155
    $region14: #{nammsr_block_forward.9} parent=5 // pred_check_branch
      %158 = sbr.rel (%p156) target = $region16
    $region15: #{nammsr_block_forward.9} parent=5 // pred_region
      // Predicated region
      $region17: #{nammsr_block_forward.9} parent=15 // pred_check
        %p159 = pneg %p50
      $region18: #{nammsr_block_forward.9} parent=15 // pred_check_branch
        %161 = sbr.rel (%p159) target = $region20
      $region19: #{nammsr_block_forward.9} parent=15 // pred_region
        %s162 = smul.u32 2, %s17
        %p163 = scmp.lt.s32.totalorder %s16, 1
        %s164 = scalar_select %p163, %s16, 1
        %p165 = scmp.lt.s32.totalorder %s162, 3
        %s166 = scalar_select %p165, %s162, 3
        %s167 = smul.addr %s164, 12
        %s168 = sadd.s32 %s166, %s167
        %s169 = smul.addr %s168, 4
        %s170 = scalar_lea.vmem %s0, %s169
        %s171 = smul.u32 2, %s17
      $region20: #{nammsr_block_forward.9} parent=15 // pred_fallthru
        _
      // Predicated region
      $region21: #{nammsr_block_forward.9} parent=15 // pred_check
        %p172 = pneg %p78
      $region22: #{nammsr_block_forward.9} parent=15 // pred_check_branch
        %174 = sbr.rel (%p172) target = $region24
      $region23: #{nammsr_block_forward.9} parent=15 // pred_region
        %s175 = smul.u32 2, %s18
        %p176 = scmp.lt.s32.totalorder %s16, 1
        %s177 = scalar_select %p176, %s16, 1
        %p178 = scmp.lt.s32.totalorder %s175, 3
        %s179 = scalar_select %p178, %s175, 3
        %s180 = sadd.s32 %s179, 4
        %s181 = smul.addr %s177, 12
        %s182 = sadd.s32 %s180, %s181
        %s183 = smul.addr %s182, 4
        %s184 = scalar_lea.vmem %s1, %s183
        %s185 = smul.u32 2, %s18
      $region24: #{nammsr_block_forward.9} parent=15 // pred_fallthru
        _
      // Predicated region
      $region25: #{nammsr_block_forward.9} parent=15 // pred_check
        %p186 = pneg %p106
      $region26: #{nammsr_block_forward.9} parent=15 // pred_check_branch
        %188 = sbr.rel (%p186) target = $region28
      $region27: #{nammsr_block_forward.9} parent=15 // pred_region
        %s189 = smul.u32 2, %s18
        %p190 = scmp.lt.s32.totalorder %s16, 1
        %s191 = scalar_select %p190, %s16, 1
        %p192 = scmp.lt.s32.totalorder %s189, 3
        %s193 = scalar_select %p192, %s189, 3
        %s194 = sadd.s32 %s193, 8
        %s195 = smul.addr %s191, 12
        %s196 = sadd.s32 %s194, %s195
        %s197 = smul.addr %s196, 4
        %s198 = scalar_lea.vmem %s2, %s197
        %s199 = smul.u32 2, %s18
      $region28: #{nammsr_block_forward.9} parent=15 // pred_fallthru
        _
    $region16: #{nammsr_block_forward.9} parent=5 // pred_fallthru
      _
    %p200 = scmp.le.s32.totalorder 1, %s9
    %p201 = scmp.lt.s32.totalorder %s9, 9
    %p202 = pnand %p200, %p201
    %p203 = pneg %p202
    // Predicated region
    $region29: #{nammsr_block_forward.9} parent=5 // pred_check
      _
    $region30: #{nammsr_block_forward.9} parent=5 // pred_check_branch
      %205 = sbr.rel (%p202) target = $region32
    $region31: #{nammsr_block_forward.9} parent=5 // pred_region
      %s206 = ssub.s32 %s9, 1
      %s207 = smul.u32 2, %s20
      %p208 = scmp.lt.s32.totalorder %s19, 1
      %s209 = scalar_select %p208, %s19, 1
      %p210 = scmp.lt.s32.totalorder %s207, 3
      %s211 = scalar_select %p210, %s207, 3
      %s212 = smul.addr %s209, 12
      %s213 = sadd.s32 %s211, %s212
      %s214 = smul.addr %s213, 4
      %s215 = scalar_lea.vmem %s0, %s214
      %p216 = pneg %p56
      %p217 = pneg %p53
      %s218 = smul.u32 2, %s21
      %p219 = scmp.lt.s32.totalorder %s19, 1
      %s220 = scalar_select %p219, %s19, 1
      %p221 = scmp.lt.s32.totalorder %s218, 3
      %s222 = scalar_select %p221, %s218, 3
      %s223 = sadd.s32 %s222, 4
      %s224 = smul.addr %s220, 12
      %s225 = sadd.s32 %s223, %s224
      %s226 = smul.addr %s225, 4
      %s227 = scalar_lea.vmem %s1, %s226
      %p228 = pneg %p84
      %p229 = pneg %p81
      %s230 = smul.u32 2, %s21
      %p231 = scmp.lt.s32.totalorder %s19, 1
      %s232 = scalar_select %p231, %s19, 1
      %p233 = scmp.lt.s32.totalorder %s230, 3
      %s234 = scalar_select %p233, %s230, 3
      %s235 = sadd.s32 %s234, 8
      %s236 = smul.addr %s232, 12
      %s237 = sadd.s32 %s235, %s236
      %s238 = smul.addr %s237, 4
      %s239 = scalar_lea.vmem %s2, %s238
      %p240 = pneg %p112
      %p241 = pneg %p109
      %p242 = pneg %p140
      %p243 = pneg %p137
      %s244 = smul.u32 2, %s20
      %p245 = scmp.lt.s32.totalorder %s19, 1
      %s246 = scalar_select %p245, %s19, 1
      %p247 = scmp.lt.s32.totalorder %s244, 3
      %s248 = scalar_select %p247, %s244, 3
      %s249 = smul.addr %s246, 4
      %s250 = sadd.s32 %s248, %s249
      %s251 = smul.addr %s250, 4
      %s252 = scalar_lea.vmem %s3, %s251
      %s253 = smul.u32 2, %s20
      %p254 = scmp.lt.s32.totalorder %s19, 1
      %s255 = scalar_select %p254, %s19, 1
      %p256 = scmp.lt.s32.totalorder %s253, 3
      %s257 = scalar_select %p256, %s253, 3
      %s258 = smul.addr %s255, 12
      %s259 = sadd.s32 %s257, %s258
      %s260 = smul.addr %s259, 4
      %s261 = scalar_lea.vmem %s0, %s260
      %s262 = smul.u32 2, %s20
      %s263 = smul.u32 2, %s21
      %p264 = scmp.lt.s32.totalorder %s19, 1
      %s265 = scalar_select %p264, %s19, 1
      %p266 = scmp.lt.s32.totalorder %s263, 3
      %s267 = scalar_select %p266, %s263, 3
      %s268 = sadd.s32 %s267, 4
      %s269 = smul.addr %s265, 12
      %s270 = sadd.s32 %s268, %s269
      %s271 = smul.addr %s270, 4
      %s272 = scalar_lea.vmem %s1, %s271
      %s273 = smul.u32 2, %s21
      %s274 = smul.u32 2, %s21
      %p275 = scmp.lt.s32.totalorder %s19, 1
      %s276 = scalar_select %p275, %s19, 1
      %p277 = scmp.lt.s32.totalorder %s274, 3
      %s278 = scalar_select %p277, %s274, 3
      %s279 = sadd.s32 %s278, 8
      %s280 = smul.addr %s276, 12
      %s281 = sadd.s32 %s279, %s280
      %s282 = smul.addr %s281, 4
      %s283 = scalar_lea.vmem %s2, %s282
      %s284 = smul.u32 2, %s21
      %s285 = smul.u32 2, %s20
      %p286 = scmp.lt.s32.totalorder %s19, 1
      %s287 = scalar_select %p286, %s19, 1
      %p288 = scmp.lt.s32.totalorder %s285, 3
      %s289 = scalar_select %p288, %s285, 3
      %s290 = smul.addr %s287, 4
      %s291 = sadd.s32 %s289, %s290
      %s292 = smul.addr %s291, 4
      %s293 = scalar_lea.vmem %s3, %s292
      %s294 = smul.u32 2, %s20
      %p296 = scmp.eq.s32.totalorder %s21, 0
      // Predicated region
      $region33: #{nammsr_block_forward.9} parent=31 // pred_check
        %p297 = pneg %p296
      $region34: #{nammsr_block_forward.9} parent=31 // pred_check_branch
        %299 = sbr.rel (%p297) target = $region36
      $region35: #{nammsr_block_forward.9} parent=31 // pred_region
        %vm300 = vcmask 261120
        %301 = vst.msk [vmem:[#allocation2] sm:$0xff] %vm300, -1e+30
        %302 = vst.msk [vmem:[#allocation2 + $0x8] sm:$0xff] %vm300, -1e+30
        %303 = vst.msk [vmem:[#allocation3] sm:$0xff] %vm300, 0.0
        %304 = vst.msk [vmem:[#allocation3 + $0x8] sm:$0xff] %vm300, 0.0
        %305 = vst.msk [vmem:[#allocation4] sm:$0xff] %vm300, 0.0
        %306 = vst.msk [vmem:[#allocation4 + $0x8] sm:$0xff] %vm300, 0.0
      $region36: #{nammsr_block_forward.9} parent=31 // pred_fallthru
        _
      %v307 = vld [vmem:[%s261] sm:$0xf]
      %v308 = vld [vmem:[%s261 + $0x4] sm:$0xf]
      %v309 = vld [vmem:[%s272] sm:$0xf]
      %v310 = vld [vmem:[%s272 + $0x4] sm:$0xf]
      %v311 = vld [vmem:[%s283] sm:$0xf]
      %v312 = vld [vmem:[%s283 + $0x4] sm:$0xf]
      %s313 = smul.u32 %s21, 16
      %v314 = vlaneseq
      %v315 = vand.u32 %v314, 127
      %v316 = vstv %s313
      %v317 = vadd.s32 %v316, %v315
      %vm318 = vcmp.lt.s32.totalorder %v317, 16
      %vm319 = vcmp.ge.s32.totalorder %v317, 16
      %vm320 = vcmp.lt.s32.totalorder %v317, 24
      %vm321 = vmand %vm319, %vm320
      %vm322 = vmor %vm318, %vm321
      %v323 = vsel %vm322, 0.0, -1e+30
      %v324 = vsel %vm322, 1, 0
      %v325 = vcvt.s32.f32 %v324
      %v328 = vunpack.c.l.b16 %v307
      %v329 = vunpack.c.l.b16 %v308
      %v330 = vpack.c.b16 %v329, %v328
      %v333 = vunpack.c.l.b16 %v309
      %v334 = vunpack.c.l.b16 %v310
      %v335 = vpack.c.b16 %v334, %v333
      %vm336 = vcmask 130048
      %v338 = vsel %vm336, %v330, 0
      %v341 = vsel %vm336, %v335, 0
      %343 = vmatprep.subr.bf16.mxu0 0
      %344 = vmatpush1.bf16.xpose.msra.mxu0 0
      %345 = vmatprep.subr.bf16.mxu0 0
      %346 = vmatpush1.bf16.xpose.msra.mxu0 0
      %347 = vmatprep.subr.bf16.mxu0 0
      %348 = vmatpush1.bf16.xpose.msra.mxu0 0
      %349 = vmatprep.subr.bf16.mxu0 0
      %350 = vmatpush1.bf16.xpose.msra.mxu0 0
      %351 = vmatprep.subr.bf16.mxu0 0
      %352 = vmatpush1.bf16.xpose.msra.mxu0 0
      %353 = vmatprep.subr.bf16.mxu0 0
      %354 = vmatpush1.bf16.xpose.msra.mxu0 0
      %355 = vmatprep.subr.bf16.mxu0 0
      %356 = vmatpush1.bf16.xpose.msra.mxu0 0
      %357 = vmatprep.subr.bf16.mxu0 0
      %358 = vmatpush1.bf16.xpose.msra.mxu0 %v341
      %359 = vmatprep.subr.bf16.mxu0 0
      %360 = vmatpush2.bf16.xpose.msra.mxu0 0
      %361 = vmatprep.subr.bf16.mxu0 0
      %362 = vmatpush2.bf16.xpose.msra.mxu0 0
      %363 = vmatprep.subr.bf16.mxu0 0
      %364 = vmatpush2.bf16.xpose.msra.mxu0 0
      %365 = vmatprep.subr.bf16.mxu0 0
      %366 = vmatpush2.bf16.xpose.msra.mxu0 0
      %367 = vmatprep.subr.bf16.mxu0 0
      %368 = vmatpush2.bf16.xpose.msra.mxu0 0
      %369 = vmatprep.subr.bf16.mxu0 0
      %370 = vmatpush2.bf16.xpose.msra.mxu0 0
      %371 = vmatprep.subr.bf16.mxu0 0
      %372 = vmatpush2.bf16.xpose.msra.mxu0 0
      %373 = vmatprep.subr.bf16.mxu0 0
      %374 = vmatpush2.bf16.xpose.msra.mxu0 0
      %375 = vmatprep.mubr.bf16.mxu0 0
      %376 = vmatmul.mubr.bf16.gmra.mxu0 %v338
      %v377 = vpop.f32.mrf.mxu0
      %v378 = vadd.f32 %v323, %v377
      %v379 = vpop.f32.mrf.mxu0
      %v380 = vpop.f32.mrf.mxu0
      %v381 = vadd.f32 %v323, %v380
      %v382 = vpop.f32.mrf.mxu0
      %383 = vdwg.mxu0
      %v384 = vld [vmem:[#allocation2] sm:$0xff]
      %v385 = vld [vmem:[#allocation2 + $0x8] sm:$0xff]
      %v386 = vsel %vm336, %v378, -inf
      %387 = vmax.xlane.f32.xlu0 %v386
      %v388 = vpop.xlane.xlu0 %387
      %v389 = vsel %vm336, %v381, -inf
      %390 = vmax.xlane.f32.xlu0 %v389
      %v391 = vpop.xlane.xlu0 %390
      %v392 = vmax.f32 %v384, %v388
      %v393 = vmax.f32 %v385, %v391
      %v394 = vsub.f32 %v384, %v392
      %v395 = vsub.f32 %v385, %v393
      %v396 = vmul.f32 %v394, 1.442695
      %v397 = vpow.pop %v396
      %v398 = vmul.f32 %v395, 1.442695
      %v399 = vpow.pop %v398
      %401 = vset.pattern.permute.xlu0 0
      %402 = vperm.xlu0 %401, %v392
      %v403 = vpop.permute.xlu0 %402
      %406 = vset.pattern.permute.xlu0 0
      %407 = vperm.xlu0 %406, %v393
      %v408 = vpop.permute.xlu0 %407
      %v410 = vsub.f32 %v378, %v403
      %v411 = vsub.f32 %v381, %v408
      %v412 = vmul.f32 %v410, 1.442695
      %v413 = vpow.pop %v412
      %v414 = vmul.f32 %v411, 1.442695
      %v415 = vpow.pop %v414
      %v416 = vmul.f32 %v413, %v325
      %v417 = vmul.f32 %v415, %v325
      %v418 = vld [vmem:[#allocation3] sm:$0xff]
      %v419 = vld [vmem:[#allocation3 + $0x8] sm:$0xff]
      %v420 = vmul.f32 %v397, %v418
      %v421 = vmul.f32 %v399, %v419
      %v422 = vsel %vm336, %v416, 0.0
      %423 = vadd.xlane.f32.xlu0 %v422
      %v424 = vpop.xlane.xlu0 %423
      %v425 = vsel %vm336, %v417, 0.0
      %426 = vadd.xlane.f32.xlu0 %v425
      %v427 = vpop.xlane.xlu0 %426
      %v428 = vadd.f32 %v420, %v424
      %v429 = vadd.f32 %v421, %v427
      %430 = vst.msk [vmem:[#allocation3] sm:$0xff] %vm336, %v428
      %431 = vst.msk [vmem:[#allocation3 + $0x8] sm:$0xff] %vm336, %v429
      %v432 = vld [vmem:[#allocation4] sm:$0xff]
      %v433 = vld [vmem:[#allocation4 + $0x8] sm:$0xff]
      %v434 = vmul.f32 %v397, %v432
      %v435 = vmul.f32 %v399, %v433
      %v436 = vpack.c.bf16 %v417, %v416
      %v439 = vunpack.c.l.b16 %v311
      %v440 = vunpack.c.l.b16 %v312
      %v441 = vpack.c.b16 %v440, %v439
      %v444 = vsel %vm336, %v436, 0
      %446 = vmatprep.subr.bf16.mxu0 0
      %447 = vmatpush1.bf16.msra.mxu0 0
      %448 = vmatprep.subr.bf16.mxu0 0
      %449 = vmatpush1.bf16.msra.mxu0 0
      %450 = vmatprep.subr.bf16.mxu0 0
      %451 = vmatpush1.bf16.msra.mxu0 0
      %452 = vmatprep.subr.bf16.mxu0 0
      %453 = vmatpush1.bf16.msra.mxu0 0
      %454 = vmatprep.subr.bf16.mxu0 0
      %455 = vmatpush1.bf16.msra.mxu0 0
      %456 = vmatprep.subr.bf16.mxu0 0
      %457 = vmatpush1.bf16.msra.mxu0 0
      %458 = vmatprep.subr.bf16.mxu0 0
      %459 = vmatpush1.bf16.msra.mxu0 0
      %460 = vmatprep.subr.bf16.mxu0 0
      %461 = vmatpush1.bf16.msra.mxu0 %v441
      %462 = vmatprep.subr.bf16.mxu0 0
      %463 = vmatpush2.bf16.msra.mxu0 0
      %464 = vmatprep.subr.bf16.mxu0 0
      %465 = vmatpush2.bf16.msra.mxu0 0
      %466 = vmatprep.subr.bf16.mxu0 0
      %467 = vmatpush2.bf16.msra.mxu0 0
      %468 = vmatprep.subr.bf16.mxu0 0
      %469 = vmatpush2.bf16.msra.mxu0 0
      %470 = vmatprep.subr.bf16.mxu0 0
      %471 = vmatpush2.bf16.msra.mxu0 0
      %472 = vmatprep.subr.bf16.mxu0 0
      %473 = vmatpush2.bf16.msra.mxu0 0
      %474 = vmatprep.subr.bf16.mxu0 0
      %475 = vmatpush2.bf16.msra.mxu0 0
      %476 = vmatprep.subr.bf16.mxu0 0
      %477 = vmatpush2.bf16.msra.mxu0 0
      %478 = vmatprep.mubr.bf16.mxu0 0
      %479 = vmatmul.mubr.bf16.gmra.mxu0 %v444
      %v480 = vpop.f32.mrf.mxu0
      %v481 = vadd.f32 0.0, %v480
      %v482 = vpop.f32.mrf.mxu0
      %v483 = vpop.f32.mrf.mxu0
      %v484 = vadd.f32 0.0, %v483
      %v485 = vpop.f32.mrf.mxu0
      %486 = vdwg.mxu0
      %v487 = vadd.f32 %v434, %v481
      %v488 = vadd.f32 %v435, %v484
      %489 = vst.msk [vmem:[#allocation4] sm:$0xff] %vm336, %v487
      %490 = vst.msk [vmem:[#allocation4 + $0x8] sm:$0xff] %vm336, %v488
      %491 = vst.msk [vmem:[#allocation2] sm:$0xff] %vm336, %v392
      %492 = vst.msk [vmem:[#allocation2 + $0x8] sm:$0xff] %vm336, %v393
      %493 = vrot.lane.b32.xlu0 %v330, 112
      %v494 = vpop.permute.xlu0 %493
      %495 = vrot.lane.b32.xlu0 %v335, 112
      %v496 = vpop.permute.xlu0 %495
      %v498 = vsel %vm336, %v494, 0
      %v501 = vsel %vm336, %v496, 0
      %503 = vmatprep.subr.bf16.mxu0 0
      %504 = vmatpush1.bf16.xpose.msra.mxu0 0
      %505 = vmatprep.subr.bf16.mxu0 0
      %506 = vmatpush1.bf16.xpose.msra.mxu0 0
      %507 = vmatprep.subr.bf16.mxu0 0
      %508 = vmatpush1.bf16.xpose.msra.mxu0 0
      %509 = vmatprep.subr.bf16.mxu0 0
      %510 = vmatpush1.bf16.xpose.msra.mxu0 0
      %511 = vmatprep.subr.bf16.mxu0 0
      %512 = vmatpush1.bf16.xpose.msra.mxu0 0
      %513 = vmatprep.subr.bf16.mxu0 0
      %514 = vmatpush1.bf16.xpose.msra.mxu0 0
      %515 = vmatprep.subr.bf16.mxu0 0
      %516 = vmatpush1.bf16.xpose.msra.mxu0 0
      %517 = vmatprep.subr.bf16.mxu0 0
      %518 = vmatpush1.bf16.xpose.msra.mxu0 %v501
      %519 = vmatprep.subr.bf16.mxu0 0
      %520 = vmatpush2.bf16.xpose.msra.mxu0 0
      %521 = vmatprep.subr.bf16.mxu0 0
      %522 = vmatpush2.bf16.xpose.msra.mxu0 0
      %523 = vmatprep.subr.bf16.mxu0 0
      %524 = vmatpush2.bf16.xpose.msra.mxu0 0
      %525 = vmatprep.subr.bf16.mxu0 0
      %526 = vmatpush2.bf16.xpose.msra.mxu0 0
      %527 = vmatprep.subr.bf16.mxu0 0
      %528 = vmatpush2.bf16.xpose.msra.mxu0 0
      %529 = vmatprep.subr.bf16.mxu0 0
      %530 = vmatpush2.bf16.xpose.msra.mxu0 0
      %531 = vmatprep.subr.bf16.mxu0 0
      %532 = vmatpush2.bf16.xpose.msra.mxu0 0
      %533 = vmatprep.subr.bf16.mxu0 0
      %534 = vmatpush2.bf16.xpose.msra.mxu0 0
      %535 = vmatprep.mubr.bf16.mxu0 0
      %536 = vmatmul.mubr.bf16.gmra.mxu0 %v498
      %v537 = vpop.f32.mrf.mxu0
      %v538 = vadd.f32 %v323, %v537
      %v539 = vpop.f32.mrf.mxu0
      %v540 = vpop.f32.mrf.mxu0
      %v541 = vadd.f32 %v323, %v540
      %v542 = vpop.f32.mrf.mxu0
      %543 = vdwg.mxu0
      %v544 = vld [vmem:[#allocation2] sm:$0xff]
      %v545 = vld [vmem:[#allocation2 + $0x8] sm:$0xff]
      %v546 = vsel %vm336, %v538, -inf
      %547 = vmax.xlane.f32.xlu0 %v546
      %v548 = vpop.xlane.xlu0 %547
      %v549 = vsel %vm336, %v541, -inf
      %550 = vmax.xlane.f32.xlu0 %v549
      %v551 = vpop.xlane.xlu0 %550
      %v552 = vmax.f32 %v544, %v548
      %v553 = vmax.f32 %v545, %v551
      %v554 = vsub.f32 %v544, %v552
      %v555 = vsub.f32 %v545, %v553
      %v556 = vmul.f32 %v554, 1.442695
      %v557 = vpow.pop %v556
      %v558 = vmul.f32 %v555, 1.442695
      %v559 = vpow.pop %v558
      %561 = vset.pattern.permute.xlu0 16
      %562 = vperm.xlu0 %561, %v552
      %v563 = vpop.permute.xlu0 %562
      %566 = vset.pattern.permute.xlu0 16
      %567 = vperm.xlu0 %566, %v553
      %v568 = vpop.permute.xlu0 %567
      %v570 = vsub.f32 %v538, %v563
      %v571 = vsub.f32 %v541, %v568
      %v572 = vmul.f32 %v570, 1.442695
      %v573 = vpow.pop %v572
      %v574 = vmul.f32 %v571, 1.442695
      %v575 = vpow.pop %v574
      %v576 = vmul.f32 %v573, %v325
      %v577 = vmul.f32 %v575, %v325
      %v578 = vld [vmem:[#allocation3] sm:$0xff]
      %v579 = vld [vmem:[#allocation3 + $0x8] sm:$0xff]
      %v580 = vmul.f32 %v557, %v578
      %v581 = vmul.f32 %v559, %v579
      %v582 = vsel %vm336, %v576, 0.0
      %583 = vadd.xlane.f32.xlu0 %v582
      %v584 = vpop.xlane.xlu0 %583
      %v585 = vsel %vm336, %v577, 0.0
      %586 = vadd.xlane.f32.xlu0 %v585
      %v587 = vpop.xlane.xlu0 %586
      %v588 = vadd.f32 %v580, %v584
      %v589 = vadd.f32 %v581, %v587
      %vm590 = vcmask 261248
      %591 = vst.msk [vmem:[#allocation3] sm:$0xff] %vm590, %v588
      %592 = vst.msk [vmem:[#allocation3 + $0x8] sm:$0xff] %vm590, %v589
      %v593 = vld [vmem:[#allocation4] sm:$0xff]
      %v594 = vld [vmem:[#allocation4 + $0x8] sm:$0xff]
      %v595 = vmul.f32 %v557, %v593
      %v596 = vmul.f32 %v559, %v594
      %v597 = vpack.c.bf16 %v577, %v576
      %598 = vrot.lane.b32.xlu0 %v441, 112
      %v599 = vpop.permute.xlu0 %598
      %v602 = vsel %vm336, %v597, 0
      %604 = vmatprep.subr.bf16.mxu0 0
      %605 = vmatpush1.bf16.msra.mxu0 0
      %606 = vmatprep.subr.bf16.mxu0 0
      %607 = vmatpush1.bf16.msra.mxu0 0
      %608 = vmatprep.subr.bf16.mxu0 0
      %609 = vmatpush1.bf16.msra.mxu0 0
      %610 = vmatprep.subr.bf16.mxu0 0
      %611 = vmatpush1.bf16.msra.mxu0 0
      %612 = vmatprep.subr.bf16.mxu0 0
      %613 = vmatpush1.bf16.msra.mxu0 0
      %614 = vmatprep.subr.bf16.mxu0 0
      %615 = vmatpush1.bf16.msra.mxu0 0
      %616 = vmatprep.subr.bf16.mxu0 0
      %617 = vmatpush1.bf16.msra.mxu0 0
      %618 = vmatprep.subr.bf16.mxu0 0
      %619 = vmatpush1.bf16.msra.mxu0 %v599
      %620 = vmatprep.subr.bf16.mxu0 0
      %621 = vmatpush2.bf16.msra.mxu0 0
      %622 = vmatprep.subr.bf16.mxu0 0
      %623 = vmatpush2.bf16.msra.mxu0 0
      %624 = vmatprep.subr.bf16.mxu0 0
      %625 = vmatpush2.bf16.msra.mxu0 0
      %626 = vmatprep.subr.bf16.mxu0 0
      %627 = vmatpush2.bf16.msra.mxu0 0
      %628 = vmatprep.subr.bf16.mxu0 0
      %629 = vmatpush2.bf16.msra.mxu0 0
      %630 = vmatprep.subr.bf16.mxu0 0
      %631 = vmatpush2.bf16.msra.mxu0 0
      %632 = vmatprep.subr.bf16.mxu0 0
      %633 = vmatpush2.bf16.msra.mxu0 0
      %634 = vmatprep.subr.bf16.mxu0 0
      %635 = vmatpush2.bf16.msra.mxu0 0
      %636 = vmatprep.mubr.bf16.mxu0 0
      %637 = vmatmul.mubr.bf16.gmra.mxu0 %v602
      %v638 = vpop.f32.mrf.mxu0
      %v639 = vadd.f32 0.0, %v638
      %v640 = vpop.f32.mrf.mxu0
      %v641 = vpop.f32.mrf.mxu0
      %v642 = vadd.f32 0.0, %v641
      %v643 = vpop.f32.mrf.mxu0
      %644 = vdwg.mxu0
      %647 = vrot.lane.b32.xlu0 %v639, 16
      %v648 = vpop.permute.xlu0 %647
      %649 = vrot.lane.b32.xlu0 %v642, 16
      %v650 = vpop.permute.xlu0 %649
      %v653 = vadd.f32 %v595, %v648
      %v654 = vadd.f32 %v596, %v650
      %655 = vst.msk [vmem:[#allocation4] sm:$0xff] %vm590, %v653
      %656 = vst.msk [vmem:[#allocation4 + $0x8] sm:$0xff] %vm590, %v654
      %657 = vst.msk [vmem:[#allocation2] sm:$0xff] %vm590, %v552
      %658 = vst.msk [vmem:[#allocation2 + $0x8] sm:$0xff] %vm590, %v553
      %p659 = scmp.eq.s32.totalorder %s21, 1
      // Predicated region
      $region37: #{nammsr_block_forward.9} parent=31 // pred_check
        %p660 = pneg %p659
      $region38: #{nammsr_block_forward.9} parent=31 // pred_check_branch
        %662 = sbr.rel (%p660) target = $region40
      $region39: #{nammsr_block_forward.9} parent=31 // pred_region
        %v663 = vld [vmem:[#allocation4] sm:$0xff]
        %v664 = vld [vmem:[#allocation4 + $0x8] sm:$0xff]
        %v665 = vld [vmem:[#allocation3] sm:$0xff]
        %v666 = vld [vmem:[#allocation3 + $0x8] sm:$0xff]
        %v667 = vrcp.pop %v665
        %v668 = vrcp.pop %v666
        %v669 = vmul.f32 %v663, %v667
        %v670 = vmul.f32 %v664, %v668
        %v671 = vpack.c.bf16 %v670, %v669
        %v673 = vunpack.c.l.b16 %v671
        %v674 = vunpack.c.h.b16 %v671
        %v675 = vpack.c.b16 %v673, %v673
        %v676 = vpack.c.b16 %v674, %v674
        %vm679 = vcmask 257024
        %680 = vst.msk [vmem:[%s293] sm:$0xf] %vm679, %v675
        %681 = vst.msk [vmem:[%s293 + $0x4] sm:$0xf] %vm679, %v676
      $region40: #{nammsr_block_forward.9} parent=31 // pred_fallthru
        _
      %s682 = smul.u32 2, %s20
      %p683 = scmp.lt.s32.totalorder %s19, 1
      %s684 = scalar_select %p683, %s19, 1
      %p685 = scmp.lt.s32.totalorder %s682, 3
      %s686 = scalar_select %p685, %s682, 3
      %s687 = smul.addr %s684, 4
      %s688 = sadd.s32 %s686, %s687
      %s689 = smul.addr %s688, 4
      %s690 = scalar_lea.vmem %s3, %s689
      // Predicated region
      $region41: #{nammsr_block_forward.9} parent=31 // pred_check
        %p691 = pneg %p137
      $region42: #{nammsr_block_forward.9} parent=31 // pred_check_branch
        %693 = sbr.rel (%p691) target = $region44
      $region43: #{nammsr_block_forward.9} parent=31 // pred_region
        %s694 = smul.u32 2, %s20
      $region44: #{nammsr_block_forward.9} parent=31 // pred_fallthru
        _
    $region32: #{nammsr_block_forward.9} parent=5 // pred_fallthru
      _
    %p695 = scmp.le.s32.totalorder 2, %s9
    // Predicated region
    $region45: #{nammsr_block_forward.9} parent=5 // pred_check
      %p696 = pneg %p695
    $region46: #{nammsr_block_forward.9} parent=5 // pred_check_branch
      %698 = sbr.rel (%p696) target = $region48
    $region47: #{nammsr_block_forward.9} parent=5 // pred_region
      %s699 = ssub.s32 %s9, 2
      // Predicated region
      $region49: #{nammsr_block_forward.9} parent=47 // pred_check
        %p700 = pneg %p143
      $region50: #{nammsr_block_forward.9} parent=47 // pred_check_branch
        %702 = sbr.rel (%p700) target = $region52
      $region51: #{nammsr_block_forward.9} parent=47 // pred_region
        %s703 = smul.u32 2, %s23
        %p704 = scmp.lt.s32.totalorder %s22, 1
        %s705 = scalar_select %p704, %s22, 1
        %p706 = scmp.lt.s32.totalorder %s703, 3
        %s707 = scalar_select %p706, %s703, 3
        %s708 = smul.addr %s705, 4
        %s709 = sadd.s32 %s707, %s708
        %s710 = smul.addr %s709, 4
        %s711 = scalar_lea.vmem %s3, %s710
      $region52: #{nammsr_block_forward.9} parent=47 // pred_fallthru
        _
    $region48: #{nammsr_block_forward.9} parent=5 // pred_fallthru
      _
  $region6: #{nammsr_block_forward.9} parent=0 // loop_footer
    %s13 = sadd.s32 1, %s9
  $region7: #{nammsr_block_forward.9} parent=0 // loop_footer_branch
    %8 = sbr.rel target = $region3
  $region8: #{nammsr_block_forward.9} parent=0 // loop_exit
    _

// kernel: nammsr_block_forward.10
$region0: #{nammsr_block_forward.10}
  #allocation0 [shape = 'u32[]', space=smem, size = 0x4, offset = 0x4, fixed_abs, tag = 'smem constant byte address 0x4 - core index']
  #allocation1 [shape = 'u32[144,128]{1,0:T(1,128)}', space=vmem, size = 0x12000, scoped, tag = 'internal scratch']
  %s0 = inlined_call_operand.vmem [shape: bf16[2,32,32], index: 0, kind: input, shape index: {}]
  %s1 = inlined_call_operand.vmem [shape: bf16[32,32], index: 1, kind: input, shape index: {}]
  %s2 = inlined_call_operand.vmem [shape: f32[1,1,32], index: 2, kind: input, shape index: {}]
  %s3 = inlined_call_operand.vmem [shape: f32[2,1,32], index: 3, kind: input, shape index: {}]
  %s4 = inlined_call_operand.vmem [shape: bf16[2,16,32], index: 4, kind: input, shape index: {}]
  %s5 = inlined_call_operand.vmem [shape: bf16[2,16,32], index: 5, kind: output, shape index: {}]
  %s6 = sld [smem:[#allocation0]]
  $region53: #{nammsr_block_forward.10} parent=0
    _
  %s8 = ssub.s32 1, %s6
  %s9 = scalar_select 0, %s8, %s6
  loop: start=0, step=1, limit=4
  $region2: #{nammsr_block_forward.10} parent=0 // loop_pre_header
    _
  $region3: #{nammsr_block_forward.10} parent=0 // loop_header
    %s11 = sphi 0, %s15
    %p12 = scmp.ge.s32.totalorder %s11, 4
    %s18 = sphi 0, %s37
    %s19 = sphi 0, %s33
    %s20 = sphi 0, %s29
    %s21 = sphi 0, %s18
    %s22 = sphi 0, %s19
    %s23 = sphi 0, %s20
    %s24 = sphi 0, %s21
    %s25 = sphi 0, %s22
    %s26 = sphi 0, %s23
    %s42 = sphi 0, %s44
    %s45 = sphi 0, %s42
    %s46 = sphi 0, %s45
    %s62 = sphi 0, %s46
    %s68 = sphi 0, %s70
    %s71 = sphi 0, %s68
    %s72 = sphi 0, %s71
    %s88 = sphi 0, %s72
    %s94 = sphi 0, %s96
    %s97 = sphi 0, %s94
    %s98 = sphi 0, %s97
    %s114 = sphi 0, %s98
    %s122 = sphi 0, %s124
    %s125 = sphi 0, %s122
    %s126 = sphi 0, %s125
    %s142 = sphi 0, %s126
    %s152 = sphi 0, %s154
    %s155 = sphi 0, %s152
    %s156 = sphi 0, %s155
    %s172 = sphi 0, %s156
    %s182 = sphi 0, %s184
    %s185 = sphi 0, %s182
    %s186 = sphi 0, %s185
    %s202 = sphi 0, %s186
  $region4: #{nammsr_block_forward.10} parent=0 // loop_header_branch
    %14 = sbr.rel (%p12) target = $region8
  $region5: #{nammsr_block_forward.10} parent=0 // loop_body
    %s16 = ssub.s32 %s11, 1
    %s17 = ssub.s32 %s11, 2
    %s27 = sadd.s32 1, %s20
    %p28 = scmp.ge.s32.totalorder %s27, 1
    %s29 = scalar_select %p28, 0, %s27
    %s30 = sadd.s32 1, %s19
    %s31 = scalar_select %p28, %s30, %s19
    %p32 = scmp.ge.s32.totalorder %s31, 1
    %s33 = scalar_select %p32, 0, %s31
    %s34 = sadd.s32 1, %s18
    %s35 = scalar_select %p32, %s34, %s18
    %p36 = scmp.ge.s32.totalorder %s35, 2
    %s37 = scalar_select %p36, 0, %s35
    %s38 = ssub.s32 %s18, %s37
    %s39 = ssub.s32 %s19, %s33
    %s40 = sor.u32 %s38, %s39
    %p41 = scmp.eq.s32.totalorder %s40, 0
    %s43 = sadd.s32 %s42, 1
    %s44 = scalar_select %p41, %s42, %s43
    %p47 = pneg %p41
    %p48 = scmp.eq.s32.totalorder %s11, 1
    %p49 = por %p47, %p48
    %p50 = scmp.ne.s32.totalorder %s42, %s45
    %p51 = scmp.eq.s32.totalorder %s11, 0
    %p52 = por %p50, %p51
    %p53 = scmp.ne.s32.totalorder %s42, %s45
    %p54 = scmp.eq.s32.totalorder %s16, 1
    %p55 = por %p53, %p54
    %p56 = scmp.ne.s32.totalorder %s45, %s46
    %p57 = scmp.eq.s32.totalorder %s16, 0
    %p58 = por %p56, %p57
    %p59 = scmp.ne.s32.totalorder %s45, %s46
    %p60 = scmp.eq.s32.totalorder %s17, 1
    %p61 = por %p59, %p60
    %p63 = scmp.ne.s32.totalorder %s46, %s62
    %p64 = scmp.eq.s32.totalorder %s17, 0
    %p65 = por %p63, %p64
    %s66 = ssub.s32 %s20, %s29
    %p67 = scmp.eq.s32.totalorder %s66, 0
    %s69 = sadd.s32 %s68, 1
    %s70 = scalar_select %p67, %s68, %s69
    %p73 = pneg %p67
    %p74 = scmp.eq.s32.totalorder %s11, 1
    %p75 = por %p73, %p74
    %p76 = scmp.ne.s32.totalorder %s68, %s71
    %p77 = scmp.eq.s32.totalorder %s11, 0
    %p78 = por %p76, %p77
    %p79 = scmp.ne.s32.totalorder %s68, %s71
    %p80 = scmp.eq.s32.totalorder %s16, 1
    %p81 = por %p79, %p80
    %p82 = scmp.ne.s32.totalorder %s71, %s72
    %p83 = scmp.eq.s32.totalorder %s16, 0
    %p84 = por %p82, %p83
    %p85 = scmp.ne.s32.totalorder %s71, %s72
    %p86 = scmp.eq.s32.totalorder %s17, 1
    %p87 = por %p85, %p86
    %p89 = scmp.ne.s32.totalorder %s72, %s88
    %p90 = scmp.eq.s32.totalorder %s17, 0
    %p91 = por %p89, %p90
    %s92 = ssub.s32 %s20, %s29
    %p93 = scmp.eq.s32.totalorder %s92, 0
    %s95 = sadd.s32 %s94, 1
    %s96 = scalar_select %p93, %s94, %s95
    %p99 = pneg %p93
    %p100 = scmp.eq.s32.totalorder %s11, 1
    %p101 = por %p99, %p100
    %p102 = scmp.ne.s32.totalorder %s94, %s97
    %p103 = scmp.eq.s32.totalorder %s11, 0
    %p104 = por %p102, %p103
    %p105 = scmp.ne.s32.totalorder %s94, %s97
    %p106 = scmp.eq.s32.totalorder %s16, 1
    %p107 = por %p105, %p106
    %p108 = scmp.ne.s32.totalorder %s97, %s98
    %p109 = scmp.eq.s32.totalorder %s16, 0
    %p110 = por %p108, %p109
    %p111 = scmp.ne.s32.totalorder %s97, %s98
    %p112 = scmp.eq.s32.totalorder %s17, 1
    %p113 = por %p111, %p112
    %p115 = scmp.ne.s32.totalorder %s98, %s114
    %p116 = scmp.eq.s32.totalorder %s17, 0
    %p117 = por %p115, %p116
    %s118 = ssub.s32 %s18, %s37
    %s119 = ssub.s32 %s20, %s29
    %s120 = sor.u32 %s118, %s119
    %p121 = scmp.eq.s32.totalorder %s120, 0
    %s123 = sadd.s32 %s122, 1
    %s124 = scalar_select %p121, %s122, %s123
    %p127 = pneg %p121
    %p128 = scmp.eq.s32.totalorder %s11, 1
    %p129 = por %p127, %p128
    %p130 = scmp.ne.s32.totalorder %s122, %s125
    %p131 = scmp.eq.s32.totalorder %s11, 0
    %p132 = por %p130, %p131
    %p133 = scmp.ne.s32.totalorder %s122, %s125
    %p134 = scmp.eq.s32.totalorder %s16, 1
    %p135 = por %p133, %p134
    %p136 = scmp.ne.s32.totalorder %s125, %s126
    %p137 = scmp.eq.s32.totalorder %s16, 0
    %p138 = por %p136, %p137
    %p139 = scmp.ne.s32.totalorder %s125, %s126
    %p140 = scmp.eq.s32.totalorder %s17, 1
    %p141 = por %p139, %p140
    %p143 = scmp.ne.s32.totalorder %s126, %s142
    %p144 = scmp.eq.s32.totalorder %s17, 0
    %p145 = por %p143, %p144
    %s146 = ssub.s32 %s18, %s37
    %s147 = ssub.s32 %s19, %s33
    %s148 = sor.u32 %s146, %s147
    %s149 = ssub.s32 %s20, %s29
    %s150 = sor.u32 %s148, %s149
    %p151 = scmp.eq.s32.totalorder %s150, 0
    %s153 = sadd.s32 %s152, 1
    %s154 = scalar_select %p151, %s152, %s153
    %p157 = pneg %p151
    %p158 = scmp.eq.s32.totalorder %s11, 1
    %p159 = por %p157, %p158
    %p160 = scmp.ne.s32.totalorder %s152, %s155
    %p161 = scmp.eq.s32.totalorder %s11, 0
    %p162 = por %p160, %p161
    %p163 = scmp.ne.s32.totalorder %s152, %s155
    %p164 = scmp.eq.s32.totalorder %s16, 1
    %p165 = por %p163, %p164
    %p166 = scmp.ne.s32.totalorder %s155, %s156
    %p167 = scmp.eq.s32.totalorder %s16, 0
    %p168 = por %p166, %p167
    %p169 = scmp.ne.s32.totalorder %s155, %s156
    %p170 = scmp.eq.s32.totalorder %s17, 1
    %p171 = por %p169, %p170
    %p173 = scmp.ne.s32.totalorder %s156, %s172
    %p174 = scmp.eq.s32.totalorder %s17, 0
    %p175 = por %p173, %p174
    %s176 = ssub.s32 %s18, %s37
    %s177 = ssub.s32 %s19, %s33
    %s178 = sor.u32 %s176, %s177
    %s179 = ssub.s32 %s20, %s29
    %s180 = sor.u32 %s178, %s179
    %p181 = scmp.eq.s32.totalorder %s180, 0
    %s183 = sadd.s32 %s182, 1
    %s184 = scalar_select %p181, %s182, %s183
    %p187 = pneg %p181
    %p188 = scmp.eq.s32.totalorder %s11, 1
    %p189 = por %p187, %p188
    %p190 = scmp.ne.s32.totalorder %s182, %s185
    %p191 = scmp.eq.s32.totalorder %s11, 0
    %p192 = por %p190, %p191
    %p193 = scmp.ne.s32.totalorder %s182, %s185
    %p194 = scmp.eq.s32.totalorder %s16, 1
    %p195 = por %p193, %p194
    %p196 = scmp.ne.s32.totalorder %s185, %s186
    %p197 = scmp.eq.s32.totalorder %s16, 0
    %p198 = por %p196, %p197
    %p199 = scmp.ne.s32.totalorder %s185, %s186
    %p200 = scmp.eq.s32.totalorder %s17, 1
    %p201 = por %p199, %p200
    %p203 = scmp.ne.s32.totalorder %s186, %s202
    %p204 = scmp.eq.s32.totalorder %s17, 0
    %p205 = por %p203, %p204
    %p206 = scmp.le.s32.totalorder 1, %s11
    %p207 = scmp.lt.s32.totalorder %s11, 3
    %p208 = pnand %p206, %p207
    %p209 = pneg %p208
    // Predicated region
    $region9: #{nammsr_block_forward.10} parent=5 // pred_check
      _
    $region10: #{nammsr_block_forward.10} parent=5 // pred_check_branch
      %211 = sbr.rel (%p208) target = $region12
    $region11: #{nammsr_block_forward.10} parent=5 // pred_region
      %s212 = ssub.s32 %s11, 1
      // Predicated region
      $region13: #{nammsr_block_forward.10} parent=11 // pred_check
        %p213 = pneg %p84
      $region14: #{nammsr_block_forward.10} parent=11 // pred_check_branch
        %215 = sbr.rel (%p213) target = $region16
      $region15: #{nammsr_block_forward.10} parent=11 // pred_region
        %p216 = scmp.lt.s32.totalorder %s23, 0
        %s217 = scalar_select %p216, %s23, 0
        %s218 = smul.addr %s217, 4
        %s219 = scalar_lea.vmem %s1, %s218
      $region16: #{nammsr_block_forward.10} parent=11 // pred_fallthru
        _
      // Predicated region
      $region17: #{nammsr_block_forward.10} parent=11 // pred_check
        %p220 = pneg %p110
      $region18: #{nammsr_block_forward.10} parent=11 // pred_check_branch
        %222 = sbr.rel (%p220) target = $region20
      $region19: #{nammsr_block_forward.10} parent=11 // pred_region
        %p223 = scmp.lt.s32.totalorder %s23, 0
        %s224 = scalar_select %p223, %s23, 0
        %s225 = scalar_lea.vmem %s2, %s224
      $region20: #{nammsr_block_forward.10} parent=11 // pred_fallthru
        _
    $region12: #{nammsr_block_forward.10} parent=5 // pred_fallthru
      _
    %p226 = scmp.lt.s32.totalorder %s11, 2
    // Predicated region
    $region21: #{nammsr_block_forward.10} parent=5 // pred_check
      %p227 = pneg %p226
    $region22: #{nammsr_block_forward.10} parent=5 // pred_check_branch
      %229 = sbr.rel (%p227) target = $region24
    $region23: #{nammsr_block_forward.10} parent=5 // pred_region
      // Predicated region
      $region25: #{nammsr_block_forward.10} parent=23 // pred_check
        %p230 = pneg %p52
      $region26: #{nammsr_block_forward.10} parent=23 // pred_check_branch
        %232 = sbr.rel (%p230) target = $region28
      $region27: #{nammsr_block_forward.10} parent=23 // pred_region
        %s233 = smul.u32 2, %s19
        %p234 = scmp.lt.s32.totalorder %s18, 1
        %s235 = scalar_select %p234, %s18, 1
        %p236 = scmp.lt.s32.totalorder %s233, 3
        %s237 = scalar_select %p236, %s233, 3
        %s238 = smul.addr %s235, 4
        %s239 = sadd.s32 %s237, %s238
        %s240 = smul.addr %s239, 4
        %s241 = scalar_lea.vmem %s0, %s240
        %s242 = smul.u32 2, %s19
      $region28: #{nammsr_block_forward.10} parent=23 // pred_fallthru
        _
      // Predicated region
      $region29: #{nammsr_block_forward.10} parent=23 // pred_check
        %p243 = pneg %p132
      $region30: #{nammsr_block_forward.10} parent=23 // pred_check_branch
        %245 = sbr.rel (%p243) target = $region32
      $region31: #{nammsr_block_forward.10} parent=23 // pred_region
        %p246 = scmp.lt.s32.totalorder %s18, 1
        %s247 = scalar_select %p246, %s18, 1
        %p248 = scmp.lt.s32.totalorder %s20, 0
        %s249 = scalar_select %p248, %s20, 0
        %s250 = sadd.s32 %s249, %s247
        %s251 = scalar_lea.vmem %s3, %s250
      $region32: #{nammsr_block_forward.10} parent=23 // pred_fallthru
        _
      // Predicated region
      $region33: #{nammsr_block_forward.10} parent=23 // pred_check
        %p252 = pneg %p162
      $region34: #{nammsr_block_forward.10} parent=23 // pred_check_branch
        %254 = sbr.rel (%p252) target = $region36
      $region35: #{nammsr_block_forward.10} parent=23 // pred_region
        %s255 = smul.u32 2, %s19
        %p256 = scmp.lt.s32.totalorder %s18, 1
        %s257 = scalar_select %p256, %s18, 1
        %p258 = scmp.lt.s32.totalorder %s255, 1
        %s259 = scalar_select %p258, %s255, 1
        %p260 = scmp.lt.s32.totalorder %s20, 0
        %s261 = scalar_select %p260, %s20, 0
        %s262 = sadd.s32 %s261, %s259
        %s263 = smul.addr %s257, 2
        %s264 = sadd.s32 %s262, %s263
        %s265 = smul.addr %s264, 4
        %s266 = scalar_lea.vmem %s4, %s265
        %s267 = smul.u32 2, %s19
      $region36: #{nammsr_block_forward.10} parent=23 // pred_fallthru
        _
    $region24: #{nammsr_block_forward.10} parent=5 // pred_fallthru
      _
    %p268 = scmp.le.s32.totalorder 1, %s11
    %p269 = scmp.lt.s32.totalorder %s11, 3
    %p270 = pnand %p268, %p269
    %p271 = pneg %p270
    // Predicated region
    $region37: #{nammsr_block_forward.10} parent=5 // pred_check
      _
    $region38: #{nammsr_block_forward.10} parent=5 // pred_check_branch
      %273 = sbr.rel (%p270) target = $region40
    $region39: #{nammsr_block_forward.10} parent=5 // pred_region
      %s274 = ssub.s32 %s11, 1
      %s275 = smul.u32 2, %s22
      %p276 = scmp.lt.s32.totalorder %s21, 1
      %s277 = scalar_select %p276, %s21, 1
      %p278 = scmp.lt.s32.totalorder %s275, 3
      %s279 = scalar_select %p278, %s275, 3
      %s280 = smul.addr %s277, 4
      %s281 = sadd.s32 %s279, %s280
      %s282 = smul.addr %s281, 4
      %s283 = scalar_lea.vmem %s0, %s282
      %p284 = pneg %p58
      %p285 = pneg %p55
      %p286 = scmp.lt.s32.totalorder %s23, 0
      %s287 = scalar_select %p286, %s23, 0
      %s288 = smul.addr %s287, 4
      %s289 = scalar_lea.vmem %s1, %s288
      %p290 = pneg %p84
      %p291 = pneg %p81
      %p292 = scmp.lt.s32.totalorder %s23, 0
      %s293 = scalar_select %p292, %s23, 0
      %s294 = scalar_lea.vmem %s2, %s293
      %p295 = pneg %p110
      %p296 = pneg %p107
      %p297 = scmp.lt.s32.totalorder %s21, 1
      %s298 = scalar_select %p297, %s21, 1
      %p299 = scmp.lt.s32.totalorder %s23, 0
      %s300 = scalar_select %p299, %s23, 0
      %s301 = sadd.s32 %s300, %s298
      %s302 = scalar_lea.vmem %s3, %s301
      %p303 = pneg %p138
      %p304 = pneg %p135
      %s305 = smul.u32 2, %s22
      %p306 = scmp.lt.s32.totalorder %s21, 1
      %s307 = scalar_select %p306, %s21, 1
      %p308 = scmp.lt.s32.totalorder %s305, 1
      %s309 = scalar_select %p308, %s305, 1
      %p310 = scmp.lt.s32.totalorder %s23, 0
      %s311 = scalar_select %p310, %s23, 0
      %s312 = sadd.s32 %s311, %s309
      %s313 = smul.addr %s307, 2
      %s314 = sadd.s32 %s312, %s313
      %s315 = smul.addr %s314, 4
      %s316 = scalar_lea.vmem %s4, %s315
      %p317 = pneg %p168
      %p318 = pneg %p165
      %p319 = pneg %p198
      %p320 = pneg %p195
      %s321 = smul.u32 2, %s22
      %p322 = scmp.lt.s32.totalorder %s21, 1
      %s323 = scalar_select %p322, %s21, 1
      %p324 = scmp.lt.s32.totalorder %s321, 1
      %s325 = scalar_select %p324, %s321, 1
      %p326 = scmp.lt.s32.totalorder %s23, 0
      %s327 = scalar_select %p326, %s23, 0
      %s328 = sadd.s32 %s327, %s325
      %s329 = smul.addr %s323, 2
      %s330 = sadd.s32 %s328, %s329
      %s331 = smul.addr %s330, 4
      %s332 = scalar_lea.vmem %s5, %s331
      %s333 = smul.u32 2, %s22
      %p334 = scmp.lt.s32.totalorder %s21, 1
      %s335 = scalar_select %p334, %s21, 1
      %p336 = scmp.lt.s32.totalorder %s333, 3
      %s337 = scalar_select %p336, %s333, 3
      %s338 = smul.addr %s335, 4
      %s339 = sadd.s32 %s337, %s338
      %s340 = smul.addr %s339, 4
      %s341 = scalar_lea.vmem %s0, %s340
      %s342 = smul.u32 2, %s22
      %p343 = scmp.lt.s32.totalorder %s23, 0
      %s344 = scalar_select %p343, %s23, 0
      %s345 = smul.addr %s344, 4
      %s346 = scalar_lea.vmem %s1, %s345
      %p347 = scmp.lt.s32.totalorder %s23, 0
      %s348 = scalar_select %p347, %s23, 0
      %s349 = scalar_lea.vmem %s2, %s348
      %p350 = scmp.lt.s32.totalorder %s21, 1
      %s351 = scalar_select %p350, %s21, 1
      %p352 = scmp.lt.s32.totalorder %s23, 0
      %s353 = scalar_select %p352, %s23, 0
      %s354 = sadd.s32 %s353, %s351
      %s355 = scalar_lea.vmem %s3, %s354
      %s356 = smul.u32 2, %s22
      %p357 = scmp.lt.s32.totalorder %s21, 1
      %s358 = scalar_select %p357, %s21, 1
      %p359 = scmp.lt.s32.totalorder %s356, 1
      %s360 = scalar_select %p359, %s356, 1
      %p361 = scmp.lt.s32.totalorder %s23, 0
      %s362 = scalar_select %p361, %s23, 0
      %s363 = sadd.s32 %s362, %s360
      %s364 = smul.addr %s358, 2
      %s365 = sadd.s32 %s363, %s364
      %s366 = smul.addr %s365, 4
      %s367 = scalar_lea.vmem %s4, %s366
      %s368 = smul.u32 2, %s22
      %s369 = smul.u32 2, %s22
      %p370 = scmp.lt.s32.totalorder %s21, 1
      %s371 = scalar_select %p370, %s21, 1
      %p372 = scmp.lt.s32.totalorder %s369, 1
      %s373 = scalar_select %p372, %s369, 1
      %p374 = scmp.lt.s32.totalorder %s23, 0
      %s375 = scalar_select %p374, %s23, 0
      %s376 = sadd.s32 %s375, %s373
      %s377 = smul.addr %s371, 2
      %s378 = sadd.s32 %s376, %s377
      %s379 = smul.addr %s378, 4
      %s380 = scalar_lea.vmem %s5, %s379
      %s381 = smul.u32 2, %s22
      %v383 = vld [vmem:[%s341] sm:$0xf]
      %v384 = vld [vmem:[%s341 + $0x4] sm:$0xf]
      %v385 = vld [vmem:[%s346] sm:$0xf]
      %v386 = vld [vmem:[%s346 + $0x4] sm:$0xf]
      %v387 = vld [vmem:[%s346 + $0x8] sm:$0xf]
      %v388 = vld [vmem:[%s346 + $0xc] sm:$0xf]
      %v389 = vld [vmem:[%s349] sm:$0x1]
      %v391 = vlaneseq
      %v392 = vshrl.u32 %v391, 7
      %v393 = vsub.s32 0, %v392
      %v394 = vrot.slane %v389, %v393
      %v398 = vunpack.c.l.b16 %v383
      %v399 = vunpack.c.l.b16 %v384
      %v400 = vpack.c.b16 %v399, %v398
      %v405 = vunpack.c.l.b16 %v385
      %v406 = vunpack.c.l.b16 %v386
      %v407 = vunpack.c.l.b16 %v387
      %v408 = vunpack.c.l.b16 %v388
      %v409 = vpack.c.b16 %v406, %v405
      %v410 = vpack.c.b16 %v408, %v407
      %vm413 = vcmask 261120
      %v415 = vsel %vm413, %v400, 0
      %417 = vmatprep.subr.bf16.mxu0 0
      %418 = vmatpush1.bf16.msra.mxu0 0
      %419 = vmatprep.subr.bf16.mxu0 0
      %420 = vmatpush1.bf16.msra.mxu0 0
      %421 = vmatprep.subr.bf16.mxu0 0
      %422 = vmatpush1.bf16.msra.mxu0 0
      %423 = vmatprep.subr.bf16.mxu0 0
      %424 = vmatpush1.bf16.msra.mxu0 0
      %425 = vmatprep.subr.bf16.mxu0 0
      %426 = vmatpush1.bf16.msra.mxu0 0
      %427 = vmatprep.subr.bf16.mxu0 0
      %428 = vmatpush1.bf16.msra.mxu0 0
      %429 = vmatprep.subr.bf16.mxu0 0
      %430 = vmatpush1.bf16.msra.mxu0 %v410
      %431 = vmatprep.subr.bf16.mxu0 0
      %432 = vmatpush1.bf16.msra.mxu0 %v409
      %433 = vmatprep.subr.bf16.mxu0 0
      %434 = vmatpush2.bf16.msra.mxu0 0
      %435 = vmatprep.subr.bf16.mxu0 0
      %436 = vmatpush2.bf16.msra.mxu0 0
      %437 = vmatprep.subr.bf16.mxu0 0
      %438 = vmatpush2.bf16.msra.mxu0 0
      %439 = vmatprep.subr.bf16.mxu0 0
      %440 = vmatpush2.bf16.msra.mxu0 0
      %441 = vmatprep.subr.bf16.mxu0 0
      %442 = vmatpush2.bf16.msra.mxu0 0
      %443 = vmatprep.subr.bf16.mxu0 0
      %444 = vmatpush2.bf16.msra.mxu0 0
      %445 = vmatprep.subr.bf16.mxu0 0
      %446 = vmatpush2.bf16.msra.mxu0 0
      %447 = vmatprep.subr.bf16.mxu0 0
      %448 = vmatpush2.bf16.msra.mxu0 0
      %449 = vmatprep.mubr.bf16.mxu0 0
      %450 = vmatmul.mubr.bf16.gmra.mxu0 %v415
      %v451 = vpop.f32.mrf.mxu0
      %v452 = vadd.f32 %v394, %v451
      %v453 = vpop.f32.mrf.mxu0
      %v454 = vpop.f32.mrf.mxu0
      %v455 = vadd.f32 %v394, %v454
      %v456 = vpop.f32.mrf.mxu0
      %457 = vdwg.mxu0
      %v458 = vld [vmem:[%s355] sm:$0x1]
      %v460 = vlaneseq
      %v461 = vshrl.u32 %v460, 7
      %v462 = vsub.s32 0, %v461
      %v463 = vrot.slane %v458, %v462
      %v465 = vmul.f32 %v452, %v463
      %v466 = vmul.f32 %v455, %v463
      %v467 = vld [vmem:[%s367] sm:$0xf]
      %v468 = vld [vmem:[%s367 + $0x4] sm:$0xf]
      %v469 = vunpack.c.l.bf16 %v467
      %v470 = vunpack.c.l.bf16 %v468
      %v471 = vadd.f32 %v465, %v469
      %v472 = vadd.f32 %v466, %v470
      %v473 = vpack.c.bf16 %v472, %v471
      %v475 = vunpack.c.l.b16 %v473
      %v476 = vunpack.c.h.b16 %v473
      %v477 = vpack.c.b16 %v475, %v475
      %v478 = vpack.c.b16 %v476, %v476
      %vm481 = vcmask 257024
      %482 = vst.msk [vmem:[%s380] sm:$0xf] %vm481, %v477
      %483 = vst.msk [vmem:[%s380 + $0x4] sm:$0xf] %vm481, %v478
      %s484 = smul.u32 2, %s22
      %p485 = scmp.lt.s32.totalorder %s21, 1
      %s486 = scalar_select %p485, %s21, 1
      %p487 = scmp.lt.s32.totalorder %s484, 1
      %s488 = scalar_select %p487, %s484, 1
      %p489 = scmp.lt.s32.totalorder %s23, 0
      %s490 = scalar_select %p489, %s23, 0
      %s491 = sadd.s32 %s490, %s488
      %s492 = smul.addr %s486, 2
      %s493 = sadd.s32 %s491, %s492
      %s494 = smul.addr %s493, 4
      %s495 = scalar_lea.vmem %s5, %s494
      // Predicated region
      $region41: #{nammsr_block_forward.10} parent=39 // pred_check
        %p496 = pneg %p195
      $region42: #{nammsr_block_forward.10} parent=39 // pred_check_branch
        %498 = sbr.rel (%p496) target = $region44
      $region43: #{nammsr_block_forward.10} parent=39 // pred_region
        %s499 = smul.u32 2, %s22
      $region44: #{nammsr_block_forward.10} parent=39 // pred_fallthru
        _
    $region40: #{nammsr_block_forward.10} parent=5 // pred_fallthru
      _
    %p500 = scmp.le.s32.totalorder 2, %s11
    // Predicated region
    $region45: #{nammsr_block_forward.10} parent=5 // pred_check
      %p501 = pneg %p500
    $region46: #{nammsr_block_forward.10} parent=5 // pred_check_branch
      %503 = sbr.rel (%p501) target = $region48
    $region47: #{nammsr_block_forward.10} parent=5 // pred_region
      %s504 = ssub.s32 %s11, 2
      // Predicated region
      $region49: #{nammsr_block_forward.10} parent=47 // pred_check
        %p505 = pneg %p201
      $region50: #{nammsr_block_forward.10} parent=47 // pred_check_branch
        %507 = sbr.rel (%p505) target = $region52
      $region51: #{nammsr_block_forward.10} parent=47 // pred_region
        %s508 = smul.u32 2, %s25
        %p509 = scmp.lt.s32.totalorder %s24, 1
        %s510 = scalar_select %p509, %s24, 1
        %p511 = scmp.lt.s32.totalorder %s508, 1
        %s512 = scalar_select %p511, %s508, 1
        %p513 = scmp.lt.s32.totalorder %s26, 0
        %s514 = scalar_select %p513, %s26, 0
        %s515 = sadd.s32 %s514, %s512
        %s516 = smul.addr %s510, 2
        %s517 = sadd.s32 %s515, %s516
        %s518 = smul.addr %s517, 4
        %s519 = scalar_lea.vmem %s5, %s518
      $region52: #{nammsr_block_forward.10} parent=47 // pred_fallthru
        _
    $region48: #{nammsr_block_forward.10} parent=5 // pred_fallthru
      _
  $region6: #{nammsr_block_forward.10} parent=0 // loop_footer
    %s15 = sadd.s32 1, %s11
  $region7: #{nammsr_block_forward.10} parent=0 // loop_footer_branch
    %10 = sbr.rel target = $region3
  $region8: #{nammsr_block_forward.10} parent=0 // loop_exit
    _

// kernel: nammsr_block_forward.12
$region0: #{nammsr_block_forward.12}
  #allocation0 [shape = 'u32[]', space=smem, size = 0x4, offset = 0x4, fixed_abs, tag = 'smem constant byte address 0x4 - core index']
  #allocation1 [shape = 'u32[144,128]{1,0:T(1,128)}', space=vmem, size = 0x12000, scoped, tag = 'internal scratch']
  #allocation2 [shape = 'bf16[16,32]{1,0:T(8,128)(2,1)}', space=vmem, size = 0x1000, scoped, tag = 'scratch operand']
  #allocation3 [shape = 'f32[16,32]{1,0:T(8,128)}', space=vmem, size = 0x2000, scoped, tag = 'scratch operand']
  %s0 = inlined_call_operand.vmem [shape: bf16[2,16,32], index: 0, kind: input, shape index: {}]
  %s1 = inlined_call_operand.vmem [shape: f32[2,1,32], index: 1, kind: input, shape index: {}]
  %s2 = inlined_call_operand.vmem [shape: f32[2,1,32], index: 2, kind: input, shape index: {}]
  %s3 = inlined_call_operand.vmem [shape: f32[2,1,32], index: 3, kind: input, shape index: {}]
  %s4 = inlined_call_operand.vmem [shape: bf16[32,128], index: 4, kind: input, shape index: {}]
  %s5 = inlined_call_operand.vmem [shape: f32[1,1,128], index: 5, kind: input, shape index: {}]
  %s6 = inlined_call_operand.vmem [shape: bf16[128,32], index: 6, kind: input, shape index: {}]
  %s7 = inlined_call_operand.vmem [shape: f32[1,1,32], index: 7, kind: input, shape index: {}]
  %s8 = inlined_call_operand.hbm [shape: bf16[2,16,32], index: 8, kind: output, shape index: {}]
  %s9 = sld [smem:[#allocation0]]
  $region73: #{nammsr_block_forward.12} parent=0
    _
  %s11 = ssub.s32 1, %s9
  %s12 = scalar_select 0, %s11, %s9
  $region1: #{nammsr_block_forward.12} parent=0
    #allocation4 [shape = 'u8[8192]{0}', space=vmem, size = 0x2000, scoped, tag = 'output window, operand 0']
    #allocation5 [shape = 's32[2]{0}', space=sflag, size = 0x8, scoped, tag = 'scoped memory for nammsr_block_forward.12']
    %13 = vsyncpa [#allocation5], 0
    %s14 = scalar_lea.sflag [#allocation5], 1
    %15 = vsyncpa %s14, 0
    loop: start=0, step=1, limit=4
    $region2: #{nammsr_block_forward.12} parent=1 // loop_pre_header
      _
    $region3: #{nammsr_block_forward.12} parent=1 // loop_header
      %s17 = sphi 0, %s21
      %p18 = scmp.ge.s32.totalorder %s17, 4
      %s24 = sphi 0, %s43
      %s25 = sphi 0, %s39
      %s26 = sphi 0, %s35
      %s27 = sphi 0, %s24
      %s28 = sphi 0, %s25
      %s29 = sphi 0, %s26
      %s30 = sphi 0, %s27
      %s31 = sphi 0, %s28
      %s32 = sphi 0, %s29
      %s48 = sphi 0, %s50
      %s51 = sphi 0, %s48
      %s52 = sphi 0, %s51
      %s68 = sphi 0, %s52
      %s74 = sphi 0, %s76
      %s77 = sphi 0, %s74
      %s78 = sphi 0, %s77
      %s94 = sphi 0, %s78
      %s100 = sphi 0, %s102
      %s103 = sphi 0, %s100
      %s104 = sphi 0, %s103
      %s120 = sphi 0, %s104
      %s126 = sphi 0, %s128
      %s129 = sphi 0, %s126
      %s130 = sphi 0, %s129
      %s146 = sphi 0, %s130
      %s152 = sphi 0, %s154
      %s155 = sphi 0, %s152
      %s156 = sphi 0, %s155
      %s172 = sphi 0, %s156
      %s178 = sphi 0, %s180
      %s181 = sphi 0, %s178
      %s182 = sphi 0, %s181
      %s198 = sphi 0, %s182
      %s204 = sphi 0, %s206
      %s207 = sphi 0, %s204
      %s208 = sphi 0, %s207
      %s224 = sphi 0, %s208
      %s228 = sphi 0, %s228
      %s230 = sphi 0, %s228
      %s231 = sphi 0, %s230
      %s245 = sphi 0, %s231
      %s253 = sphi 0, %s255
      %s256 = sphi 0, %s253
      %s257 = sphi 0, %s256
      %s273 = sphi 0, %s257
    $region4: #{nammsr_block_forward.12} parent=1 // loop_header_branch
      %20 = sbr.rel (%p18) target = $region8
    $region5: #{nammsr_block_forward.12} parent=1 // loop_body
      %s22 = ssub.s32 %s17, 1
      %s23 = ssub.s32 %s17, 2
      %s33 = sadd.s32 1, %s26
      %p34 = scmp.ge.s32.totalorder %s33, 1
      %s35 = scalar_select %p34, 0, %s33
      %s36 = sadd.s32 1, %s25
      %s37 = scalar_select %p34, %s36, %s25
      %p38 = scmp.ge.s32.totalorder %s37, 1
      %s39 = scalar_select %p38, 0, %s37
      %s40 = sadd.s32 1, %s24
      %s41 = scalar_select %p38, %s40, %s24
      %p42 = scmp.ge.s32.totalorder %s41, 2
      %s43 = scalar_select %p42, 0, %s41
      %s44 = ssub.s32 %s24, %s43
      %s45 = ssub.s32 %s25, %s39
      %s46 = sor.u32 %s44, %s45
      %p47 = scmp.eq.s32.totalorder %s46, 0
      %s49 = sadd.s32 %s48, 1
      %s50 = scalar_select %p47, %s48, %s49
      %p53 = pneg %p47
      %p54 = scmp.eq.s32.totalorder %s17, 1
      %p55 = por %p53, %p54
      %p56 = scmp.ne.s32.totalorder %s48, %s51
      %p57 = scmp.eq.s32.totalorder %s17, 0
      %p58 = por %p56, %p57
      %p59 = scmp.ne.s32.totalorder %s48, %s51
      %p60 = scmp.eq.s32.totalorder %s22, 1
      %p61 = por %p59, %p60
      %p62 = scmp.ne.s32.totalorder %s51, %s52
      %p63 = scmp.eq.s32.totalorder %s22, 0
      %p64 = por %p62, %p63
      %p65 = scmp.ne.s32.totalorder %s51, %s52
      %p66 = scmp.eq.s32.totalorder %s23, 1
      %p67 = por %p65, %p66
      %p69 = scmp.ne.s32.totalorder %s52, %s68
      %p70 = scmp.eq.s32.totalorder %s23, 0
      %p71 = por %p69, %p70
      %s72 = ssub.s32 %s24, %s43
      %p73 = scmp.eq.s32.totalorder %s72, 0
      %s75 = sadd.s32 %s74, 1
      %s76 = scalar_select %p73, %s74, %s75
      %p79 = pneg %p73
      %p80 = scmp.eq.s32.totalorder %s17, 1
      %p81 = por %p79, %p80
      %p82 = scmp.ne.s32.totalorder %s74, %s77
      %p83 = scmp.eq.s32.totalorder %s17, 0
      %p84 = por %p82, %p83
      %p85 = scmp.ne.s32.totalorder %s74, %s77
      %p86 = scmp.eq.s32.totalorder %s22, 1
      %p87 = por %p85, %p86
      %p88 = scmp.ne.s32.totalorder %s77, %s78
      %p89 = scmp.eq.s32.totalorder %s22, 0
      %p90 = por %p88, %p89
      %p91 = scmp.ne.s32.totalorder %s77, %s78
      %p92 = scmp.eq.s32.totalorder %s23, 1
      %p93 = por %p91, %p92
      %p95 = scmp.ne.s32.totalorder %s78, %s94
      %p96 = scmp.eq.s32.totalorder %s23, 0
      %p97 = por %p95, %p96
      %s98 = ssub.s32 %s24, %s43
      %p99 = scmp.eq.s32.totalorder %s98, 0
      %s101 = sadd.s32 %s100, 1
      %s102 = scalar_select %p99, %s100, %s101
      %p105 = pneg %p99
      %p106 = scmp.eq.s32.totalorder %s17, 1
      %p107 = por %p105, %p106
      %p108 = scmp.ne.s32.totalorder %s100, %s103
      %p109 = scmp.eq.s32.totalorder %s17, 0
      %p110 = por %p108, %p109
      %p111 = scmp.ne.s32.totalorder %s100, %s103
      %p112 = scmp.eq.s32.totalorder %s22, 1
      %p113 = por %p111, %p112
      %p114 = scmp.ne.s32.totalorder %s103, %s104
      %p115 = scmp.eq.s32.totalorder %s22, 0
      %p116 = por %p114, %p115
      %p117 = scmp.ne.s32.totalorder %s103, %s104
      %p118 = scmp.eq.s32.totalorder %s23, 1
      %p119 = por %p117, %p118
      %p121 = scmp.ne.s32.totalorder %s104, %s120
      %p122 = scmp.eq.s32.totalorder %s23, 0
      %p123 = por %p121, %p122
      %s124 = ssub.s32 %s24, %s43
      %p125 = scmp.eq.s32.totalorder %s124, 0
      %s127 = sadd.s32 %s126, 1
      %s128 = scalar_select %p125, %s126, %s127
      %p131 = pneg %p125
      %p132 = scmp.eq.s32.totalorder %s17, 1
      %p133 = por %p131, %p132
      %p134 = scmp.ne.s32.totalorder %s126, %s129
      %p135 = scmp.eq.s32.totalorder %s17, 0
      %p136 = por %p134, %p135
      %p137 = scmp.ne.s32.totalorder %s126, %s129
      %p138 = scmp.eq.s32.totalorder %s22, 1
      %p139 = por %p137, %p138
      %p140 = scmp.ne.s32.totalorder %s129, %s130
      %p141 = scmp.eq.s32.totalorder %s22, 0
      %p142 = por %p140, %p141
      %p143 = scmp.ne.s32.totalorder %s129, %s130
      %p144 = scmp.eq.s32.totalorder %s23, 1
      %p145 = por %p143, %p144
      %p147 = scmp.ne.s32.totalorder %s130, %s146
      %p148 = scmp.eq.s32.totalorder %s23, 0
      %p149 = por %p147, %p148
      %s150 = ssub.s32 %s26, %s35
      %p151 = scmp.eq.s32.totalorder %s150, 0
      %s153 = sadd.s32 %s152, 1
      %s154 = scalar_select %p151, %s152, %s153
      %p157 = pneg %p151
      %p158 = scmp.eq.s32.totalorder %s17, 1
      %p159 = por %p157, %p158
      %p160 = scmp.ne.s32.totalorder %s152, %s155
      %p161 = scmp.eq.s32.totalorder %s17, 0
      %p162 = por %p160, %p161
      %p163 = scmp.ne.s32.totalorder %s152, %s155
      %p164 = scmp.eq.s32.totalorder %s22, 1
      %p165 = por %p163, %p164
      %p166 = scmp.ne.s32.totalorder %s155, %s156
      %p167 = scmp.eq.s32.totalorder %s22, 0
      %p168 = por %p166, %p167
      %p169 = scmp.ne.s32.totalorder %s155, %s156
      %p170 = scmp.eq.s32.totalorder %s23, 1
      %p171 = por %p169, %p170
      %p173 = scmp.ne.s32.totalorder %s156, %s172
      %p174 = scmp.eq.s32.totalorder %s23, 0
      %p175 = por %p173, %p174
      %s176 = ssub.s32 %s26, %s35
      %p177 = scmp.eq.s32.totalorder %s176, 0
      %s179 = sadd.s32 %s178, 1
      %s180 = scalar_select %p177, %s178, %s179
      %p183 = pneg %p177
      %p184 = scmp.eq.s32.totalorder %s17, 1
      %p185 = por %p183, %p184
      %p186 = scmp.ne.s32.totalorder %s178, %s181
      %p187 = scmp.eq.s32.totalorder %s17, 0
      %p188 = por %p186, %p187
      %p189 = scmp.ne.s32.totalorder %s178, %s181
      %p190 = scmp.eq.s32.totalorder %s22, 1
      %p191 = por %p189, %p190
      %p192 = scmp.ne.s32.totalorder %s181, %s182
      %p193 = scmp.eq.s32.totalorder %s22, 0
      %p194 = por %p192, %p193
      %p195 = scmp.ne.s32.totalorder %s181, %s182
      %p196 = scmp.eq.s32.totalorder %s23, 1
      %p197 = por %p195, %p196
      %p199 = scmp.ne.s32.totalorder %s182, %s198
      %p200 = scmp.eq.s32.totalorder %s23, 0
      %p201 = por %p199, %p200
      %s202 = ssub.s32 %s26, %s35
      %p203 = scmp.eq.s32.totalorder %s202, 0
      %s205 = sadd.s32 %s204, 1
      %s206 = scalar_select %p203, %s204, %s205
      %p209 = pneg %p203
      %p210 = scmp.eq.s32.totalorder %s17, 1
      %p211 = por %p209, %p210
      %p212 = scmp.ne.s32.totalorder %s204, %s207
      %p213 = scmp.eq.s32.totalorder %s17, 0
      %p214 = por %p212, %p213
      %p215 = scmp.ne.s32.totalorder %s204, %s207
      %p216 = scmp.eq.s32.totalorder %s22, 1
      %p217 = por %p215, %p216
      %p218 = scmp.ne.s32.totalorder %s207, %s208
      %p219 = scmp.eq.s32.totalorder %s22, 0
      %p220 = por %p218, %p219
      %p221 = scmp.ne.s32.totalorder %s207, %s208
      %p222 = scmp.eq.s32.totalorder %s23, 1
      %p223 = por %p221, %p222
      %p225 = scmp.ne.s32.totalorder %s208, %s224
      %p226 = scmp.eq.s32.totalorder %s23, 0
      %p227 = por %p225, %p226
      %s229 = sadd.s32 %s228, 1
      %p232 = scmp.eq.s32.totalorder %s17, 1
      %p233 = scmp.ne.s32.totalorder %s228, %s230
      %p234 = scmp.eq.s32.totalorder %s17, 0
      %p235 = por %p233, %p234
      %p236 = scmp.ne.s32.totalorder %s228, %s230
      %p237 = scmp.eq.s32.totalorder %s22, 1
      %p238 = por %p236, %p237
      %p239 = scmp.ne.s32.totalorder %s230, %s231
      %p240 = scmp.eq.s32.totalorder %s22, 0
      %p241 = por %p239, %p240
      %p242 = scmp.ne.s32.totalorder %s230, %s231
      %p243 = scmp.eq.s32.totalorder %s23, 1
      %p244 = por %p242, %p243
      %p246 = scmp.ne.s32.totalorder %s231, %s245
      %p247 = scmp.eq.s32.totalorder %s23, 0
      %p248 = por %p246, %p247
      %s249 = ssub.s32 %s24, %s43
      %s250 = ssub.s32 %s25, %s39
      %s251 = sor.u32 %s249, %s250
      %p252 = scmp.eq.s32.totalorder %s251, 0
      %s254 = sadd.s32 %s253, 1
      %s255 = scalar_select %p252, %s253, %s254
      %p258 = pneg %p252
      %p259 = scmp.eq.s32.totalorder %s17, 1
      %p260 = por %p258, %p259
      %p261 = scmp.ne.s32.totalorder %s253, %s256
      %p262 = scmp.eq.s32.totalorder %s17, 0
      %p263 = por %p261, %p262
      %p264 = scmp.ne.s32.totalorder %s253, %s256
      %p265 = scmp.eq.s32.totalorder %s22, 1
      %p266 = por %p264, %p265
      %p267 = scmp.ne.s32.totalorder %s256, %s257
      %p268 = scmp.eq.s32.totalorder %s22, 0
      %p269 = por %p267, %p268
      %p270 = scmp.ne.s32.totalorder %s256, %s257
      %p271 = scmp.eq.s32.totalorder %s23, 1
      %p272 = por %p270, %p271
      %p274 = scmp.ne.s32.totalorder %s257, %s273
      %p275 = scmp.eq.s32.totalorder %s23, 0
      %p276 = por %p274, %p275
      %p277 = scmp.le.s32.totalorder 1, %s17
      %p278 = scmp.lt.s32.totalorder %s17, 3
      %p279 = pnand %p277, %p278
      %p280 = pneg %p279
      // Predicated region
      $region9: #{nammsr_block_forward.12} parent=5 // pred_check
        _
      $region10: #{nammsr_block_forward.12} parent=5 // pred_check_branch
        %282 = sbr.rel (%p279) target = $region12
      $region11: #{nammsr_block_forward.12} parent=5 // pred_region
        %s283 = ssub.s32 %s17, 1
        // Predicated region
        $region13: #{nammsr_block_forward.12} parent=11 // pred_check
          %p284 = pneg %p168
        $region14: #{nammsr_block_forward.12} parent=11 // pred_check_branch
          %286 = sbr.rel (%p284) target = $region16
        $region15: #{nammsr_block_forward.12} parent=11 // pred_region
          %p287 = scmp.lt.s32.totalorder %s29, 0
          %s288 = scalar_select %p287, %s29, 0
          %s289 = smul.addr %s288, 4
          %s290 = scalar_lea.vmem %s4, %s289
        $region16: #{nammsr_block_forward.12} parent=11 // pred_fallthru
          _
        // Predicated region
        $region17: #{nammsr_block_forward.12} parent=11 // pred_check
          %p291 = pneg %p194
        $region18: #{nammsr_block_forward.12} parent=11 // pred_check_branch
          %293 = sbr.rel (%p291) target = $region20
        $region19: #{nammsr_block_forward.12} parent=11 // pred_region
          %p294 = scmp.lt.s32.totalorder %s29, 0
          %s295 = scalar_select %p294, %s29, 0
          %s296 = scalar_lea.vmem %s5, %s295
        $region20: #{nammsr_block_forward.12} parent=11 // pred_fallthru
          _
        // Predicated region
        $region21: #{nammsr_block_forward.12} parent=11 // pred_check
          %p297 = pneg %p220
        $region22: #{nammsr_block_forward.12} parent=11 // pred_check_branch
          %299 = sbr.rel (%p297) target = $region24
        $region23: #{nammsr_block_forward.12} parent=11 // pred_region
          %s300 = smul.u32 16, %s29
          %p301 = scmp.lt.s32.totalorder %s300, 15
          %s302 = scalar_select %p301, %s300, 15
          %s303 = smul.addr %s302, 4
          %s304 = scalar_lea.vmem %s6, %s303
          %s305 = smul.u32 16, %s29
        $region24: #{nammsr_block_forward.12} parent=11 // pred_fallthru
          _
        // Predicated region
        $region25: #{nammsr_block_forward.12} parent=11 // pred_check
          %p306 = pneg %p241
        $region26: #{nammsr_block_forward.12} parent=11 // pred_check_branch
          %308 = sbr.rel (%p306) target = $region28
        $region27: #{nammsr_block_forward.12} parent=11 // pred_region
          _
        $region28: #{nammsr_block_forward.12} parent=11 // pred_fallthru
          _
      $region12: #{nammsr_block_forward.12} parent=5 // pred_fallthru
        _
      %p309 = scmp.lt.s32.totalorder %s17, 2
      // Predicated region
      $region29: #{nammsr_block_forward.12} parent=5 // pred_check
        %p310 = pneg %p309
      $region30: #{nammsr_block_forward.12} parent=5 // pred_check_branch
        %312 = sbr.rel (%p310) target = $region32
      $region31: #{nammsr_block_forward.12} parent=5 // pred_region
        // Predicated region
        $region33: #{nammsr_block_forward.12} parent=31 // pred_check
          %p313 = pneg %p58
        $region34: #{nammsr_block_forward.12} parent=31 // pred_check_branch
          %315 = sbr.rel (%p313) target = $region36
        $region35: #{nammsr_block_forward.12} parent=31 // pred_region
          %s316 = smul.u32 2, %s25
          %p317 = scmp.lt.s32.totalorder %s24, 1
          %s318 = scalar_select %p317, %s24, 1
          %p319 = scmp.lt.s32.totalorder %s316, 1
          %s320 = scalar_select %p319, %s316, 1
          %s321 = smul.addr %s318, 2
          %s322 = sadd.s32 %s320, %s321
          %s323 = smul.addr %s322, 4
          %s324 = scalar_lea.vmem %s0, %s323
          %s325 = smul.u32 2, %s25
        $region36: #{nammsr_block_forward.12} parent=31 // pred_fallthru
          _
        // Predicated region
        $region37: #{nammsr_block_forward.12} parent=31 // pred_check
          %p326 = pneg %p84
        $region38: #{nammsr_block_forward.12} parent=31 // pred_check_branch
          %328 = sbr.rel (%p326) target = $region40
        $region39: #{nammsr_block_forward.12} parent=31 // pred_region
          %p329 = scmp.lt.s32.totalorder %s24, 1
          %s330 = scalar_select %p329, %s24, 1
          %s331 = scalar_lea.vmem %s1, %s330
        $region40: #{nammsr_block_forward.12} parent=31 // pred_fallthru
          _
        // Predicated region
        $region41: #{nammsr_block_forward.12} parent=31 // pred_check
          %p332 = pneg %p110
        $region42: #{nammsr_block_forward.12} parent=31 // pred_check_branch
          %334 = sbr.rel (%p332) target = $region44
        $region43: #{nammsr_block_forward.12} parent=31 // pred_region
          %p335 = scmp.lt.s32.totalorder %s24, 1
          %s336 = scalar_select %p335, %s24, 1
          %s337 = scalar_lea.vmem %s2, %s336
        $region44: #{nammsr_block_forward.12} parent=31 // pred_fallthru
          _
        // Predicated region
        $region45: #{nammsr_block_forward.12} parent=31 // pred_check
          %p338 = pneg %p136
        $region46: #{nammsr_block_forward.12} parent=31 // pred_check_branch
          %340 = sbr.rel (%p338) target = $region48
        $region47: #{nammsr_block_forward.12} parent=31 // pred_region
          %p341 = scmp.lt.s32.totalorder %s24, 1
          %s342 = scalar_select %p341, %s24, 1
          %s343 = scalar_lea.vmem %s3, %s342
        $region48: #{nammsr_block_forward.12} parent=31 // pred_fallthru
          _
      $region32: #{nammsr_block_forward.12} parent=5 // pred_fallthru
        _
      %p344 = scmp.le.s32.totalorder 1, %s17
      %p345 = scmp.lt.s32.totalorder %s17, 3
      %p346 = pnand %p344, %p345
      %p347 = pneg %p346
      // Predicated region
      $region49: #{nammsr_block_forward.12} parent=5 // pred_check
        _
      $region50: #{nammsr_block_forward.12} parent=5 // pred_check_branch
        %349 = sbr.rel (%p346) target = $region52
      $region51: #{nammsr_block_forward.12} parent=5 // pred_region
        %s350 = ssub.s32 %s17, 1
        %s351 = smul.u32 2, %s28
        %p352 = scmp.lt.s32.totalorder %s27, 1
        %s353 = scalar_select %p352, %s27, 1
        %p354 = scmp.lt.s32.totalorder %s351, 1
        %s355 = scalar_select %p354, %s351, 1
        %s356 = smul.addr %s353, 2
        %s357 = sadd.s32 %s355, %s356
        %s358 = smul.addr %s357, 4
        %s359 = scalar_lea.vmem %s0, %s358
        %p360 = pneg %p64
        %p361 = pneg %p61
        %p362 = scmp.lt.s32.totalorder %s27, 1
        %s363 = scalar_select %p362, %s27, 1
        %s364 = scalar_lea.vmem %s1, %s363
        %p365 = pneg %p90
        %p366 = pneg %p87
        %p367 = scmp.lt.s32.totalorder %s27, 1
        %s368 = scalar_select %p367, %s27, 1
        %s369 = scalar_lea.vmem %s2, %s368
        %p370 = pneg %p116
        %p371 = pneg %p113
        %p372 = scmp.lt.s32.totalorder %s27, 1
        %s373 = scalar_select %p372, %s27, 1
        %s374 = scalar_lea.vmem %s3, %s373
        %p375 = pneg %p142
        %p376 = pneg %p139
        %p377 = scmp.lt.s32.totalorder %s29, 0
        %s378 = scalar_select %p377, %s29, 0
        %s379 = smul.addr %s378, 4
        %s380 = scalar_lea.vmem %s4, %s379
        %p381 = pneg %p168
        %p382 = pneg %p165
        %p383 = scmp.lt.s32.totalorder %s29, 0
        %s384 = scalar_select %p383, %s29, 0
        %s385 = scalar_lea.vmem %s5, %s384
        %p386 = pneg %p194
        %p387 = pneg %p191
        %s388 = smul.u32 16, %s29
        %p389 = scmp.lt.s32.totalorder %s388, 15
        %s390 = scalar_select %p389, %s388, 15
        %s391 = smul.addr %s390, 4
        %s392 = scalar_lea.vmem %s6, %s391
        %p393 = pneg %p220
        %p394 = pneg %p217
        %p395 = pneg %p241
        %p396 = pneg %p238
        %p397 = pneg %p269
        %p398 = pneg %p266
        %s399 = sand.u32 %s256, 1
        %s400 = scalar_lea.sflag [#allocation5], %s399
        %s401 = sand.u32 %s256, 1
        %s402 = smul.addr %s401, 8
        %s403 = scalar_lea.vmem [#allocation4], %s402
        %s404 = smul.u32 2, %s28
        %p405 = scmp.lt.s32.totalorder %s27, 1
        %s406 = scalar_select %p405, %s27, 1
        %p407 = scmp.lt.s32.totalorder %s404, 1
        %s408 = scalar_select %p407, %s404, 1
        %s409 = smul.addr %s406, 2
        %s410 = sadd.s32 %s408, %s409
        %s411 = smul.addr %s410, 4
        %s412 = scalar_lea.vmem %s0, %s411
        %s413 = smul.u32 2, %s28
        %p414 = scmp.lt.s32.totalorder %s27, 1
        %s415 = scalar_select %p414, %s27, 1
        %s416 = scalar_lea.vmem %s1, %s415
        %p417 = scmp.lt.s32.totalorder %s27, 1
        %s418 = scalar_select %p417, %s27, 1
        %s419 = scalar_lea.vmem %s2, %s418
        %p420 = scmp.lt.s32.totalorder %s27, 1
        %s421 = scalar_select %p420, %s27, 1
        %s422 = scalar_lea.vmem %s3, %s421
        %p423 = scmp.lt.s32.totalorder %s29, 0
        %s424 = scalar_select %p423, %s29, 0
        %s425 = smul.addr %s424, 4
        %s426 = scalar_lea.vmem %s4, %s425
        %p427 = scmp.lt.s32.totalorder %s29, 0
        %s428 = scalar_select %p427, %s29, 0
        %s429 = scalar_lea.vmem %s5, %s428
        %s430 = smul.u32 16, %s29
        %p431 = scmp.lt.s32.totalorder %s430, 15
        %s432 = scalar_select %p431, %s430, 15
        %s433 = smul.addr %s432, 4
        %s434 = scalar_lea.vmem %s6, %s433
        %s435 = smul.u32 16, %s29
        %s436 = smul.u32 2, %s28
        %p438 = scmp.eq.s32.totalorder %s29, 0
        // Predicated region
        $region53: #{nammsr_block_forward.12} parent=51 // pred_check
          %p439 = pneg %p438
        $region54: #{nammsr_block_forward.12} parent=51 // pred_check_branch
          %441 = sbr.rel (%p439) target = $region56
        $region55: #{nammsr_block_forward.12} parent=51 // pred_region
          %v442 = vld [vmem:[%s412] sm:$0xf]
          %v443 = vld [vmem:[%s412 + $0x4] sm:$0xf]
          %v444 = vunpack.c.l.bf16 %v442
          %v445 = vunpack.c.l.bf16 %v443
          %vm446 = vcmask 261120
          %v447 = vsel %vm446, %v444, 0.0
          %448 = vadd.xlane.f32.xlu0 %v447
          %v449 = vpop.xlane.xlu0 %448
          %v450 = vsel %vm446, %v445, 0.0
          %451 = vadd.xlane.f32.xlu0 %v450
          %v452 = vpop.xlane.xlu0 %451
          %v453 = vrcp.pop 32.0
          %v454 = vmul.f32 %v449, %v453
          %v455 = vmul.f32 %v452, %v453
          %v456 = vsub.f32 %v444, %v454
          %v457 = vsub.f32 %v445, %v455
          %v458 = vmul.f32 %v456, %v456
          %v459 = vmul.f32 %v457, %v457
          %v460 = vsel %vm446, %v458, 0.0
          %461 = vadd.xlane.f32.xlu0 %v460
          %v462 = vpop.xlane.xlu0 %461
          %v463 = vsel %vm446, %v459, 0.0
          %464 = vadd.xlane.f32.xlu0 %v463
          %v465 = vpop.xlane.xlu0 %464
          %v466 = vmul.f32 %v462, %v453
          %v467 = vmul.f32 %v465, %v453
          %v468 = vadd.f32 %v466, 1e-06
          %v469 = vadd.f32 %v467, 1e-06
          %v470 = vrsqrt.pop %v468
          %v471 = vrsqrt.pop %v469
          %v472 = vmul.f32 %v456, %v470
          %v473 = vmul.f32 %v457, %v471
          %v474 = vld [vmem:[%s419] sm:$0x1]
          %v475 = vadd.f32 %v474, 1.0
          %v477 = vlaneseq
          %v478 = vshrl.u32 %v477, 7
          %v479 = vsub.s32 0, %v478
          %v480 = vrot.slane %v475, %v479
          %v482 = vmul.f32 %v472, %v480
          %v483 = vmul.f32 %v473, %v480
          %v484 = vld [vmem:[%s416] sm:$0x1]
          %v486 = vlaneseq
          %v487 = vshrl.u32 %v486, 7
          %v488 = vsub.s32 0, %v487
          %v489 = vrot.slane %v484, %v488
          %v491 = vadd.f32 %v482, %v489
          %v492 = vadd.f32 %v483, %v489
          %v493 = vpack.c.bf16 %v492, %v491
          %v495 = vunpack.c.l.b16 %v493
          %v496 = vunpack.c.h.b16 %v493
          %v497 = vpack.c.b16 %v495, %v495
          %v498 = vpack.c.b16 %v496, %v496
          %vm501 = vcmask 257024
          %502 = vst.msk [vmem:[#allocation2] sm:$0xf] %vm501, %v497
          %503 = vst.msk [vmem:[#allocation2 + $0x4] sm:$0xf] %vm501, %v498
          %504 = vst.msk [vmem:[#allocation3] sm:$0xff] %vm446, 0.0
          %505 = vst.msk [vmem:[#allocation3 + $0x8] sm:$0xff] %vm446, 0.0
        $region56: #{nammsr_block_forward.12} parent=51 // pred_fallthru
          _
        %v506 = vld [vmem:[#allocation2] sm:$0xf]
        %v507 = vld [vmem:[#allocation2 + $0x4] sm:$0xf]
        %v508 = vld [vmem:[%s426] sm:$0xf]
        %v509 = vld [vmem:[%s426 + $0x4] sm:$0xf]
        %v510 = vld [vmem:[%s426 + $0x8] sm:$0xf]
        %v511 = vld [vmem:[%s426 + $0xc] sm:$0xf]
        %v512 = vld [vmem:[%s429] sm:$0x1]
        %v514 = vlaneseq
        %v515 = vshrl.u32 %v514, 7
        %v516 = vsub.s32 0, %v515
        %v517 = vrot.slane %v512, %v516
        %v521 = vunpack.c.l.b16 %v506
        %v522 = vunpack.c.l.b16 %v507
        %v523 = vpack.c.b16 %v522, %v521
        %v528 = vunpack.c.l.b16 %v508
        %v529 = vunpack.c.l.b16 %v509
        %v530 = vunpack.c.l.b16 %v510
        %v531 = vunpack.c.l.b16 %v511
        %v532 = vpack.c.b16 %v529, %v528
        %v533 = vpack.c.b16 %v531, %v530
        %vm536 = vcmask 261120
        %v538 = vsel %vm536, %v523, 0
        %540 = vmatprep.subr.bf16.mxu0 0
        %541 = vmatpush1.bf16.msra.mxu0 0
        %542 = vmatprep.subr.bf16.mxu0 0
        %543 = vmatpush1.bf16.msra.mxu0 0
        %544 = vmatprep.subr.bf16.mxu0 0
        %545 = vmatpush1.bf16.msra.mxu0 0
        %546 = vmatprep.subr.bf16.mxu0 0
        %547 = vmatpush1.bf16.msra.mxu0 0
        %548 = vmatprep.subr.bf16.mxu0 0
        %549 = vmatpush1.bf16.msra.mxu0 0
        %550 = vmatprep.subr.bf16.mxu0 0
        %551 = vmatpush1.bf16.msra.mxu0 0
        %552 = vmatprep.subr.bf16.mxu0 0
        %553 = vmatpush1.bf16.msra.mxu0 %v533
        %554 = vmatprep.subr.bf16.mxu0 0
        %555 = vmatpush1.bf16.msra.mxu0 %v532
        %556 = vmatprep.subr.bf16.mxu0 0
        %557 = vmatpush2.bf16.msra.mxu0 0
        %558 = vmatprep.subr.bf16.mxu0 0
        %559 = vmatpush2.bf16.msra.mxu0 0
        %560 = vmatprep.subr.bf16.mxu0 0
        %561 = vmatpush2.bf16.msra.mxu0 0
        %562 = vmatprep.subr.bf16.mxu0 0
        %563 = vmatpush2.bf16.msra.mxu0 0
        %564 = vmatprep.subr.bf16.mxu0 0
        %565 = vmatpush2.bf16.msra.mxu0 0
        %566 = vmatprep.subr.bf16.mxu0 0
        %567 = vmatpush2.bf16.msra.mxu0 0
        %568 = vmatprep.subr.bf16.mxu0 0
        %569 = vmatpush2.bf16.msra.mxu0 0
        %570 = vmatprep.subr.bf16.mxu0 0
        %571 = vmatpush2.bf16.msra.mxu0 0
        %572 = vmatprep.mubr.bf16.mxu0 0
        %573 = vmatmul.mubr.bf16.gmra.mxu0 %v538
        %v574 = vpop.f32.mrf.mxu0
        %v575 = vadd.f32 %v517, %v574
        %v576 = vpop.f32.mrf.mxu0
        %v577 = vpop.f32.mrf.mxu0
        %v578 = vadd.f32 %v517, %v577
        %v579 = vpop.f32.mrf.mxu0
        %580 = vdwg.mxu0
        %v581 = vmul.f32 %v575, %v575
        %v582 = vmul.f32 %v578, %v578
        %v583 = vmul.f32 %v575, %v581
        %v584 = vmul.f32 %v578, %v582
        %v585 = vmul.f32 %v583, 0.044715
        %v586 = vmul.f32 %v584, 0.044715
        %v587 = vadd.f32 %v575, %v585
        %v588 = vadd.f32 %v578, %v586
        %v589 = vmul.f32 %v587, 0.7978846
        %v590 = vmul.f32 %v588, 0.7978846
        %v591 = vtanh.pop %v589
        %v592 = vtanh.pop %v590
        %v593 = vadd.f32 %v591, 1.0
        %v594 = vadd.f32 %v592, 1.0
        %v595 = vmul.f32 %v593, 0.5
        %v596 = vmul.f32 %v594, 0.5
        %v597 = vmul.f32 %v575, %v595
        %v598 = vmul.f32 %v578, %v596
        %v599 = vld [vmem:[#allocation3] sm:$0xff]
        %v600 = vld [vmem:[#allocation3 + $0x8] sm:$0xff]
        %v601 = vpack.c.bf16 %v598, %v597
        %v602 = vld [vmem:[%s434] sm:$0xf]
        %v603 = vld [vmem:[%s434 + $0x4] sm:$0xf]
        %v604 = vld [vmem:[%s434 + $0x8] sm:$0xf]
        %v605 = vld [vmem:[%s434 + $0xc] sm:$0xf]
        %v606 = vld [vmem:[%s434 + $0x10] sm:$0xf]
        %v607 = vld [vmem:[%s434 + $0x14] sm:$0xf]
        %v608 = vld [vmem:[%s434 + $0x18] sm:$0xf]
        %v609 = vld [vmem:[%s434 + $0x1c] sm:$0xf]
        %v610 = vld [vmem:[%s434 + $0x20] sm:$0xf]
        %v611 = vld [vmem:[%s434 + $0x24] sm:$0xf]
        %v612 = vld [vmem:[%s434 + $0x28] sm:$0xf]
        %v613 = vld [vmem:[%s434 + $0x2c] sm:$0xf]
        %v614 = vld [vmem:[%s434 + $0x30] sm:$0xf]
        %v615 = vld [vmem:[%s434 + $0x34] sm:$0xf]
        %v616 = vld [vmem:[%s434 + $0x38] sm:$0xf]
        %v617 = vld [vmem:[%s434 + $0x3c] sm:$0xf]
        %v634 = vunpack.c.l.b16 %v602
        %v635 = vunpack.c.l.b16 %v603
        %v636 = vunpack.c.l.b16 %v604
        %v637 = vunpack.c.l.b16 %v605
        %v638 = vunpack.c.l.b16 %v606
        %v639 = vunpack.c.l.b16 %v607
        %v640 = vunpack.c.l.b16 %v608
        %v641 = vunpack.c.l.b16 %v609
        %v642 = vunpack.c.l.b16 %v610
        %v643 = vunpack.c.l.b16 %v611
        %v644 = vunpack.c.l.b16 %v612
        %v645 = vunpack.c.l.b16 %v613
        %v646 = vunpack.c.l.b16 %v614
        %v647 = vunpack.c.l.b16 %v615
        %v648 = vunpack.c.l.b16 %v616
        %v649 = vunpack.c.l.b16 %v617
        %v650 = vpack.c.b16 %v635, %v634
        %v651 = vpack.c.b16 %v637, %v636
        %v652 = vpack.c.b16 %v639, %v638
        %v653 = vpack.c.b16 %v641, %v640
        %v654 = vpack.c.b16 %v643, %v642
        %v655 = vpack.c.b16 %v645, %v644
        %v656 = vpack.c.b16 %v647, %v646
        %v657 = vpack.c.b16 %v649, %v648
        %666 = vmatprep.subr.bf16.mxu0 0
        %667 = vmatpush1.bf16.msra.mxu0 %v657
        %668 = vmatprep.subr.bf16.mxu0 0
        %669 = vmatpush1.bf16.msra.mxu0 %v656
        %670 = vmatprep.subr.bf16.mxu0 0
        %671 = vmatpush1.bf16.msra.mxu0 %v655
        %672 = vmatprep.subr.bf16.mxu0 0
        %673 = vmatpush1.bf16.msra.mxu0 %v654
        %674 = vmatprep.subr.bf16.mxu0 0
        %675 = vmatpush1.bf16.msra.mxu0 %v653
        %676 = vmatprep.subr.bf16.mxu0 0
        %677 = vmatpush1.bf16.msra.mxu0 %v652
        %678 = vmatprep.subr.bf16.mxu0 0
        %679 = vmatpush1.bf16.msra.mxu0 %v651
        %680 = vmatprep.subr.bf16.mxu0 0
        %681 = vmatpush1.bf16.msra.mxu0 %v650
        %682 = vmatprep.subr.bf16.mxu0 0
        %683 = vmatpush2.bf16.msra.mxu0 0
        %684 = vmatprep.subr.bf16.mxu0 0
        %685 = vmatpush2.bf16.msra.mxu0 0
        %686 = vmatprep.subr.bf16.mxu0 0
        %687 = vmatpush2.bf16.msra.mxu0 0
        %688 = vmatprep.subr.bf16.mxu0 0
        %689 = vmatpush2.bf16.msra.mxu0 0
        %690 = vmatprep.subr.bf16.mxu0 0
        %691 = vmatpush2.bf16.msra.mxu0 0
        %692 = vmatprep.subr.bf16.mxu0 0
        %693 = vmatpush2.bf16.msra.mxu0 0
        %694 = vmatprep.subr.bf16.mxu0 0
        %695 = vmatpush2.bf16.msra.mxu0 0
        %696 = vmatprep.subr.bf16.mxu0 0
        %697 = vmatpush2.bf16.msra.mxu0 0
        %698 = vmatprep.mubr.bf16.mxu0 0
        %699 = vmatmul.mubr.bf16.gmra.mxu0 %v601
        %v700 = vpop.f32.mrf.mxu0
        %v701 = vadd.f32 0.0, %v700
        %v702 = vpop.f32.mrf.mxu0
        %v703 = vpop.f32.mrf.mxu0
        %v704 = vadd.f32 0.0, %v703
        %v705 = vpop.f32.mrf.mxu0
        %706 = vdwg.mxu0
        %v707 = vadd.f32 %v599, %v701
        %v708 = vadd.f32 %v600, %v704
        %709 = vst.msk [vmem:[#allocation3] sm:$0xff] %vm536, %v707
        %710 = vst.msk [vmem:[#allocation3 + $0x8] sm:$0xff] %vm536, %v708
        // Predicated region
        $region57: #{nammsr_block_forward.12} parent=51 // pred_check
          %p711 = pneg %p438
        $region58: #{nammsr_block_forward.12} parent=51 // pred_check_branch
          %713 = sbr.rel (%p711) target = $region60
        $region59: #{nammsr_block_forward.12} parent=51 // pred_region
          %v714 = vld [vmem:[#allocation3] sm:$0xff]
          %v715 = vld [vmem:[#allocation3 + $0x8] sm:$0xff]
          %v716 = vld [vmem:[%s7] sm:$0x1]
          %v718 = vlaneseq
          %v719 = vshrl.u32 %v718, 7
          %v720 = vsub.s32 0, %v719
          %v721 = vrot.slane %v716, %v720
          %v723 = vadd.f32 %v714, %v721
          %v724 = vadd.f32 %v715, %v721
          %v725 = vld [vmem:[%s422] sm:$0x1]
          %v727 = vlaneseq
          %v728 = vshrl.u32 %v727, 7
          %v729 = vsub.s32 0, %v728
          %v730 = vrot.slane %v725, %v729
          %v732 = vmul.f32 %v723, %v730
          %v733 = vmul.f32 %v724, %v730
          %v734 = vld [vmem:[%s412] sm:$0xf]
          %v735 = vld [vmem:[%s412 + $0x4] sm:$0xf]
          %v736 = vunpack.c.l.bf16 %v734
          %v737 = vunpack.c.l.bf16 %v735
          %v738 = vadd.f32 %v732, %v736
          %v739 = vadd.f32 %v733, %v737
          %v740 = vpack.c.bf16 %v739, %v738
          %v742 = vunpack.c.l.b16 %v740
          %v743 = vunpack.c.h.b16 %v740
          %v744 = vpack.c.b16 %v742, %v742
          %v745 = vpack.c.b16 %v743, %v743
          %vm748 = vcmask 257024
          %749 = vst.msk [vmem:[%s403] sm:$0xf] %vm748, %v744
          %750 = vst.msk [vmem:[%s403 + $0x4] sm:$0xf] %vm748, %v745
        $region60: #{nammsr_block_forward.12} parent=51 // pred_fallthru
          _
        %s751 = sand.u32 %s256, 1
        %s752 = scalar_lea.sflag [#allocation5], %s751
        %s753 = sand.u32 %s256, 1
        %s754 = smul.addr %s753, 8
        %s755 = scalar_lea.vmem [#allocation4], %s754
        // Predicated region
        $region61: #{nammsr_block_forward.12} parent=51 // pred_check
          %p756 = pneg %p266
        $region62: #{nammsr_block_forward.12} parent=51 // pred_check_branch
          %758 = sbr.rel (%p756) target = $region64
        $region63: #{nammsr_block_forward.12} parent=51 // pred_region
          %s759 = smul.u32 2, %s28
          %s761 = ssub.s32 128, 128
          %762 = vsyncadd %s752, %s761
          %s763 = smul.addr %s27, 2
          %s764 = sadd.s32 %s759, %s763
          %s765 = smul.addr %s764, 64
          %s766 = scalar_lea.hbm %s8, %s765
          %s767 = sshll.u32 %s755, 4
          %s768 = int_to_ptr.vmem [resolvable:$true] %s767
          %773 = dma.vmem_to_hbm [thread:$0]  %s768, 128, %s766, %s752, 64, 64, 4
        $region64: #{nammsr_block_forward.12} parent=51 // pred_fallthru
          _
      $region52: #{nammsr_block_forward.12} parent=5 // pred_fallthru
        _
      %p774 = scmp.le.s32.totalorder 2, %s17
      // Predicated region
      $region65: #{nammsr_block_forward.12} parent=5 // pred_check
        %p775 = pneg %p774
      $region66: #{nammsr_block_forward.12} parent=5 // pred_check_branch
        %777 = sbr.rel (%p775) target = $region68
      $region67: #{nammsr_block_forward.12} parent=5 // pred_region
        %s778 = ssub.s32 %s17, 2
        // Predicated region
        $region69: #{nammsr_block_forward.12} parent=67 // pred_check
          %p779 = pneg %p272
        $region70: #{nammsr_block_forward.12} parent=67 // pred_check_branch
          %781 = sbr.rel (%p779) target = $region72
        $region71: #{nammsr_block_forward.12} parent=67 // pred_region
          %s782 = sand.u32 %s257, 1
          %s783 = scalar_lea.sflag [#allocation5], %s782
          %s784 = sand.u32 %s257, 1
          %s785 = smul.addr %s784, 8
          %s786 = scalar_lea.vmem [#allocation4], %s785
          %787 = dma.done %s783, 128
        $region72: #{nammsr_block_forward.12} parent=67 // pred_fallthru
          _
      $region68: #{nammsr_block_forward.12} parent=5 // pred_fallthru
        _
    $region6: #{nammsr_block_forward.12} parent=1 // loop_footer
      %s21 = sadd.s32 1, %s17
    $region7: #{nammsr_block_forward.12} parent=1 // loop_footer_branch
      %16 = sbr.rel target = $region3
    $region8: #{nammsr_block_forward.12} parent=1 // loop_exit
      _
    %788 = vsyncpa [#allocation5], 1
    %s789 = scalar_lea.sflag [#allocation5], 1
    %790 = vsyncpa %s789, 1

// kernel: nammsr_block_forward.13
$region0: #{nammsr_block_forward.13}
  #allocation0 [shape = 'u32[]', space=smem, size = 0x4, offset = 0x4, fixed_abs, tag = 'smem constant byte address 0x4 - core index']
  #allocation1 [shape = 'u32[144,128]{1,0:T(1,128)}', space=vmem, size = 0x12000, scoped, tag = 'internal scratch']
  #allocation2 [shape = 'bf16[16,16]{1,0:T(8,128)(2,1)}', space=vmem, size = 0x1000, scoped, tag = 'scratch operand']
  #allocation3 [shape = 'f32[16,16]{1,0:T(8,128)}', space=vmem, size = 0x2000, scoped, tag = 'scratch operand']
  %s0 = inlined_call_operand.vmem [shape: bf16[2,16,16], index: 0, kind: input, shape index: {}]
  %s1 = inlined_call_operand.vmem [shape: f32[2,1,16], index: 1, kind: input, shape index: {}]
  %s2 = inlined_call_operand.vmem [shape: f32[2,1,16], index: 2, kind: input, shape index: {}]
  %s3 = inlined_call_operand.vmem [shape: f32[2,1,16], index: 3, kind: input, shape index: {}]
  %s4 = inlined_call_operand.vmem [shape: bf16[16,64], index: 4, kind: input, shape index: {}]
  %s5 = inlined_call_operand.vmem [shape: f32[1,1,64], index: 5, kind: input, shape index: {}]
  %s6 = inlined_call_operand.vmem [shape: bf16[64,16], index: 6, kind: input, shape index: {}]
  %s7 = inlined_call_operand.vmem [shape: f32[1,1,16], index: 7, kind: input, shape index: {}]
  %s8 = inlined_call_operand.vmem [shape: bf16[2,16,16], index: 8, kind: output, shape index: {}]
  %s9 = sld [smem:[#allocation0]]
  $region73: #{nammsr_block_forward.13} parent=0
    _
  %s11 = ssub.s32 1, %s9
  %s12 = scalar_select 0, %s11, %s9
  loop: start=0, step=1, limit=4
  $region2: #{nammsr_block_forward.13} parent=0 // loop_pre_header
    _
  $region3: #{nammsr_block_forward.13} parent=0 // loop_header
    %s14 = sphi 0, %s18
    %p15 = scmp.ge.s32.totalorder %s14, 4
    %s21 = sphi 0, %s40
    %s22 = sphi 0, %s36
    %s23 = sphi 0, %s32
    %s24 = sphi 0, %s21
    %s25 = sphi 0, %s22
    %s26 = sphi 0, %s23
    %s27 = sphi 0, %s24
    %s28 = sphi 0, %s25
    %s29 = sphi 0, %s26
    %s45 = sphi 0, %s47
    %s48 = sphi 0, %s45
    %s49 = sphi 0, %s48
    %s65 = sphi 0, %s49
    %s71 = sphi 0, %s73
    %s74 = sphi 0, %s71
    %s75 = sphi 0, %s74
    %s91 = sphi 0, %s75
    %s97 = sphi 0, %s99
    %s100 = sphi 0, %s97
    %s101 = sphi 0, %s100
    %s117 = sphi 0, %s101
    %s123 = sphi 0, %s125
    %s126 = sphi 0, %s123
    %s127 = sphi 0, %s126
    %s143 = sphi 0, %s127
    %s149 = sphi 0, %s151
    %s152 = sphi 0, %s149
    %s153 = sphi 0, %s152
    %s169 = sphi 0, %s153
    %s175 = sphi 0, %s177
    %s178 = sphi 0, %s175
    %s179 = sphi 0, %s178
    %s195 = sphi 0, %s179
    %s201 = sphi 0, %s203
    %s204 = sphi 0, %s201
    %s205 = sphi 0, %s204
    %s221 = sphi 0, %s205
    %s225 = sphi 0, %s225
    %s227 = sphi 0, %s225
    %s228 = sphi 0, %s227
    %s242 = sphi 0, %s228
    %s250 = sphi 0, %s252
    %s253 = sphi 0, %s250
    %s254 = sphi 0, %s253
    %s270 = sphi 0, %s254
  $region4: #{nammsr_block_forward.13} parent=0 // loop_header_branch
    %17 = sbr.rel (%p15) target = $region8
  $region5: #{nammsr_block_forward.13} parent=0 // loop_body
    %s19 = ssub.s32 %s14, 1
    %s20 = ssub.s32 %s14, 2
    %s30 = sadd.s32 1, %s23
    %p31 = scmp.ge.s32.totalorder %s30, 1
    %s32 = scalar_select %p31, 0, %s30
    %s33 = sadd.s32 1, %s22
    %s34 = scalar_select %p31, %s33, %s22
    %p35 = scmp.ge.s32.totalorder %s34, 1
    %s36 = scalar_select %p35, 0, %s34
    %s37 = sadd.s32 1, %s21
    %s38 = scalar_select %p35, %s37, %s21
    %p39 = scmp.ge.s32.totalorder %s38, 2
    %s40 = scalar_select %p39, 0, %s38
    %s41 = ssub.s32 %s21, %s40
    %s42 = ssub.s32 %s22, %s36
    %s43 = sor.u32 %s41, %s42
    %p44 = scmp.eq.s32.totalorder %s43, 0
    %s46 = sadd.s32 %s45, 1
    %s47 = scalar_select %p44, %s45, %s46
    %p50 = pneg %p44
    %p51 = scmp.eq.s32.totalorder %s14, 1
    %p52 = por %p50, %p51
    %p53 = scmp.ne.s32.totalorder %s45, %s48
    %p54 = scmp.eq.s32.totalorder %s14, 0
    %p55 = por %p53, %p54
    %p56 = scmp.ne.s32.totalorder %s45, %s48
    %p57 = scmp.eq.s32.totalorder %s19, 1
    %p58 = por %p56, %p57
    %p59 = scmp.ne.s32.totalorder %s48, %s49
    %p60 = scmp.eq.s32.totalorder %s19, 0
    %p61 = por %p59, %p60
    %p62 = scmp.ne.s32.totalorder %s48, %s49
    %p63 = scmp.eq.s32.totalorder %s20, 1
    %p64 = por %p62, %p63
    %p66 = scmp.ne.s32.totalorder %s49, %s65
    %p67 = scmp.eq.s32.totalorder %s20, 0
    %p68 = por %p66, %p67
    %s69 = ssub.s32 %s21, %s40
    %p70 = scmp.eq.s32.totalorder %s69, 0
    %s72 = sadd.s32 %s71, 1
    %s73 = scalar_select %p70, %s71, %s72
    %p76 = pneg %p70
    %p77 = scmp.eq.s32.totalorder %s14, 1
    %p78 = por %p76, %p77
    %p79 = scmp.ne.s32.totalorder %s71, %s74
    %p80 = scmp.eq.s32.totalorder %s14, 0
    %p81 = por %p79, %p80
    %p82 = scmp.ne.s32.totalorder %s71, %s74
    %p83 = scmp.eq.s32.totalorder %s19, 1
    %p84 = por %p82, %p83
    %p85 = scmp.ne.s32.totalorder %s74, %s75
    %p86 = scmp.eq.s32.totalorder %s19, 0
    %p87 = por %p85, %p86
    %p88 = scmp.ne.s32.totalorder %s74, %s75
    %p89 = scmp.eq.s32.totalorder %s20, 1
    %p90 = por %p88, %p89
    %p92 = scmp.ne.s32.totalorder %s75, %s91
    %p93 = scmp.eq.s32.totalorder %s20, 0
    %p94 = por %p92, %p93
    %s95 = ssub.s32 %s21, %s40
    %p96 = scmp.eq.s32.totalorder %s95, 0
    %s98 = sadd.s32 %s97, 1
    %s99 = scalar_select %p96, %s97, %s98
    %p102 = pneg %p96
    %p103 = scmp.eq.s32.totalorder %s14, 1
    %p104 = por %p102, %p103
    %p105 = scmp.ne.s32.totalorder %s97, %s100
    %p106 = scmp.eq.s32.totalorder %s14, 0
    %p107 = por %p105, %p106
    %p108 = scmp.ne.s32.totalorder %s97, %s100
    %p109 = scmp.eq.s32.totalorder %s19, 1
    %p110 = por %p108, %p109
    %p111 = scmp.ne.s32.totalorder %s100, %s101
    %p112 = scmp.eq.s32.totalorder %s19, 0
    %p113 = por %p111, %p112
    %p114 = scmp.ne.s32.totalorder %s100, %s101
    %p115 = scmp.eq.s32.totalorder %s20, 1
    %p116 = por %p114, %p115
    %p118 = scmp.ne.s32.totalorder %s101, %s117
    %p119 = scmp.eq.s32.totalorder %s20, 0
    %p120 = por %p118, %p119
    %s121 = ssub.s32 %s21, %s40
    %p122 = scmp.eq.s32.totalorder %s121, 0
    %s124 = sadd.s32 %s123, 1
    %s125 = scalar_select %p122, %s123, %s124
    %p128 = pneg %p122
    %p129 = scmp.eq.s32.totalorder %s14, 1
    %p130 = por %p128, %p129
    %p131 = scmp.ne.s32.totalorder %s123, %s126
    %p132 = scmp.eq.s32.totalorder %s14, 0
    %p133 = por %p131, %p132
    %p134 = scmp.ne.s32.totalorder %s123, %s126
    %p135 = scmp.eq.s32.totalorder %s19, 1
    %p136 = por %p134, %p135
    %p137 = scmp.ne.s32.totalorder %s126, %s127
    %p138 = scmp.eq.s32.totalorder %s19, 0
    %p139 = por %p137, %p138
    %p140 = scmp.ne.s32.totalorder %s126, %s127
    %p141 = scmp.eq.s32.totalorder %s20, 1
    %p142 = por %p140, %p141
    %p144 = scmp.ne.s32.totalorder %s127, %s143
    %p145 = scmp.eq.s32.totalorder %s20, 0
    %p146 = por %p144, %p145
    %s147 = ssub.s32 %s23, %s32
    %p148 = scmp.eq.s32.totalorder %s147, 0
    %s150 = sadd.s32 %s149, 1
    %s151 = scalar_select %p148, %s149, %s150
    %p154 = pneg %p148
    %p155 = scmp.eq.s32.totalorder %s14, 1
    %p156 = por %p154, %p155
    %p157 = scmp.ne.s32.totalorder %s149, %s152
    %p158 = scmp.eq.s32.totalorder %s14, 0
    %p159 = por %p157, %p158
    %p160 = scmp.ne.s32.totalorder %s149, %s152
    %p161 = scmp.eq.s32.totalorder %s19, 1
    %p162 = por %p160, %p161
    %p163 = scmp.ne.s32.totalorder %s152, %s153
    %p164 = scmp.eq.s32.totalorder %s19, 0
    %p165 = por %p163, %p164
    %p166 = scmp.ne.s32.totalorder %s152, %s153
    %p167 = scmp.eq.s32.totalorder %s20, 1
    %p168 = por %p166, %p167
    %p170 = scmp.ne.s32.totalorder %s153, %s169
    %p171 = scmp.eq.s32.totalorder %s20, 0
    %p172 = por %p170, %p171
    %s173 = ssub.s32 %s23, %s32
    %p174 = scmp.eq.s32.totalorder %s173, 0
    %s176 = sadd.s32 %s175, 1
    %s177 = scalar_select %p174, %s175, %s176
    %p180 = pneg %p174
    %p181 = scmp.eq.s32.totalorder %s14, 1
    %p182 = por %p180, %p181
    %p183 = scmp.ne.s32.totalorder %s175, %s178
    %p184 = scmp.eq.s32.totalorder %s14, 0
    %p185 = por %p183, %p184
    %p186 = scmp.ne.s32.totalorder %s175, %s178
    %p187 = scmp.eq.s32.totalorder %s19, 1
    %p188 = por %p186, %p187
    %p189 = scmp.ne.s32.totalorder %s178, %s179
    %p190 = scmp.eq.s32.totalorder %s19, 0
    %p191 = por %p189, %p190
    %p192 = scmp.ne.s32.totalorder %s178, %s179
    %p193 = scmp.eq.s32.totalorder %s20, 1
    %p194 = por %p192, %p193
    %p196 = scmp.ne.s32.totalorder %s179, %s195
    %p197 = scmp.eq.s32.totalorder %s20, 0
    %p198 = por %p196, %p197
    %s199 = ssub.s32 %s23, %s32
    %p200 = scmp.eq.s32.totalorder %s199, 0
    %s202 = sadd.s32 %s201, 1
    %s203 = scalar_select %p200, %s201, %s202
    %p206 = pneg %p200
    %p207 = scmp.eq.s32.totalorder %s14, 1
    %p208 = por %p206, %p207
    %p209 = scmp.ne.s32.totalorder %s201, %s204
    %p210 = scmp.eq.s32.totalorder %s14, 0
    %p211 = por %p209, %p210
    %p212 = scmp.ne.s32.totalorder %s201, %s204
    %p213 = scmp.eq.s32.totalorder %s19, 1
    %p214 = por %p212, %p213
    %p215 = scmp.ne.s32.totalorder %s204, %s205
    %p216 = scmp.eq.s32.totalorder %s19, 0
    %p217 = por %p215, %p216
    %p218 = scmp.ne.s32.totalorder %s204, %s205
    %p219 = scmp.eq.s32.totalorder %s20, 1
    %p220 = por %p218, %p219
    %p222 = scmp.ne.s32.totalorder %s205, %s221
    %p223 = scmp.eq.s32.totalorder %s20, 0
    %p224 = por %p222, %p223
    %s226 = sadd.s32 %s225, 1
    %p229 = scmp.eq.s32.totalorder %s14, 1
    %p230 = scmp.ne.s32.totalorder %s225, %s227
    %p231 = scmp.eq.s32.totalorder %s14, 0
    %p232 = por %p230, %p231
    %p233 = scmp.ne.s32.totalorder %s225, %s227
    %p234 = scmp.eq.s32.totalorder %s19, 1
    %p235 = por %p233, %p234
    %p236 = scmp.ne.s32.totalorder %s227, %s228
    %p237 = scmp.eq.s32.totalorder %s19, 0
    %p238 = por %p236, %p237
    %p239 = scmp.ne.s32.totalorder %s227, %s228
    %p240 = scmp.eq.s32.totalorder %s20, 1
    %p241 = por %p239, %p240
    %p243 = scmp.ne.s32.totalorder %s228, %s242
    %p244 = scmp.eq.s32.totalorder %s20, 0
    %p245 = por %p243, %p244
    %s246 = ssub.s32 %s21, %s40
    %s247 = ssub.s32 %s22, %s36
    %s248 = sor.u32 %s246, %s247
    %p249 = scmp.eq.s32.totalorder %s248, 0
    %s251 = sadd.s32 %s250, 1
    %s252 = scalar_select %p249, %s250, %s251
    %p255 = pneg %p249
    %p256 = scmp.eq.s32.totalorder %s14, 1
    %p257 = por %p255, %p256
    %p258 = scmp.ne.s32.totalorder %s250, %s253
    %p259 = scmp.eq.s32.totalorder %s14, 0
    %p260 = por %p258, %p259
    %p261 = scmp.ne.s32.totalorder %s250, %s253
    %p262 = scmp.eq.s32.totalorder %s19, 1
    %p263 = por %p261, %p262
    %p264 = scmp.ne.s32.totalorder %s253, %s254
    %p265 = scmp.eq.s32.totalorder %s19, 0
    %p266 = por %p264, %p265
    %p267 = scmp.ne.s32.totalorder %s253, %s254
    %p268 = scmp.eq.s32.totalorder %s20, 1
    %p269 = por %p267, %p268
    %p271 = scmp.ne.s32.totalorder %s254, %s270
    %p272 = scmp.eq.s32.totalorder %s20, 0
    %p273 = por %p271, %p272
    %p274 = scmp.le.s32.totalorder 1, %s14
    %p275 = scmp.lt.s32.totalorder %s14, 3
    %p276 = pnand %p274, %p275
    %p277 = pneg %p276
    // Predicated region
    $region9: #{nammsr_block_forward.13} parent=5 // pred_check
      _
    $region10: #{nammsr_block_forward.13} parent=5 // pred_check_branch
      %279 = sbr.rel (%p276) target = $region12
    $region11: #{nammsr_block_forward.13} parent=5 // pred_region
      %s280 = ssub.s32 %s14, 1
      // Predicated region
      $region13: #{nammsr_block_forward.13} parent=11 // pred_check
        %p281 = pneg %p165
      $region14: #{nammsr_block_forward.13} parent=11 // pred_check_branch
        %283 = sbr.rel (%p281) target = $region16
      $region15: #{nammsr_block_forward.13} parent=11 // pred_region
        %p284 = scmp.lt.s32.totalorder %s26, 0
        %s285 = scalar_select %p284, %s26, 0
        %s286 = smul.addr %s285, 4
        %s287 = scalar_lea.vmem %s4, %s286
      $region16: #{nammsr_block_forward.13} parent=11 // pred_fallthru
        _
      // Predicated region
      $region17: #{nammsr_block_forward.13} parent=11 // pred_check
        %p288 = pneg %p191
      $region18: #{nammsr_block_forward.13} parent=11 // pred_check_branch
        %290 = sbr.rel (%p288) target = $region20
      $region19: #{nammsr_block_forward.13} parent=11 // pred_region
        %p291 = scmp.lt.s32.totalorder %s26, 0
        %s292 = scalar_select %p291, %s26, 0
        %s293 = scalar_lea.vmem %s5, %s292
      $region20: #{nammsr_block_forward.13} parent=11 // pred_fallthru
        _
      // Predicated region
      $region21: #{nammsr_block_forward.13} parent=11 // pred_check
        %p294 = pneg %p217
      $region22: #{nammsr_block_forward.13} parent=11 // pred_check_branch
        %296 = sbr.rel (%p294) target = $region24
      $region23: #{nammsr_block_forward.13} parent=11 // pred_region
        %s297 = smul.u32 8, %s26
        %p298 = scmp.lt.s32.totalorder %s297, 7
        %s299 = scalar_select %p298, %s297, 7
        %s300 = smul.addr %s299, 4
        %s301 = scalar_lea.vmem %s6, %s300
        %s302 = smul.u32 8, %s26
      $region24: #{nammsr_block_forward.13} parent=11 // pred_fallthru
        _
      // Predicated region
      $region25: #{nammsr_block_forward.13} parent=11 // pred_check
        %p303 = pneg %p238
      $region26: #{nammsr_block_forward.13} parent=11 // pred_check_branch
        %305 = sbr.rel (%p303) target = $region28
      $region27: #{nammsr_block_forward.13} parent=11 // pred_region
        _
      $region28: #{nammsr_block_forward.13} parent=11 // pred_fallthru
        _
    $region12: #{nammsr_block_forward.13} parent=5 // pred_fallthru
      _
    %p306 = scmp.lt.s32.totalorder %s14, 2
    // Predicated region
    $region29: #{nammsr_block_forward.13} parent=5 // pred_check
      %p307 = pneg %p306
    $region30: #{nammsr_block_forward.13} parent=5 // pred_check_branch
      %309 = sbr.rel (%p307) target = $region32
    $region31: #{nammsr_block_forward.13} parent=5 // pred_region
      // Predicated region
      $region33: #{nammsr_block_forward.13} parent=31 // pred_check
        %p310 = pneg %p55
      $region34: #{nammsr_block_forward.13} parent=31 // pred_check_branch
        %312 = sbr.rel (%p310) target = $region36
      $region35: #{nammsr_block_forward.13} parent=31 // pred_region
        %s313 = smul.u32 2, %s22
        %p314 = scmp.lt.s32.totalorder %s21, 1
        %s315 = scalar_select %p314, %s21, 1
        %p316 = scmp.lt.s32.totalorder %s313, 1
        %s317 = scalar_select %p316, %s313, 1
        %s318 = smul.addr %s315, 2
        %s319 = sadd.s32 %s317, %s318
        %s320 = smul.addr %s319, 4
        %s321 = scalar_lea.vmem %s0, %s320
        %s322 = smul.u32 2, %s22
      $region36: #{nammsr_block_forward.13} parent=31 // pred_fallthru
        _
      // Predicated region
      $region37: #{nammsr_block_forward.13} parent=31 // pred_check
        %p323 = pneg %p81
      $region38: #{nammsr_block_forward.13} parent=31 // pred_check_branch
        %325 = sbr.rel (%p323) target = $region40
      $region39: #{nammsr_block_forward.13} parent=31 // pred_region
        %p326 = scmp.lt.s32.totalorder %s21, 1
        %s327 = scalar_select %p326, %s21, 1
        %s328 = scalar_lea.vmem %s1, %s327
      $region40: #{nammsr_block_forward.13} parent=31 // pred_fallthru
        _
      // Predicated region
      $region41: #{nammsr_block_forward.13} parent=31 // pred_check
        %p329 = pneg %p107
      $region42: #{nammsr_block_forward.13} parent=31 // pred_check_branch
        %331 = sbr.rel (%p329) target = $region44
      $region43: #{nammsr_block_forward.13} parent=31 // pred_region
        %p332 = scmp.lt.s32.totalorder %s21, 1
        %s333 = scalar_select %p332, %s21, 1
        %s334 = scalar_lea.vmem %s2, %s333
      $region44: #{nammsr_block_forward.13} parent=31 // pred_fallthru
        _
      // Predicated region
      $region45: #{nammsr_block_forward.13} parent=31 // pred_check
        %p335 = pneg %p133
      $region46: #{nammsr_block_forward.13} parent=31 // pred_check_branch
        %337 = sbr.rel (%p335) target = $region48
      $region47: #{nammsr_block_forward.13} parent=31 // pred_region
        %p338 = scmp.lt.s32.totalorder %s21, 1
        %s339 = scalar_select %p338, %s21, 1
        %s340 = scalar_lea.vmem %s3, %s339
      $region48: #{nammsr_block_forward.13} parent=31 // pred_fallthru
        _
    $region32: #{nammsr_block_forward.13} parent=5 // pred_fallthru
      _
    %p341 = scmp.le.s32.totalorder 1, %s14
    %p342 = scmp.lt.s32.totalorder %s14, 3
    %p343 = pnand %p341, %p342
    %p344 = pneg %p343
    // Predicated region
    $region49: #{nammsr_block_forward.13} parent=5 // pred_check
      _
    $region50: #{nammsr_block_forward.13} parent=5 // pred_check_branch
      %346 = sbr.rel (%p343) target = $region52
    $region51: #{nammsr_block_forward.13} parent=5 // pred_region
      %s347 = ssub.s32 %s14, 1
      %s348 = smul.u32 2, %s25
      %p349 = scmp.lt.s32.totalorder %s24, 1
      %s350 = scalar_select %p349, %s24, 1
      %p351 = scmp.lt.s32.totalorder %s348, 1
      %s352 = scalar_select %p351, %s348, 1
      %s353 = smul.addr %s350, 2
      %s354 = sadd.s32 %s352, %s353
      %s355 = smul.addr %s354, 4
      %s356 = scalar_lea.vmem %s0, %s355
      %p357 = pneg %p61
      %p358 = pneg %p58
      %p359 = scmp.lt.s32.totalorder %s24, 1
      %s360 = scalar_select %p359, %s24, 1
      %s361 = scalar_lea.vmem %s1, %s360
      %p362 = pneg %p87
      %p363 = pneg %p84
      %p364 = scmp.lt.s32.totalorder %s24, 1
      %s365 = scalar_select %p364, %s24, 1
      %s366 = scalar_lea.vmem %s2, %s365
      %p367 = pneg %p113
      %p368 = pneg %p110
      %p369 = scmp.lt.s32.totalorder %s24, 1
      %s370 = scalar_select %p369, %s24, 1
      %s371 = scalar_lea.vmem %s3, %s370
      %p372 = pneg %p139
      %p373 = pneg %p136
      %p374 = scmp.lt.s32.totalorder %s26, 0
      %s375 = scalar_select %p374, %s26, 0
      %s376 = smul.addr %s375, 4
      %s377 = scalar_lea.vmem %s4, %s376
      %p378 = pneg %p165
      %p379 = pneg %p162
      %p380 = scmp.lt.s32.totalorder %s26, 0
      %s381 = scalar_select %p380, %s26, 0
      %s382 = scalar_lea.vmem %s5, %s381
      %p383 = pneg %p191
      %p384 = pneg %p188
      %s385 = smul.u32 8, %s26
      %p386 = scmp.lt.s32.totalorder %s385, 7
      %s387 = scalar_select %p386, %s385, 7
      %s388 = smul.addr %s387, 4
      %s389 = scalar_lea.vmem %s6, %s388
      %p390 = pneg %p217
      %p391 = pneg %p214
      %p392 = pneg %p238
      %p393 = pneg %p235
      %p394 = pneg %p266
      %p395 = pneg %p263
      %s396 = smul.u32 2, %s25
      %p397 = scmp.lt.s32.totalorder %s24, 1
      %s398 = scalar_select %p397, %s24, 1
      %p399 = scmp.lt.s32.totalorder %s396, 1
      %s400 = scalar_select %p399, %s396, 1
      %s401 = smul.addr %s398, 2
      %s402 = sadd.s32 %s400, %s401
      %s403 = smul.addr %s402, 4
      %s404 = scalar_lea.vmem %s8, %s403
      %s405 = smul.u32 2, %s25
      %p406 = scmp.lt.s32.totalorder %s24, 1
      %s407 = scalar_select %p406, %s24, 1
      %p408 = scmp.lt.s32.totalorder %s405, 1
      %s409 = scalar_select %p408, %s405, 1
      %s410 = smul.addr %s407, 2
      %s411 = sadd.s32 %s409, %s410
      %s412 = smul.addr %s411, 4
      %s413 = scalar_lea.vmem %s0, %s412
      %s414 = smul.u32 2, %s25
      %p415 = scmp.lt.s32.totalorder %s24, 1
      %s416 = scalar_select %p415, %s24, 1
      %s417 = scalar_lea.vmem %s1, %s416
      %p418 = scmp.lt.s32.totalorder %s24, 1
      %s419 = scalar_select %p418, %s24, 1
      %s420 = scalar_lea.vmem %s2, %s419
      %p421 = scmp.lt.s32.totalorder %s24, 1
      %s422 = scalar_select %p421, %s24, 1
      %s423 = scalar_lea.vmem %s3, %s422
      %p424 = scmp.lt.s32.totalorder %s26, 0
      %s425 = scalar_select %p424, %s26, 0
      %s426 = smul.addr %s425, 4
      %s427 = scalar_lea.vmem %s4, %s426
      %p428 = scmp.lt.s32.totalorder %s26, 0
      %s429 = scalar_select %p428, %s26, 0
      %s430 = scalar_lea.vmem %s5, %s429
      %s431 = smul.u32 8, %s26
      %p432 = scmp.lt.s32.totalorder %s431, 7
      %s433 = scalar_select %p432, %s431, 7
      %s434 = smul.addr %s433, 4
      %s435 = scalar_lea.vmem %s6, %s434
      %s436 = smul.u32 8, %s26
      %s437 = smul.u32 2, %s25
      %p438 = scmp.lt.s32.totalorder %s24, 1
      %s439 = scalar_select %p438, %s24, 1
      %p440 = scmp.lt.s32.totalorder %s437, 1
      %s441 = scalar_select %p440, %s437, 1
      %s442 = smul.addr %s439, 2
      %s443 = sadd.s32 %s441, %s442
      %s444 = smul.addr %s443, 4
      %s445 = scalar_lea.vmem %s8, %s444
      %s446 = smul.u32 2, %s25
      %p448 = scmp.eq.s32.totalorder %s26, 0
      // Predicated region
      $region53: #{nammsr_block_forward.13} parent=51 // pred_check
        %p449 = pneg %p448
      $region54: #{nammsr_block_forward.13} parent=51 // pred_check_branch
        %451 = sbr.rel (%p449) target = $region56
      $region55: #{nammsr_block_forward.13} parent=51 // pred_region
        %v452 = vld [vmem:[%s413] sm:$0xf]
        %v453 = vld [vmem:[%s413 + $0x4] sm:$0xf]
        %v454 = vunpack.c.l.bf16 %v452
        %v455 = vunpack.c.l.bf16 %v453
        %vm456 = vcmask 130048
        %v457 = vsel %vm456, %v454, 0.0
        %458 = vadd.xlane.f32.xlu0 %v457
        %v459 = vpop.xlane.xlu0 %458
        %v460 = vsel %vm456, %v455, 0.0
        %461 = vadd.xlane.f32.xlu0 %v460
        %v462 = vpop.xlane.xlu0 %461
        %v463 = vrcp.pop 16.0
        %v464 = vmul.f32 %v459, %v463
        %v465 = vmul.f32 %v462, %v463
        %v466 = vsub.f32 %v454, %v464
        %v467 = vsub.f32 %v455, %v465
        %v468 = vmul.f32 %v466, %v466
        %v469 = vmul.f32 %v467, %v467
        %v470 = vsel %vm456, %v468, 0.0
        %471 = vadd.xlane.f32.xlu0 %v470
        %v472 = vpop.xlane.xlu0 %471
        %v473 = vsel %vm456, %v469, 0.0
        %474 = vadd.xlane.f32.xlu0 %v473
        %v475 = vpop.xlane.xlu0 %474
        %v476 = vmul.f32 %v472, %v463
        %v477 = vmul.f32 %v475, %v463
        %v478 = vadd.f32 %v476, 1e-06
        %v479 = vadd.f32 %v477, 1e-06
        %v480 = vrsqrt.pop %v478
        %v481 = vrsqrt.pop %v479
        %v482 = vmul.f32 %v466, %v480
        %v483 = vmul.f32 %v467, %v481
        %v484 = vld [vmem:[%s420] sm:$0x1]
        %v485 = vadd.f32 %v484, 1.0
        %v487 = vlaneseq
        %v488 = vshrl.u32 %v487, 7
        %v489 = vsub.s32 0, %v488
        %v490 = vrot.slane %v485, %v489
        %v492 = vmul.f32 %v482, %v490
        %v493 = vmul.f32 %v483, %v490
        %v494 = vld [vmem:[%s417] sm:$0x1]
        %v496 = vlaneseq
        %v497 = vshrl.u32 %v496, 7
        %v498 = vsub.s32 0, %v497
        %v499 = vrot.slane %v494, %v498
        %v501 = vadd.f32 %v492, %v499
        %v502 = vadd.f32 %v493, %v499
        %v503 = vpack.c.bf16 %v502, %v501
        %v505 = vunpack.c.l.b16 %v503
        %v506 = vunpack.c.h.b16 %v503
        %v507 = vpack.c.b16 %v505, %v505
        %v508 = vpack.c.b16 %v506, %v506
        %vm511 = vcmask 125952
        %512 = vst.msk [vmem:[#allocation2] sm:$0xf] %vm511, %v507
        %513 = vst.msk [vmem:[#allocation2 + $0x4] sm:$0xf] %vm511, %v508
        %514 = vst.msk [vmem:[#allocation3] sm:$0xff] %vm456, 0.0
        %515 = vst.msk [vmem:[#allocation3 + $0x8] sm:$0xff] %vm456, 0.0
      $region56: #{nammsr_block_forward.13} parent=51 // pred_fallthru
        _
      %v516 = vld [vmem:[#allocation2] sm:$0xf]
      %v517 = vld [vmem:[#allocation2 + $0x4] sm:$0xf]
      %v518 = vld [vmem:[%s427] sm:$0xf]
      %v519 = vld [vmem:[%s427 + $0x4] sm:$0xf]
      %v520 = vld [vmem:[%s430] sm:$0x1]
      %v522 = vlaneseq
      %v523 = vshrl.u32 %v522, 7
      %v524 = vsub.s32 0, %v523
      %v525 = vrot.slane %v520, %v524
      %v529 = vunpack.c.l.b16 %v516
      %v530 = vunpack.c.l.b16 %v517
      %v531 = vpack.c.b16 %v530, %v529
      %v534 = vunpack.c.l.b16 %v518
      %v535 = vunpack.c.l.b16 %v519
      %v536 = vpack.c.b16 %v535, %v534
      %vm538 = vcmask 130048
      %v540 = vsel %vm538, %v531, 0
      %542 = vmatprep.subr.bf16.mxu0 0
      %543 = vmatpush1.bf16.msra.mxu0 0
      %544 = vmatprep.subr.bf16.mxu0 0
      %545 = vmatpush1.bf16.msra.mxu0 0
      %546 = vmatprep.subr.bf16.mxu0 0
      %547 = vmatpush1.bf16.msra.mxu0 0
      %548 = vmatprep.subr.bf16.mxu0 0
      %549 = vmatpush1.bf16.msra.mxu0 0
      %550 = vmatprep.subr.bf16.mxu0 0
      %551 = vmatpush1.bf16.msra.mxu0 0
      %552 = vmatprep.subr.bf16.mxu0 0
      %553 = vmatpush1.bf16.msra.mxu0 0
      %554 = vmatprep.subr.bf16.mxu0 0
      %555 = vmatpush1.bf16.msra.mxu0 0
      %556 = vmatprep.subr.bf16.mxu0 0
      %557 = vmatpush1.bf16.msra.mxu0 %v536
      %558 = vmatprep.subr.bf16.mxu0 0
      %559 = vmatpush2.bf16.msra.mxu0 0
      %560 = vmatprep.subr.bf16.mxu0 0
      %561 = vmatpush2.bf16.msra.mxu0 0
      %562 = vmatprep.subr.bf16.mxu0 0
      %563 = vmatpush2.bf16.msra.mxu0 0
      %564 = vmatprep.subr.bf16.mxu0 0
      %565 = vmatpush2.bf16.msra.mxu0 0
      %566 = vmatprep.subr.bf16.mxu0 0
      %567 = vmatpush2.bf16.msra.mxu0 0
      %568 = vmatprep.subr.bf16.mxu0 0
      %569 = vmatpush2.bf16.msra.mxu0 0
      %570 = vmatprep.subr.bf16.mxu0 0
      %571 = vmatpush2.bf16.msra.mxu0 0
      %572 = vmatprep.subr.bf16.mxu0 0
      %573 = vmatpush2.bf16.msra.mxu0 0
      %574 = vmatprep.mubr.bf16.mxu0 0
      %575 = vmatmul.mubr.bf16.gmra.mxu0 %v540
      %v576 = vpop.f32.mrf.mxu0
      %v577 = vadd.f32 %v525, %v576
      %v578 = vpop.f32.mrf.mxu0
      %v579 = vpop.f32.mrf.mxu0
      %v580 = vadd.f32 %v525, %v579
      %v581 = vpop.f32.mrf.mxu0
      %582 = vdwg.mxu0
      %v583 = vmul.f32 %v577, %v577
      %v584 = vmul.f32 %v580, %v580
      %v585 = vmul.f32 %v577, %v583
      %v586 = vmul.f32 %v580, %v584
      %v587 = vmul.f32 %v585, 0.044715
      %v588 = vmul.f32 %v586, 0.044715
      %v589 = vadd.f32 %v577, %v587
      %v590 = vadd.f32 %v580, %v588
      %v591 = vmul.f32 %v589, 0.7978846
      %v592 = vmul.f32 %v590, 0.7978846
      %v593 = vtanh.pop %v591
      %v594 = vtanh.pop %v592
      %v595 = vadd.f32 %v593, 1.0
      %v596 = vadd.f32 %v594, 1.0
      %v597 = vmul.f32 %v595, 0.5
      %v598 = vmul.f32 %v596, 0.5
      %v599 = vmul.f32 %v577, %v597
      %v600 = vmul.f32 %v580, %v598
      %v601 = vld [vmem:[#allocation3] sm:$0xff]
      %v602 = vld [vmem:[#allocation3 + $0x8] sm:$0xff]
      %v603 = vpack.c.bf16 %v600, %v599
      %v604 = vld [vmem:[%s435] sm:$0xf]
      %v605 = vld [vmem:[%s435 + $0x4] sm:$0xf]
      %v606 = vld [vmem:[%s435 + $0x8] sm:$0xf]
      %v607 = vld [vmem:[%s435 + $0xc] sm:$0xf]
      %v608 = vld [vmem:[%s435 + $0x10] sm:$0xf]
      %v609 = vld [vmem:[%s435 + $0x14] sm:$0xf]
      %v610 = vld [vmem:[%s435 + $0x18] sm:$0xf]
      %v611 = vld [vmem:[%s435 + $0x1c] sm:$0xf]
      %v620 = vunpack.c.l.b16 %v604
      %v621 = vunpack.c.l.b16 %v605
      %v622 = vunpack.c.l.b16 %v606
      %v623 = vunpack.c.l.b16 %v607
      %v624 = vunpack.c.l.b16 %v608
      %v625 = vunpack.c.l.b16 %v609
      %v626 = vunpack.c.l.b16 %v610
      %v627 = vunpack.c.l.b16 %v611
      %v628 = vpack.c.b16 %v621, %v620
      %v629 = vpack.c.b16 %v623, %v622
      %v630 = vpack.c.b16 %v625, %v624
      %v631 = vpack.c.b16 %v627, %v626
      %vm636 = vcmask 523264
      %v638 = vsel %vm636, %v603, 0
      %640 = vmatprep.subr.bf16.mxu0 0
      %641 = vmatpush1.bf16.msra.mxu0 0
      %642 = vmatprep.subr.bf16.mxu0 0
      %643 = vmatpush1.bf16.msra.mxu0 0
      %644 = vmatprep.subr.bf16.mxu0 0
      %645 = vmatpush1.bf16.msra.mxu0 0
      %646 = vmatprep.subr.bf16.mxu0 0
      %647 = vmatpush1.bf16.msra.mxu0 0
      %648 = vmatprep.subr.bf16.mxu0 0
      %649 = vmatpush1.bf16.msra.mxu0 %v631
      %650 = vmatprep.subr.bf16.mxu0 0
      %651 = vmatpush1.bf16.msra.mxu0 %v630
      %652 = vmatprep.subr.bf16.mxu0 0
      %653 = vmatpush1.bf16.msra.mxu0 %v629
      %654 = vmatprep.subr.bf16.mxu0 0
      %655 = vmatpush1.bf16.msra.mxu0 %v628
      %656 = vmatprep.subr.bf16.mxu0 0
      %657 = vmatpush2.bf16.msra.mxu0 0
      %658 = vmatprep.subr.bf16.mxu0 0
      %659 = vmatpush2.bf16.msra.mxu0 0
      %660 = vmatprep.subr.bf16.mxu0 0
      %661 = vmatpush2.bf16.msra.mxu0 0
      %662 = vmatprep.subr.bf16.mxu0 0
      %663 = vmatpush2.bf16.msra.mxu0 0
      %664 = vmatprep.subr.bf16.mxu0 0
      %665 = vmatpush2.bf16.msra.mxu0 0
      %666 = vmatprep.subr.bf16.mxu0 0
      %667 = vmatpush2.bf16.msra.mxu0 0
      %668 = vmatprep.subr.bf16.mxu0 0
      %669 = vmatpush2.bf16.msra.mxu0 0
      %670 = vmatprep.subr.bf16.mxu0 0
      %671 = vmatpush2.bf16.msra.mxu0 0
      %672 = vmatprep.mubr.bf16.mxu0 0
      %673 = vmatmul.mubr.bf16.gmra.mxu0 %v638
      %v674 = vpop.f32.mrf.mxu0
      %v675 = vadd.f32 0.0, %v674
      %v676 = vpop.f32.mrf.mxu0
      %v677 = vpop.f32.mrf.mxu0
      %v678 = vadd.f32 0.0, %v677
      %v679 = vpop.f32.mrf.mxu0
      %680 = vdwg.mxu0
      %v681 = vadd.f32 %v601, %v675
      %v682 = vadd.f32 %v602, %v678
      %683 = vst.msk [vmem:[#allocation3] sm:$0xff] %vm538, %v681
      %684 = vst.msk [vmem:[#allocation3 + $0x8] sm:$0xff] %vm538, %v682
      // Predicated region
      $region57: #{nammsr_block_forward.13} parent=51 // pred_check
        %p685 = pneg %p448
      $region58: #{nammsr_block_forward.13} parent=51 // pred_check_branch
        %687 = sbr.rel (%p685) target = $region60
      $region59: #{nammsr_block_forward.13} parent=51 // pred_region
        %v688 = vld [vmem:[#allocation3] sm:$0xff]
        %v689 = vld [vmem:[#allocation3 + $0x8] sm:$0xff]
        %v690 = vld [vmem:[%s7] sm:$0x1]
        %v692 = vlaneseq
        %v693 = vshrl.u32 %v692, 7
        %v694 = vsub.s32 0, %v693
        %v695 = vrot.slane %v690, %v694
        %v697 = vadd.f32 %v688, %v695
        %v698 = vadd.f32 %v689, %v695
        %v699 = vld [vmem:[%s423] sm:$0x1]
        %v701 = vlaneseq
        %v702 = vshrl.u32 %v701, 7
        %v703 = vsub.s32 0, %v702
        %v704 = vrot.slane %v699, %v703
        %v706 = vmul.f32 %v697, %v704
        %v707 = vmul.f32 %v698, %v704
        %v708 = vld [vmem:[%s413] sm:$0xf]
        %v709 = vld [vmem:[%s413 + $0x4] sm:$0xf]
        %v710 = vunpack.c.l.bf16 %v708
        %v711 = vunpack.c.l.bf16 %v709
        %v712 = vadd.f32 %v706, %v710
        %v713 = vadd.f32 %v707, %v711
        %v714 = vpack.c.bf16 %v713, %v712
        %v716 = vunpack.c.l.b16 %v714
        %v717 = vunpack.c.h.b16 %v714
        %v718 = vpack.c.b16 %v716, %v716
        %v719 = vpack.c.b16 %v717, %v717
        %vm722 = vcmask 125952
        %723 = vst.msk [vmem:[%s445] sm:$0xf] %vm722, %v718
        %724 = vst.msk [vmem:[%s445 + $0x4] sm:$0xf] %vm722, %v719
      $region60: #{nammsr_block_forward.13} parent=51 // pred_fallthru
        _
      %s725 = smul.u32 2, %s25
      %p726 = scmp.lt.s32.totalorder %s24, 1
      %s727 = scalar_select %p726, %s24, 1
      %p728 = scmp.lt.s32.totalorder %s725, 1
      %s729 = scalar_select %p728, %s725, 1
      %s730 = smul.addr %s727, 2
      %s731 = sadd.s32 %s729, %s730
      %s732 = smul.addr %s731, 4
      %s733 = scalar_lea.vmem %s8, %s732
      // Predicated region
      $region61: #{nammsr_block_forward.13} parent=51 // pred_check
        %p734 = pneg %p263
      $region62: #{nammsr_block_forward.13} parent=51 // pred_check_branch
        %736 = sbr.rel (%p734) target = $region64
      $region63: #{nammsr_block_forward.13} parent=51 // pred_region
        %s737 = smul.u32 2, %s25
      $region64: #{nammsr_block_forward.13} parent=51 // pred_fallthru
        _
    $region52: #{nammsr_block_forward.13} parent=5 // pred_fallthru
      _
    %p738 = scmp.le.s32.totalorder 2, %s14
    // Predicated region
    $region65: #{nammsr_block_forward.13} parent=5 // pred_check
      %p739 = pneg %p738
    $region66: #{nammsr_block_forward.13} parent=5 // pred_check_branch
      %741 = sbr.rel (%p739) target = $region68
    $region67: #{nammsr_block_forward.13} parent=5 // pred_region
      %s742 = ssub.s32 %s14, 2
      // Predicated region
      $region69: #{nammsr_block_forward.13} parent=67 // pred_check
        %p743 = pneg %p269
      $region70: #{nammsr_block_forward.13} parent=67 // pred_check_branch
        %745 = sbr.rel (%p743) target = $region72
      $region71: #{nammsr_block_forward.13} parent=67 // pred_region
        %s746 = smul.u32 2, %s28
        %p747 = scmp.lt.s32.totalorder %s27, 1
        %s748 = scalar_select %p747, %s27, 1
        %p749 = scmp.lt.s32.totalorder %s746, 1
        %s750 = scalar_select %p749, %s746, 1
        %s751 = smul.addr %s748, 2
        %s752 = sadd.s32 %s750, %s751
        %s753 = smul.addr %s752, 4
        %s754 = scalar_lea.vmem %s8, %s753
      $region72: #{nammsr_block_forward.13} parent=67 // pred_fallthru
        _
    $region68: #{nammsr_block_forward.13} parent=5 // pred_fallthru
      _
  $region6: #{nammsr_block_forward.13} parent=0 // loop_footer
    %s18 = sadd.s32 1, %s14
  $region7: #{nammsr_block_forward.13} parent=0 // loop_footer_branch
    %13 = sbr.rel target = $region3
  $region8: #{nammsr_block_forward.13} parent=0 // loop_exit
    _

</llo_original>
